<compile_context>
chip_gen: v7x
topology: tpu7x:2x2x1
jax: 0.10.0
libtpu: 0.0.40
codegen_flags: <defaults>
</compile_context>

<pallas_src>
import jax
import jax.numpy as jnp
from jax import lax
from jax.experimental import pallas as pl
from jax.experimental.pallas import tpu as pltpu


# ----------------------------------------------------------------------------
# Wrapper-side glue: even/odd parity-plane split (done once per tensor).
# ----------------------------------------------------------------------------
def _parity_planes_flat(x):
    """x: (N, H, W, C) -> 4 arrays (N, Hc*Wc, C), planes (p, q) in row-major order.

    Plane (p, q) holds x[:, p::2, q::2, :], zero-padded to the common shape
    (Hc, Wc) = (ceil(H/2)+1, ceil(W/2)+1); the +1 row/col keeps every in-kernel
    tap slice in bounds.  Flattened over the spatial dims so the kernels only
    ever take contiguous slices.
    """
    N, H, W, C = x.shape
    Hc = (H + 1) // 2 + 1
    Wc = (W + 1) // 2 + 1
    planes = []
    for p in (0, 1):
        for q in (0, 1):
            xp = x[:, p::2, q::2, :]
            xp = jnp.pad(xp, ((0, 0), (0, Hc - xp.shape[1]),
                              (0, Wc - xp.shape[2]), (0, 0)))
            planes.append(xp.reshape(N, Hc * Wc, C))
    return planes, Hc, Wc


# ----------------------------------------------------------------------------
# Front kernel: maxpool3x3s2 + conv3x3s2 (branch2) + conv1x1 + conv3x3s1p1.
# ----------------------------------------------------------------------------
def _make_front_kernel(H, W, Wc, Ho2, n_ch, l_ch):
    Wp = W + 2          # padded width for the stride-1, pad-1 conv
    M2 = Ho2 * Wc       # over-wide row count of the stride-2 outputs
    M1 = H * Wp         # over-wide row count of the stride-1 conv output

    def kernel(x_ref, p00, p01, p10, p11,
               w2_ref, b2_ref, w31_ref, b31_ref, w32_ref, b32_ref,
               out1_ref, out2_ref, t2_ref, xpad_ref):
        planes = ((p00, p01), (p10, p11))

        # -- branch1 (maxpool 3x3 s2) + branch2 (conv 3x3 s2), per-tap over the
        #    parity planes; each tap is one contiguous slice + one MXU dot.
        mp = None
        acc2 = jnp.zeros((M2, n_ch), jnp.float32)
        for kh in range(3):
            for kw in range(3):
                pref = planes[kh % 2][kw % 2]
                off = (kh // 2) * Wc + (kw // 2)
                v = pref[0, pl.ds(off, M2), :]                    # (M2, Cin)
                mp = v if mp is None else jnp.maximum(mp, v)
                acc2 = acc2 + jnp.dot(v, w2_ref[kh * 3 + kw],
                                      preferred_element_type=jnp.float32)
        out1_ref[0] = mp
        out2_ref[0] = acc2 + b2_ref[...]

        # -- branch3[0]: 1x1 conv == single (H*W, Cin) x (Cin, k) MXU dot.
        t1 = jnp.dot(x_ref[0], w31_ref[...],
                     preferred_element_type=jnp.float32) + b31_ref[...]

        # -- branch3[1]: 3x3 s1 p1 conv; halo handled in-kernel by writing t1
        #    into a zeroed VMEM scratch laid out as the flattened padded image.
        xpad_ref[...] = jnp.zeros(xpad_ref.shape, xpad_ref.dtype)
        for r in range(H):
            xpad_ref[pl.ds((r + 1) * Wp + 1, W), :] = t1[r * W:(r + 1) * W, :]
        acc3 = jnp.zeros((M1, l_ch), jnp.float32)
        for kh in range(3):
            for kw in range(3):
                v = xpad_ref[pl.ds(kh * Wp + kw, M1), :]          # (M1, k)
                acc3 = acc3 + jnp.dot(v, w32_ref[kh * 3 + kw],
                                      preferred_element_type=jnp.float32)
        t2_ref[0] = acc3 + b32_ref[...]

    return kernel


# ----------------------------------------------------------------------------
# Tail kernel: conv 3x3 s2 (branch3 tail) fused with the channel concat.
# ----------------------------------------------------------------------------
def _make_tail_kernel(Wc, Ho2, c1, c2, c3):
    M2 = Ho2 * Wc

    def kernel(q00, q01, q10, q11, w33_ref, b33_ref, o1_ref, o2_ref, y_ref):
        planes = ((q00, q01), (q10, q11))
        acc = jnp.zeros((M2, c3), jnp.float32)
        for kh in range(3):
            for kw in range(3):
                pref = planes[kh % 2][kw % 2]
                off = (kh // 2) * Wc + (kw // 2)
                acc = acc + jnp.dot(pref[0, pl.ds(off, M2), :],
                                    w33_ref[kh * 3 + kw],
                                    preferred_element_type=jnp.float32)
        # Fused torch.cat(..., dim=1): each branch writes its channel slice of
        # the single concatenated output buffer.
        y_ref[0, :, 0:c1] = o1_ref[0]
        y_ref[0, :, c1:c1 + c2] = o2_ref[0]
        y_ref[0, :, c1 + c2:c1 + c2 + c3] = acc + b33_ref[...]

    return kernel


# ----------------------------------------------------------------------------
# Reduction_A forward (NCHW in / NCHW out).
# ----------------------------------------------------------------------------
def reduction_a_forward(x_nchw, params):
    x = jnp.transpose(x_nchw, (0, 2, 3, 1)).astype(jnp.float32)   # NCHW -> NHWC
    N, H, W, Cin = x.shape
    Ho2, Wo2 = (H - 3) // 2 + 1, (W - 3) // 2 + 1
    Wp = W + 2

    w2, b2 = params["b2"]        # (3,3,Cin,n)  stride 2, pad 0
    w31, b31 = params["b3_1"]    # (1,1,Cin,k)  stride 1, pad 0
    w32, b32 = params["b3_2"]    # (3,3,k,l)    stride 1, pad 1
    w33, b33 = params["b3_3"]    # (3,3,l,m)    stride 2, pad 0
    n_ch, k_ch = w2.shape[-1], w31.shape[-1]
    l_ch, m_ch = w32.shape[-1], w33.shape[-1]
    c_tot = Cin + n_ch + m_ch

    # Glue: flatten + parity split (plain XLA slices/reshapes, done once).
    x_flat = x.reshape(N, H * W, Cin)
    planes_x, Hc, Wc = _parity_planes_flat(x)
    M2 = Ho2 * Wc
    M1 = H * Wp

    w2s = w2.reshape(9, Cin, n_ch)       # per-tap weights, tap = kh*3 + kw
    w31m = w31.reshape(Cin, k_ch)
    w32s = w32.reshape(9, k_ch, l_ch)
    w33s = w33.reshape(9, l_ch, m_ch)
    b2r, b31r = b2.reshape(1, n_ch), b31.reshape(1, k_ch)
    b32r, b33r = b32.reshape(1, l_ch), b33.reshape(1, m_ch)

    img = lambda i: (i, 0, 0)
    cst3 = lambda i: (0, 0, 0)
    cst2 = lambda i: (0, 0)

    out1_ow, out2_ow, t2_ow = pl.pallas_call(
        _make_front_kernel(H, W, Wc, Ho2, n_ch, l_ch),
        out_shape=(
            jax.ShapeDtypeStruct((N, M2, Cin), jnp.float32),      # maxpool
            jax.ShapeDtypeStruct((N, M2, n_ch), jnp.float32),     # branch2
            jax.ShapeDtypeStruct((N, M1, l_ch), jnp.float32),     # branch3 t2
        ),
        grid=(N,),
        in_specs=[pl.BlockSpec((1, H * W, Cin), img)]
                 + [pl.BlockSpec((1, Hc * Wc, Cin), img)] * 4
                 + [pl.BlockSpec((9, Cin, n_ch), cst3),
                    pl.BlockSpec((1, n_ch), cst2),
                    pl.BlockSpec((Cin, k_ch), cst2),
                    pl.BlockSpec((1, k_ch), cst2),
                    pl.BlockSpec((9, k_ch, l_ch), cst3),
                    pl.BlockSpec((1, l_ch), cst2)],
        out_specs=(pl.BlockSpec((1, M2, Cin), img),
                   pl.BlockSpec((1, M2, n_ch), img),
                   pl.BlockSpec((1, M1, l_ch), img)),
        scratch_shapes=[pltpu.VMEM(((H + 3) * Wp, k_ch), jnp.float32)],
        compiler_params=pltpu.CompilerParams(dimension_semantics=("parallel",)),
    )(x_flat, *planes_x, w2s, b2r, w31m, b31r, w32s, b32r)

    # Glue between kernels: crop the over-wide columns of t2, parity-split it.
    t2 = t2_ow.reshape(N, H, Wp, l_ch)[:, :, :W, :]
    planes_t2, _, _ = _parity_planes_flat(t2)

    y_ow = pl.pallas_call(
        _make_tail_kernel(Wc, Ho2, Cin, n_ch, m_ch),
        out_shape=jax.ShapeDtypeStruct((N, M2, c_tot), jnp.float32),
        grid=(N,),
        in_specs=[pl.BlockSpec((1, Hc * Wc, l_ch), img)] * 4
                 + [pl.BlockSpec((9, l_ch, m_ch), cst3),
                    pl.BlockSpec((1, m_ch), cst2),
                    pl.BlockSpec((1, M2, Cin), img),
                    pl.BlockSpec((1, M2, n_ch), img)],
        out_specs=pl.BlockSpec((1, M2, c_tot), img),
        compiler_params=pltpu.CompilerParams(dimension_semantics=("parallel",)),
    )(*planes_t2, w33s, b33r, out1_ow, out2_ow)

    y = y_ow.reshape(N, Ho2, Wc, c_tot)[:, :, :Wo2, :]    # crop garbage cols
    return jnp.transpose(y, (0, 3, 1, 2))                 # NHWC -> NCHW


# ----------------------------------------------------------------------------
# Parameter init + pure-JAX reference (correctness check only).
# ----------------------------------------------------------------------------
def _conv_init(key, kh, kw, cin, cout):
    k1, k2 = jax.random.split(key)
    w = jax.random.normal(k1, (kh, kw, cin, cout), jnp.float32) / jnp.sqrt(kh * kw * cin)
    b = jax.random.normal(k2, (cout,), jnp.float32) * 0.1
    return w, b


def init_reduction_a_params(key, in_channels, k, l, m, n):
    keys = jax.random.split(key, 4)
    return {
        "b2":   _conv_init(keys[0], 3, 3, in_channels, n),   # 3x3 s2 p0
        "b3_1": _conv_init(keys[1], 1, 1, in_channels, k),   # 1x1 s1 p0
        "b3_2": _conv_init(keys[2], 3, 3, k, l),              # 3x3 s1 p1
        "b3_3": _conv_init(keys[3], 3, 3, l, m),              # 3x3 s2 p0
    }


def _reference(x_nchw, params):
    x = jnp.transpose(x_nchw, (0, 2, 3, 1))

    def conv(xx, w, b, stride, padding):
        y = lax.conv_general_dilated(
            xx, w, (stride, stride), [(padding, padding)] * 2,
            dimension_numbers=("NHWC", "HWIO", "NHWC"))
        return y + b

    out1 = lax.reduce_window(x, -jnp.inf, lax.max,
                             (1, 3, 3, 1), (1, 2, 2, 1), "VALID")
    w, b = params["b2"];   out2 = conv(x, w, b, 2, 0)
    w, b = params["b3_1"]; t = conv(x, w, b, 1, 0)
    w, b = params["b3_2"]; t = conv(t, w, b, 1, 1)
    w, b = params["b3_3"]; out3 = conv(t, w, b, 2, 0)
    out = jnp.concatenate([out1, out2, out3], axis=-1)
    return jnp.transpose(out, (0, 3, 1, 2))


if __name__ == "__main__":
    key = jax.random.PRNGKey(0)
    kx, kp = jax.random.split(key)

    in_channels, k, l, m, n = 4, 8, 12, 16, 24
    x = jax.random.normal(kx, (2, in_channels, 16, 16), jnp.float32)
    params = init_reduction_a_params(kp, in_channels, k, l, m, n)

    out = jax.jit(reduction_a_forward)(x, params)
    out = jax.block_until_ready(out)
    assert out.shape == (2, in_channels + n + m, 7, 7), out.shape

    ref = _reference(x, params)
    # Loose tolerance: default-precision f32 MXU dots vs XLA's conv can differ
    # at ~1e-3; any logic error would show up as an O(1) difference.
    assert jnp.allclose(out, ref, atol=5e-2, rtol=5e-2), float(
        jnp.max(jnp.abs(out - ref)))

    print("KERNEL_OK")
</pallas_src>

<mosaic_0001>
module attributes {stable_mosaic.version = 11 : i64} {
  func.func @kernel(%arg0: i32, %arg1: memref<1x256x4xf32, #tpu.memory_space<vmem>>, %arg2: memref<1x81x4xf32, #tpu.memory_space<vmem>>, %arg3: memref<1x81x4xf32, #tpu.memory_space<vmem>>, %arg4: memref<1x81x4xf32, #tpu.memory_space<vmem>>, %arg5: memref<1x81x4xf32, #tpu.memory_space<vmem>>, %arg6: memref<9x4x24xf32, #tpu.memory_space<vmem>>, %arg7: memref<1x24xf32, #tpu.memory_space<vmem>>, %arg8: memref<4x8xf32, #tpu.memory_space<vmem>>, %arg9: memref<1x8xf32, #tpu.memory_space<vmem>>, %arg10: memref<9x8x12xf32, #tpu.memory_space<vmem>>, %arg11: memref<1x12xf32, #tpu.memory_space<vmem>>, %arg12: memref<1x63x4xf32, #tpu.memory_space<vmem>>, %arg13: memref<1x63x24xf32, #tpu.memory_space<vmem>>, %arg14: memref<1x288x12xf32, #tpu.memory_space<vmem>>, %arg15: memref<342x8xf32, #tpu.memory_space<vmem>>) attributes {dimension_semantics = [#tpu.dimension_semantics<parallel>], iteration_bounds = array<i64: 2>, scalar_prefetch = 0 : i64, scratch_operands = 1 : i64, tpu.core_type = #tpu.core_type<tc>, window_params = [{transform_indices = @transform_0, window_bounds = array<i64: 1, 256, 4>}, {transform_indices = @transform_1, window_bounds = array<i64: 1, 81, 4>}, {transform_indices = @transform_2, window_bounds = array<i64: 1, 81, 4>}, {transform_indices = @transform_3, window_bounds = array<i64: 1, 81, 4>}, {transform_indices = @transform_4, window_bounds = array<i64: 1, 81, 4>}, {pipeline_mode = #tpu.pipeline_mode<synchronous>, transform_indices = @transform_5, window_bounds = array<i64: 9, 4, 24>}, {pipeline_mode = #tpu.pipeline_mode<synchronous>, transform_indices = @transform_6, window_bounds = array<i64: 1, 24>}, {pipeline_mode = #tpu.pipeline_mode<synchronous>, transform_indices = @transform_7, window_bounds = array<i64: 4, 8>}, {pipeline_mode = #tpu.pipeline_mode<synchronous>, transform_indices = @transform_8, window_bounds = array<i64: 1, 8>}, {pipeline_mode = #tpu.pipeline_mode<synchronous>, transform_indices = @transform_9, window_bounds = array<i64: 9, 8, 12>}, {pipeline_mode = #tpu.pipeline_mode<synchronous>, transform_indices = @transform_10, window_bounds = array<i64: 1, 12>}, {transform_indices = @transform_11, window_bounds = array<i64: 1, 63, 4>}, {transform_indices = @transform_12, window_bounds = array<i64: 1, 63, 24>}, {transform_indices = @transform_13, window_bounds = array<i64: 1, 288, 12>}]} {
    %cst = arith.constant 0.000000e+00 : f32
    %0 = vector.broadcast %cst : f32 to vector<63x24xf32>
    %c0 = arith.constant 0 : index
    %c0_0 = arith.constant 0 : index
    %c0_1 = arith.constant 0 : index
    %1 = vector.load %arg2[%c0, %c0_0, %c0_1] : memref<1x81x4xf32, #tpu.memory_space<vmem>>, vector<1x63x4xf32>
    %2 = vector.shape_cast %1 : vector<1x63x4xf32> to vector<63x4xf32>
    %c0_2 = arith.constant 0 : index
    %c0_3 = arith.constant 0 : index
    %c0_4 = arith.constant 0 : index
    %3 = vector.load %arg6[%c0_2, %c0_3, %c0_4] : memref<9x4x24xf32, #tpu.memory_space<vmem>>, vector<1x4x24xf32>
    %4 = vector.shape_cast %3 : vector<1x4x24xf32> to vector<4x24xf32>
    %cst_5 = arith.constant dense<0.000000e+00> : vector<63x24xf32>
    %5 = tpu.matmul %2, %4, %cst_5 {dimension_numbers = #tpu.dot_dimension_numbers<[1], [0], [0], [1], [0, 0, 1, 1], [], []>} : vector<63x4xf32>, vector<4x24xf32>, vector<63x24xf32> -> vector<63x24xf32>
    %6 = arith.addf %0, %5 : vector<63x24xf32>
    %c0_6 = arith.constant 0 : index
    %c0_7 = arith.constant 0 : index
    %c0_8 = arith.constant 0 : index
    %7 = vector.load %arg3[%c0_6, %c0_7, %c0_8] : memref<1x81x4xf32, #tpu.memory_space<vmem>>, vector<1x63x4xf32>
    %8 = vector.shape_cast %7 : vector<1x63x4xf32> to vector<63x4xf32>
    %9 = arith.maximumf %2, %8 : vector<63x4xf32>
    %c1 = arith.constant 1 : index
    %c0_9 = arith.constant 0 : index
    %c0_10 = arith.constant 0 : index
    %10 = vector.load %arg6[%c1, %c0_9, %c0_10] : memref<9x4x24xf32, #tpu.memory_space<vmem>>, vector<1x4x24xf32>
    %11 = vector.shape_cast %10 : vector<1x4x24xf32> to vector<4x24xf32>
    %cst_11 = arith.constant dense<0.000000e+00> : vector<63x24xf32>
    %12 = tpu.matmul %8, %11, %cst_11 {dimension_numbers = #tpu.dot_dimension_numbers<[1], [0], [0], [1], [0, 0, 1, 1], [], []>} : vector<63x4xf32>, vector<4x24xf32>, vector<63x24xf32> -> vector<63x24xf32>
    %13 = arith.addf %6, %12 : vector<63x24xf32>
    %c0_12 = arith.constant 0 : index
    %c1_13 = arith.constant 1 : index
    %c0_14 = arith.constant 0 : index
    %14 = vector.load %arg2[%c0_12, %c1_13, %c0_14] : memref<1x81x4xf32, #tpu.memory_space<vmem>>, vector<1x63x4xf32>
    %15 = vector.shape_cast %14 : vector<1x63x4xf32> to vector<63x4xf32>
    %16 = arith.maximumf %9, %15 : vector<63x4xf32>
    %c2 = arith.constant 2 : index
    %c0_15 = arith.constant 0 : index
    %c0_16 = arith.constant 0 : index
    %17 = vector.load %arg6[%c2, %c0_15, %c0_16] : memref<9x4x24xf32, #tpu.memory_space<vmem>>, vector<1x4x24xf32>
    %18 = vector.shape_cast %17 : vector<1x4x24xf32> to vector<4x24xf32>
    %cst_17 = arith.constant dense<0.000000e+00> : vector<63x24xf32>
    %19 = tpu.matmul %15, %18, %cst_17 {dimension_numbers = #tpu.dot_dimension_numbers<[1], [0], [0], [1], [0, 0, 1, 1], [], []>} : vector<63x4xf32>, vector<4x24xf32>, vector<63x24xf32> -> vector<63x24xf32>
    %20 = arith.addf %13, %19 : vector<63x24xf32>
    %c0_18 = arith.constant 0 : index
    %c0_19 = arith.constant 0 : index
    %c0_20 = arith.constant 0 : index
    %21 = vector.load %arg4[%c0_18, %c0_19, %c0_20] : memref<1x81x4xf32, #tpu.memory_space<vmem>>, vector<1x63x4xf32>
    %22 = vector.shape_cast %21 : vector<1x63x4xf32> to vector<63x4xf32>
    %23 = arith.maximumf %16, %22 : vector<63x4xf32>
    %c3 = arith.constant 3 : index
    %c0_21 = arith.constant 0 : index
    %c0_22 = arith.constant 0 : index
    %24 = vector.load %arg6[%c3, %c0_21, %c0_22] : memref<9x4x24xf32, #tpu.memory_space<vmem>>, vector<1x4x24xf32>
    %25 = vector.shape_cast %24 : vector<1x4x24xf32> to vector<4x24xf32>
    %cst_23 = arith.constant dense<0.000000e+00> : vector<63x24xf32>
    %26 = tpu.matmul %22, %25, %cst_23 {dimension_numbers = #tpu.dot_dimension_numbers<[1], [0], [0], [1], [0, 0, 1, 1], [], []>} : vector<63x4xf32>, vector<4x24xf32>, vector<63x24xf32> -> vector<63x24xf32>
    %27 = arith.addf %20, %26 : vector<63x24xf32>
    %c0_24 = arith.constant 0 : index
    %c0_25 = arith.constant 0 : index
    %c0_26 = arith.constant 0 : index
    %28 = vector.load %arg5[%c0_24, %c0_25, %c0_26] : memref<1x81x4xf32, #tpu.memory_space<vmem>>, vector<1x63x4xf32>
    %29 = vector.shape_cast %28 : vector<1x63x4xf32> to vector<63x4xf32>
    %30 = arith.maximumf %23, %29 : vector<63x4xf32>
    %c4 = arith.constant 4 : index
    %c0_27 = arith.constant 0 : index
    %c0_28 = arith.constant 0 : index
    %31 = vector.load %arg6[%c4, %c0_27, %c0_28] : memref<9x4x24xf32, #tpu.memory_space<vmem>>, vector<1x4x24xf32>
    %32 = vector.shape_cast %31 : vector<1x4x24xf32> to vector<4x24xf32>
    %cst_29 = arith.constant dense<0.000000e+00> : vector<63x24xf32>
    %33 = tpu.matmul %29, %32, %cst_29 {dimension_numbers = #tpu.dot_dimension_numbers<[1], [0], [0], [1], [0, 0, 1, 1], [], []>} : vector<63x4xf32>, vector<4x24xf32>, vector<63x24xf32> -> vector<63x24xf32>
    %34 = arith.addf %27, %33 : vector<63x24xf32>
    %c0_30 = arith.constant 0 : index
    %c1_31 = arith.constant 1 : index
    %c0_32 = arith.constant 0 : index
    %35 = vector.load %arg4[%c0_30, %c1_31, %c0_32] : memref<1x81x4xf32, #tpu.memory_space<vmem>>, vector<1x63x4xf32>
    %36 = vector.shape_cast %35 : vector<1x63x4xf32> to vector<63x4xf32>
    %37 = arith.maximumf %30, %36 : vector<63x4xf32>
    %c5 = arith.constant 5 : index
    %c0_33 = arith.constant 0 : index
    %c0_34 = arith.constant 0 : index
    %38 = vector.load %arg6[%c5, %c0_33, %c0_34] : memref<9x4x24xf32, #tpu.memory_space<vmem>>, vector<1x4x24xf32>
    %39 = vector.shape_cast %38 : vector<1x4x24xf32> to vector<4x24xf32>
    %cst_35 = arith.constant dense<0.000000e+00> : vector<63x24xf32>
    %40 = tpu.matmul %36, %39, %cst_35 {dimension_numbers = #tpu.dot_dimension_numbers<[1], [0], [0], [1], [0, 0, 1, 1], [], []>} : vector<63x4xf32>, vector<4x24xf32>, vector<63x24xf32> -> vector<63x24xf32>
    %41 = arith.addf %34, %40 : vector<63x24xf32>
    %c0_36 = arith.constant 0 : index
    %c9 = arith.constant 9 : index
    %c0_37 = arith.constant 0 : index
    %42 = vector.load %arg2[%c0_36, %c9, %c0_37] : memref<1x81x4xf32, #tpu.memory_space<vmem>>, vector<1x63x4xf32>
    %43 = vector.shape_cast %42 : vector<1x63x4xf32> to vector<63x4xf32>
    %44 = arith.maximumf %37, %43 : vector<63x4xf32>
    %c6 = arith.constant 6 : index
    %c0_38 = arith.constant 0 : index
    %c0_39 = arith.constant 0 : index
    %45 = vector.load %arg6[%c6, %c0_38, %c0_39] : memref<9x4x24xf32, #tpu.memory_space<vmem>>, vector<1x4x24xf32>
    %46 = vector.shape_cast %45 : vector<1x4x24xf32> to vector<4x24xf32>
    %cst_40 = arith.constant dense<0.000000e+00> : vector<63x24xf32>
    %47 = tpu.matmul %43, %46, %cst_40 {dimension_numbers = #tpu.dot_dimension_numbers<[1], [0], [0], [1], [0, 0, 1, 1], [], []>} : vector<63x4xf32>, vector<4x24xf32>, vector<63x24xf32> -> vector<63x24xf32>
    %48 = arith.addf %41, %47 : vector<63x24xf32>
    %c0_41 = arith.constant 0 : index
    %c9_42 = arith.constant 9 : index
    %c0_43 = arith.constant 0 : index
    %49 = vector.load %arg3[%c0_41, %c9_42, %c0_43] : memref<1x81x4xf32, #tpu.memory_space<vmem>>, vector<1x63x4xf32>
    %50 = vector.shape_cast %49 : vector<1x63x4xf32> to vector<63x4xf32>
    %51 = arith.maximumf %44, %50 : vector<63x4xf32>
    %c7 = arith.constant 7 : index
    %c0_44 = arith.constant 0 : index
    %c0_45 = arith.constant 0 : index
    %52 = vector.load %arg6[%c7, %c0_44, %c0_45] : memref<9x4x24xf32, #tpu.memory_space<vmem>>, vector<1x4x24xf32>
    %53 = vector.shape_cast %52 : vector<1x4x24xf32> to vector<4x24xf32>
    %cst_46 = arith.constant dense<0.000000e+00> : vector<63x24xf32>
    %54 = tpu.matmul %50, %53, %cst_46 {dimension_numbers = #tpu.dot_dimension_numbers<[1], [0], [0], [1], [0, 0, 1, 1], [], []>} : vector<63x4xf32>, vector<4x24xf32>, vector<63x24xf32> -> vector<63x24xf32>
    %55 = arith.addf %48, %54 : vector<63x24xf32>
    %c0_47 = arith.constant 0 : index
    %c10 = arith.constant 10 : index
    %c0_48 = arith.constant 0 : index
    %56 = vector.load %arg2[%c0_47, %c10, %c0_48] : memref<1x81x4xf32, #tpu.memory_space<vmem>>, vector<1x63x4xf32>
    %57 = vector.shape_cast %56 : vector<1x63x4xf32> to vector<63x4xf32>
    %58 = arith.maximumf %51, %57 : vector<63x4xf32>
    %c8 = arith.constant 8 : index
    %c0_49 = arith.constant 0 : index
    %c0_50 = arith.constant 0 : index
    %59 = vector.load %arg6[%c8, %c0_49, %c0_50] : memref<9x4x24xf32, #tpu.memory_space<vmem>>, vector<1x4x24xf32>
    %60 = vector.shape_cast %59 : vector<1x4x24xf32> to vector<4x24xf32>
    %cst_51 = arith.constant dense<0.000000e+00> : vector<63x24xf32>
    %61 = tpu.matmul %57, %60, %cst_51 {dimension_numbers = #tpu.dot_dimension_numbers<[1], [0], [0], [1], [0, 0, 1, 1], [], []>} : vector<63x4xf32>, vector<4x24xf32>, vector<63x24xf32> -> vector<63x24xf32>
    %62 = arith.addf %55, %61 : vector<63x24xf32>
    %c0_52 = arith.constant 0 : index
    %c0_53 = arith.constant 0 : index
    %c0_54 = arith.constant 0 : index
    %63 = vector.load %arg12[%c0_52, %c0_53, %c0_54] : memref<1x63x4xf32, #tpu.memory_space<vmem>>, vector<1x63x4xf32>
    %64 = vector.shape_cast %63 : vector<1x63x4xf32> to vector<63x4xf32>
    %65 = vector.shape_cast %58 : vector<63x4xf32> to vector<1x63x4xf32>
    tpu.vector_store %arg12[%c0_52, %c0_53, %c0_54], %65 {strides = array<i32>} : memref<1x63x4xf32, #tpu.memory_space<vmem>>, vector<1x63x4xf32>,
    %c0_55 = arith.constant 0 : index
    %c0_56 = arith.constant 0 : index
    %66 = vector.load %arg7[%c0_55, %c0_56] : memref<1x24xf32, #tpu.memory_space<vmem>>, vector<1x24xf32>
    %67 = vector.broadcast %66 : vector<1x24xf32> to vector<63x24xf32>
    %68 = arith.addf %62, %67 : vector<63x24xf32>
    %c0_57 = arith.constant 0 : index
    %c0_58 = arith.constant 0 : index
    %c0_59 = arith.constant 0 : index
    %69 = vector.load %arg13[%c0_57, %c0_58, %c0_59] : memref<1x63x24xf32, #tpu.memory_space<vmem>>, vector<1x63x24xf32>
    %70 = vector.shape_cast %69 : vector<1x63x24xf32> to vector<63x24xf32>
    %71 = vector.shape_cast %68 : vector<63x24xf32> to vector<1x63x24xf32>
    tpu.vector_store %arg13[%c0_57, %c0_58, %c0_59], %71 {strides = array<i32>} : memref<1x63x24xf32, #tpu.memory_space<vmem>>, vector<1x63x24xf32>,
    %c0_60 = arith.constant 0 : index
    %c0_61 = arith.constant 0 : index
    %c0_62 = arith.constant 0 : index
    %72 = vector.load %arg1[%c0_60, %c0_61, %c0_62] : memref<1x256x4xf32, #tpu.memory_space<vmem>>, vector<1x256x4xf32>
    %73 = vector.shape_cast %72 : vector<1x256x4xf32> to vector<256x4xf32>
    %c0_63 = arith.constant 0 : index
    %c0_64 = arith.constant 0 : index
    %74 = vector.load %arg8[%c0_63, %c0_64] : memref<4x8xf32, #tpu.memory_space<vmem>>, vector<4x8xf32>
    %cst_65 = arith.constant dense<0.000000e+00> : vector<256x8xf32>
    %75 = tpu.matmul %73, %74, %cst_65 {dimension_numbers = #tpu.dot_dimension_numbers<[1], [0], [0], [1], [0, 0, 1, 1], [], []>} : vector<256x4xf32>, vector<4x8xf32>, vector<256x8xf32> -> vector<256x8xf32>
    %c0_66 = arith.constant 0 : index
    %c0_67 = arith.constant 0 : index
    %76 = vector.load %arg9[%c0_66, %c0_67] : memref<1x8xf32, #tpu.memory_space<vmem>>, vector<1x8xf32>
    %77 = vector.broadcast %76 : vector<1x8xf32> to vector<256x8xf32>
    %78 = arith.addf %75, %77 : vector<256x8xf32>
    %cst_68 = arith.constant 0.000000e+00 : f32
    %79 = vector.broadcast %cst_68 : f32 to vector<342x8xf32>
    %c0_69 = arith.constant 0 : index
    %c0_70 = arith.constant 0 : index
    %80 = vector.load %arg15[%c0_69, %c0_70] : memref<342x8xf32, #tpu.memory_space<vmem>>, vector<342x8xf32>
    tpu.vector_store %arg15[%c0_69, %c0_70], %79 {strides = array<i32>} : memref<342x8xf32, #tpu.memory_space<vmem>>, vector<342x8xf32>,
    %81 = vector.extract_strided_slice %78 {offsets = [0, 0], sizes = [16, 8], strides = [1, 1]} : vector<256x8xf32> to vector<16x8xf32>
    %c19 = arith.constant 19 : index
    %c0_71 = arith.constant 0 : index
    %82 = vector.load %arg15[%c19, %c0_71] : memref<342x8xf32, #tpu.memory_space<vmem>>, vector<16x8xf32>
    tpu.vector_store %arg15[%c19, %c0_71], %81 {strides = array<i32>} : memref<342x8xf32, #tpu.memory_space<vmem>>, vector<16x8xf32>,
    %83 = vector.extract_strided_slice %78 {offsets = [16, 0], sizes = [16, 8], strides = [1, 1]} : vector<256x8xf32> to vector<16x8xf32>
    %c37 = arith.constant 37 : index
    %c0_72 = arith.constant 0 : index
    %84 = vector.load %arg15[%c37, %c0_72] : memref<342x8xf32, #tpu.memory_space<vmem>>, vector<16x8xf32>
    tpu.vector_store %arg15[%c37, %c0_72], %83 {strides = array<i32>} : memref<342x8xf32, #tpu.memory_space<vmem>>, vector<16x8xf32>,
    %85 = vector.extract_strided_slice %78 {offsets = [32, 0], sizes = [16, 8], strides = [1, 1]} : vector<256x8xf32> to vector<16x8xf32>
    %c55 = arith.constant 55 : index
    %c0_73 = arith.constant 0 : index
    %86 = vector.load %arg15[%c55, %c0_73] : memref<342x8xf32, #tpu.memory_space<vmem>>, vector<16x8xf32>
    tpu.vector_store %arg15[%c55, %c0_73], %85 {strides = array<i32>} : memref<342x8xf32, #tpu.memory_space<vmem>>, vector<16x8xf32>,
    %87 = vector.extract_strided_slice %78 {offsets = [48, 0], sizes = [16, 8], strides = [1, 1]} : vector<256x8xf32> to vector<16x8xf32>
    %c73 = arith.constant 73 : index
    %c0_74 = arith.constant 0 : index
    %88 = vector.load %arg15[%c73, %c0_74] : memref<342x8xf32, #tpu.memory_space<vmem>>, vector<16x8xf32>
    tpu.vector_store %arg15[%c73, %c0_74], %87 {strides = array<i32>} : memref<342x8xf32, #tpu.memory_space<vmem>>, vector<16x8xf32>,
    %89 = vector.extract_strided_slice %78 {offsets = [64, 0], sizes = [16, 8], strides = [1, 1]} : vector<256x8xf32> to vector<16x8xf32>
    %c91 = arith.constant 91 : index
    %c0_75 = arith.constant 0 : index
    %90 = vector.load %arg15[%c91, %c0_75] : memref<342x8xf32, #tpu.memory_space<vmem>>, vector<16x8xf32>
    tpu.vector_store %arg15[%c91, %c0_75], %89 {strides = array<i32>} : memref<342x8xf32, #tpu.memory_space<vmem>>, vector<16x8xf32>,
    %91 = vector.extract_strided_slice %78 {offsets = [80, 0], sizes = [16, 8], strides = [1, 1]} : vector<256x8xf32> to vector<16x8xf32>
    %c109 = arith.constant 109 : index
    %c0_76 = arith.constant 0 : index
    %92 = vector.load %arg15[%c109, %c0_76] : memref<342x8xf32, #tpu.memory_space<vmem>>, vector<16x8xf32>
    tpu.vector_store %arg15[%c109, %c0_76], %91 {strides = array<i32>} : memref<342x8xf32, #tpu.memory_space<vmem>>, vector<16x8xf32>,
    %93 = vector.extract_strided_slice %78 {offsets = [96, 0], sizes = [16, 8], strides = [1, 1]} : vector<256x8xf32> to vector<16x8xf32>
    %c127 = arith.constant 127 : index
    %c0_77 = arith.constant 0 : index
    %94 = vector.load %arg15[%c127, %c0_77] : memref<342x8xf32, #tpu.memory_space<vmem>>, vector<16x8xf32>
    tpu.vector_store %arg15[%c127, %c0_77], %93 {strides = array<i32>} : memref<342x8xf32, #tpu.memory_space<vmem>>, vector<16x8xf32>,
    %95 = vector.extract_strided_slice %78 {offsets = [112, 0], sizes = [16, 8], strides = [1, 1]} : vector<256x8xf32> to vector<16x8xf32>
    %c145 = arith.constant 145 : index
    %c0_78 = arith.constant 0 : index
    %96 = vector.load %arg15[%c145, %c0_78] : memref<342x8xf32, #tpu.memory_space<vmem>>, vector<16x8xf32>
    tpu.vector_store %arg15[%c145, %c0_78], %95 {strides = array<i32>} : memref<342x8xf32, #tpu.memory_space<vmem>>, vector<16x8xf32>,
    %97 = vector.extract_strided_slice %78 {offsets = [128, 0], sizes = [16, 8], strides = [1, 1]} : vector<256x8xf32> to vector<16x8xf32>
    %c163 = arith.constant 163 : index
    %c0_79 = arith.constant 0 : index
    %98 = vector.load %arg15[%c163, %c0_79] : memref<342x8xf32, #tpu.memory_space<vmem>>, vector<16x8xf32>
    tpu.vector_store %arg15[%c163, %c0_79], %97 {strides = array<i32>} : memref<342x8xf32, #tpu.memory_space<vmem>>, vector<16x8xf32>,
    %99 = vector.extract_strided_slice %78 {offsets = [144, 0], sizes = [16, 8], strides = [1, 1]} : vector<256x8xf32> to vector<16x8xf32>
    %c181 = arith.constant 181 : index
    %c0_80 = arith.constant 0 : index
    %100 = vector.load %arg15[%c181, %c0_80] : memref<342x8xf32, #tpu.memory_space<vmem>>, vector<16x8xf32>
    tpu.vector_store %arg15[%c181, %c0_80], %99 {strides = array<i32>} : memref<342x8xf32, #tpu.memory_space<vmem>>, vector<16x8xf32>,
    %101 = vector.extract_strided_slice %78 {offsets = [160, 0], sizes = [16, 8], strides = [1, 1]} : vector<256x8xf32> to vector<16x8xf32>
    %c199 = arith.constant 199 : index
    %c0_81 = arith.constant 0 : index
    %102 = vector.load %arg15[%c199, %c0_81] : memref<342x8xf32, #tpu.memory_space<vmem>>, vector<16x8xf32>
    tpu.vector_store %arg15[%c199, %c0_81], %101 {strides = array<i32>} : memref<342x8xf32, #tpu.memory_space<vmem>>, vector<16x8xf32>,
    %103 = vector.extract_strided_slice %78 {offsets = [176, 0], sizes = [16, 8], strides = [1, 1]} : vector<256x8xf32> to vector<16x8xf32>
    %c217 = arith.constant 217 : index
    %c0_82 = arith.constant 0 : index
    %104 = vector.load %arg15[%c217, %c0_82] : memref<342x8xf32, #tpu.memory_space<vmem>>, vector<16x8xf32>
    tpu.vector_store %arg15[%c217, %c0_82], %103 {strides = array<i32>} : memref<342x8xf32, #tpu.memory_space<vmem>>, vector<16x8xf32>,
    %105 = vector.extract_strided_slice %78 {offsets = [192, 0], sizes = [16, 8], strides = [1, 1]} : vector<256x8xf32> to vector<16x8xf32>
    %c235 = arith.constant 235 : index
    %c0_83 = arith.constant 0 : index
    %106 = vector.load %arg15[%c235, %c0_83] : memref<342x8xf32, #tpu.memory_space<vmem>>, vector<16x8xf32>
    tpu.vector_store %arg15[%c235, %c0_83], %105 {strides = array<i32>} : memref<342x8xf32, #tpu.memory_space<vmem>>, vector<16x8xf32>,
    %107 = vector.extract_strided_slice %78 {offsets = [208, 0], sizes = [16, 8], strides = [1, 1]} : vector<256x8xf32> to vector<16x8xf32>
    %c253 = arith.constant 253 : index
    %c0_84 = arith.constant 0 : index
    %108 = vector.load %arg15[%c253, %c0_84] : memref<342x8xf32, #tpu.memory_space<vmem>>, vector<16x8xf32>
    tpu.vector_store %arg15[%c253, %c0_84], %107 {strides = array<i32>} : memref<342x8xf32, #tpu.memory_space<vmem>>, vector<16x8xf32>,
    %109 = vector.extract_strided_slice %78 {offsets = [224, 0], sizes = [16, 8], strides = [1, 1]} : vector<256x8xf32> to vector<16x8xf32>
    %c271 = arith.constant 271 : index
    %c0_85 = arith.constant 0 : index
    %110 = vector.load %arg15[%c271, %c0_85] : memref<342x8xf32, #tpu.memory_space<vmem>>, vector<16x8xf32>
    tpu.vector_store %arg15[%c271, %c0_85], %109 {strides = array<i32>} : memref<342x8xf32, #tpu.memory_space<vmem>>, vector<16x8xf32>,
    %111 = vector.extract_strided_slice %78 {offsets = [240, 0], sizes = [16, 8], strides = [1, 1]} : vector<256x8xf32> to vector<16x8xf32>
    %c289 = arith.constant 289 : index
    %c0_86 = arith.constant 0 : index
    %112 = vector.load %arg15[%c289, %c0_86] : memref<342x8xf32, #tpu.memory_space<vmem>>, vector<16x8xf32>
    tpu.vector_store %arg15[%c289, %c0_86], %111 {strides = array<i32>} : memref<342x8xf32, #tpu.memory_space<vmem>>, vector<16x8xf32>,
    %cst_87 = arith.constant 0.000000e+00 : f32
    %113 = vector.broadcast %cst_87 : f32 to vector<288x12xf32>
    %c0_88 = arith.constant 0 : index
    %c0_89 = arith.constant 0 : index
    %114 = vector.load %arg15[%c0_88, %c0_89] : memref<342x8xf32, #tpu.memory_space<vmem>>, vector<288x8xf32>
    %c0_90 = arith.constant 0 : index
    %c0_91 = arith.constant 0 : index
    %c0_92 = arith.constant 0 : index
    %115 = vector.load %arg10[%c0_90, %c0_91, %c0_92] : memref<9x8x12xf32, #tpu.memory_space<vmem>>, vector<1x8x12xf32>
    %116 = vector.shape_cast %115 : vector<1x8x12xf32> to vector<8x12xf32>
    %cst_93 = arith.constant dense<0.000000e+00> : vector<288x12xf32>
    %117 = tpu.matmul %114, %116, %cst_93 {dimension_numbers = #tpu.dot_dimension_numbers<[1], [0], [0], [1], [0, 0, 1, 1], [], []>} : vector<288x8xf32>, vector<8x12xf32>, vector<288x12xf32> -> vector<288x12xf32>
    %118 = arith.addf %113, %117 : vector<288x12xf32>
    %c1_94 = arith.constant 1 : index
    %c0_95 = arith.constant 0 : index
    %119 = vector.load %arg15[%c1_94, %c0_95] : memref<342x8xf32, #tpu.memory_space<vmem>>, vector<288x8xf32>
    %c1_96 = arith.constant 1 : index
    %c0_97 = arith.constant 0 : index
    %c0_98 = arith.constant 0 : index
    %120 = vector.load %arg10[%c1_96, %c0_97, %c0_98] : memref<9x8x12xf32, #tpu.memory_space<vmem>>, vector<1x8x12xf32>
    %121 = vector.shape_cast %120 : vector<1x8x12xf32> to vector<8x12xf32>
    %cst_99 = arith.constant dense<0.000000e+00> : vector<288x12xf32>
    %122 = tpu.matmul %119, %121, %cst_99 {dimension_numbers = #tpu.dot_dimension_numbers<[1], [0], [0], [1], [0, 0, 1, 1], [], []>} : vector<288x8xf32>, vector<8x12xf32>, vector<288x12xf32> -> vector<288x12xf32>
    %123 = arith.addf %118, %122 : vector<288x12xf32>
    %c2_100 = arith.constant 2 : index
    %c0_101 = arith.constant 0 : index
    %124 = vector.load %arg15[%c2_100, %c0_101] : memref<342x8xf32, #tpu.memory_space<vmem>>, vector<288x8xf32>
    %c2_102 = arith.constant 2 : index
    %c0_103 = arith.constant 0 : index
    %c0_104 = arith.constant 0 : index
    %125 = vector.load %arg10[%c2_102, %c0_103, %c0_104] : memref<9x8x12xf32, #tpu.memory_space<vmem>>, vector<1x8x12xf32>
    %126 = vector.shape_cast %125 : vector<1x8x12xf32> to vector<8x12xf32>
    %cst_105 = arith.constant dense<0.000000e+00> : vector<288x12xf32>
    %127 = tpu.matmul %124, %126, %cst_105 {dimension_numbers = #tpu.dot_dimension_numbers<[1], [0], [0], [1], [0, 0, 1, 1], [], []>} : vector<288x8xf32>, vector<8x12xf32>, vector<288x12xf32> -> vector<288x12xf32>
    %128 = arith.addf %123, %127 : vector<288x12xf32>
    %c18 = arith.constant 18 : index
    %c0_106 = arith.constant 0 : index
    %129 = vector.load %arg15[%c18, %c0_106] : memref<342x8xf32, #tpu.memory_space<vmem>>, vector<288x8xf32>
    %c3_107 = arith.constant 3 : index
    %c0_108 = arith.constant 0 : index
    %c0_109 = arith.constant 0 : index
    %130 = vector.load %arg10[%c3_107, %c0_108, %c0_109] : memref<9x8x12xf32, #tpu.memory_space<vmem>>, vector<1x8x12xf32>
    %131 = vector.shape_cast %130 : vector<1x8x12xf32> to vector<8x12xf32>
    %cst_110 = arith.constant dense<0.000000e+00> : vector<288x12xf32>
    %132 = tpu.matmul %129, %131, %cst_110 {dimension_numbers = #tpu.dot_dimension_numbers<[1], [0], [0], [1], [0, 0, 1, 1], [], []>} : vector<288x8xf32>, vector<8x12xf32>, vector<288x12xf32> -> vector<288x12xf32>
    %133 = arith.addf %128, %132 : vector<288x12xf32>
    %c19_111 = arith.constant 19 : index
    %c0_112 = arith.constant 0 : index
    %134 = vector.load %arg15[%c19_111, %c0_112] : memref<342x8xf32, #tpu.memory_space<vmem>>, vector<288x8xf32>
    %c4_113 = arith.constant 4 : index
    %c0_114 = arith.constant 0 : index
    %c0_115 = arith.constant 0 : index
    %135 = vector.load %arg10[%c4_113, %c0_114, %c0_115] : memref<9x8x12xf32, #tpu.memory_space<vmem>>, vector<1x8x12xf32>
    %136 = vector.shape_cast %135 : vector<1x8x12xf32> to vector<8x12xf32>
    %cst_116 = arith.constant dense<0.000000e+00> : vector<288x12xf32>
    %137 = tpu.matmul %134, %136, %cst_116 {dimension_numbers = #tpu.dot_dimension_numbers<[1], [0], [0], [1], [0, 0, 1, 1], [], []>} : vector<288x8xf32>, vector<8x12xf32>, vector<288x12xf32> -> vector<288x12xf32>
    %138 = arith.addf %133, %137 : vector<288x12xf32>
    %c20 = arith.constant 20 : index
    %c0_117 = arith.constant 0 : index
    %139 = vector.load %arg15[%c20, %c0_117] : memref<342x8xf32, #tpu.memory_space<vmem>>, vector<288x8xf32>
    %c5_118 = arith.constant 5 : index
    %c0_119 = arith.constant 0 : index
    %c0_120 = arith.constant 0 : index
    %140 = vector.load %arg10[%c5_118, %c0_119, %c0_120] : memref<9x8x12xf32, #tpu.memory_space<vmem>>, vector<1x8x12xf32>
    %141 = vector.shape_cast %140 : vector<1x8x12xf32> to vector<8x12xf32>
    %cst_121 = arith.constant dense<0.000000e+00> : vector<288x12xf32>
    %142 = tpu.matmul %139, %141, %cst_121 {dimension_numbers = #tpu.dot_dimension_numbers<[1], [0], [0], [1], [0, 0, 1, 1], [], []>} : vector<288x8xf32>, vector<8x12xf32>, vector<288x12xf32> -> vector<288x12xf32>
    %143 = arith.addf %138, %142 : vector<288x12xf32>
    %c36 = arith.constant 36 : index
    %c0_122 = arith.constant 0 : index
    %144 = vector.load %arg15[%c36, %c0_122] : memref<342x8xf32, #tpu.memory_space<vmem>>, vector<288x8xf32>
    %c6_123 = arith.constant 6 : index
    %c0_124 = arith.constant 0 : index
    %c0_125 = arith.constant 0 : index
    %145 = vector.load %arg10[%c6_123, %c0_124, %c0_125] : memref<9x8x12xf32, #tpu.memory_space<vmem>>, vector<1x8x12xf32>
    %146 = vector.shape_cast %145 : vector<1x8x12xf32> to vector<8x12xf32>
    %cst_126 = arith.constant dense<0.000000e+00> : vector<288x12xf32>
    %147 = tpu.matmul %144, %146, %cst_126 {dimension_numbers = #tpu.dot_dimension_numbers<[1], [0], [0], [1], [0, 0, 1, 1], [], []>} : vector<288x8xf32>, vector<8x12xf32>, vector<288x12xf32> -> vector<288x12xf32>
    %148 = arith.addf %143, %147 : vector<288x12xf32>
    %c37_127 = arith.constant 37 : index
    %c0_128 = arith.constant 0 : index
    %149 = vector.load %arg15[%c37_127, %c0_128] : memref<342x8xf32, #tpu.memory_space<vmem>>, vector<288x8xf32>
    %c7_129 = arith.constant 7 : index
    %c0_130 = arith.constant 0 : index
    %c0_131 = arith.constant 0 : index
    %150 = vector.load %arg10[%c7_129, %c0_130, %c0_131] : memref<9x8x12xf32, #tpu.memory_space<vmem>>, vector<1x8x12xf32>
    %151 = vector.shape_cast %150 : vector<1x8x12xf32> to vector<8x12xf32>
    %cst_132 = arith.constant dense<0.000000e+00> : vector<288x12xf32>
    %152 = tpu.matmul %149, %151, %cst_132 {dimension_numbers = #tpu.dot_dimension_numbers<[1], [0], [0], [1], [0, 0, 1, 1], [], []>} : vector<288x8xf32>, vector<8x12xf32>, vector<288x12xf32> -> vector<288x12xf32>
    %153 = arith.addf %148, %152 : vector<288x12xf32>
    %c38 = arith.constant 38 : index
    %c0_133 = arith.constant 0 : index
    %154 = vector.load %arg15[%c38, %c0_133] : memref<342x8xf32, #tpu.memory_space<vmem>>, vector<288x8xf32>
    %c8_134 = arith.constant 8 : index
    %c0_135 = arith.constant 0 : index
    %c0_136 = arith.constant 0 : index
    %155 = vector.load %arg10[%c8_134, %c0_135, %c0_136] : memref<9x8x12xf32, #tpu.memory_space<vmem>>, vector<1x8x12xf32>
    %156 = vector.shape_cast %155 : vector<1x8x12xf32> to vector<8x12xf32>
    %cst_137 = arith.constant dense<0.000000e+00> : vector<288x12xf32>
    %157 = tpu.matmul %154, %156, %cst_137 {dimension_numbers = #tpu.dot_dimension_numbers<[1], [0], [0], [1], [0, 0, 1, 1], [], []>} : vector<288x8xf32>, vector<8x12xf32>, vector<288x12xf32> -> vector<288x12xf32>
    %158 = arith.addf %153, %157 : vector<288x12xf32>
    %c0_138 = arith.constant 0 : index
    %c0_139 = arith.constant 0 : index
    %159 = vector.load %arg11[%c0_138, %c0_139] : memref<1x12xf32, #tpu.memory_space<vmem>>, vector<1x12xf32>
    %160 = vector.broadcast %159 : vector<1x12xf32> to vector<288x12xf32>
    %161 = arith.addf %158, %160 : vector<288x12xf32>
    %c0_140 = arith.constant 0 : index
    %c0_141 = arith.constant 0 : index
    %c0_142 = arith.constant 0 : index
    %162 = vector.load %arg14[%c0_140, %c0_141, %c0_142] : memref<1x288x12xf32, #tpu.memory_space<vmem>>, vector<1x288x12xf32>
    %163 = vector.shape_cast %162 : vector<1x288x12xf32> to vector<288x12xf32>
    %164 = vector.shape_cast %161 : vector<288x12xf32> to vector<1x288x12xf32>
    tpu.vector_store %arg14[%c0_140, %c0_141, %c0_142], %164 {strides = array<i32>} : memref<1x288x12xf32, #tpu.memory_space<vmem>>, vector<1x288x12xf32>,
    return
  }
  func.func @transform_0(%arg0: i32) -> (i32, i32, i32) {
    %c0_i32 = arith.constant 0 : i32
    %c0_i32_0 = arith.constant 0 : i32
    %c0_i32_1 = arith.constant 0 : i32
    return %arg0, %c0_i32, %c0_i32_0 : i32, i32, i32
  }
  func.func @transform_1(%arg0: i32) -> (i32, i32, i32) {
    %c0_i32 = arith.constant 0 : i32
    %c0_i32_0 = arith.constant 0 : i32
    %c0_i32_1 = arith.constant 0 : i32
    return %arg0, %c0_i32, %c0_i32_0 : i32, i32, i32
  }
  func.func @transform_2(%arg0: i32) -> (i32, i32, i32) {
    %c0_i32 = arith.constant 0 : i32
    %c0_i32_0 = arith.constant 0 : i32
    %c0_i32_1 = arith.constant 0 : i32
    return %arg0, %c0_i32, %c0_i32_0 : i32, i32, i32
  }
  func.func @transform_3(%arg0: i32) -> (i32, i32, i32) {
    %c0_i32 = arith.constant 0 : i32
    %c0_i32_0 = arith.constant 0 : i32
    %c0_i32_1 = arith.constant 0 : i32
    return %arg0, %c0_i32, %c0_i32_0 : i32, i32, i32
  }
  func.func @transform_4(%arg0: i32) -> (i32, i32, i32) {
    %c0_i32 = arith.constant 0 : i32
    %c0_i32_0 = arith.constant 0 : i32
    %c0_i32_1 = arith.constant 0 : i32
    return %arg0, %c0_i32, %c0_i32_0 : i32, i32, i32
  }
  func.func @transform_5(%arg0: i32) -> (i32, i32, i32) {
    %c0_i32 = arith.constant 0 : i32
    %c0_i32_0 = arith.constant 0 : i32
    %c0_i32_1 = arith.constant 0 : i32
    %c0_i32_2 = arith.constant 0 : i32
    return %c0_i32, %c0_i32_0, %c0_i32_1 : i32, i32, i32
  }
  func.func @transform_6(%arg0: i32) -> (i32, i32) {
    %c0_i32 = arith.constant 0 : i32
    %c0_i32_0 = arith.constant 0 : i32
    %c0_i32_1 = arith.constant 0 : i32
    return %c0_i32, %c0_i32_0 : i32, i32
  }
  func.func @transform_7(%arg0: i32) -> (i32, i32) {
    %c0_i32 = arith.constant 0 : i32
    %c0_i32_0 = arith.constant 0 : i32
    %c0_i32_1 = arith.constant 0 : i32
    return %c0_i32, %c0_i32_0 : i32, i32
  }
  func.func @transform_8(%arg0: i32) -> (i32, i32) {
    %c0_i32 = arith.constant 0 : i32
    %c0_i32_0 = arith.constant 0 : i32
    %c0_i32_1 = arith.constant 0 : i32
    return %c0_i32, %c0_i32_0 : i32, i32
  }
  func.func @transform_9(%arg0: i32) -> (i32, i32, i32) {
    %c0_i32 = arith.constant 0 : i32
    %c0_i32_0 = arith.constant 0 : i32
    %c0_i32_1 = arith.constant 0 : i32
    %c0_i32_2 = arith.constant 0 : i32
    return %c0_i32, %c0_i32_0, %c0_i32_1 : i32, i32, i32
  }
  func.func @transform_10(%arg0: i32) -> (i32, i32) {
    %c0_i32 = arith.constant 0 : i32
    %c0_i32_0 = arith.constant 0 : i32
    %c0_i32_1 = arith.constant 0 : i32
    return %c0_i32, %c0_i32_0 : i32, i32
  }
  func.func @transform_11(%arg0: i32) -> (i32, i32, i32) {
    %c0_i32 = arith.constant 0 : i32
    %c0_i32_0 = arith.constant 0 : i32
    %c0_i32_1 = arith.constant 0 : i32
    return %arg0, %c0_i32, %c0_i32_0 : i32, i32, i32
  }
  func.func @transform_12(%arg0: i32) -> (i32, i32, i32) {
    %c0_i32 = arith.constant 0 : i32
    %c0_i32_0 = arith.constant 0 : i32
    %c0_i32_1 = arith.constant 0 : i32
    return %arg0, %c0_i32, %c0_i32_0 : i32, i32, i32
  }
  func.func @transform_13(%arg0: i32) -> (i32, i32, i32) {
    %c0_i32 = arith.constant 0 : i32
    %c0_i32_0 = arith.constant 0 : i32
    %c0_i32_1 = arith.constant 0 : i32
    return %arg0, %c0_i32, %c0_i32_0 : i32, i32, i32
  }
}

module attributes {stable_mosaic.version = 11 : i64} {
  func.func @kernel(%arg0: i32, %arg1: memref<1x81x12xf32, #tpu.memory_space<vmem>>, %arg2: memref<1x81x12xf32, #tpu.memory_space<vmem>>, %arg3: memref<1x81x12xf32, #tpu.memory_space<vmem>>, %arg4: memref<1x81x12xf32, #tpu.memory_space<vmem>>, %arg5: memref<9x12x16xf32, #tpu.memory_space<vmem>>, %arg6: memref<1x16xf32, #tpu.memory_space<vmem>>, %arg7: memref<1x63x4xf32, #tpu.memory_space<vmem>>, %arg8: memref<1x63x24xf32, #tpu.memory_space<vmem>>, %arg9: memref<1x63x44xf32, #tpu.memory_space<vmem>>) attributes {dimension_semantics = [#tpu.dimension_semantics<parallel>], iteration_bounds = array<i64: 2>, scalar_prefetch = 0 : i64, scratch_operands = 0 : i64, tpu.core_type = #tpu.core_type<tc>, window_params = [{transform_indices = @transform_0, window_bounds = array<i64: 1, 81, 12>}, {transform_indices = @transform_1, window_bounds = array<i64: 1, 81, 12>}, {transform_indices = @transform_2, window_bounds = array<i64: 1, 81, 12>}, {transform_indices = @transform_3, window_bounds = array<i64: 1, 81, 12>}, {pipeline_mode = #tpu.pipeline_mode<synchronous>, transform_indices = @transform_4, window_bounds = array<i64: 9, 12, 16>}, {pipeline_mode = #tpu.pipeline_mode<synchronous>, transform_indices = @transform_5, window_bounds = array<i64: 1, 16>}, {transform_indices = @transform_6, window_bounds = array<i64: 1, 63, 4>}, {transform_indices = @transform_7, window_bounds = array<i64: 1, 63, 24>}, {transform_indices = @transform_8, window_bounds = array<i64: 1, 63, 44>}]} {
    %cst = arith.constant 0.000000e+00 : f32
    %0 = vector.broadcast %cst : f32 to vector<63x16xf32>
    %c0 = arith.constant 0 : index
    %c0_0 = arith.constant 0 : index
    %c0_1 = arith.constant 0 : index
    %1 = vector.load %arg1[%c0, %c0_0, %c0_1] : memref<1x81x12xf32, #tpu.memory_space<vmem>>, vector<1x63x12xf32>
    %2 = vector.shape_cast %1 : vector<1x63x12xf32> to vector<63x12xf32>
    %c0_2 = arith.constant 0 : index
    %c0_3 = arith.constant 0 : index
    %c0_4 = arith.constant 0 : index
    %3 = vector.load %arg5[%c0_2, %c0_3, %c0_4] : memref<9x12x16xf32, #tpu.memory_space<vmem>>, vector<1x12x16xf32>
    %4 = vector.shape_cast %3 : vector<1x12x16xf32> to vector<12x16xf32>
    %cst_5 = arith.constant dense<0.000000e+00> : vector<63x16xf32>
    %5 = tpu.matmul %2, %4, %cst_5 {dimension_numbers = #tpu.dot_dimension_numbers<[1], [0], [0], [1], [0, 0, 1, 1], [], []>} : vector<63x12xf32>, vector<12x16xf32>, vector<63x16xf32> -> vector<63x16xf32>
    %6 = arith.addf %0, %5 : vector<63x16xf32>
    %c0_6 = arith.constant 0 : index
    %c0_7 = arith.constant 0 : index
    %c0_8 = arith.constant 0 : index
    %7 = vector.load %arg2[%c0_6, %c0_7, %c0_8] : memref<1x81x12xf32, #tpu.memory_space<vmem>>, vector<1x63x12xf32>
    %8 = vector.shape_cast %7 : vector<1x63x12xf32> to vector<63x12xf32>
    %c1 = arith.constant 1 : index
    %c0_9 = arith.constant 0 : index
    %c0_10 = arith.constant 0 : index
    %9 = vector.load %arg5[%c1, %c0_9, %c0_10] : memref<9x12x16xf32, #tpu.memory_space<vmem>>, vector<1x12x16xf32>
    %10 = vector.shape_cast %9 : vector<1x12x16xf32> to vector<12x16xf32>
    %cst_11 = arith.constant dense<0.000000e+00> : vector<63x16xf32>
    %11 = tpu.matmul %8, %10, %cst_11 {dimension_numbers = #tpu.dot_dimension_numbers<[1], [0], [0], [1], [0, 0, 1, 1], [], []>} : vector<63x12xf32>, vector<12x16xf32>, vector<63x16xf32> -> vector<63x16xf32>
    %12 = arith.addf %6, %11 : vector<63x16xf32>
    %c0_12 = arith.constant 0 : index
    %c1_13 = arith.constant 1 : index
    %c0_14 = arith.constant 0 : index
    %13 = vector.load %arg1[%c0_12, %c1_13, %c0_14] : memref<1x81x12xf32, #tpu.memory_space<vmem>>, vector<1x63x12xf32>
    %14 = vector.shape_cast %13 : vector<1x63x12xf32> to vector<63x12xf32>
    %c2 = arith.constant 2 : index
    %c0_15 = arith.constant 0 : index
    %c0_16 = arith.constant 0 : index
    %15 = vector.load %arg5[%c2, %c0_15, %c0_16] : memref<9x12x16xf32, #tpu.memory_space<vmem>>, vector<1x12x16xf32>
    %16 = vector.shape_cast %15 : vector<1x12x16xf32> to vector<12x16xf32>
    %cst_17 = arith.constant dense<0.000000e+00> : vector<63x16xf32>
    %17 = tpu.matmul %14, %16, %cst_17 {dimension_numbers = #tpu.dot_dimension_numbers<[1], [0], [0], [1], [0, 0, 1, 1], [], []>} : vector<63x12xf32>, vector<12x16xf32>, vector<63x16xf32> -> vector<63x16xf32>
    %18 = arith.addf %12, %17 : vector<63x16xf32>
    %c0_18 = arith.constant 0 : index
    %c0_19 = arith.constant 0 : index
    %c0_20 = arith.constant 0 : index
    %19 = vector.load %arg3[%c0_18, %c0_19, %c0_20] : memref<1x81x12xf32, #tpu.memory_space<vmem>>, vector<1x63x12xf32>
    %20 = vector.shape_cast %19 : vector<1x63x12xf32> to vector<63x12xf32>
    %c3 = arith.constant 3 : index
    %c0_21 = arith.constant 0 : index
    %c0_22 = arith.constant 0 : index
    %21 = vector.load %arg5[%c3, %c0_21, %c0_22] : memref<9x12x16xf32, #tpu.memory_space<vmem>>, vector<1x12x16xf32>
    %22 = vector.shape_cast %21 : vector<1x12x16xf32> to vector<12x16xf32>
    %cst_23 = arith.constant dense<0.000000e+00> : vector<63x16xf32>
    %23 = tpu.matmul %20, %22, %cst_23 {dimension_numbers = #tpu.dot_dimension_numbers<[1], [0], [0], [1], [0, 0, 1, 1], [], []>} : vector<63x12xf32>, vector<12x16xf32>, vector<63x16xf32> -> vector<63x16xf32>
    %24 = arith.addf %18, %23 : vector<63x16xf32>
    %c0_24 = arith.constant 0 : index
    %c0_25 = arith.constant 0 : index
    %c0_26 = arith.constant 0 : index
    %25 = vector.load %arg4[%c0_24, %c0_25, %c0_26] : memref<1x81x12xf32, #tpu.memory_space<vmem>>, vector<1x63x12xf32>
    %26 = vector.shape_cast %25 : vector<1x63x12xf32> to vector<63x12xf32>
    %c4 = arith.constant 4 : index
    %c0_27 = arith.constant 0 : index
    %c0_28 = arith.constant 0 : index
    %27 = vector.load %arg5[%c4, %c0_27, %c0_28] : memref<9x12x16xf32, #tpu.memory_space<vmem>>, vector<1x12x16xf32>
    %28 = vector.shape_cast %27 : vector<1x12x16xf32> to vector<12x16xf32>
    %cst_29 = arith.constant dense<0.000000e+00> : vector<63x16xf32>
    %29 = tpu.matmul %26, %28, %cst_29 {dimension_numbers = #tpu.dot_dimension_numbers<[1], [0], [0], [1], [0, 0, 1, 1], [], []>} : vector<63x12xf32>, vector<12x16xf32>, vector<63x16xf32> -> vector<63x16xf32>
    %30 = arith.addf %24, %29 : vector<63x16xf32>
    %c0_30 = arith.constant 0 : index
    %c1_31 = arith.constant 1 : index
    %c0_32 = arith.constant 0 : index
    %31 = vector.load %arg3[%c0_30, %c1_31, %c0_32] : memref<1x81x12xf32, #tpu.memory_space<vmem>>, vector<1x63x12xf32>
    %32 = vector.shape_cast %31 : vector<1x63x12xf32> to vector<63x12xf32>
    %c5 = arith.constant 5 : index
    %c0_33 = arith.constant 0 : index
    %c0_34 = arith.constant 0 : index
    %33 = vector.load %arg5[%c5, %c0_33, %c0_34] : memref<9x12x16xf32, #tpu.memory_space<vmem>>, vector<1x12x16xf32>
    %34 = vector.shape_cast %33 : vector<1x12x16xf32> to vector<12x16xf32>
    %cst_35 = arith.constant dense<0.000000e+00> : vector<63x16xf32>
    %35 = tpu.matmul %32, %34, %cst_35 {dimension_numbers = #tpu.dot_dimension_numbers<[1], [0], [0], [1], [0, 0, 1, 1], [], []>} : vector<63x12xf32>, vector<12x16xf32>, vector<63x16xf32> -> vector<63x16xf32>
    %36 = arith.addf %30, %35 : vector<63x16xf32>
    %c0_36 = arith.constant 0 : index
    %c9 = arith.constant 9 : index
    %c0_37 = arith.constant 0 : index
    %37 = vector.load %arg1[%c0_36, %c9, %c0_37] : memref<1x81x12xf32, #tpu.memory_space<vmem>>, vector<1x63x12xf32>
    %38 = vector.shape_cast %37 : vector<1x63x12xf32> to vector<63x12xf32>
    %c6 = arith.constant 6 : index
    %c0_38 = arith.constant 0 : index
    %c0_39 = arith.constant 0 : index
    %39 = vector.load %arg5[%c6, %c0_38, %c0_39] : memref<9x12x16xf32, #tpu.memory_space<vmem>>, vector<1x12x16xf32>
    %40 = vector.shape_cast %39 : vector<1x12x16xf32> to vector<12x16xf32>
    %cst_40 = arith.constant dense<0.000000e+00> : vector<63x16xf32>
    %41 = tpu.matmul %38, %40, %cst_40 {dimension_numbers = #tpu.dot_dimension_numbers<[1], [0], [0], [1], [0, 0, 1, 1], [], []>} : vector<63x12xf32>, vector<12x16xf32>, vector<63x16xf32> -> vector<63x16xf32>
    %42 = arith.addf %36, %41 : vector<63x16xf32>
    %c0_41 = arith.constant 0 : index
    %c9_42 = arith.constant 9 : index
    %c0_43 = arith.constant 0 : index
    %43 = vector.load %arg2[%c0_41, %c9_42, %c0_43] : memref<1x81x12xf32, #tpu.memory_space<vmem>>, vector<1x63x12xf32>
    %44 = vector.shape_cast %43 : vector<1x63x12xf32> to vector<63x12xf32>
    %c7 = arith.constant 7 : index
    %c0_44 = arith.constant 0 : index
    %c0_45 = arith.constant 0 : index
    %45 = vector.load %arg5[%c7, %c0_44, %c0_45] : memref<9x12x16xf32, #tpu.memory_space<vmem>>, vector<1x12x16xf32>
    %46 = vector.shape_cast %45 : vector<1x12x16xf32> to vector<12x16xf32>
    %cst_46 = arith.constant dense<0.000000e+00> : vector<63x16xf32>
    %47 = tpu.matmul %44, %46, %cst_46 {dimension_numbers = #tpu.dot_dimension_numbers<[1], [0], [0], [1], [0, 0, 1, 1], [], []>} : vector<63x12xf32>, vector<12x16xf32>, vector<63x16xf32> -> vector<63x16xf32>
    %48 = arith.addf %42, %47 : vector<63x16xf32>
    %c0_47 = arith.constant 0 : index
    %c10 = arith.constant 10 : index
    %c0_48 = arith.constant 0 : index
    %49 = vector.load %arg1[%c0_47, %c10, %c0_48] : memref<1x81x12xf32, #tpu.memory_space<vmem>>, vector<1x63x12xf32>
    %50 = vector.shape_cast %49 : vector<1x63x12xf32> to vector<63x12xf32>
    %c8 = arith.constant 8 : index
    %c0_49 = arith.constant 0 : index
    %c0_50 = arith.constant 0 : index
    %51 = vector.load %arg5[%c8, %c0_49, %c0_50] : memref<9x12x16xf32, #tpu.memory_space<vmem>>, vector<1x12x16xf32>
    %52 = vector.shape_cast %51 : vector<1x12x16xf32> to vector<12x16xf32>
    %cst_51 = arith.constant dense<0.000000e+00> : vector<63x16xf32>
    %53 = tpu.matmul %50, %52, %cst_51 {dimension_numbers = #tpu.dot_dimension_numbers<[1], [0], [0], [1], [0, 0, 1, 1], [], []>} : vector<63x12xf32>, vector<12x16xf32>, vector<63x16xf32> -> vector<63x16xf32>
    %54 = arith.addf %48, %53 : vector<63x16xf32>
    %c0_52 = arith.constant 0 : index
    %c0_53 = arith.constant 0 : index
    %c0_54 = arith.constant 0 : index
    %55 = vector.load %arg7[%c0_52, %c0_53, %c0_54] : memref<1x63x4xf32, #tpu.memory_space<vmem>>, vector<1x63x4xf32>
    %56 = vector.shape_cast %55 : vector<1x63x4xf32> to vector<63x4xf32>
    %c0_55 = arith.constant 0 : index
    %c0_56 = arith.constant 0 : index
    %c0_57 = arith.constant 0 : index
    %57 = vector.load %arg9[%c0_55, %c0_56, %c0_57] : memref<1x63x44xf32, #tpu.memory_space<vmem>>, vector<1x63x4xf32>
    %58 = vector.shape_cast %57 : vector<1x63x4xf32> to vector<63x4xf32>
    %59 = vector.shape_cast %56 : vector<63x4xf32> to vector<1x63x4xf32>
    tpu.vector_store %arg9[%c0_55, %c0_56, %c0_57], %59 {strides = array<i32>} : memref<1x63x44xf32, #tpu.memory_space<vmem>>, vector<1x63x4xf32>,
    %c0_58 = arith.constant 0 : index
    %c0_59 = arith.constant 0 : index
    %c0_60 = arith.constant 0 : index
    %60 = vector.load %arg8[%c0_58, %c0_59, %c0_60] : memref<1x63x24xf32, #tpu.memory_space<vmem>>, vector<1x63x24xf32>
    %61 = vector.shape_cast %60 : vector<1x63x24xf32> to vector<63x24xf32>
    %c0_61 = arith.constant 0 : index
    %c0_62 = arith.constant 0 : index
    %c4_63 = arith.constant 4 : index
    %62 = vector.load %arg9[%c0_61, %c0_62, %c4_63] : memref<1x63x44xf32, #tpu.memory_space<vmem>>, vector<1x63x24xf32>
    %63 = vector.shape_cast %62 : vector<1x63x24xf32> to vector<63x24xf32>
    %64 = vector.shape_cast %61 : vector<63x24xf32> to vector<1x63x24xf32>
    tpu.vector_store %arg9[%c0_61, %c0_62, %c4_63], %64 {strides = array<i32>} : memref<1x63x44xf32, #tpu.memory_space<vmem>>, vector<1x63x24xf32>,
    %c0_64 = arith.constant 0 : index
    %c0_65 = arith.constant 0 : index
    %65 = vector.load %arg6[%c0_64, %c0_65] : memref<1x16xf32, #tpu.memory_space<vmem>>, vector<1x16xf32>
    %66 = vector.broadcast %65 : vector<1x16xf32> to vector<63x16xf32>
    %67 = arith.addf %54, %66 : vector<63x16xf32>
    %c0_66 = arith.constant 0 : index
    %c0_67 = arith.constant 0 : index
    %c28 = arith.constant 28 : index
    %68 = vector.load %arg9[%c0_66, %c0_67, %c28] : memref<1x63x44xf32, #tpu.memory_space<vmem>>, vector<1x63x16xf32>
    %69 = vector.shape_cast %68 : vector<1x63x16xf32> to vector<63x16xf32>
    %70 = vector.shape_cast %67 : vector<63x16xf32> to vector<1x63x16xf32>
    tpu.vector_store %arg9[%c0_66, %c0_67, %c28], %70 {strides = array<i32>} : memref<1x63x44xf32, #tpu.memory_space<vmem>>, vector<1x63x16xf32>,
    return
  }
  func.func @transform_0(%arg0: i32) -> (i32, i32, i32) {
    %c0_i32 = arith.constant 0 : i32
    %c0_i32_0 = arith.constant 0 : i32
    %c0_i32_1 = arith.constant 0 : i32
    return %arg0, %c0_i32, %c0_i32_0 : i32, i32, i32
  }
  func.func @transform_1(%arg0: i32) -> (i32, i32, i32) {
    %c0_i32 = arith.constant 0 : i32
    %c0_i32_0 = arith.constant 0 : i32
    %c0_i32_1 = arith.constant 0 : i32
    return %arg0, %c0_i32, %c0_i32_0 : i32, i32, i32
  }
  func.func @transform_2(%arg0: i32) -> (i32, i32, i32) {
    %c0_i32 = arith.constant 0 : i32
    %c0_i32_0 = arith.constant 0 : i32
    %c0_i32_1 = arith.constant 0 : i32
    return %arg0, %c0_i32, %c0_i32_0 : i32, i32, i32
  }
  func.func @transform_3(%arg0: i32) -> (i32, i32, i32) {
    %c0_i32 = arith.constant 0 : i32
    %c0_i32_0 = arith.constant 0 : i32
    %c0_i32_1 = arith.constant 0 : i32
    return %arg0, %c0_i32, %c0_i32_0 : i32, i32, i32
  }
  func.func @transform_4(%arg0: i32) -> (i32, i32, i32) {
    %c0_i32 = arith.constant 0 : i32
    %c0_i32_0 = arith.constant 0 : i32
    %c0_i32_1 = arith.constant 0 : i32
    %c0_i32_2 = arith.constant 0 : i32
    return %c0_i32, %c0_i32_0, %c0_i32_1 : i32, i32, i32
  }
  func.func @transform_5(%arg0: i32) -> (i32, i32) {
    %c0_i32 = arith.constant 0 : i32
    %c0_i32_0 = arith.constant 0 : i32
    %c0_i32_1 = arith.constant 0 : i32
    return %c0_i32, %c0_i32_0 : i32, i32
  }
  func.func @transform_6(%arg0: i32) -> (i32, i32, i32) {
    %c0_i32 = arith.constant 0 : i32
    %c0_i32_0 = arith.constant 0 : i32
    %c0_i32_1 = arith.constant 0 : i32
    return %arg0, %c0_i32, %c0_i32_0 : i32, i32, i32
  }
  func.func @transform_7(%arg0: i32) -> (i32, i32, i32) {
    %c0_i32 = arith.constant 0 : i32
    %c0_i32_0 = arith.constant 0 : i32
    %c0_i32_1 = arith.constant 0 : i32
    return %arg0, %c0_i32, %c0_i32_0 : i32, i32, i32
  }
  func.func @transform_8(%arg0: i32) -> (i32, i32, i32) {
    %c0_i32 = arith.constant 0 : i32
    %c0_i32_0 = arith.constant 0 : i32
    %c0_i32_1 = arith.constant 0 : i32
    return %arg0, %c0_i32, %c0_i32_0 : i32, i32, i32
  }
}

</mosaic_0001>

<llo_original>
// kernel: reduction_a_forward.3
$region0: #{reduction_a_forward.3}
  #allocation0 [shape = 'u32[]', space=smem, size = 0x4, offset = 0x4, fixed_abs, tag = 'smem constant byte address 0x4 - core index']
  #allocation1 [shape = 'u32[144,128]{1,0:T(1,128)}', space=vmem, size = 0x12000, scoped, tag = 'internal scratch']
  %s0 = inlined_call_operand.vmem [shape: f32[2,81,12], index: 0, kind: input, shape index: {}]
  %s1 = inlined_call_operand.vmem [shape: f32[2,81,12], index: 1, kind: input, shape index: {}]
  %s2 = inlined_call_operand.vmem [shape: f32[2,81,12], index: 2, kind: input, shape index: {}]
  %s3 = inlined_call_operand.vmem [shape: f32[2,81,12], index: 3, kind: input, shape index: {}]
  %s4 = inlined_call_operand.vmem [shape: f32[9,12,16], index: 4, kind: input, shape index: {}]
  %s5 = inlined_call_operand.vmem [shape: f32[1,16], index: 5, kind: input, shape index: {}]
  %s6 = inlined_call_operand.vmem [shape: f32[2,63,4], index: 6, kind: input, shape index: {}]
  %s7 = inlined_call_operand.vmem [shape: f32[2,63,24], index: 7, kind: input, shape index: {}]
  %s8 = inlined_call_operand.vmem [shape: f32[2,63,44], index: 8, kind: output, shape index: {}]
  %s9 = sld [smem:[#allocation0]]
  $region65: #{reduction_a_forward.3} parent=0
    _
  %s11 = ssub.s32 1, %s9
  %s12 = scalar_select 0, %s11, %s9
  loop: start=0, step=1, limit=4
  $region2: #{reduction_a_forward.3} parent=0 // loop_pre_header
    _
  $region3: #{reduction_a_forward.3} parent=0 // loop_header
    %s14 = sphi 0, %s18
    %p15 = scmp.ge.s32.totalorder %s14, 4
    %s24 = sphi 0, %s26
    %s27 = sphi 0, %s24
    %s28 = sphi 0, %s27
    %s44 = sphi 0, %s28
    %s50 = sphi 0, %s52
    %s53 = sphi 0, %s50
    %s54 = sphi 0, %s53
    %s70 = sphi 0, %s54
    %s76 = sphi 0, %s78
    %s79 = sphi 0, %s76
    %s80 = sphi 0, %s79
    %s96 = sphi 0, %s80
    %s102 = sphi 0, %s104
    %s105 = sphi 0, %s102
    %s106 = sphi 0, %s105
    %s122 = sphi 0, %s106
    %s126 = sphi 0, %s126
    %s128 = sphi 0, %s126
    %s129 = sphi 0, %s128
    %s143 = sphi 0, %s129
    %s147 = sphi 0, %s147
    %s149 = sphi 0, %s147
    %s150 = sphi 0, %s149
    %s164 = sphi 0, %s150
    %s170 = sphi 0, %s172
    %s173 = sphi 0, %s170
    %s174 = sphi 0, %s173
    %s190 = sphi 0, %s174
    %s196 = sphi 0, %s198
    %s199 = sphi 0, %s196
    %s200 = sphi 0, %s199
    %s216 = sphi 0, %s200
    %s222 = sphi 0, %s224
    %s225 = sphi 0, %s222
    %s226 = sphi 0, %s225
    %s242 = sphi 0, %s226
  $region4: #{reduction_a_forward.3} parent=0 // loop_header_branch
    %17 = sbr.rel (%p15) target = $region8
  $region5: #{reduction_a_forward.3} parent=0 // loop_body
    %s19 = ssub.s32 %s14, 1
    %s20 = ssub.s32 %s14, 2
    %s21 = sadd.s32 %s14, 1
    %s22 = ssub.s32 %s14, %s21
    %p23 = scmp.eq.s32.totalorder %s22, 0
    %s25 = sadd.s32 %s24, 1
    %s26 = scalar_select %p23, %s24, %s25
    %p29 = pneg %p23
    %p30 = scmp.eq.s32.totalorder %s14, 1
    %p31 = por %p29, %p30
    %p32 = scmp.ne.s32.totalorder %s24, %s27
    %p33 = scmp.eq.s32.totalorder %s14, 0
    %p34 = por %p32, %p33
    %p35 = scmp.ne.s32.totalorder %s24, %s27
    %p36 = scmp.eq.s32.totalorder %s19, 1
    %p37 = por %p35, %p36
    %p38 = scmp.ne.s32.totalorder %s27, %s28
    %p39 = scmp.eq.s32.totalorder %s19, 0
    %p40 = por %p38, %p39
    %p41 = scmp.ne.s32.totalorder %s27, %s28
    %p42 = scmp.eq.s32.totalorder %s20, 1
    %p43 = por %p41, %p42
    %p45 = scmp.ne.s32.totalorder %s28, %s44
    %p46 = scmp.eq.s32.totalorder %s20, 0
    %p47 = por %p45, %p46
    %s48 = ssub.s32 %s14, %s21
    %p49 = scmp.eq.s32.totalorder %s48, 0
    %s51 = sadd.s32 %s50, 1
    %s52 = scalar_select %p49, %s50, %s51
    %p55 = pneg %p49
    %p56 = scmp.eq.s32.totalorder %s14, 1
    %p57 = por %p55, %p56
    %p58 = scmp.ne.s32.totalorder %s50, %s53
    %p59 = scmp.eq.s32.totalorder %s14, 0
    %p60 = por %p58, %p59
    %p61 = scmp.ne.s32.totalorder %s50, %s53
    %p62 = scmp.eq.s32.totalorder %s19, 1
    %p63 = por %p61, %p62
    %p64 = scmp.ne.s32.totalorder %s53, %s54
    %p65 = scmp.eq.s32.totalorder %s19, 0
    %p66 = por %p64, %p65
    %p67 = scmp.ne.s32.totalorder %s53, %s54
    %p68 = scmp.eq.s32.totalorder %s20, 1
    %p69 = por %p67, %p68
    %p71 = scmp.ne.s32.totalorder %s54, %s70
    %p72 = scmp.eq.s32.totalorder %s20, 0
    %p73 = por %p71, %p72
    %s74 = ssub.s32 %s14, %s21
    %p75 = scmp.eq.s32.totalorder %s74, 0
    %s77 = sadd.s32 %s76, 1
    %s78 = scalar_select %p75, %s76, %s77
    %p81 = pneg %p75
    %p82 = scmp.eq.s32.totalorder %s14, 1
    %p83 = por %p81, %p82
    %p84 = scmp.ne.s32.totalorder %s76, %s79
    %p85 = scmp.eq.s32.totalorder %s14, 0
    %p86 = por %p84, %p85
    %p87 = scmp.ne.s32.totalorder %s76, %s79
    %p88 = scmp.eq.s32.totalorder %s19, 1
    %p89 = por %p87, %p88
    %p90 = scmp.ne.s32.totalorder %s79, %s80
    %p91 = scmp.eq.s32.totalorder %s19, 0
    %p92 = por %p90, %p91
    %p93 = scmp.ne.s32.totalorder %s79, %s80
    %p94 = scmp.eq.s32.totalorder %s20, 1
    %p95 = por %p93, %p94
    %p97 = scmp.ne.s32.totalorder %s80, %s96
    %p98 = scmp.eq.s32.totalorder %s20, 0
    %p99 = por %p97, %p98
    %s100 = ssub.s32 %s14, %s21
    %p101 = scmp.eq.s32.totalorder %s100, 0
    %s103 = sadd.s32 %s102, 1
    %s104 = scalar_select %p101, %s102, %s103
    %p107 = pneg %p101
    %p108 = scmp.eq.s32.totalorder %s14, 1
    %p109 = por %p107, %p108
    %p110 = scmp.ne.s32.totalorder %s102, %s105
    %p111 = scmp.eq.s32.totalorder %s14, 0
    %p112 = por %p110, %p111
    %p113 = scmp.ne.s32.totalorder %s102, %s105
    %p114 = scmp.eq.s32.totalorder %s19, 1
    %p115 = por %p113, %p114
    %p116 = scmp.ne.s32.totalorder %s105, %s106
    %p117 = scmp.eq.s32.totalorder %s19, 0
    %p118 = por %p116, %p117
    %p119 = scmp.ne.s32.totalorder %s105, %s106
    %p120 = scmp.eq.s32.totalorder %s20, 1
    %p121 = por %p119, %p120
    %p123 = scmp.ne.s32.totalorder %s106, %s122
    %p124 = scmp.eq.s32.totalorder %s20, 0
    %p125 = por %p123, %p124
    %s127 = sadd.s32 %s126, 1
    %p130 = scmp.eq.s32.totalorder %s14, 1
    %p131 = scmp.ne.s32.totalorder %s126, %s128
    %p132 = scmp.eq.s32.totalorder %s14, 0
    %p133 = por %p131, %p132
    %p134 = scmp.ne.s32.totalorder %s126, %s128
    %p135 = scmp.eq.s32.totalorder %s19, 1
    %p136 = por %p134, %p135
    %p137 = scmp.ne.s32.totalorder %s128, %s129
    %p138 = scmp.eq.s32.totalorder %s19, 0
    %p139 = por %p137, %p138
    %p140 = scmp.ne.s32.totalorder %s128, %s129
    %p141 = scmp.eq.s32.totalorder %s20, 1
    %p142 = por %p140, %p141
    %p144 = scmp.ne.s32.totalorder %s129, %s143
    %p145 = scmp.eq.s32.totalorder %s20, 0
    %p146 = por %p144, %p145
    %s148 = sadd.s32 %s147, 1
    %p151 = scmp.eq.s32.totalorder %s14, 1
    %p152 = scmp.ne.s32.totalorder %s147, %s149
    %p153 = scmp.eq.s32.totalorder %s14, 0
    %p154 = por %p152, %p153
    %p155 = scmp.ne.s32.totalorder %s147, %s149
    %p156 = scmp.eq.s32.totalorder %s19, 1
    %p157 = por %p155, %p156
    %p158 = scmp.ne.s32.totalorder %s149, %s150
    %p159 = scmp.eq.s32.totalorder %s19, 0
    %p160 = por %p158, %p159
    %p161 = scmp.ne.s32.totalorder %s149, %s150
    %p162 = scmp.eq.s32.totalorder %s20, 1
    %p163 = por %p161, %p162
    %p165 = scmp.ne.s32.totalorder %s150, %s164
    %p166 = scmp.eq.s32.totalorder %s20, 0
    %p167 = por %p165, %p166
    %s168 = ssub.s32 %s14, %s21
    %p169 = scmp.eq.s32.totalorder %s168, 0
    %s171 = sadd.s32 %s170, 1
    %s172 = scalar_select %p169, %s170, %s171
    %p175 = pneg %p169
    %p176 = scmp.eq.s32.totalorder %s14, 1
    %p177 = por %p175, %p176
    %p178 = scmp.ne.s32.totalorder %s170, %s173
    %p179 = scmp.eq.s32.totalorder %s14, 0
    %p180 = por %p178, %p179
    %p181 = scmp.ne.s32.totalorder %s170, %s173
    %p182 = scmp.eq.s32.totalorder %s19, 1
    %p183 = por %p181, %p182
    %p184 = scmp.ne.s32.totalorder %s173, %s174
    %p185 = scmp.eq.s32.totalorder %s19, 0
    %p186 = por %p184, %p185
    %p187 = scmp.ne.s32.totalorder %s173, %s174
    %p188 = scmp.eq.s32.totalorder %s20, 1
    %p189 = por %p187, %p188
    %p191 = scmp.ne.s32.totalorder %s174, %s190
    %p192 = scmp.eq.s32.totalorder %s20, 0
    %p193 = por %p191, %p192
    %s194 = ssub.s32 %s14, %s21
    %p195 = scmp.eq.s32.totalorder %s194, 0
    %s197 = sadd.s32 %s196, 1
    %s198 = scalar_select %p195, %s196, %s197
    %p201 = pneg %p195
    %p202 = scmp.eq.s32.totalorder %s14, 1
    %p203 = por %p201, %p202
    %p204 = scmp.ne.s32.totalorder %s196, %s199
    %p205 = scmp.eq.s32.totalorder %s14, 0
    %p206 = por %p204, %p205
    %p207 = scmp.ne.s32.totalorder %s196, %s199
    %p208 = scmp.eq.s32.totalorder %s19, 1
    %p209 = por %p207, %p208
    %p210 = scmp.ne.s32.totalorder %s199, %s200
    %p211 = scmp.eq.s32.totalorder %s19, 0
    %p212 = por %p210, %p211
    %p213 = scmp.ne.s32.totalorder %s199, %s200
    %p214 = scmp.eq.s32.totalorder %s20, 1
    %p215 = por %p213, %p214
    %p217 = scmp.ne.s32.totalorder %s200, %s216
    %p218 = scmp.eq.s32.totalorder %s20, 0
    %p219 = por %p217, %p218
    %s220 = ssub.s32 %s14, %s21
    %p221 = scmp.eq.s32.totalorder %s220, 0
    %s223 = sadd.s32 %s222, 1
    %s224 = scalar_select %p221, %s222, %s223
    %p227 = pneg %p221
    %p228 = scmp.eq.s32.totalorder %s14, 1
    %p229 = por %p227, %p228
    %p230 = scmp.ne.s32.totalorder %s222, %s225
    %p231 = scmp.eq.s32.totalorder %s14, 0
    %p232 = por %p230, %p231
    %p233 = scmp.ne.s32.totalorder %s222, %s225
    %p234 = scmp.eq.s32.totalorder %s19, 1
    %p235 = por %p233, %p234
    %p236 = scmp.ne.s32.totalorder %s225, %s226
    %p237 = scmp.eq.s32.totalorder %s19, 0
    %p238 = por %p236, %p237
    %p239 = scmp.ne.s32.totalorder %s225, %s226
    %p240 = scmp.eq.s32.totalorder %s20, 1
    %p241 = por %p239, %p240
    %p243 = scmp.ne.s32.totalorder %s226, %s242
    %p244 = scmp.eq.s32.totalorder %s20, 0
    %p245 = por %p243, %p244
    %p246 = scmp.le.s32.totalorder 1, %s14
    %p247 = scmp.lt.s32.totalorder %s14, 3
    %p248 = pnand %p246, %p247
    %p249 = pneg %p248
    // Predicated region
    $region9: #{reduction_a_forward.3} parent=5 // pred_check
      _
    $region10: #{reduction_a_forward.3} parent=5 // pred_check_branch
      %251 = sbr.rel (%p248) target = $region12
    $region11: #{reduction_a_forward.3} parent=5 // pred_region
      %s252 = ssub.s32 %s14, 1
      // Predicated region
      $region13: #{reduction_a_forward.3} parent=11 // pred_check
        %p253 = pneg %p139
      $region14: #{reduction_a_forward.3} parent=11 // pred_check_branch
        %255 = sbr.rel (%p253) target = $region16
      $region15: #{reduction_a_forward.3} parent=11 // pred_region
        _
      $region16: #{reduction_a_forward.3} parent=11 // pred_fallthru
        _
      // Predicated region
      $region17: #{reduction_a_forward.3} parent=11 // pred_check
        %p256 = pneg %p160
      $region18: #{reduction_a_forward.3} parent=11 // pred_check_branch
        %258 = sbr.rel (%p256) target = $region20
      $region19: #{reduction_a_forward.3} parent=11 // pred_region
        _
      $region20: #{reduction_a_forward.3} parent=11 // pred_fallthru
        _
    $region12: #{reduction_a_forward.3} parent=5 // pred_fallthru
      _
    %p259 = scmp.lt.s32.totalorder %s14, 2
    // Predicated region
    $region21: #{reduction_a_forward.3} parent=5 // pred_check
      %p260 = pneg %p259
    $region22: #{reduction_a_forward.3} parent=5 // pred_check_branch
      %262 = sbr.rel (%p260) target = $region24
    $region23: #{reduction_a_forward.3} parent=5 // pred_region
      // Predicated region
      $region25: #{reduction_a_forward.3} parent=23 // pred_check
        %p263 = pneg %p34
      $region26: #{reduction_a_forward.3} parent=23 // pred_check_branch
        %265 = sbr.rel (%p263) target = $region28
      $region27: #{reduction_a_forward.3} parent=23 // pred_region
        %p266 = scmp.lt.s32.totalorder %s14, 1
        %s267 = scalar_select %p266, %s14, 1
        %s268 = smul.addr %s267, 11
        %s269 = smul.addr %s268, 8
        %s270 = scalar_lea.vmem %s0, %s269
      $region28: #{reduction_a_forward.3} parent=23 // pred_fallthru
        _
      // Predicated region
      $region29: #{reduction_a_forward.3} parent=23 // pred_check
        %p271 = pneg %p60
      $region30: #{reduction_a_forward.3} parent=23 // pred_check_branch
        %273 = sbr.rel (%p271) target = $region32
      $region31: #{reduction_a_forward.3} parent=23 // pred_region
        %p274 = scmp.lt.s32.totalorder %s14, 1
        %s275 = scalar_select %p274, %s14, 1
        %s276 = smul.addr %s275, 11
        %s277 = smul.addr %s276, 8
        %s278 = scalar_lea.vmem %s1, %s277
      $region32: #{reduction_a_forward.3} parent=23 // pred_fallthru
        _
      // Predicated region
      $region33: #{reduction_a_forward.3} parent=23 // pred_check
        %p279 = pneg %p86
      $region34: #{reduction_a_forward.3} parent=23 // pred_check_branch
        %281 = sbr.rel (%p279) target = $region36
      $region35: #{reduction_a_forward.3} parent=23 // pred_region
        %p282 = scmp.lt.s32.totalorder %s14, 1
        %s283 = scalar_select %p282, %s14, 1
        %s284 = smul.addr %s283, 11
        %s285 = smul.addr %s284, 8
        %s286 = scalar_lea.vmem %s2, %s285
      $region36: #{reduction_a_forward.3} parent=23 // pred_fallthru
        _
      // Predicated region
      $region37: #{reduction_a_forward.3} parent=23 // pred_check
        %p287 = pneg %p112
      $region38: #{reduction_a_forward.3} parent=23 // pred_check_branch
        %289 = sbr.rel (%p287) target = $region40
      $region39: #{reduction_a_forward.3} parent=23 // pred_region
        %p290 = scmp.lt.s32.totalorder %s14, 1
        %s291 = scalar_select %p290, %s14, 1
        %s292 = smul.addr %s291, 11
        %s293 = smul.addr %s292, 8
        %s294 = scalar_lea.vmem %s3, %s293
      $region40: #{reduction_a_forward.3} parent=23 // pred_fallthru
        _
      // Predicated region
      $region41: #{reduction_a_forward.3} parent=23 // pred_check
        %p295 = pneg %p180
      $region42: #{reduction_a_forward.3} parent=23 // pred_check_branch
        %297 = sbr.rel (%p295) target = $region44
      $region43: #{reduction_a_forward.3} parent=23 // pred_region
        %p298 = scmp.lt.s32.totalorder %s14, 1
        %s299 = scalar_select %p298, %s14, 1
        %s300 = smul.addr %s299, 8
        %s301 = smul.addr %s300, 8
        %s302 = scalar_lea.vmem %s6, %s301
      $region44: #{reduction_a_forward.3} parent=23 // pred_fallthru
        _
      // Predicated region
      $region45: #{reduction_a_forward.3} parent=23 // pred_check
        %p303 = pneg %p206
      $region46: #{reduction_a_forward.3} parent=23 // pred_check_branch
        %305 = sbr.rel (%p303) target = $region48
      $region47: #{reduction_a_forward.3} parent=23 // pred_region
        %p306 = scmp.lt.s32.totalorder %s14, 1
        %s307 = scalar_select %p306, %s14, 1
        %s308 = smul.addr %s307, 8
        %s309 = smul.addr %s308, 8
        %s310 = scalar_lea.vmem %s7, %s309
      $region48: #{reduction_a_forward.3} parent=23 // pred_fallthru
        _
    $region24: #{reduction_a_forward.3} parent=5 // pred_fallthru
      _
    %p311 = scmp.le.s32.totalorder 1, %s14
    %p312 = scmp.lt.s32.totalorder %s14, 3
    %p313 = pnand %p311, %p312
    %p314 = pneg %p313
    // Predicated region
    $region49: #{reduction_a_forward.3} parent=5 // pred_check
      _
    $region50: #{reduction_a_forward.3} parent=5 // pred_check_branch
      %316 = sbr.rel (%p313) target = $region52
    $region51: #{reduction_a_forward.3} parent=5 // pred_region
      %s317 = ssub.s32 %s14, 1
      %p318 = scmp.lt.s32.totalorder %s19, 1
      %s319 = scalar_select %p318, %s19, 1
      %s320 = smul.addr %s319, 11
      %s321 = smul.addr %s320, 8
      %s322 = scalar_lea.vmem %s0, %s321
      %p323 = pneg %p40
      %p324 = pneg %p37
      %p325 = scmp.lt.s32.totalorder %s19, 1
      %s326 = scalar_select %p325, %s19, 1
      %s327 = smul.addr %s326, 11
      %s328 = smul.addr %s327, 8
      %s329 = scalar_lea.vmem %s1, %s328
      %p330 = pneg %p66
      %p331 = pneg %p63
      %p332 = scmp.lt.s32.totalorder %s19, 1
      %s333 = scalar_select %p332, %s19, 1
      %s334 = smul.addr %s333, 11
      %s335 = smul.addr %s334, 8
      %s336 = scalar_lea.vmem %s2, %s335
      %p337 = pneg %p92
      %p338 = pneg %p89
      %p339 = scmp.lt.s32.totalorder %s19, 1
      %s340 = scalar_select %p339, %s19, 1
      %s341 = smul.addr %s340, 11
      %s342 = smul.addr %s341, 8
      %s343 = scalar_lea.vmem %s3, %s342
      %p344 = pneg %p118
      %p345 = pneg %p115
      %p346 = pneg %p139
      %p347 = pneg %p136
      %p348 = pneg %p160
      %p349 = pneg %p157
      %p350 = scmp.lt.s32.totalorder %s19, 1
      %s351 = scalar_select %p350, %s19, 1
      %s352 = smul.addr %s351, 8
      %s353 = smul.addr %s352, 8
      %s354 = scalar_lea.vmem %s6, %s353
      %p355 = pneg %p186
      %p356 = pneg %p183
      %p357 = scmp.lt.s32.totalorder %s19, 1
      %s358 = scalar_select %p357, %s19, 1
      %s359 = smul.addr %s358, 8
      %s360 = smul.addr %s359, 8
      %s361 = scalar_lea.vmem %s7, %s360
      %p362 = pneg %p212
      %p363 = pneg %p209
      %p364 = pneg %p238
      %p365 = pneg %p235
      %p366 = scmp.lt.s32.totalorder %s19, 1
      %s367 = scalar_select %p366, %s19, 1
      %s368 = smul.addr %s367, 8
      %s369 = smul.addr %s368, 8
      %s370 = scalar_lea.vmem %s8, %s369
      %p371 = scmp.lt.s32.totalorder %s19, 1
      %s372 = scalar_select %p371, %s19, 1
      %s373 = smul.addr %s372, 11
      %s374 = smul.addr %s373, 8
      %s375 = scalar_lea.vmem %s0, %s374
      %p376 = scmp.lt.s32.totalorder %s19, 1
      %s377 = scalar_select %p376, %s19, 1
      %s378 = smul.addr %s377, 11
      %s379 = smul.addr %s378, 8
      %s380 = scalar_lea.vmem %s1, %s379
      %p381 = scmp.lt.s32.totalorder %s19, 1
      %s382 = scalar_select %p381, %s19, 1
      %s383 = smul.addr %s382, 11
      %s384 = smul.addr %s383, 8
      %s385 = scalar_lea.vmem %s2, %s384
      %p386 = scmp.lt.s32.totalorder %s19, 1
      %s387 = scalar_select %p386, %s19, 1
      %s388 = smul.addr %s387, 11
      %s389 = smul.addr %s388, 8
      %s390 = scalar_lea.vmem %s3, %s389
      %p391 = scmp.lt.s32.totalorder %s19, 1
      %s392 = scalar_select %p391, %s19, 1
      %s393 = smul.addr %s392, 8
      %s394 = smul.addr %s393, 8
      %s395 = scalar_lea.vmem %s6, %s394
      %p396 = scmp.lt.s32.totalorder %s19, 1
      %s397 = scalar_select %p396, %s19, 1
      %s398 = smul.addr %s397, 8
      %s399 = smul.addr %s398, 8
      %s400 = scalar_lea.vmem %s7, %s399
      %p401 = scmp.lt.s32.totalorder %s19, 1
      %s402 = scalar_select %p401, %s19, 1
      %s403 = smul.addr %s402, 8
      %s404 = smul.addr %s403, 8
      %s405 = scalar_lea.vmem %s8, %s404
      %v406 = vld [vmem:[%s375] sm:$0xff]
      %v407 = vld [vmem:[%s375 + $0x8] sm:$0xff]
      %v408 = vld [vmem:[%s375 + $0x10] sm:$0xff]
      %v409 = vld [vmem:[%s375 + $0x18] sm:$0xff]
      %v410 = vld [vmem:[%s375 + $0x20] sm:$0xff]
      %v411 = vld [vmem:[%s375 + $0x28] sm:$0xff]
      %v412 = vld [vmem:[%s375 + $0x30] sm:$0xff]
      %v413 = vld [vmem:[%s375 + $0x38] sm:$0x7f]
      %v414 = vld [vmem:[%s4] sm:$0xff]
      %v415 = vld [vmem:[%s4 + $0x8] sm:$0xf]
      %v416 = vld [vmem:[%s380] sm:$0xff]
      %v417 = vld [vmem:[%s380 + $0x8] sm:$0xff]
      %v418 = vld [vmem:[%s380 + $0x10] sm:$0xff]
      %v419 = vld [vmem:[%s380 + $0x18] sm:$0xff]
      %v420 = vld [vmem:[%s380 + $0x20] sm:$0xff]
      %v421 = vld [vmem:[%s380 + $0x28] sm:$0xff]
      %v422 = vld [vmem:[%s380 + $0x30] sm:$0xff]
      %v423 = vld [vmem:[%s380 + $0x38] sm:$0x7f]
      %s424 = scalar_lea.vmem %s4, 16
      %v425 = vld [vmem:[%s424] sm:$0xff]
      %v426 = vld [vmem:[%s424 + $0x8] sm:$0xf]
      %vm427 = vcmask 97280
      %v429 = vsel %vm427, %v416, 0
      %v432 = vsel %vm427, %v417, 0
      %v435 = vsel %vm427, %v418, 0
      %v438 = vsel %vm427, %v419, 0
      %v441 = vsel %vm427, %v420, 0
      %v444 = vsel %vm427, %v421, 0
      %v447 = vsel %vm427, %v422, 0
      %v450 = vsel %vm427, %v423, 0
      %vm452 = vcmask 1043456
      %v454 = vsel %vm452, %v426, 0
      %456 = vmatprep.subr.mxu0 0.0
      %457 = vmatpush1.msra.mxu0 %v425
      %458 = vmatprep.subr.mxu0 0.0
      %459 = vmatpush1.msra.mxu0 %v454
      %460 = vmatprep.subr.mxu0 0.0
      %461 = vmatpush1.msra.mxu0 0.0
      %462 = vmatprep.subr.mxu0 0.0
      %463 = vmatpush1.msra.mxu0 0.0
      %464 = vmatprep.subr.mxu0 0.0
      %465 = vmatpush1.msra.mxu0 0.0
      %466 = vmatprep.subr.mxu0 0.0
      %467 = vmatpush1.msra.mxu0 0.0
      %468 = vmatprep.subr.mxu0 0.0
      %469 = vmatpush1.msra.mxu0 0.0
      %470 = vmatprep.subr.mxu0 0.0
      %471 = vmatpush1.msra.mxu0 0.0
      %472 = vmatprep.subr.mxu0 0.0
      %473 = vmatpush1.msra.mxu0 0.0
      %474 = vmatprep.subr.mxu0 0.0
      %475 = vmatpush1.msra.mxu0 0.0
      %476 = vmatprep.subr.mxu0 0.0
      %477 = vmatpush1.msra.mxu0 0.0
      %478 = vmatprep.subr.mxu0 0.0
      %479 = vmatpush1.msra.mxu0 0.0
      %480 = vmatprep.subr.mxu0 0.0
      %481 = vmatpush1.msra.mxu0 0.0
      %482 = vmatprep.subr.mxu0 0.0
      %483 = vmatpush1.msra.mxu0 0.0
      %484 = vmatprep.subr.mxu0 0.0
      %485 = vmatpush1.msra.mxu0 0.0
      %486 = vmatprep.subr.mxu0 0.0
      %487 = vmatpush1.msra.mxu0 0.0
      %488 = vmatprep.subr.mxu0 0.0
      %489 = vmatpush1.msra.mxu0 0.0
      %490 = vmatprep.subr.mxu0 0.0
      %491 = vmatpush1.msra.mxu0 0.0
      %492 = vmatprep.subr.mxu0 0.0
      %493 = vmatpush1.msra.mxu0 0.0
      %494 = vmatprep.subr.mxu0 0.0
      %495 = vmatpush1.msra.mxu0 0.0
      %496 = vmatprep.subr.mxu0 0.0
      %497 = vmatpush1.msra.mxu0 0.0
      %498 = vmatprep.subr.mxu0 0.0
      %499 = vmatpush1.msra.mxu0 0.0
      %500 = vmatprep.subr.mxu0 0.0
      %501 = vmatpush1.msra.mxu0 0.0
      %502 = vmatprep.subr.mxu0 0.0
      %503 = vmatpush1.msra.mxu0 0.0
      %504 = vmatprep.subr.mxu0 0.0
      %505 = vmatpush1.msra.mxu0 0.0
      %506 = vmatprep.subr.mxu0 0.0
      %507 = vmatpush1.msra.mxu0 0.0
      %508 = vmatprep.subr.mxu0 0.0
      %509 = vmatpush1.msra.mxu0 0.0
      %510 = vmatprep.subr.mxu0 0.0
      %511 = vmatpush1.msra.mxu0 0.0
      %512 = vmatprep.subr.mxu0 0.0
      %513 = vmatpush1.msra.mxu0 0.0
      %514 = vmatprep.subr.mxu0 0.0
      %515 = vmatpush1.msra.mxu0 0.0
      %516 = vmatprep.subr.mxu0 0.0
      %517 = vmatpush1.msra.mxu0 0.0
      %518 = vmatprep.subr.mxu0 0.0
      %519 = vmatpush1.msra.mxu0 0.0
      %520 = vmatprep.mubr.f32.mxu0 0.0
      %521 = vmatmul.mubr.f32.gmra.mrb[0].mxu0 %v429
      %v522 = vpop.f32.mrb[0].mxu0
      %v523 = vadd.f32 0.0, %v522
      %v524 = vpop.f32.mrb[0].mxu0
      %525 = vmatprep.mubr.f32.mxu0 0.0
      %526 = vmatmul.mubr.f32.gmra.mrb[0].mxu0 %v432
      %v527 = vpop.f32.mrb[0].mxu0
      %v528 = vadd.f32 0.0, %v527
      %v529 = vpop.f32.mrb[0].mxu0
      %530 = vmatprep.mubr.f32.mxu0 0.0
      %531 = vmatmul.mubr.f32.gmra.mrb[0].mxu0 %v435
      %v532 = vpop.f32.mrb[0].mxu0
      %v533 = vadd.f32 0.0, %v532
      %v534 = vpop.f32.mrb[0].mxu0
      %535 = vmatprep.mubr.f32.mxu0 0.0
      %536 = vmatmul.mubr.f32.gmra.mrb[0].mxu0 %v438
      %v537 = vpop.f32.mrb[0].mxu0
      %v538 = vadd.f32 0.0, %v537
      %v539 = vpop.f32.mrb[0].mxu0
      %540 = vmatprep.mubr.f32.mxu0 0.0
      %541 = vmatmul.mubr.f32.gmra.mrb[0].mxu0 %v441
      %v542 = vpop.f32.mrb[0].mxu0
      %v543 = vadd.f32 0.0, %v542
      %v544 = vpop.f32.mrb[0].mxu0
      %545 = vmatprep.mubr.f32.mxu0 0.0
      %546 = vmatmul.mubr.f32.gmra.mrb[0].mxu0 %v444
      %v547 = vpop.f32.mrb[0].mxu0
      %v548 = vadd.f32 0.0, %v547
      %v549 = vpop.f32.mrb[0].mxu0
      %550 = vmatprep.mubr.f32.mxu0 0.0
      %551 = vmatmul.mubr.f32.gmra.mrb[0].mxu0 %v447
      %v552 = vpop.f32.mrb[0].mxu0
      %v553 = vadd.f32 0.0, %v552
      %v554 = vpop.f32.mrb[0].mxu0
      %555 = vmatprep.mubr.f32.mxu0 0.0
      %556 = vmatmul.mubr.f32.gmra.mrb[0].mxu0 %v450
      %v557 = vpop.f32.mrb[0].mxu0
      %v558 = vadd.f32 0.0, %v557
      %v559 = vpop.f32.mrb[0].mxu0
      %560 = vdwg.mxu0
      %v562 = vsel %vm427, %v406, 0
      %v565 = vsel %vm427, %v407, 0
      %v568 = vsel %vm427, %v408, 0
      %v571 = vsel %vm427, %v409, 0
      %v574 = vsel %vm427, %v410, 0
      %v577 = vsel %vm427, %v411, 0
      %v580 = vsel %vm427, %v412, 0
      %v583 = vsel %vm427, %v413, 0
      %v586 = vsel %vm452, %v415, 0
      %588 = vmatprep.subr.mxu0 0.0
      %589 = vmatpush1.msra.mxu0 %v414
      %590 = vmatprep.subr.mxu0 0.0
      %591 = vmatpush1.msra.mxu0 %v586
      %592 = vmatprep.subr.mxu0 0.0
      %593 = vmatpush1.msra.mxu0 0.0
      %594 = vmatprep.subr.mxu0 0.0
      %595 = vmatpush1.msra.mxu0 0.0
      %596 = vmatprep.subr.mxu0 0.0
      %597 = vmatpush1.msra.mxu0 0.0
      %598 = vmatprep.subr.mxu0 0.0
      %599 = vmatpush1.msra.mxu0 0.0
      %600 = vmatprep.subr.mxu0 0.0
      %601 = vmatpush1.msra.mxu0 0.0
      %602 = vmatprep.subr.mxu0 0.0
      %603 = vmatpush1.msra.mxu0 0.0
      %604 = vmatprep.subr.mxu0 0.0
      %605 = vmatpush1.msra.mxu0 0.0
      %606 = vmatprep.subr.mxu0 0.0
      %607 = vmatpush1.msra.mxu0 0.0
      %608 = vmatprep.subr.mxu0 0.0
      %609 = vmatpush1.msra.mxu0 0.0
      %610 = vmatprep.subr.mxu0 0.0
      %611 = vmatpush1.msra.mxu0 0.0
      %612 = vmatprep.subr.mxu0 0.0
      %613 = vmatpush1.msra.mxu0 0.0
      %614 = vmatprep.subr.mxu0 0.0
      %615 = vmatpush1.msra.mxu0 0.0
      %616 = vmatprep.subr.mxu0 0.0
      %617 = vmatpush1.msra.mxu0 0.0
      %618 = vmatprep.subr.mxu0 0.0
      %619 = vmatpush1.msra.mxu0 0.0
      %620 = vmatprep.subr.mxu0 0.0
      %621 = vmatpush1.msra.mxu0 0.0
      %622 = vmatprep.subr.mxu0 0.0
      %623 = vmatpush1.msra.mxu0 0.0
      %624 = vmatprep.subr.mxu0 0.0
      %625 = vmatpush1.msra.mxu0 0.0
      %626 = vmatprep.subr.mxu0 0.0
      %627 = vmatpush1.msra.mxu0 0.0
      %628 = vmatprep.subr.mxu0 0.0
      %629 = vmatpush1.msra.mxu0 0.0
      %630 = vmatprep.subr.mxu0 0.0
      %631 = vmatpush1.msra.mxu0 0.0
      %632 = vmatprep.subr.mxu0 0.0
      %633 = vmatpush1.msra.mxu0 0.0
      %634 = vmatprep.subr.mxu0 0.0
      %635 = vmatpush1.msra.mxu0 0.0
      %636 = vmatprep.subr.mxu0 0.0
      %637 = vmatpush1.msra.mxu0 0.0
      %638 = vmatprep.subr.mxu0 0.0
      %639 = vmatpush1.msra.mxu0 0.0
      %640 = vmatprep.subr.mxu0 0.0
      %641 = vmatpush1.msra.mxu0 0.0
      %642 = vmatprep.subr.mxu0 0.0
      %643 = vmatpush1.msra.mxu0 0.0
      %644 = vmatprep.subr.mxu0 0.0
      %645 = vmatpush1.msra.mxu0 0.0
      %646 = vmatprep.subr.mxu0 0.0
      %647 = vmatpush1.msra.mxu0 0.0
      %648 = vmatprep.subr.mxu0 0.0
      %649 = vmatpush1.msra.mxu0 0.0
      %650 = vmatprep.subr.mxu0 0.0
      %651 = vmatpush1.msra.mxu0 0.0
      %652 = vmatprep.mubr.f32.mxu0 0.0
      %653 = vmatmul.mubr.f32.gmra.mrb[0].mxu0 %v562
      %v654 = vpop.f32.mrb[0].mxu0
      %v655 = vadd.f32 %v523, %v654
      %v656 = vpop.f32.mrb[0].mxu0
      %657 = vmatprep.mubr.f32.mxu0 0.0
      %658 = vmatmul.mubr.f32.gmra.mrb[0].mxu0 %v565
      %v659 = vpop.f32.mrb[0].mxu0
      %v660 = vadd.f32 %v528, %v659
      %v661 = vpop.f32.mrb[0].mxu0
      %662 = vmatprep.mubr.f32.mxu0 0.0
      %663 = vmatmul.mubr.f32.gmra.mrb[0].mxu0 %v568
      %v664 = vpop.f32.mrb[0].mxu0
      %v665 = vadd.f32 %v533, %v664
      %v666 = vpop.f32.mrb[0].mxu0
      %667 = vmatprep.mubr.f32.mxu0 0.0
      %668 = vmatmul.mubr.f32.gmra.mrb[0].mxu0 %v571
      %v669 = vpop.f32.mrb[0].mxu0
      %v670 = vadd.f32 %v538, %v669
      %v671 = vpop.f32.mrb[0].mxu0
      %672 = vmatprep.mubr.f32.mxu0 0.0
      %673 = vmatmul.mubr.f32.gmra.mrb[0].mxu0 %v574
      %v674 = vpop.f32.mrb[0].mxu0
      %v675 = vadd.f32 %v543, %v674
      %v676 = vpop.f32.mrb[0].mxu0
      %677 = vmatprep.mubr.f32.mxu0 0.0
      %678 = vmatmul.mubr.f32.gmra.mrb[0].mxu0 %v577
      %v679 = vpop.f32.mrb[0].mxu0
      %v680 = vadd.f32 %v548, %v679
      %v681 = vpop.f32.mrb[0].mxu0
      %682 = vmatprep.mubr.f32.mxu0 0.0
      %683 = vmatmul.mubr.f32.gmra.mrb[0].mxu0 %v580
      %v684 = vpop.f32.mrb[0].mxu0
      %v685 = vadd.f32 %v553, %v684
      %v686 = vpop.f32.mrb[0].mxu0
      %687 = vmatprep.mubr.f32.mxu0 0.0
      %688 = vmatmul.mubr.f32.gmra.mrb[0].mxu0 %v583
      %v689 = vpop.f32.mrb[0].mxu0
      %v690 = vadd.f32 %v558, %v689
      %v691 = vpop.f32.mrb[0].mxu0
      %692 = vdwg.mxu0
      %v693 = vld [vmem:[%s375 + $0x1] sm:$0xff]
      %v694 = vld [vmem:[%s375 + $0x9] sm:$0xff]
      %v695 = vld [vmem:[%s375 + $0x11] sm:$0xff]
      %v696 = vld [vmem:[%s375 + $0x19] sm:$0xff]
      %v697 = vld [vmem:[%s375 + $0x21] sm:$0xff]
      %v698 = vld [vmem:[%s375 + $0x29] sm:$0xff]
      %v699 = vld [vmem:[%s375 + $0x31] sm:$0xff]
      %v700 = vld [vmem:[%s375 + $0x39] sm:$0x7f]
      %s701 = scalar_lea.vmem %s4, 32
      %v702 = vld [vmem:[%s701] sm:$0xff]
      %v703 = vld [vmem:[%s701 + $0x8] sm:$0xf]
      %v705 = vsel %vm427, %v693, 0
      %v708 = vsel %vm427, %v694, 0
      %v711 = vsel %vm427, %v695, 0
      %v714 = vsel %vm427, %v696, 0
      %v717 = vsel %vm427, %v697, 0
      %v720 = vsel %vm427, %v698, 0
      %v723 = vsel %vm427, %v699, 0
      %v726 = vsel %vm427, %v700, 0
      %v729 = vsel %vm452, %v703, 0
      %731 = vmatprep.subr.mxu0 0.0
      %732 = vmatpush1.msra.mxu0 %v702
      %733 = vmatprep.subr.mxu0 0.0
      %734 = vmatpush1.msra.mxu0 %v729
      %735 = vmatprep.subr.mxu0 0.0
      %736 = vmatpush1.msra.mxu0 0.0
      %737 = vmatprep.subr.mxu0 0.0
      %738 = vmatpush1.msra.mxu0 0.0
      %739 = vmatprep.subr.mxu0 0.0
      %740 = vmatpush1.msra.mxu0 0.0
      %741 = vmatprep.subr.mxu0 0.0
      %742 = vmatpush1.msra.mxu0 0.0
      %743 = vmatprep.subr.mxu0 0.0
      %744 = vmatpush1.msra.mxu0 0.0
      %745 = vmatprep.subr.mxu0 0.0
      %746 = vmatpush1.msra.mxu0 0.0
      %747 = vmatprep.subr.mxu0 0.0
      %748 = vmatpush1.msra.mxu0 0.0
      %749 = vmatprep.subr.mxu0 0.0
      %750 = vmatpush1.msra.mxu0 0.0
      %751 = vmatprep.subr.mxu0 0.0
      %752 = vmatpush1.msra.mxu0 0.0
      %753 = vmatprep.subr.mxu0 0.0
      %754 = vmatpush1.msra.mxu0 0.0
      %755 = vmatprep.subr.mxu0 0.0
      %756 = vmatpush1.msra.mxu0 0.0
      %757 = vmatprep.subr.mxu0 0.0
      %758 = vmatpush1.msra.mxu0 0.0
      %759 = vmatprep.subr.mxu0 0.0
      %760 = vmatpush1.msra.mxu0 0.0
      %761 = vmatprep.subr.mxu0 0.0
      %762 = vmatpush1.msra.mxu0 0.0
      %763 = vmatprep.subr.mxu0 0.0
      %764 = vmatpush1.msra.mxu0 0.0
      %765 = vmatprep.subr.mxu0 0.0
      %766 = vmatpush1.msra.mxu0 0.0
      %767 = vmatprep.subr.mxu0 0.0
      %768 = vmatpush1.msra.mxu0 0.0
      %769 = vmatprep.subr.mxu0 0.0
      %770 = vmatpush1.msra.mxu0 0.0
      %771 = vmatprep.subr.mxu0 0.0
      %772 = vmatpush1.msra.mxu0 0.0
      %773 = vmatprep.subr.mxu0 0.0
      %774 = vmatpush1.msra.mxu0 0.0
      %775 = vmatprep.subr.mxu0 0.0
      %776 = vmatpush1.msra.mxu0 0.0
      %777 = vmatprep.subr.mxu0 0.0
      %778 = vmatpush1.msra.mxu0 0.0
      %779 = vmatprep.subr.mxu0 0.0
      %780 = vmatpush1.msra.mxu0 0.0
      %781 = vmatprep.subr.mxu0 0.0
      %782 = vmatpush1.msra.mxu0 0.0
      %783 = vmatprep.subr.mxu0 0.0
      %784 = vmatpush1.msra.mxu0 0.0
      %785 = vmatprep.subr.mxu0 0.0
      %786 = vmatpush1.msra.mxu0 0.0
      %787 = vmatprep.subr.mxu0 0.0
      %788 = vmatpush1.msra.mxu0 0.0
      %789 = vmatprep.subr.mxu0 0.0
      %790 = vmatpush1.msra.mxu0 0.0
      %791 = vmatprep.subr.mxu0 0.0
      %792 = vmatpush1.msra.mxu0 0.0
      %793 = vmatprep.subr.mxu0 0.0
      %794 = vmatpush1.msra.mxu0 0.0
      %795 = vmatprep.mubr.f32.mxu0 0.0
      %796 = vmatmul.mubr.f32.gmra.mrb[0].mxu0 %v705
      %v797 = vpop.f32.mrb[0].mxu0
      %v798 = vadd.f32 0.0, %v797
      %v799 = vpop.f32.mrb[0].mxu0
      %800 = vmatprep.mubr.f32.mxu0 0.0
      %801 = vmatmul.mubr.f32.gmra.mrb[0].mxu0 %v708
      %v802 = vpop.f32.mrb[0].mxu0
      %v803 = vadd.f32 0.0, %v802
      %v804 = vpop.f32.mrb[0].mxu0
      %805 = vmatprep.mubr.f32.mxu0 0.0
      %806 = vmatmul.mubr.f32.gmra.mrb[0].mxu0 %v711
      %v807 = vpop.f32.mrb[0].mxu0
      %v808 = vadd.f32 0.0, %v807
      %v809 = vpop.f32.mrb[0].mxu0
      %810 = vmatprep.mubr.f32.mxu0 0.0
      %811 = vmatmul.mubr.f32.gmra.mrb[0].mxu0 %v714
      %v812 = vpop.f32.mrb[0].mxu0
      %v813 = vadd.f32 0.0, %v812
      %v814 = vpop.f32.mrb[0].mxu0
      %815 = vmatprep.mubr.f32.mxu0 0.0
      %816 = vmatmul.mubr.f32.gmra.mrb[0].mxu0 %v717
      %v817 = vpop.f32.mrb[0].mxu0
      %v818 = vadd.f32 0.0, %v817
      %v819 = vpop.f32.mrb[0].mxu0
      %820 = vmatprep.mubr.f32.mxu0 0.0
      %821 = vmatmul.mubr.f32.gmra.mrb[0].mxu0 %v720
      %v822 = vpop.f32.mrb[0].mxu0
      %v823 = vadd.f32 0.0, %v822
      %v824 = vpop.f32.mrb[0].mxu0
      %825 = vmatprep.mubr.f32.mxu0 0.0
      %826 = vmatmul.mubr.f32.gmra.mrb[0].mxu0 %v723
      %v827 = vpop.f32.mrb[0].mxu0
      %v828 = vadd.f32 0.0, %v827
      %v829 = vpop.f32.mrb[0].mxu0
      %830 = vmatprep.mubr.f32.mxu0 0.0
      %831 = vmatmul.mubr.f32.gmra.mrb[0].mxu0 %v726
      %v832 = vpop.f32.mrb[0].mxu0
      %v833 = vadd.f32 0.0, %v832
      %v834 = vpop.f32.mrb[0].mxu0
      %835 = vdwg.mxu0
      %v836 = vadd.f32 %v655, %v798
      %v837 = vadd.f32 %v660, %v803
      %v838 = vadd.f32 %v665, %v808
      %v839 = vadd.f32 %v670, %v813
      %v840 = vadd.f32 %v675, %v818
      %v841 = vadd.f32 %v680, %v823
      %v842 = vadd.f32 %v685, %v828
      %v843 = vadd.f32 %v690, %v833
      %v844 = vld [vmem:[%s385] sm:$0xff]
      %v845 = vld [vmem:[%s385 + $0x8] sm:$0xff]
      %v846 = vld [vmem:[%s385 + $0x10] sm:$0xff]
      %v847 = vld [vmem:[%s385 + $0x18] sm:$0xff]
      %v848 = vld [vmem:[%s385 + $0x20] sm:$0xff]
      %v849 = vld [vmem:[%s385 + $0x28] sm:$0xff]
      %v850 = vld [vmem:[%s385 + $0x30] sm:$0xff]
      %v851 = vld [vmem:[%s385 + $0x38] sm:$0x7f]
      %s852 = scalar_lea.vmem %s4, 48
      %v853 = vld [vmem:[%s852] sm:$0xff]
      %v854 = vld [vmem:[%s852 + $0x8] sm:$0xf]
      %v856 = vsel %vm427, %v844, 0
      %v859 = vsel %vm427, %v845, 0
      %v862 = vsel %vm427, %v846, 0
      %v865 = vsel %vm427, %v847, 0
      %v868 = vsel %vm427, %v848, 0
      %v871 = vsel %vm427, %v849, 0
      %v874 = vsel %vm427, %v850, 0
      %v877 = vsel %vm427, %v851, 0
      %v880 = vsel %vm452, %v854, 0
      %882 = vmatprep.subr.mxu0 0.0
      %883 = vmatpush1.msra.mxu0 %v853
      %884 = vmatprep.subr.mxu0 0.0
      %885 = vmatpush1.msra.mxu0 %v880
      %886 = vmatprep.subr.mxu0 0.0
      %887 = vmatpush1.msra.mxu0 0.0
      %888 = vmatprep.subr.mxu0 0.0
      %889 = vmatpush1.msra.mxu0 0.0
      %890 = vmatprep.subr.mxu0 0.0
      %891 = vmatpush1.msra.mxu0 0.0
      %892 = vmatprep.subr.mxu0 0.0
      %893 = vmatpush1.msra.mxu0 0.0
      %894 = vmatprep.subr.mxu0 0.0
      %895 = vmatpush1.msra.mxu0 0.0
      %896 = vmatprep.subr.mxu0 0.0
      %897 = vmatpush1.msra.mxu0 0.0
      %898 = vmatprep.subr.mxu0 0.0
      %899 = vmatpush1.msra.mxu0 0.0
      %900 = vmatprep.subr.mxu0 0.0
      %901 = vmatpush1.msra.mxu0 0.0
      %902 = vmatprep.subr.mxu0 0.0
      %903 = vmatpush1.msra.mxu0 0.0
      %904 = vmatprep.subr.mxu0 0.0
      %905 = vmatpush1.msra.mxu0 0.0
      %906 = vmatprep.subr.mxu0 0.0
      %907 = vmatpush1.msra.mxu0 0.0
      %908 = vmatprep.subr.mxu0 0.0
      %909 = vmatpush1.msra.mxu0 0.0
      %910 = vmatprep.subr.mxu0 0.0
      %911 = vmatpush1.msra.mxu0 0.0
      %912 = vmatprep.subr.mxu0 0.0
      %913 = vmatpush1.msra.mxu0 0.0
      %914 = vmatprep.subr.mxu0 0.0
      %915 = vmatpush1.msra.mxu0 0.0
      %916 = vmatprep.subr.mxu0 0.0
      %917 = vmatpush1.msra.mxu0 0.0
      %918 = vmatprep.subr.mxu0 0.0
      %919 = vmatpush1.msra.mxu0 0.0
      %920 = vmatprep.subr.mxu0 0.0
      %921 = vmatpush1.msra.mxu0 0.0
      %922 = vmatprep.subr.mxu0 0.0
      %923 = vmatpush1.msra.mxu0 0.0
      %924 = vmatprep.subr.mxu0 0.0
      %925 = vmatpush1.msra.mxu0 0.0
      %926 = vmatprep.subr.mxu0 0.0
      %927 = vmatpush1.msra.mxu0 0.0
      %928 = vmatprep.subr.mxu0 0.0
      %929 = vmatpush1.msra.mxu0 0.0
      %930 = vmatprep.subr.mxu0 0.0
      %931 = vmatpush1.msra.mxu0 0.0
      %932 = vmatprep.subr.mxu0 0.0
      %933 = vmatpush1.msra.mxu0 0.0
      %934 = vmatprep.subr.mxu0 0.0
      %935 = vmatpush1.msra.mxu0 0.0
      %936 = vmatprep.subr.mxu0 0.0
      %937 = vmatpush1.msra.mxu0 0.0
      %938 = vmatprep.subr.mxu0 0.0
      %939 = vmatpush1.msra.mxu0 0.0
      %940 = vmatprep.subr.mxu0 0.0
      %941 = vmatpush1.msra.mxu0 0.0
      %942 = vmatprep.subr.mxu0 0.0
      %943 = vmatpush1.msra.mxu0 0.0
      %944 = vmatprep.subr.mxu0 0.0
      %945 = vmatpush1.msra.mxu0 0.0
      %946 = vmatprep.mubr.f32.mxu0 0.0
      %947 = vmatmul.mubr.f32.gmra.mrb[0].mxu0 %v856
      %v948 = vpop.f32.mrb[0].mxu0
      %v949 = vadd.f32 0.0, %v948
      %v950 = vpop.f32.mrb[0].mxu0
      %951 = vmatprep.mubr.f32.mxu0 0.0
      %952 = vmatmul.mubr.f32.gmra.mrb[0].mxu0 %v859
      %v953 = vpop.f32.mrb[0].mxu0
      %v954 = vadd.f32 0.0, %v953
      %v955 = vpop.f32.mrb[0].mxu0
      %956 = vmatprep.mubr.f32.mxu0 0.0
      %957 = vmatmul.mubr.f32.gmra.mrb[0].mxu0 %v862
      %v958 = vpop.f32.mrb[0].mxu0
      %v959 = vadd.f32 0.0, %v958
      %v960 = vpop.f32.mrb[0].mxu0
      %961 = vmatprep.mubr.f32.mxu0 0.0
      %962 = vmatmul.mubr.f32.gmra.mrb[0].mxu0 %v865
      %v963 = vpop.f32.mrb[0].mxu0
      %v964 = vadd.f32 0.0, %v963
      %v965 = vpop.f32.mrb[0].mxu0
      %966 = vmatprep.mubr.f32.mxu0 0.0
      %967 = vmatmul.mubr.f32.gmra.mrb[0].mxu0 %v868
      %v968 = vpop.f32.mrb[0].mxu0
      %v969 = vadd.f32 0.0, %v968
      %v970 = vpop.f32.mrb[0].mxu0
      %971 = vmatprep.mubr.f32.mxu0 0.0
      %972 = vmatmul.mubr.f32.gmra.mrb[0].mxu0 %v871
      %v973 = vpop.f32.mrb[0].mxu0
      %v974 = vadd.f32 0.0, %v973
      %v975 = vpop.f32.mrb[0].mxu0
      %976 = vmatprep.mubr.f32.mxu0 0.0
      %977 = vmatmul.mubr.f32.gmra.mrb[0].mxu0 %v874
      %v978 = vpop.f32.mrb[0].mxu0
      %v979 = vadd.f32 0.0, %v978
      %v980 = vpop.f32.mrb[0].mxu0
      %981 = vmatprep.mubr.f32.mxu0 0.0
      %982 = vmatmul.mubr.f32.gmra.mrb[0].mxu0 %v877
      %v983 = vpop.f32.mrb[0].mxu0
      %v984 = vadd.f32 0.0, %v983
      %v985 = vpop.f32.mrb[0].mxu0
      %986 = vdwg.mxu0
      %v987 = vadd.f32 %v836, %v949
      %v988 = vadd.f32 %v837, %v954
      %v989 = vadd.f32 %v838, %v959
      %v990 = vadd.f32 %v839, %v964
      %v991 = vadd.f32 %v840, %v969
      %v992 = vadd.f32 %v841, %v974
      %v993 = vadd.f32 %v842, %v979
      %v994 = vadd.f32 %v843, %v984
      %v995 = vld [vmem:[%s390] sm:$0xff]
      %v996 = vld [vmem:[%s390 + $0x8] sm:$0xff]
      %v997 = vld [vmem:[%s390 + $0x10] sm:$0xff]
      %v998 = vld [vmem:[%s390 + $0x18] sm:$0xff]
      %v999 = vld [vmem:[%s390 + $0x20] sm:$0xff]
      %v1000 = vld [vmem:[%s390 + $0x28] sm:$0xff]
      %v1001 = vld [vmem:[%s390 + $0x30] sm:$0xff]
      %v1002 = vld [vmem:[%s390 + $0x38] sm:$0x7f]
      %s1003 = scalar_lea.vmem %s4, 64
      %v1004 = vld [vmem:[%s1003] sm:$0xff]
      %v1005 = vld [vmem:[%s1003 + $0x8] sm:$0xf]
      %v1007 = vsel %vm427, %v995, 0
      %v1010 = vsel %vm427, %v996, 0
      %v1013 = vsel %vm427, %v997, 0
      %v1016 = vsel %vm427, %v998, 0
      %v1019 = vsel %vm427, %v999, 0
      %v1022 = vsel %vm427, %v1000, 0
      %v1025 = vsel %vm427, %v1001, 0
      %v1028 = vsel %vm427, %v1002, 0
      %v1031 = vsel %vm452, %v1005, 0
      %1033 = vmatprep.subr.mxu0 0.0
      %1034 = vmatpush1.msra.mxu0 %v1004
      %1035 = vmatprep.subr.mxu0 0.0
      %1036 = vmatpush1.msra.mxu0 %v1031
      %1037 = vmatprep.subr.mxu0 0.0
      %1038 = vmatpush1.msra.mxu0 0.0
      %1039 = vmatprep.subr.mxu0 0.0
      %1040 = vmatpush1.msra.mxu0 0.0
      %1041 = vmatprep.subr.mxu0 0.0
      %1042 = vmatpush1.msra.mxu0 0.0
      %1043 = vmatprep.subr.mxu0 0.0
      %1044 = vmatpush1.msra.mxu0 0.0
      %1045 = vmatprep.subr.mxu0 0.0
      %1046 = vmatpush1.msra.mxu0 0.0
      %1047 = vmatprep.subr.mxu0 0.0
      %1048 = vmatpush1.msra.mxu0 0.0
      %1049 = vmatprep.subr.mxu0 0.0
      %1050 = vmatpush1.msra.mxu0 0.0
      %1051 = vmatprep.subr.mxu0 0.0
      %1052 = vmatpush1.msra.mxu0 0.0
      %1053 = vmatprep.subr.mxu0 0.0
      %1054 = vmatpush1.msra.mxu0 0.0
      %1055 = vmatprep.subr.mxu0 0.0
      %1056 = vmatpush1.msra.mxu0 0.0
      %1057 = vmatprep.subr.mxu0 0.0
      %1058 = vmatpush1.msra.mxu0 0.0
      %1059 = vmatprep.subr.mxu0 0.0
      %1060 = vmatpush1.msra.mxu0 0.0
      %1061 = vmatprep.subr.mxu0 0.0
      %1062 = vmatpush1.msra.mxu0 0.0
      %1063 = vmatprep.subr.mxu0 0.0
      %1064 = vmatpush1.msra.mxu0 0.0
      %1065 = vmatprep.subr.mxu0 0.0
      %1066 = vmatpush1.msra.mxu0 0.0
      %1067 = vmatprep.subr.mxu0 0.0
      %1068 = vmatpush1.msra.mxu0 0.0
      %1069 = vmatprep.subr.mxu0 0.0
      %1070 = vmatpush1.msra.mxu0 0.0
      %1071 = vmatprep.subr.mxu0 0.0
      %1072 = vmatpush1.msra.mxu0 0.0
      %1073 = vmatprep.subr.mxu0 0.0
      %1074 = vmatpush1.msra.mxu0 0.0
      %1075 = vmatprep.subr.mxu0 0.0
      %1076 = vmatpush1.msra.mxu0 0.0
      %1077 = vmatprep.subr.mxu0 0.0
      %1078 = vmatpush1.msra.mxu0 0.0
      %1079 = vmatprep.subr.mxu0 0.0
      %1080 = vmatpush1.msra.mxu0 0.0
      %1081 = vmatprep.subr.mxu0 0.0
      %1082 = vmatpush1.msra.mxu0 0.0
      %1083 = vmatprep.subr.mxu0 0.0
      %1084 = vmatpush1.msra.mxu0 0.0
      %1085 = vmatprep.subr.mxu0 0.0
      %1086 = vmatpush1.msra.mxu0 0.0
      %1087 = vmatprep.subr.mxu0 0.0
      %1088 = vmatpush1.msra.mxu0 0.0
      %1089 = vmatprep.subr.mxu0 0.0
      %1090 = vmatpush1.msra.mxu0 0.0
      %1091 = vmatprep.subr.mxu0 0.0
      %1092 = vmatpush1.msra.mxu0 0.0
      %1093 = vmatprep.subr.mxu0 0.0
      %1094 = vmatpush1.msra.mxu0 0.0
      %1095 = vmatprep.subr.mxu0 0.0
      %1096 = vmatpush1.msra.mxu0 0.0
      %1097 = vmatprep.mubr.f32.mxu0 0.0
      %1098 = vmatmul.mubr.f32.gmra.mrb[0].mxu0 %v1007
      %v1099 = vpop.f32.mrb[0].mxu0
      %v1100 = vadd.f32 0.0, %v1099
      %v1101 = vpop.f32.mrb[0].mxu0
      %1102 = vmatprep.mubr.f32.mxu0 0.0
      %1103 = vmatmul.mubr.f32.gmra.mrb[0].mxu0 %v1010
      %v1104 = vpop.f32.mrb[0].mxu0
      %v1105 = vadd.f32 0.0, %v1104
      %v1106 = vpop.f32.mrb[0].mxu0
      %1107 = vmatprep.mubr.f32.mxu0 0.0
      %1108 = vmatmul.mubr.f32.gmra.mrb[0].mxu0 %v1013
      %v1109 = vpop.f32.mrb[0].mxu0
      %v1110 = vadd.f32 0.0, %v1109
      %v1111 = vpop.f32.mrb[0].mxu0
      %1112 = vmatprep.mubr.f32.mxu0 0.0
      %1113 = vmatmul.mubr.f32.gmra.mrb[0].mxu0 %v1016
      %v1114 = vpop.f32.mrb[0].mxu0
      %v1115 = vadd.f32 0.0, %v1114
      %v1116 = vpop.f32.mrb[0].mxu0
      %1117 = vmatprep.mubr.f32.mxu0 0.0
      %1118 = vmatmul.mubr.f32.gmra.mrb[0].mxu0 %v1019
      %v1119 = vpop.f32.mrb[0].mxu0
      %v1120 = vadd.f32 0.0, %v1119
      %v1121 = vpop.f32.mrb[0].mxu0
      %1122 = vmatprep.mubr.f32.mxu0 0.0
      %1123 = vmatmul.mubr.f32.gmra.mrb[0].mxu0 %v1022
      %v1124 = vpop.f32.mrb[0].mxu0
      %v1125 = vadd.f32 0.0, %v1124
      %v1126 = vpop.f32.mrb[0].mxu0
      %1127 = vmatprep.mubr.f32.mxu0 0.0
      %1128 = vmatmul.mubr.f32.gmra.mrb[0].mxu0 %v1025
      %v1129 = vpop.f32.mrb[0].mxu0
      %v1130 = vadd.f32 0.0, %v1129
      %v1131 = vpop.f32.mrb[0].mxu0
      %1132 = vmatprep.mubr.f32.mxu0 0.0
      %1133 = vmatmul.mubr.f32.gmra.mrb[0].mxu0 %v1028
      %v1134 = vpop.f32.mrb[0].mxu0
      %v1135 = vadd.f32 0.0, %v1134
      %v1136 = vpop.f32.mrb[0].mxu0
      %1137 = vdwg.mxu0
      %v1138 = vadd.f32 %v987, %v1100
      %v1139 = vadd.f32 %v988, %v1105
      %v1140 = vadd.f32 %v989, %v1110
      %v1141 = vadd.f32 %v990, %v1115
      %v1142 = vadd.f32 %v991, %v1120
      %v1143 = vadd.f32 %v992, %v1125
      %v1144 = vadd.f32 %v993, %v1130
      %v1145 = vadd.f32 %v994, %v1135
      %v1146 = vld [vmem:[%s385 + $0x1] sm:$0xff]
      %v1147 = vld [vmem:[%s385 + $0x9] sm:$0xff]
      %v1148 = vld [vmem:[%s385 + $0x11] sm:$0xff]
      %v1149 = vld [vmem:[%s385 + $0x19] sm:$0xff]
      %v1150 = vld [vmem:[%s385 + $0x21] sm:$0xff]
      %v1151 = vld [vmem:[%s385 + $0x29] sm:$0xff]
      %v1152 = vld [vmem:[%s385 + $0x31] sm:$0xff]
      %v1153 = vld [vmem:[%s385 + $0x39] sm:$0x7f]
      %s1154 = scalar_lea.vmem %s4, 80
      %v1155 = vld [vmem:[%s1154] sm:$0xff]
      %v1156 = vld [vmem:[%s1154 + $0x8] sm:$0xf]
      %v1158 = vsel %vm427, %v1146, 0
      %v1161 = vsel %vm427, %v1147, 0
      %v1164 = vsel %vm427, %v1148, 0
      %v1167 = vsel %vm427, %v1149, 0
      %v1170 = vsel %vm427, %v1150, 0
      %v1173 = vsel %vm427, %v1151, 0
      %v1176 = vsel %vm427, %v1152, 0
      %v1179 = vsel %vm427, %v1153, 0
      %v1182 = vsel %vm452, %v1156, 0
      %1184 = vmatprep.subr.mxu0 0.0
      %1185 = vmatpush1.msra.mxu0 %v1155
      %1186 = vmatprep.subr.mxu0 0.0
      %1187 = vmatpush1.msra.mxu0 %v1182
      %1188 = vmatprep.subr.mxu0 0.0
      %1189 = vmatpush1.msra.mxu0 0.0
      %1190 = vmatprep.subr.mxu0 0.0
      %1191 = vmatpush1.msra.mxu0 0.0
      %1192 = vmatprep.subr.mxu0 0.0
      %1193 = vmatpush1.msra.mxu0 0.0
      %1194 = vmatprep.subr.mxu0 0.0
      %1195 = vmatpush1.msra.mxu0 0.0
      %1196 = vmatprep.subr.mxu0 0.0
      %1197 = vmatpush1.msra.mxu0 0.0
      %1198 = vmatprep.subr.mxu0 0.0
      %1199 = vmatpush1.msra.mxu0 0.0
      %1200 = vmatprep.subr.mxu0 0.0
      %1201 = vmatpush1.msra.mxu0 0.0
      %1202 = vmatprep.subr.mxu0 0.0
      %1203 = vmatpush1.msra.mxu0 0.0
      %1204 = vmatprep.subr.mxu0 0.0
      %1205 = vmatpush1.msra.mxu0 0.0
      %1206 = vmatprep.subr.mxu0 0.0
      %1207 = vmatpush1.msra.mxu0 0.0
      %1208 = vmatprep.subr.mxu0 0.0
      %1209 = vmatpush1.msra.mxu0 0.0
      %1210 = vmatprep.subr.mxu0 0.0
      %1211 = vmatpush1.msra.mxu0 0.0
      %1212 = vmatprep.subr.mxu0 0.0
      %1213 = vmatpush1.msra.mxu0 0.0
      %1214 = vmatprep.subr.mxu0 0.0
      %1215 = vmatpush1.msra.mxu0 0.0
      %1216 = vmatprep.subr.mxu0 0.0
      %1217 = vmatpush1.msra.mxu0 0.0
      %1218 = vmatprep.subr.mxu0 0.0
      %1219 = vmatpush1.msra.mxu0 0.0
      %1220 = vmatprep.subr.mxu0 0.0
      %1221 = vmatpush1.msra.mxu0 0.0
      %1222 = vmatprep.subr.mxu0 0.0
      %1223 = vmatpush1.msra.mxu0 0.0
      %1224 = vmatprep.subr.mxu0 0.0
      %1225 = vmatpush1.msra.mxu0 0.0
      %1226 = vmatprep.subr.mxu0 0.0
      %1227 = vmatpush1.msra.mxu0 0.0
      %1228 = vmatprep.subr.mxu0 0.0
      %1229 = vmatpush1.msra.mxu0 0.0
      %1230 = vmatprep.subr.mxu0 0.0
      %1231 = vmatpush1.msra.mxu0 0.0
      %1232 = vmatprep.subr.mxu0 0.0
      %1233 = vmatpush1.msra.mxu0 0.0
      %1234 = vmatprep.subr.mxu0 0.0
      %1235 = vmatpush1.msra.mxu0 0.0
      %1236 = vmatprep.subr.mxu0 0.0
      %1237 = vmatpush1.msra.mxu0 0.0
      %1238 = vmatprep.subr.mxu0 0.0
      %1239 = vmatpush1.msra.mxu0 0.0
      %1240 = vmatprep.subr.mxu0 0.0
      %1241 = vmatpush1.msra.mxu0 0.0
      %1242 = vmatprep.subr.mxu0 0.0
      %1243 = vmatpush1.msra.mxu0 0.0
      %1244 = vmatprep.subr.mxu0 0.0
      %1245 = vmatpush1.msra.mxu0 0.0
      %1246 = vmatprep.subr.mxu0 0.0
      %1247 = vmatpush1.msra.mxu0 0.0
      %1248 = vmatprep.mubr.f32.mxu0 0.0
      %1249 = vmatmul.mubr.f32.gmra.mrb[0].mxu0 %v1158
      %v1250 = vpop.f32.mrb[0].mxu0
      %v1251 = vadd.f32 0.0, %v1250
      %v1252 = vpop.f32.mrb[0].mxu0
      %1253 = vmatprep.mubr.f32.mxu0 0.0
      %1254 = vmatmul.mubr.f32.gmra.mrb[0].mxu0 %v1161
      %v1255 = vpop.f32.mrb[0].mxu0
      %v1256 = vadd.f32 0.0, %v1255
      %v1257 = vpop.f32.mrb[0].mxu0
      %1258 = vmatprep.mubr.f32.mxu0 0.0
      %1259 = vmatmul.mubr.f32.gmra.mrb[0].mxu0 %v1164
      %v1260 = vpop.f32.mrb[0].mxu0
      %v1261 = vadd.f32 0.0, %v1260
      %v1262 = vpop.f32.mrb[0].mxu0
      %1263 = vmatprep.mubr.f32.mxu0 0.0
      %1264 = vmatmul.mubr.f32.gmra.mrb[0].mxu0 %v1167
      %v1265 = vpop.f32.mrb[0].mxu0
      %v1266 = vadd.f32 0.0, %v1265
      %v1267 = vpop.f32.mrb[0].mxu0
      %1268 = vmatprep.mubr.f32.mxu0 0.0
      %1269 = vmatmul.mubr.f32.gmra.mrb[0].mxu0 %v1170
      %v1270 = vpop.f32.mrb[0].mxu0
      %v1271 = vadd.f32 0.0, %v1270
      %v1272 = vpop.f32.mrb[0].mxu0
      %1273 = vmatprep.mubr.f32.mxu0 0.0
      %1274 = vmatmul.mubr.f32.gmra.mrb[0].mxu0 %v1173
      %v1275 = vpop.f32.mrb[0].mxu0
      %v1276 = vadd.f32 0.0, %v1275
      %v1277 = vpop.f32.mrb[0].mxu0
      %1278 = vmatprep.mubr.f32.mxu0 0.0
      %1279 = vmatmul.mubr.f32.gmra.mrb[0].mxu0 %v1176
      %v1280 = vpop.f32.mrb[0].mxu0
      %v1281 = vadd.f32 0.0, %v1280
      %v1282 = vpop.f32.mrb[0].mxu0
      %1283 = vmatprep.mubr.f32.mxu0 0.0
      %1284 = vmatmul.mubr.f32.gmra.mrb[0].mxu0 %v1179
      %v1285 = vpop.f32.mrb[0].mxu0
      %v1286 = vadd.f32 0.0, %v1285
      %v1287 = vpop.f32.mrb[0].mxu0
      %1288 = vdwg.mxu0
      %v1289 = vadd.f32 %v1138, %v1251
      %v1290 = vadd.f32 %v1139, %v1256
      %v1291 = vadd.f32 %v1140, %v1261
      %v1292 = vadd.f32 %v1141, %v1266
      %v1293 = vadd.f32 %v1142, %v1271
      %v1294 = vadd.f32 %v1143, %v1276
      %v1295 = vadd.f32 %v1144, %v1281
      %v1296 = vadd.f32 %v1145, %v1286
      %v1297 = vld [vmem:[%s375 + $0x9] sm:$0xff]
      %v1298 = vld [vmem:[%s375 + $0x11] sm:$0xff]
      %v1299 = vld [vmem:[%s375 + $0x19] sm:$0xff]
      %v1300 = vld [vmem:[%s375 + $0x21] sm:$0xff]
      %v1301 = vld [vmem:[%s375 + $0x29] sm:$0xff]
      %v1302 = vld [vmem:[%s375 + $0x31] sm:$0xff]
      %v1303 = vld [vmem:[%s375 + $0x39] sm:$0xff]
      %v1304 = vld [vmem:[%s375 + $0x41] sm:$0x7f]
      %s1305 = scalar_lea.vmem %s4, 96
      %v1306 = vld [vmem:[%s1305] sm:$0xff]
      %v1307 = vld [vmem:[%s1305 + $0x8] sm:$0xf]
      %v1309 = vsel %vm427, %v1297, 0
      %v1312 = vsel %vm427, %v1298, 0
      %v1315 = vsel %vm427, %v1299, 0
      %v1318 = vsel %vm427, %v1300, 0
      %v1321 = vsel %vm427, %v1301, 0
      %v1324 = vsel %vm427, %v1302, 0
      %v1327 = vsel %vm427, %v1303, 0
      %v1330 = vsel %vm427, %v1304, 0
      %v1333 = vsel %vm452, %v1307, 0
      %1335 = vmatprep.subr.mxu0 0.0
      %1336 = vmatpush1.msra.mxu0 %v1306
      %1337 = vmatprep.subr.mxu0 0.0
      %1338 = vmatpush1.msra.mxu0 %v1333
      %1339 = vmatprep.subr.mxu0 0.0
      %1340 = vmatpush1.msra.mxu0 0.0
      %1341 = vmatprep.subr.mxu0 0.0
      %1342 = vmatpush1.msra.mxu0 0.0
      %1343 = vmatprep.subr.mxu0 0.0
      %1344 = vmatpush1.msra.mxu0 0.0
      %1345 = vmatprep.subr.mxu0 0.0
      %1346 = vmatpush1.msra.mxu0 0.0
      %1347 = vmatprep.subr.mxu0 0.0
      %1348 = vmatpush1.msra.mxu0 0.0
      %1349 = vmatprep.subr.mxu0 0.0
      %1350 = vmatpush1.msra.mxu0 0.0
      %1351 = vmatprep.subr.mxu0 0.0
      %1352 = vmatpush1.msra.mxu0 0.0
      %1353 = vmatprep.subr.mxu0 0.0
      %1354 = vmatpush1.msra.mxu0 0.0
      %1355 = vmatprep.subr.mxu0 0.0
      %1356 = vmatpush1.msra.mxu0 0.0
      %1357 = vmatprep.subr.mxu0 0.0
      %1358 = vmatpush1.msra.mxu0 0.0
      %1359 = vmatprep.subr.mxu0 0.0
      %1360 = vmatpush1.msra.mxu0 0.0
      %1361 = vmatprep.subr.mxu0 0.0
      %1362 = vmatpush1.msra.mxu0 0.0
      %1363 = vmatprep.subr.mxu0 0.0
      %1364 = vmatpush1.msra.mxu0 0.0
      %1365 = vmatprep.subr.mxu0 0.0
      %1366 = vmatpush1.msra.mxu0 0.0
      %1367 = vmatprep.subr.mxu0 0.0
      %1368 = vmatpush1.msra.mxu0 0.0
      %1369 = vmatprep.subr.mxu0 0.0
      %1370 = vmatpush1.msra.mxu0 0.0
      %1371 = vmatprep.subr.mxu0 0.0
      %1372 = vmatpush1.msra.mxu0 0.0
      %1373 = vmatprep.subr.mxu0 0.0
      %1374 = vmatpush1.msra.mxu0 0.0
      %1375 = vmatprep.subr.mxu0 0.0
      %1376 = vmatpush1.msra.mxu0 0.0
      %1377 = vmatprep.subr.mxu0 0.0
      %1378 = vmatpush1.msra.mxu0 0.0
      %1379 = vmatprep.subr.mxu0 0.0
      %1380 = vmatpush1.msra.mxu0 0.0
      %1381 = vmatprep.subr.mxu0 0.0
      %1382 = vmatpush1.msra.mxu0 0.0
      %1383 = vmatprep.subr.mxu0 0.0
      %1384 = vmatpush1.msra.mxu0 0.0
      %1385 = vmatprep.subr.mxu0 0.0
      %1386 = vmatpush1.msra.mxu0 0.0
      %1387 = vmatprep.subr.mxu0 0.0
      %1388 = vmatpush1.msra.mxu0 0.0
      %1389 = vmatprep.subr.mxu0 0.0
      %1390 = vmatpush1.msra.mxu0 0.0
      %1391 = vmatprep.subr.mxu0 0.0
      %1392 = vmatpush1.msra.mxu0 0.0
      %1393 = vmatprep.subr.mxu0 0.0
      %1394 = vmatpush1.msra.mxu0 0.0
      %1395 = vmatprep.subr.mxu0 0.0
      %1396 = vmatpush1.msra.mxu0 0.0
      %1397 = vmatprep.subr.mxu0 0.0
      %1398 = vmatpush1.msra.mxu0 0.0
      %1399 = vmatprep.mubr.f32.mxu0 0.0
      %1400 = vmatmul.mubr.f32.gmra.mrb[0].mxu0 %v1309
      %v1401 = vpop.f32.mrb[0].mxu0
      %v1402 = vadd.f32 0.0, %v1401
      %v1403 = vpop.f32.mrb[0].mxu0
      %1404 = vmatprep.mubr.f32.mxu0 0.0
      %1405 = vmatmul.mubr.f32.gmra.mrb[0].mxu0 %v1312
      %v1406 = vpop.f32.mrb[0].mxu0
      %v1407 = vadd.f32 0.0, %v1406
      %v1408 = vpop.f32.mrb[0].mxu0
      %1409 = vmatprep.mubr.f32.mxu0 0.0
      %1410 = vmatmul.mubr.f32.gmra.mrb[0].mxu0 %v1315
      %v1411 = vpop.f32.mrb[0].mxu0
      %v1412 = vadd.f32 0.0, %v1411
      %v1413 = vpop.f32.mrb[0].mxu0
      %1414 = vmatprep.mubr.f32.mxu0 0.0
      %1415 = vmatmul.mubr.f32.gmra.mrb[0].mxu0 %v1318
      %v1416 = vpop.f32.mrb[0].mxu0
      %v1417 = vadd.f32 0.0, %v1416
      %v1418 = vpop.f32.mrb[0].mxu0
      %1419 = vmatprep.mubr.f32.mxu0 0.0
      %1420 = vmatmul.mubr.f32.gmra.mrb[0].mxu0 %v1321
      %v1421 = vpop.f32.mrb[0].mxu0
      %v1422 = vadd.f32 0.0, %v1421
      %v1423 = vpop.f32.mrb[0].mxu0
      %1424 = vmatprep.mubr.f32.mxu0 0.0
      %1425 = vmatmul.mubr.f32.gmra.mrb[0].mxu0 %v1324
      %v1426 = vpop.f32.mrb[0].mxu0
      %v1427 = vadd.f32 0.0, %v1426
      %v1428 = vpop.f32.mrb[0].mxu0
      %1429 = vmatprep.mubr.f32.mxu0 0.0
      %1430 = vmatmul.mubr.f32.gmra.mrb[0].mxu0 %v1327
      %v1431 = vpop.f32.mrb[0].mxu0
      %v1432 = vadd.f32 0.0, %v1431
      %v1433 = vpop.f32.mrb[0].mxu0
      %1434 = vmatprep.mubr.f32.mxu0 0.0
      %1435 = vmatmul.mubr.f32.gmra.mrb[0].mxu0 %v1330
      %v1436 = vpop.f32.mrb[0].mxu0
      %v1437 = vadd.f32 0.0, %v1436
      %v1438 = vpop.f32.mrb[0].mxu0
      %1439 = vdwg.mxu0
      %v1440 = vadd.f32 %v1289, %v1402
      %v1441 = vadd.f32 %v1290, %v1407
      %v1442 = vadd.f32 %v1291, %v1412
      %v1443 = vadd.f32 %v1292, %v1417
      %v1444 = vadd.f32 %v1293, %v1422
      %v1445 = vadd.f32 %v1294, %v1427
      %v1446 = vadd.f32 %v1295, %v1432
      %v1447 = vadd.f32 %v1296, %v1437
      %v1448 = vld [vmem:[%s380 + $0x9] sm:$0xff]
      %v1449 = vld [vmem:[%s380 + $0x11] sm:$0xff]
      %v1450 = vld [vmem:[%s380 + $0x19] sm:$0xff]
      %v1451 = vld [vmem:[%s380 + $0x21] sm:$0xff]
      %v1452 = vld [vmem:[%s380 + $0x29] sm:$0xff]
      %v1453 = vld [vmem:[%s380 + $0x31] sm:$0xff]
      %v1454 = vld [vmem:[%s380 + $0x39] sm:$0xff]
      %v1455 = vld [vmem:[%s380 + $0x41] sm:$0x7f]
      %s1456 = scalar_lea.vmem %s4, 112
      %v1457 = vld [vmem:[%s1456] sm:$0xff]
      %v1458 = vld [vmem:[%s1456 + $0x8] sm:$0xf]
      %v1460 = vsel %vm427, %v1448, 0
      %v1463 = vsel %vm427, %v1449, 0
      %v1466 = vsel %vm427, %v1450, 0
      %v1469 = vsel %vm427, %v1451, 0
      %v1472 = vsel %vm427, %v1452, 0
      %v1475 = vsel %vm427, %v1453, 0
      %v1478 = vsel %vm427, %v1454, 0
      %v1481 = vsel %vm427, %v1455, 0
      %v1484 = vsel %vm452, %v1458, 0
      %1486 = vmatprep.subr.mxu0 0.0
      %1487 = vmatpush1.msra.mxu0 %v1457
      %1488 = vmatprep.subr.mxu0 0.0
      %1489 = vmatpush1.msra.mxu0 %v1484
      %1490 = vmatprep.subr.mxu0 0.0
      %1491 = vmatpush1.msra.mxu0 0.0
      %1492 = vmatprep.subr.mxu0 0.0
      %1493 = vmatpush1.msra.mxu0 0.0
      %1494 = vmatprep.subr.mxu0 0.0
      %1495 = vmatpush1.msra.mxu0 0.0
      %1496 = vmatprep.subr.mxu0 0.0
      %1497 = vmatpush1.msra.mxu0 0.0
      %1498 = vmatprep.subr.mxu0 0.0
      %1499 = vmatpush1.msra.mxu0 0.0
      %1500 = vmatprep.subr.mxu0 0.0
      %1501 = vmatpush1.msra.mxu0 0.0
      %1502 = vmatprep.subr.mxu0 0.0
      %1503 = vmatpush1.msra.mxu0 0.0
      %1504 = vmatprep.subr.mxu0 0.0
      %1505 = vmatpush1.msra.mxu0 0.0
      %1506 = vmatprep.subr.mxu0 0.0
      %1507 = vmatpush1.msra.mxu0 0.0
      %1508 = vmatprep.subr.mxu0 0.0
      %1509 = vmatpush1.msra.mxu0 0.0
      %1510 = vmatprep.subr.mxu0 0.0
      %1511 = vmatpush1.msra.mxu0 0.0
      %1512 = vmatprep.subr.mxu0 0.0
      %1513 = vmatpush1.msra.mxu0 0.0
      %1514 = vmatprep.subr.mxu0 0.0
      %1515 = vmatpush1.msra.mxu0 0.0
      %1516 = vmatprep.subr.mxu0 0.0
      %1517 = vmatpush1.msra.mxu0 0.0
      %1518 = vmatprep.subr.mxu0 0.0
      %1519 = vmatpush1.msra.mxu0 0.0
      %1520 = vmatprep.subr.mxu0 0.0
      %1521 = vmatpush1.msra.mxu0 0.0
      %1522 = vmatprep.subr.mxu0 0.0
      %1523 = vmatpush1.msra.mxu0 0.0
      %1524 = vmatprep.subr.mxu0 0.0
      %1525 = vmatpush1.msra.mxu0 0.0
      %1526 = vmatprep.subr.mxu0 0.0
      %1527 = vmatpush1.msra.mxu0 0.0
      %1528 = vmatprep.subr.mxu0 0.0
      %1529 = vmatpush1.msra.mxu0 0.0
      %1530 = vmatprep.subr.mxu0 0.0
      %1531 = vmatpush1.msra.mxu0 0.0
      %1532 = vmatprep.subr.mxu0 0.0
      %1533 = vmatpush1.msra.mxu0 0.0
      %1534 = vmatprep.subr.mxu0 0.0
      %1535 = vmatpush1.msra.mxu0 0.0
      %1536 = vmatprep.subr.mxu0 0.0
      %1537 = vmatpush1.msra.mxu0 0.0
      %1538 = vmatprep.subr.mxu0 0.0
      %1539 = vmatpush1.msra.mxu0 0.0
      %1540 = vmatprep.subr.mxu0 0.0
      %1541 = vmatpush1.msra.mxu0 0.0
      %1542 = vmatprep.subr.mxu0 0.0
      %1543 = vmatpush1.msra.mxu0 0.0
      %1544 = vmatprep.subr.mxu0 0.0
      %1545 = vmatpush1.msra.mxu0 0.0
      %1546 = vmatprep.subr.mxu0 0.0
      %1547 = vmatpush1.msra.mxu0 0.0
      %1548 = vmatprep.subr.mxu0 0.0
      %1549 = vmatpush1.msra.mxu0 0.0
      %1550 = vmatprep.mubr.f32.mxu0 0.0
      %1551 = vmatmul.mubr.f32.gmra.mrb[0].mxu0 %v1460
      %v1552 = vpop.f32.mrb[0].mxu0
      %v1553 = vadd.f32 0.0, %v1552
      %v1554 = vpop.f32.mrb[0].mxu0
      %1555 = vmatprep.mubr.f32.mxu0 0.0
      %1556 = vmatmul.mubr.f32.gmra.mrb[0].mxu0 %v1463
      %v1557 = vpop.f32.mrb[0].mxu0
      %v1558 = vadd.f32 0.0, %v1557
      %v1559 = vpop.f32.mrb[0].mxu0
      %1560 = vmatprep.mubr.f32.mxu0 0.0
      %1561 = vmatmul.mubr.f32.gmra.mrb[0].mxu0 %v1466
      %v1562 = vpop.f32.mrb[0].mxu0
      %v1563 = vadd.f32 0.0, %v1562
      %v1564 = vpop.f32.mrb[0].mxu0
      %1565 = vmatprep.mubr.f32.mxu0 0.0
      %1566 = vmatmul.mubr.f32.gmra.mrb[0].mxu0 %v1469
      %v1567 = vpop.f32.mrb[0].mxu0
      %v1568 = vadd.f32 0.0, %v1567
      %v1569 = vpop.f32.mrb[0].mxu0
      %1570 = vmatprep.mubr.f32.mxu0 0.0
      %1571 = vmatmul.mubr.f32.gmra.mrb[0].mxu0 %v1472
      %v1572 = vpop.f32.mrb[0].mxu0
      %v1573 = vadd.f32 0.0, %v1572
      %v1574 = vpop.f32.mrb[0].mxu0
      %1575 = vmatprep.mubr.f32.mxu0 0.0
      %1576 = vmatmul.mubr.f32.gmra.mrb[0].mxu0 %v1475
      %v1577 = vpop.f32.mrb[0].mxu0
      %v1578 = vadd.f32 0.0, %v1577
      %v1579 = vpop.f32.mrb[0].mxu0
      %1580 = vmatprep.mubr.f32.mxu0 0.0
      %1581 = vmatmul.mubr.f32.gmra.mrb[0].mxu0 %v1478
      %v1582 = vpop.f32.mrb[0].mxu0
      %v1583 = vadd.f32 0.0, %v1582
      %v1584 = vpop.f32.mrb[0].mxu0
      %1585 = vmatprep.mubr.f32.mxu0 0.0
      %1586 = vmatmul.mubr.f32.gmra.mrb[0].mxu0 %v1481
      %v1587 = vpop.f32.mrb[0].mxu0
      %v1588 = vadd.f32 0.0, %v1587
      %v1589 = vpop.f32.mrb[0].mxu0
      %1590 = vdwg.mxu0
      %v1591 = vadd.f32 %v1440, %v1553
      %v1592 = vadd.f32 %v1441, %v1558
      %v1593 = vadd.f32 %v1442, %v1563
      %v1594 = vadd.f32 %v1443, %v1568
      %v1595 = vadd.f32 %v1444, %v1573
      %v1596 = vadd.f32 %v1445, %v1578
      %v1597 = vadd.f32 %v1446, %v1583
      %v1598 = vadd.f32 %v1447, %v1588
      %v1599 = vld [vmem:[%s375 + $0xa] sm:$0xff]
      %v1600 = vld [vmem:[%s375 + $0x12] sm:$0xff]
      %v1601 = vld [vmem:[%s375 + $0x1a] sm:$0xff]
      %v1602 = vld [vmem:[%s375 + $0x22] sm:$0xff]
      %v1603 = vld [vmem:[%s375 + $0x2a] sm:$0xff]
      %v1604 = vld [vmem:[%s375 + $0x32] sm:$0xff]
      %v1605 = vld [vmem:[%s375 + $0x3a] sm:$0xff]
      %v1606 = vld [vmem:[%s375 + $0x42] sm:$0x7f]
      %s1607 = scalar_lea.vmem %s4, 128
      %v1608 = vld [vmem:[%s1607] sm:$0xff]
      %v1609 = vld [vmem:[%s1607 + $0x8] sm:$0xf]
      %v1611 = vsel %vm427, %v1599, 0
      %v1614 = vsel %vm427, %v1600, 0
      %v1617 = vsel %vm427, %v1601, 0
      %v1620 = vsel %vm427, %v1602, 0
      %v1623 = vsel %vm427, %v1603, 0
      %v1626 = vsel %vm427, %v1604, 0
      %v1629 = vsel %vm427, %v1605, 0
      %v1632 = vsel %vm427, %v1606, 0
      %v1635 = vsel %vm452, %v1609, 0
      %1637 = vmatprep.subr.mxu0 0.0
      %1638 = vmatpush1.msra.mxu0 %v1608
      %1639 = vmatprep.subr.mxu0 0.0
      %1640 = vmatpush1.msra.mxu0 %v1635
      %1641 = vmatprep.subr.mxu0 0.0
      %1642 = vmatpush1.msra.mxu0 0.0
      %1643 = vmatprep.subr.mxu0 0.0
      %1644 = vmatpush1.msra.mxu0 0.0
      %1645 = vmatprep.subr.mxu0 0.0
      %1646 = vmatpush1.msra.mxu0 0.0
      %1647 = vmatprep.subr.mxu0 0.0
      %1648 = vmatpush1.msra.mxu0 0.0
      %1649 = vmatprep.subr.mxu0 0.0
      %1650 = vmatpush1.msra.mxu0 0.0
      %1651 = vmatprep.subr.mxu0 0.0
      %1652 = vmatpush1.msra.mxu0 0.0
      %1653 = vmatprep.subr.mxu0 0.0
      %1654 = vmatpush1.msra.mxu0 0.0
      %1655 = vmatprep.subr.mxu0 0.0
      %1656 = vmatpush1.msra.mxu0 0.0
      %1657 = vmatprep.subr.mxu0 0.0
      %1658 = vmatpush1.msra.mxu0 0.0
      %1659 = vmatprep.subr.mxu0 0.0
      %1660 = vmatpush1.msra.mxu0 0.0
      %1661 = vmatprep.subr.mxu0 0.0
      %1662 = vmatpush1.msra.mxu0 0.0
      %1663 = vmatprep.subr.mxu0 0.0
      %1664 = vmatpush1.msra.mxu0 0.0
      %1665 = vmatprep.subr.mxu0 0.0
      %1666 = vmatpush1.msra.mxu0 0.0
      %1667 = vmatprep.subr.mxu0 0.0
      %1668 = vmatpush1.msra.mxu0 0.0
      %1669 = vmatprep.subr.mxu0 0.0
      %1670 = vmatpush1.msra.mxu0 0.0
      %1671 = vmatprep.subr.mxu0 0.0
      %1672 = vmatpush1.msra.mxu0 0.0
      %1673 = vmatprep.subr.mxu0 0.0
      %1674 = vmatpush1.msra.mxu0 0.0
      %1675 = vmatprep.subr.mxu0 0.0
      %1676 = vmatpush1.msra.mxu0 0.0
      %1677 = vmatprep.subr.mxu0 0.0
      %1678 = vmatpush1.msra.mxu0 0.0
      %1679 = vmatprep.subr.mxu0 0.0
      %1680 = vmatpush1.msra.mxu0 0.0
      %1681 = vmatprep.subr.mxu0 0.0
      %1682 = vmatpush1.msra.mxu0 0.0
      %1683 = vmatprep.subr.mxu0 0.0
      %1684 = vmatpush1.msra.mxu0 0.0
      %1685 = vmatprep.subr.mxu0 0.0
      %1686 = vmatpush1.msra.mxu0 0.0
      %1687 = vmatprep.subr.mxu0 0.0
      %1688 = vmatpush1.msra.mxu0 0.0
      %1689 = vmatprep.subr.mxu0 0.0
      %1690 = vmatpush1.msra.mxu0 0.0
      %1691 = vmatprep.subr.mxu0 0.0
      %1692 = vmatpush1.msra.mxu0 0.0
      %1693 = vmatprep.subr.mxu0 0.0
      %1694 = vmatpush1.msra.mxu0 0.0
      %1695 = vmatprep.subr.mxu0 0.0
      %1696 = vmatpush1.msra.mxu0 0.0
      %1697 = vmatprep.subr.mxu0 0.0
      %1698 = vmatpush1.msra.mxu0 0.0
      %1699 = vmatprep.subr.mxu0 0.0
      %1700 = vmatpush1.msra.mxu0 0.0
      %1701 = vmatprep.mubr.f32.mxu0 0.0
      %1702 = vmatmul.mubr.f32.gmra.mrb[0].mxu0 %v1611
      %v1703 = vpop.f32.mrb[0].mxu0
      %v1704 = vadd.f32 0.0, %v1703
      %v1705 = vpop.f32.mrb[0].mxu0
      %1706 = vmatprep.mubr.f32.mxu0 0.0
      %1707 = vmatmul.mubr.f32.gmra.mrb[0].mxu0 %v1614
      %v1708 = vpop.f32.mrb[0].mxu0
      %v1709 = vadd.f32 0.0, %v1708
      %v1710 = vpop.f32.mrb[0].mxu0
      %1711 = vmatprep.mubr.f32.mxu0 0.0
      %1712 = vmatmul.mubr.f32.gmra.mrb[0].mxu0 %v1617
      %v1713 = vpop.f32.mrb[0].mxu0
      %v1714 = vadd.f32 0.0, %v1713
      %v1715 = vpop.f32.mrb[0].mxu0
      %1716 = vmatprep.mubr.f32.mxu0 0.0
      %1717 = vmatmul.mubr.f32.gmra.mrb[0].mxu0 %v1620
      %v1718 = vpop.f32.mrb[0].mxu0
      %v1719 = vadd.f32 0.0, %v1718
      %v1720 = vpop.f32.mrb[0].mxu0
      %1721 = vmatprep.mubr.f32.mxu0 0.0
      %1722 = vmatmul.mubr.f32.gmra.mrb[0].mxu0 %v1623
      %v1723 = vpop.f32.mrb[0].mxu0
      %v1724 = vadd.f32 0.0, %v1723
      %v1725 = vpop.f32.mrb[0].mxu0
      %1726 = vmatprep.mubr.f32.mxu0 0.0
      %1727 = vmatmul.mubr.f32.gmra.mrb[0].mxu0 %v1626
      %v1728 = vpop.f32.mrb[0].mxu0
      %v1729 = vadd.f32 0.0, %v1728
      %v1730 = vpop.f32.mrb[0].mxu0
      %1731 = vmatprep.mubr.f32.mxu0 0.0
      %1732 = vmatmul.mubr.f32.gmra.mrb[0].mxu0 %v1629
      %v1733 = vpop.f32.mrb[0].mxu0
      %v1734 = vadd.f32 0.0, %v1733
      %v1735 = vpop.f32.mrb[0].mxu0
      %1736 = vmatprep.mubr.f32.mxu0 0.0
      %1737 = vmatmul.mubr.f32.gmra.mrb[0].mxu0 %v1632
      %v1738 = vpop.f32.mrb[0].mxu0
      %v1739 = vadd.f32 0.0, %v1738
      %v1740 = vpop.f32.mrb[0].mxu0
      %1741 = vdwg.mxu0
      %v1742 = vadd.f32 %v1591, %v1704
      %v1743 = vadd.f32 %v1592, %v1709
      %v1744 = vadd.f32 %v1593, %v1714
      %v1745 = vadd.f32 %v1594, %v1719
      %v1746 = vadd.f32 %v1595, %v1724
      %v1747 = vadd.f32 %v1596, %v1729
      %v1748 = vadd.f32 %v1597, %v1734
      %v1749 = vadd.f32 %v1598, %v1739
      %v1750 = vld [vmem:[%s395] sm:$0xff]
      %v1751 = vld [vmem:[%s395 + $0x8] sm:$0xff]
      %v1752 = vld [vmem:[%s395 + $0x10] sm:$0xff]
      %v1753 = vld [vmem:[%s395 + $0x18] sm:$0xff]
      %v1754 = vld [vmem:[%s395 + $0x20] sm:$0xff]
      %v1755 = vld [vmem:[%s395 + $0x28] sm:$0xff]
      %v1756 = vld [vmem:[%s395 + $0x30] sm:$0xff]
      %v1757 = vld [vmem:[%s395 + $0x38] sm:$0x7f]
      %vm1758 = vcmask 31744
      %1759 = vst.msk [vmem:[%s405] sm:$0xff] %vm1758, %v1750
      %1760 = vst.msk [vmem:[%s405 + $0x8] sm:$0xff] %vm1758, %v1751
      %1761 = vst.msk [vmem:[%s405 + $0x10] sm:$0xff] %vm1758, %v1752
      %1762 = vst.msk [vmem:[%s405 + $0x18] sm:$0xff] %vm1758, %v1753
      %1763 = vst.msk [vmem:[%s405 + $0x20] sm:$0xff] %vm1758, %v1754
      %1764 = vst.msk [vmem:[%s405 + $0x28] sm:$0xff] %vm1758, %v1755
      %1765 = vst.msk [vmem:[%s405 + $0x30] sm:$0xff] %vm1758, %v1756
      %vm1766 = vcmask 30720
      %1767 = vst.msk [vmem:[%s405 + $0x38] sm:$0x7f] %vm1766, %v1757
      %v1768 = vld [vmem:[%s400] sm:$0xff]
      %v1769 = vld [vmem:[%s400 + $0x8] sm:$0xff]
      %v1770 = vld [vmem:[%s400 + $0x10] sm:$0xff]
      %v1771 = vld [vmem:[%s400 + $0x18] sm:$0xff]
      %v1772 = vld [vmem:[%s400 + $0x20] sm:$0xff]
      %v1773 = vld [vmem:[%s400 + $0x28] sm:$0xff]
      %v1774 = vld [vmem:[%s400 + $0x30] sm:$0xff]
      %v1775 = vld [vmem:[%s400 + $0x38] sm:$0x7f]
      %1784 = vrot.lane.b32.xlu0 %v1768, 4
      %v1785 = vpop.permute.xlu0 %1784
      %1786 = vrot.lane.b32.xlu0 %v1769, 4
      %v1787 = vpop.permute.xlu0 %1786
      %1788 = vrot.lane.b32.xlu0 %v1770, 4
      %v1789 = vpop.permute.xlu0 %1788
      %1790 = vrot.lane.b32.xlu0 %v1771, 4
      %v1791 = vpop.permute.xlu0 %1790
      %1792 = vrot.lane.b32.xlu0 %v1772, 4
      %v1793 = vpop.permute.xlu0 %1792
      %1794 = vrot.lane.b32.xlu0 %v1773, 4
      %v1795 = vpop.permute.xlu0 %1794
      %1796 = vrot.lane.b32.xlu0 %v1774, 4
      %v1797 = vpop.permute.xlu0 %1796
      %1798 = vrot.lane.b32.xlu0 %v1775, 4
      %v1799 = vpop.permute.xlu0 %1798
      %vm1808 = vcmask 228384
      %1809 = vst.msk [vmem:[%s405] sm:$0xff] %vm1808, %v1785
      %1810 = vst.msk [vmem:[%s405 + $0x8] sm:$0xff] %vm1808, %v1787
      %1811 = vst.msk [vmem:[%s405 + $0x10] sm:$0xff] %vm1808, %v1789
      %1812 = vst.msk [vmem:[%s405 + $0x18] sm:$0xff] %vm1808, %v1791
      %1813 = vst.msk [vmem:[%s405 + $0x20] sm:$0xff] %vm1808, %v1793
      %1814 = vst.msk [vmem:[%s405 + $0x28] sm:$0xff] %vm1808, %v1795
      %1815 = vst.msk [vmem:[%s405 + $0x30] sm:$0xff] %vm1808, %v1797
      %vm1816 = vcmask 227360
      %1817 = vst.msk [vmem:[%s405 + $0x38] sm:$0x7f] %vm1816, %v1799
      %v1818 = vld [vmem:[%s5] sm:$0x1]
      %v1820 = vlaneseq
      %v1821 = vshrl.u32 %v1820, 7
      %v1822 = vsub.s32 0, %v1821
      %v1823 = vrot.slane %v1818, %v1822
      %v1825 = vadd.f32 %v1742, %v1823
      %v1826 = vadd.f32 %v1743, %v1823
      %v1827 = vadd.f32 %v1744, %v1823
      %v1828 = vadd.f32 %v1745, %v1823
      %v1829 = vadd.f32 %v1746, %v1823
      %v1830 = vadd.f32 %v1747, %v1823
      %v1831 = vadd.f32 %v1748, %v1823
      %v1832 = vadd.f32 %v1749, %v1823
      %1841 = vrot.lane.b32.xlu0 %v1825, 28
      %v1842 = vpop.permute.xlu0 %1841
      %1843 = vrot.lane.b32.xlu0 %v1826, 28
      %v1844 = vpop.permute.xlu0 %1843
      %1845 = vrot.lane.b32.xlu0 %v1827, 28
      %v1846 = vpop.permute.xlu0 %1845
      %1847 = vrot.lane.b32.xlu0 %v1828, 28
      %v1848 = vpop.permute.xlu0 %1847
      %1849 = vrot.lane.b32.xlu0 %v1829, 28
      %v1850 = vpop.permute.xlu0 %1849
      %1851 = vrot.lane.b32.xlu0 %v1830, 28
      %v1852 = vpop.permute.xlu0 %1851
      %1853 = vrot.lane.b32.xlu0 %v1831, 28
      %v1854 = vpop.permute.xlu0 %1853
      %1855 = vrot.lane.b32.xlu0 %v1832, 28
      %v1856 = vpop.permute.xlu0 %1855
      %vm1865 = vcmask 359648
      %1866 = vst.msk [vmem:[%s405] sm:$0xff] %vm1865, %v1842
      %1867 = vst.msk [vmem:[%s405 + $0x8] sm:$0xff] %vm1865, %v1844
      %1868 = vst.msk [vmem:[%s405 + $0x10] sm:$0xff] %vm1865, %v1846
      %1869 = vst.msk [vmem:[%s405 + $0x18] sm:$0xff] %vm1865, %v1848
      %1870 = vst.msk [vmem:[%s405 + $0x20] sm:$0xff] %vm1865, %v1850
      %1871 = vst.msk [vmem:[%s405 + $0x28] sm:$0xff] %vm1865, %v1852
      %1872 = vst.msk [vmem:[%s405 + $0x30] sm:$0xff] %vm1865, %v1854
      %vm1873 = vcmask 358624
      %1874 = vst.msk [vmem:[%s405 + $0x38] sm:$0x7f] %vm1873, %v1856
      %p1875 = scmp.lt.s32.totalorder %s19, 1
      %s1876 = scalar_select %p1875, %s19, 1
      %s1877 = smul.addr %s1876, 8
      %s1878 = smul.addr %s1877, 8
      %s1879 = scalar_lea.vmem %s8, %s1878
      // Predicated region
      $region53: #{reduction_a_forward.3} parent=51 // pred_check
        %p1880 = pneg %p235
      $region54: #{reduction_a_forward.3} parent=51 // pred_check_branch
        %1882 = sbr.rel (%p1880) target = $region56
      $region55: #{reduction_a_forward.3} parent=51 // pred_region
        _
      $region56: #{reduction_a_forward.3} parent=51 // pred_fallthru
        _
    $region52: #{reduction_a_forward.3} parent=5 // pred_fallthru
      _
    %p1883 = scmp.le.s32.totalorder 2, %s14
    // Predicated region
    $region57: #{reduction_a_forward.3} parent=5 // pred_check
      %p1884 = pneg %p1883
    $region58: #{reduction_a_forward.3} parent=5 // pred_check_branch
      %1886 = sbr.rel (%p1884) target = $region60
    $region59: #{reduction_a_forward.3} parent=5 // pred_region
      %s1887 = ssub.s32 %s14, 2
      // Predicated region
      $region61: #{reduction_a_forward.3} parent=59 // pred_check
        %p1888 = pneg %p241
      $region62: #{reduction_a_forward.3} parent=59 // pred_check_branch
        %1890 = sbr.rel (%p1888) target = $region64
      $region63: #{reduction_a_forward.3} parent=59 // pred_region
        %p1891 = scmp.lt.s32.totalorder %s20, 1
        %s1892 = scalar_select %p1891, %s20, 1
        %s1893 = smul.addr %s1892, 8
        %s1894 = smul.addr %s1893, 8
        %s1895 = scalar_lea.vmem %s8, %s1894
      $region64: #{reduction_a_forward.3} parent=59 // pred_fallthru
        _
    $region60: #{reduction_a_forward.3} parent=5 // pred_fallthru
      _
  $region6: #{reduction_a_forward.3} parent=0 // loop_footer
    %s18 = sadd.s32 1, %s14
  $region7: #{reduction_a_forward.3} parent=0 // loop_footer_branch
    %13 = sbr.rel target = $region3
  $region8: #{reduction_a_forward.3} parent=0 // loop_exit
    _

// kernel: reduction_a_forward.2
$region0: #{reduction_a_forward.2}
  #allocation0 [shape = 'u32[]', space=smem, size = 0x4, offset = 0x4, fixed_abs, tag = 'smem constant byte address 0x4 - core index']
  #allocation1 [shape = 'u32[144,128]{1,0:T(1,128)}', space=vmem, size = 0x12000, scoped, tag = 'internal scratch']
  #allocation2 [shape = 'f32[342,8]{1,0:T(8,128)}', space=vmem, size = 0x2b000, scoped, tag = 'scratch operand']
  %s0 = inlined_call_operand.vmem [shape: f32[2,256,4], index: 0, kind: input, shape index: {}]
  %s1 = inlined_call_operand.vmem [shape: f32[2,81,4], index: 1, kind: input, shape index: {}]
  %s2 = inlined_call_operand.vmem [shape: f32[2,81,4], index: 2, kind: input, shape index: {}]
  %s3 = inlined_call_operand.vmem [shape: f32[2,81,4], index: 3, kind: input, shape index: {}]
  %s4 = inlined_call_operand.vmem [shape: f32[2,81,4], index: 4, kind: input, shape index: {}]
  %s5 = inlined_call_operand.vmem [shape: f32[9,4,24], index: 5, kind: input, shape index: {}]
  %s6 = inlined_call_operand.vmem [shape: f32[1,24], index: 6, kind: input, shape index: {}]
  %s7 = inlined_call_operand.vmem [shape: f32[4,8], index: 7, kind: input, shape index: {}]
  %s8 = inlined_call_operand.vmem [shape: f32[1,8], index: 8, kind: input, shape index: {}]
  %s9 = inlined_call_operand.vmem [shape: f32[9,8,12], index: 9, kind: input, shape index: {}]
  %s10 = inlined_call_operand.vmem [shape: f32[1,12], index: 10, kind: input, shape index: {}]
  %s11 = inlined_call_operand.vmem [shape: f32[2,63,4], index: 11, kind: output, shape index: {0}]
  %s12 = inlined_call_operand.vmem [shape: f32[2,63,24], index: 12, kind: output, shape index: {1}]
  %s13 = inlined_call_operand.vmem [shape: f32[2,288,12], index: 13, kind: output, shape index: {2}]
  %14 = xla_tuple %s11, %s12, %s13
  %s15 = sld [smem:[#allocation0]]
  $region93: #{reduction_a_forward.2} parent=0
    _
  %s17 = ssub.s32 1, %s15
  %s18 = scalar_select 0, %s17, %s15
  loop: start=0, step=1, limit=4
  $region2: #{reduction_a_forward.2} parent=0 // loop_pre_header
    _
  $region3: #{reduction_a_forward.2} parent=0 // loop_header
    %s20 = sphi 0, %s24
    %p21 = scmp.ge.s32.totalorder %s20, 4
    %s30 = sphi 0, %s32
    %s33 = sphi 0, %s30
    %s34 = sphi 0, %s33
    %s50 = sphi 0, %s34
    %s56 = sphi 0, %s58
    %s59 = sphi 0, %s56
    %s60 = sphi 0, %s59
    %s76 = sphi 0, %s60
    %s82 = sphi 0, %s84
    %s85 = sphi 0, %s82
    %s86 = sphi 0, %s85
    %s102 = sphi 0, %s86
    %s108 = sphi 0, %s110
    %s111 = sphi 0, %s108
    %s112 = sphi 0, %s111
    %s128 = sphi 0, %s112
    %s134 = sphi 0, %s136
    %s137 = sphi 0, %s134
    %s138 = sphi 0, %s137
    %s154 = sphi 0, %s138
    %s158 = sphi 0, %s158
    %s160 = sphi 0, %s158
    %s161 = sphi 0, %s160
    %s175 = sphi 0, %s161
    %s179 = sphi 0, %s179
    %s181 = sphi 0, %s179
    %s182 = sphi 0, %s181
    %s196 = sphi 0, %s182
    %s200 = sphi 0, %s200
    %s202 = sphi 0, %s200
    %s203 = sphi 0, %s202
    %s217 = sphi 0, %s203
    %s221 = sphi 0, %s221
    %s223 = sphi 0, %s221
    %s224 = sphi 0, %s223
    %s238 = sphi 0, %s224
    %s242 = sphi 0, %s242
    %s244 = sphi 0, %s242
    %s245 = sphi 0, %s244
    %s259 = sphi 0, %s245
    %s263 = sphi 0, %s263
    %s265 = sphi 0, %s263
    %s266 = sphi 0, %s265
    %s280 = sphi 0, %s266
    %s286 = sphi 0, %s288
    %s289 = sphi 0, %s286
    %s290 = sphi 0, %s289
    %s306 = sphi 0, %s290
    %s312 = sphi 0, %s314
    %s315 = sphi 0, %s312
    %s316 = sphi 0, %s315
    %s332 = sphi 0, %s316
    %s338 = sphi 0, %s340
    %s341 = sphi 0, %s338
    %s342 = sphi 0, %s341
    %s358 = sphi 0, %s342
  $region4: #{reduction_a_forward.2} parent=0 // loop_header_branch
    %23 = sbr.rel (%p21) target = $region8
  $region5: #{reduction_a_forward.2} parent=0 // loop_body
    %s25 = ssub.s32 %s20, 1
    %s26 = ssub.s32 %s20, 2
    %s27 = sadd.s32 %s20, 1
    %s28 = ssub.s32 %s20, %s27
    %p29 = scmp.eq.s32.totalorder %s28, 0
    %s31 = sadd.s32 %s30, 1
    %s32 = scalar_select %p29, %s30, %s31
    %p35 = pneg %p29
    %p36 = scmp.eq.s32.totalorder %s20, 1
    %p37 = por %p35, %p36
    %p38 = scmp.ne.s32.totalorder %s30, %s33
    %p39 = scmp.eq.s32.totalorder %s20, 0
    %p40 = por %p38, %p39
    %p41 = scmp.ne.s32.totalorder %s30, %s33
    %p42 = scmp.eq.s32.totalorder %s25, 1
    %p43 = por %p41, %p42
    %p44 = scmp.ne.s32.totalorder %s33, %s34
    %p45 = scmp.eq.s32.totalorder %s25, 0
    %p46 = por %p44, %p45
    %p47 = scmp.ne.s32.totalorder %s33, %s34
    %p48 = scmp.eq.s32.totalorder %s26, 1
    %p49 = por %p47, %p48
    %p51 = scmp.ne.s32.totalorder %s34, %s50
    %p52 = scmp.eq.s32.totalorder %s26, 0
    %p53 = por %p51, %p52
    %s54 = ssub.s32 %s20, %s27
    %p55 = scmp.eq.s32.totalorder %s54, 0
    %s57 = sadd.s32 %s56, 1
    %s58 = scalar_select %p55, %s56, %s57
    %p61 = pneg %p55
    %p62 = scmp.eq.s32.totalorder %s20, 1
    %p63 = por %p61, %p62
    %p64 = scmp.ne.s32.totalorder %s56, %s59
    %p65 = scmp.eq.s32.totalorder %s20, 0
    %p66 = por %p64, %p65
    %p67 = scmp.ne.s32.totalorder %s56, %s59
    %p68 = scmp.eq.s32.totalorder %s25, 1
    %p69 = por %p67, %p68
    %p70 = scmp.ne.s32.totalorder %s59, %s60
    %p71 = scmp.eq.s32.totalorder %s25, 0
    %p72 = por %p70, %p71
    %p73 = scmp.ne.s32.totalorder %s59, %s60
    %p74 = scmp.eq.s32.totalorder %s26, 1
    %p75 = por %p73, %p74
    %p77 = scmp.ne.s32.totalorder %s60, %s76
    %p78 = scmp.eq.s32.totalorder %s26, 0
    %p79 = por %p77, %p78
    %s80 = ssub.s32 %s20, %s27
    %p81 = scmp.eq.s32.totalorder %s80, 0
    %s83 = sadd.s32 %s82, 1
    %s84 = scalar_select %p81, %s82, %s83
    %p87 = pneg %p81
    %p88 = scmp.eq.s32.totalorder %s20, 1
    %p89 = por %p87, %p88
    %p90 = scmp.ne.s32.totalorder %s82, %s85
    %p91 = scmp.eq.s32.totalorder %s20, 0
    %p92 = por %p90, %p91
    %p93 = scmp.ne.s32.totalorder %s82, %s85
    %p94 = scmp.eq.s32.totalorder %s25, 1
    %p95 = por %p93, %p94
    %p96 = scmp.ne.s32.totalorder %s85, %s86
    %p97 = scmp.eq.s32.totalorder %s25, 0
    %p98 = por %p96, %p97
    %p99 = scmp.ne.s32.totalorder %s85, %s86
    %p100 = scmp.eq.s32.totalorder %s26, 1
    %p101 = por %p99, %p100
    %p103 = scmp.ne.s32.totalorder %s86, %s102
    %p104 = scmp.eq.s32.totalorder %s26, 0
    %p105 = por %p103, %p104
    %s106 = ssub.s32 %s20, %s27
    %p107 = scmp.eq.s32.totalorder %s106, 0
    %s109 = sadd.s32 %s108, 1
    %s110 = scalar_select %p107, %s108, %s109
    %p113 = pneg %p107
    %p114 = scmp.eq.s32.totalorder %s20, 1
    %p115 = por %p113, %p114
    %p116 = scmp.ne.s32.totalorder %s108, %s111
    %p117 = scmp.eq.s32.totalorder %s20, 0
    %p118 = por %p116, %p117
    %p119 = scmp.ne.s32.totalorder %s108, %s111
    %p120 = scmp.eq.s32.totalorder %s25, 1
    %p121 = por %p119, %p120
    %p122 = scmp.ne.s32.totalorder %s111, %s112
    %p123 = scmp.eq.s32.totalorder %s25, 0
    %p124 = por %p122, %p123
    %p125 = scmp.ne.s32.totalorder %s111, %s112
    %p126 = scmp.eq.s32.totalorder %s26, 1
    %p127 = por %p125, %p126
    %p129 = scmp.ne.s32.totalorder %s112, %s128
    %p130 = scmp.eq.s32.totalorder %s26, 0
    %p131 = por %p129, %p130
    %s132 = ssub.s32 %s20, %s27
    %p133 = scmp.eq.s32.totalorder %s132, 0
    %s135 = sadd.s32 %s134, 1
    %s136 = scalar_select %p133, %s134, %s135
    %p139 = pneg %p133
    %p140 = scmp.eq.s32.totalorder %s20, 1
    %p141 = por %p139, %p140
    %p142 = scmp.ne.s32.totalorder %s134, %s137
    %p143 = scmp.eq.s32.totalorder %s20, 0
    %p144 = por %p142, %p143
    %p145 = scmp.ne.s32.totalorder %s134, %s137
    %p146 = scmp.eq.s32.totalorder %s25, 1
    %p147 = por %p145, %p146
    %p148 = scmp.ne.s32.totalorder %s137, %s138
    %p149 = scmp.eq.s32.totalorder %s25, 0
    %p150 = por %p148, %p149
    %p151 = scmp.ne.s32.totalorder %s137, %s138
    %p152 = scmp.eq.s32.totalorder %s26, 1
    %p153 = por %p151, %p152
    %p155 = scmp.ne.s32.totalorder %s138, %s154
    %p156 = scmp.eq.s32.totalorder %s26, 0
    %p157 = por %p155, %p156
    %s159 = sadd.s32 %s158, 1
    %p162 = scmp.eq.s32.totalorder %s20, 1
    %p163 = scmp.ne.s32.totalorder %s158, %s160
    %p164 = scmp.eq.s32.totalorder %s20, 0
    %p165 = por %p163, %p164
    %p166 = scmp.ne.s32.totalorder %s158, %s160
    %p167 = scmp.eq.s32.totalorder %s25, 1
    %p168 = por %p166, %p167
    %p169 = scmp.ne.s32.totalorder %s160, %s161
    %p170 = scmp.eq.s32.totalorder %s25, 0
    %p171 = por %p169, %p170
    %p172 = scmp.ne.s32.totalorder %s160, %s161
    %p173 = scmp.eq.s32.totalorder %s26, 1
    %p174 = por %p172, %p173
    %p176 = scmp.ne.s32.totalorder %s161, %s175
    %p177 = scmp.eq.s32.totalorder %s26, 0
    %p178 = por %p176, %p177
    %s180 = sadd.s32 %s179, 1
    %p183 = scmp.eq.s32.totalorder %s20, 1
    %p184 = scmp.ne.s32.totalorder %s179, %s181
    %p185 = scmp.eq.s32.totalorder %s20, 0
    %p186 = por %p184, %p185
    %p187 = scmp.ne.s32.totalorder %s179, %s181
    %p188 = scmp.eq.s32.totalorder %s25, 1
    %p189 = por %p187, %p188
    %p190 = scmp.ne.s32.totalorder %s181, %s182
    %p191 = scmp.eq.s32.totalorder %s25, 0
    %p192 = por %p190, %p191
    %p193 = scmp.ne.s32.totalorder %s181, %s182
    %p194 = scmp.eq.s32.totalorder %s26, 1
    %p195 = por %p193, %p194
    %p197 = scmp.ne.s32.totalorder %s182, %s196
    %p198 = scmp.eq.s32.totalorder %s26, 0
    %p199 = por %p197, %p198
    %s201 = sadd.s32 %s200, 1
    %p204 = scmp.eq.s32.totalorder %s20, 1
    %p205 = scmp.ne.s32.totalorder %s200, %s202
    %p206 = scmp.eq.s32.totalorder %s20, 0
    %p207 = por %p205, %p206
    %p208 = scmp.ne.s32.totalorder %s200, %s202
    %p209 = scmp.eq.s32.totalorder %s25, 1
    %p210 = por %p208, %p209
    %p211 = scmp.ne.s32.totalorder %s202, %s203
    %p212 = scmp.eq.s32.totalorder %s25, 0
    %p213 = por %p211, %p212
    %p214 = scmp.ne.s32.totalorder %s202, %s203
    %p215 = scmp.eq.s32.totalorder %s26, 1
    %p216 = por %p214, %p215
    %p218 = scmp.ne.s32.totalorder %s203, %s217
    %p219 = scmp.eq.s32.totalorder %s26, 0
    %p220 = por %p218, %p219
    %s222 = sadd.s32 %s221, 1
    %p225 = scmp.eq.s32.totalorder %s20, 1
    %p226 = scmp.ne.s32.totalorder %s221, %s223
    %p227 = scmp.eq.s32.totalorder %s20, 0
    %p228 = por %p226, %p227
    %p229 = scmp.ne.s32.totalorder %s221, %s223
    %p230 = scmp.eq.s32.totalorder %s25, 1
    %p231 = por %p229, %p230
    %p232 = scmp.ne.s32.totalorder %s223, %s224
    %p233 = scmp.eq.s32.totalorder %s25, 0
    %p234 = por %p232, %p233
    %p235 = scmp.ne.s32.totalorder %s223, %s224
    %p236 = scmp.eq.s32.totalorder %s26, 1
    %p237 = por %p235, %p236
    %p239 = scmp.ne.s32.totalorder %s224, %s238
    %p240 = scmp.eq.s32.totalorder %s26, 0
    %p241 = por %p239, %p240
    %s243 = sadd.s32 %s242, 1
    %p246 = scmp.eq.s32.totalorder %s20, 1
    %p247 = scmp.ne.s32.totalorder %s242, %s244
    %p248 = scmp.eq.s32.totalorder %s20, 0
    %p249 = por %p247, %p248
    %p250 = scmp.ne.s32.totalorder %s242, %s244
    %p251 = scmp.eq.s32.totalorder %s25, 1
    %p252 = por %p250, %p251
    %p253 = scmp.ne.s32.totalorder %s244, %s245
    %p254 = scmp.eq.s32.totalorder %s25, 0
    %p255 = por %p253, %p254
    %p256 = scmp.ne.s32.totalorder %s244, %s245
    %p257 = scmp.eq.s32.totalorder %s26, 1
    %p258 = por %p256, %p257
    %p260 = scmp.ne.s32.totalorder %s245, %s259
    %p261 = scmp.eq.s32.totalorder %s26, 0
    %p262 = por %p260, %p261
    %s264 = sadd.s32 %s263, 1
    %p267 = scmp.eq.s32.totalorder %s20, 1
    %p268 = scmp.ne.s32.totalorder %s263, %s265
    %p269 = scmp.eq.s32.totalorder %s20, 0
    %p270 = por %p268, %p269
    %p271 = scmp.ne.s32.totalorder %s263, %s265
    %p272 = scmp.eq.s32.totalorder %s25, 1
    %p273 = por %p271, %p272
    %p274 = scmp.ne.s32.totalorder %s265, %s266
    %p275 = scmp.eq.s32.totalorder %s25, 0
    %p276 = por %p274, %p275
    %p277 = scmp.ne.s32.totalorder %s265, %s266
    %p278 = scmp.eq.s32.totalorder %s26, 1
    %p279 = por %p277, %p278
    %p281 = scmp.ne.s32.totalorder %s266, %s280
    %p282 = scmp.eq.s32.totalorder %s26, 0
    %p283 = por %p281, %p282
    %s284 = ssub.s32 %s20, %s27
    %p285 = scmp.eq.s32.totalorder %s284, 0
    %s287 = sadd.s32 %s286, 1
    %s288 = scalar_select %p285, %s286, %s287
    %p291 = pneg %p285
    %p292 = scmp.eq.s32.totalorder %s20, 1
    %p293 = por %p291, %p292
    %p294 = scmp.ne.s32.totalorder %s286, %s289
    %p295 = scmp.eq.s32.totalorder %s20, 0
    %p296 = por %p294, %p295
    %p297 = scmp.ne.s32.totalorder %s286, %s289
    %p298 = scmp.eq.s32.totalorder %s25, 1
    %p299 = por %p297, %p298
    %p300 = scmp.ne.s32.totalorder %s289, %s290
    %p301 = scmp.eq.s32.totalorder %s25, 0
    %p302 = por %p300, %p301
    %p303 = scmp.ne.s32.totalorder %s289, %s290
    %p304 = scmp.eq.s32.totalorder %s26, 1
    %p305 = por %p303, %p304
    %p307 = scmp.ne.s32.totalorder %s290, %s306
    %p308 = scmp.eq.s32.totalorder %s26, 0
    %p309 = por %p307, %p308
    %s310 = ssub.s32 %s20, %s27
    %p311 = scmp.eq.s32.totalorder %s310, 0
    %s313 = sadd.s32 %s312, 1
    %s314 = scalar_select %p311, %s312, %s313
    %p317 = pneg %p311
    %p318 = scmp.eq.s32.totalorder %s20, 1
    %p319 = por %p317, %p318
    %p320 = scmp.ne.s32.totalorder %s312, %s315
    %p321 = scmp.eq.s32.totalorder %s20, 0
    %p322 = por %p320, %p321
    %p323 = scmp.ne.s32.totalorder %s312, %s315
    %p324 = scmp.eq.s32.totalorder %s25, 1
    %p325 = por %p323, %p324
    %p326 = scmp.ne.s32.totalorder %s315, %s316
    %p327 = scmp.eq.s32.totalorder %s25, 0
    %p328 = por %p326, %p327
    %p329 = scmp.ne.s32.totalorder %s315, %s316
    %p330 = scmp.eq.s32.totalorder %s26, 1
    %p331 = por %p329, %p330
    %p333 = scmp.ne.s32.totalorder %s316, %s332
    %p334 = scmp.eq.s32.totalorder %s26, 0
    %p335 = por %p333, %p334
    %s336 = ssub.s32 %s20, %s27
    %p337 = scmp.eq.s32.totalorder %s336, 0
    %s339 = sadd.s32 %s338, 1
    %s340 = scalar_select %p337, %s338, %s339
    %p343 = pneg %p337
    %p344 = scmp.eq.s32.totalorder %s20, 1
    %p345 = por %p343, %p344
    %p346 = scmp.ne.s32.totalorder %s338, %s341
    %p347 = scmp.eq.s32.totalorder %s20, 0
    %p348 = por %p346, %p347
    %p349 = scmp.ne.s32.totalorder %s338, %s341
    %p350 = scmp.eq.s32.totalorder %s25, 1
    %p351 = por %p349, %p350
    %p352 = scmp.ne.s32.totalorder %s341, %s342
    %p353 = scmp.eq.s32.totalorder %s25, 0
    %p354 = por %p352, %p353
    %p355 = scmp.ne.s32.totalorder %s341, %s342
    %p356 = scmp.eq.s32.totalorder %s26, 1
    %p357 = por %p355, %p356
    %p359 = scmp.ne.s32.totalorder %s342, %s358
    %p360 = scmp.eq.s32.totalorder %s26, 0
    %p361 = por %p359, %p360
    %p362 = scmp.le.s32.totalorder 1, %s20
    %p363 = scmp.lt.s32.totalorder %s20, 3
    %p364 = pnand %p362, %p363
    %p365 = pneg %p364
    // Predicated region
    $region9: #{reduction_a_forward.2} parent=5 // pred_check
      _
    $region10: #{reduction_a_forward.2} parent=5 // pred_check_branch
      %367 = sbr.rel (%p364) target = $region12
    $region11: #{reduction_a_forward.2} parent=5 // pred_region
      %s368 = ssub.s32 %s20, 1
      // Predicated region
      $region13: #{reduction_a_forward.2} parent=11 // pred_check
        %p369 = pneg %p171
      $region14: #{reduction_a_forward.2} parent=11 // pred_check_branch
        %371 = sbr.rel (%p369) target = $region16
      $region15: #{reduction_a_forward.2} parent=11 // pred_region
        _
      $region16: #{reduction_a_forward.2} parent=11 // pred_fallthru
        _
      // Predicated region
      $region17: #{reduction_a_forward.2} parent=11 // pred_check
        %p372 = pneg %p192
      $region18: #{reduction_a_forward.2} parent=11 // pred_check_branch
        %374 = sbr.rel (%p372) target = $region20
      $region19: #{reduction_a_forward.2} parent=11 // pred_region
        _
      $region20: #{reduction_a_forward.2} parent=11 // pred_fallthru
        _
      // Predicated region
      $region21: #{reduction_a_forward.2} parent=11 // pred_check
        %p375 = pneg %p213
      $region22: #{reduction_a_forward.2} parent=11 // pred_check_branch
        %377 = sbr.rel (%p375) target = $region24
      $region23: #{reduction_a_forward.2} parent=11 // pred_region
        _
      $region24: #{reduction_a_forward.2} parent=11 // pred_fallthru
        _
      // Predicated region
      $region25: #{reduction_a_forward.2} parent=11 // pred_check
        %p378 = pneg %p234
      $region26: #{reduction_a_forward.2} parent=11 // pred_check_branch
        %380 = sbr.rel (%p378) target = $region28
      $region27: #{reduction_a_forward.2} parent=11 // pred_region
        _
      $region28: #{reduction_a_forward.2} parent=11 // pred_fallthru
        _
      // Predicated region
      $region29: #{reduction_a_forward.2} parent=11 // pred_check
        %p381 = pneg %p255
      $region30: #{reduction_a_forward.2} parent=11 // pred_check_branch
        %383 = sbr.rel (%p381) target = $region32
      $region31: #{reduction_a_forward.2} parent=11 // pred_region
        _
      $region32: #{reduction_a_forward.2} parent=11 // pred_fallthru
        _
      // Predicated region
      $region33: #{reduction_a_forward.2} parent=11 // pred_check
        %p384 = pneg %p276
      $region34: #{reduction_a_forward.2} parent=11 // pred_check_branch
        %386 = sbr.rel (%p384) target = $region36
      $region35: #{reduction_a_forward.2} parent=11 // pred_region
        _
      $region36: #{reduction_a_forward.2} parent=11 // pred_fallthru
        _
    $region12: #{reduction_a_forward.2} parent=5 // pred_fallthru
      _
    %p387 = scmp.lt.s32.totalorder %s20, 2
    // Predicated region
    $region37: #{reduction_a_forward.2} parent=5 // pred_check
      %p388 = pneg %p387
    $region38: #{reduction_a_forward.2} parent=5 // pred_check_branch
      %390 = sbr.rel (%p388) target = $region40
    $region39: #{reduction_a_forward.2} parent=5 // pred_region
      // Predicated region
      $region41: #{reduction_a_forward.2} parent=39 // pred_check
        %p391 = pneg %p40
      $region42: #{reduction_a_forward.2} parent=39 // pred_check_branch
        %393 = sbr.rel (%p391) target = $region44
      $region43: #{reduction_a_forward.2} parent=39 // pred_region
        %p394 = scmp.lt.s32.totalorder %s20, 1
        %s395 = scalar_select %p394, %s20, 1
        %s396 = smul.addr %s395, 32
        %s397 = smul.addr %s396, 8
        %s398 = scalar_lea.vmem %s0, %s397
      $region44: #{reduction_a_forward.2} parent=39 // pred_fallthru
        _
      // Predicated region
      $region45: #{reduction_a_forward.2} parent=39 // pred_check
        %p399 = pneg %p66
      $region46: #{reduction_a_forward.2} parent=39 // pred_check_branch
        %401 = sbr.rel (%p399) target = $region48
      $region47: #{reduction_a_forward.2} parent=39 // pred_region
        %p402 = scmp.lt.s32.totalorder %s20, 1
        %s403 = scalar_select %p402, %s20, 1
        %s404 = smul.addr %s403, 11
        %s405 = smul.addr %s404, 8
        %s406 = scalar_lea.vmem %s1, %s405
      $region48: #{reduction_a_forward.2} parent=39 // pred_fallthru
        _
      // Predicated region
      $region49: #{reduction_a_forward.2} parent=39 // pred_check
        %p407 = pneg %p92
      $region50: #{reduction_a_forward.2} parent=39 // pred_check_branch
        %409 = sbr.rel (%p407) target = $region52
      $region51: #{reduction_a_forward.2} parent=39 // pred_region
        %p410 = scmp.lt.s32.totalorder %s20, 1
        %s411 = scalar_select %p410, %s20, 1
        %s412 = smul.addr %s411, 11
        %s413 = smul.addr %s412, 8
        %s414 = scalar_lea.vmem %s2, %s413
      $region52: #{reduction_a_forward.2} parent=39 // pred_fallthru
        _
      // Predicated region
      $region53: #{reduction_a_forward.2} parent=39 // pred_check
        %p415 = pneg %p118
      $region54: #{reduction_a_forward.2} parent=39 // pred_check_branch
        %417 = sbr.rel (%p415) target = $region56
      $region55: #{reduction_a_forward.2} parent=39 // pred_region
        %p418 = scmp.lt.s32.totalorder %s20, 1
        %s419 = scalar_select %p418, %s20, 1
        %s420 = smul.addr %s419, 11
        %s421 = smul.addr %s420, 8
        %s422 = scalar_lea.vmem %s3, %s421
      $region56: #{reduction_a_forward.2} parent=39 // pred_fallthru
        _
      // Predicated region
      $region57: #{reduction_a_forward.2} parent=39 // pred_check
        %p423 = pneg %p144
      $region58: #{reduction_a_forward.2} parent=39 // pred_check_branch
        %425 = sbr.rel (%p423) target = $region60
      $region59: #{reduction_a_forward.2} parent=39 // pred_region
        %p426 = scmp.lt.s32.totalorder %s20, 1
        %s427 = scalar_select %p426, %s20, 1
        %s428 = smul.addr %s427, 11
        %s429 = smul.addr %s428, 8
        %s430 = scalar_lea.vmem %s4, %s429
      $region60: #{reduction_a_forward.2} parent=39 // pred_fallthru
        _
    $region40: #{reduction_a_forward.2} parent=5 // pred_fallthru
      _
    %p431 = scmp.le.s32.totalorder 1, %s20
    %p432 = scmp.lt.s32.totalorder %s20, 3
    %p433 = pnand %p431, %p432
    %p434 = pneg %p433
    // Predicated region
    $region61: #{reduction_a_forward.2} parent=5 // pred_check
      _
    $region62: #{reduction_a_forward.2} parent=5 // pred_check_branch
      %436 = sbr.rel (%p433) target = $region64
    $region63: #{reduction_a_forward.2} parent=5 // pred_region
      %s437 = ssub.s32 %s20, 1
      %p438 = scmp.lt.s32.totalorder %s25, 1
      %s439 = scalar_select %p438, %s25, 1
      %s440 = smul.addr %s439, 32
      %s441 = smul.addr %s440, 8
      %s442 = scalar_lea.vmem %s0, %s441
      %p443 = pneg %p46
      %p444 = pneg %p43
      %p445 = scmp.lt.s32.totalorder %s25, 1
      %s446 = scalar_select %p445, %s25, 1
      %s447 = smul.addr %s446, 11
      %s448 = smul.addr %s447, 8
      %s449 = scalar_lea.vmem %s1, %s448
      %p450 = pneg %p72
      %p451 = pneg %p69
      %p452 = scmp.lt.s32.totalorder %s25, 1
      %s453 = scalar_select %p452, %s25, 1
      %s454 = smul.addr %s453, 11
      %s455 = smul.addr %s454, 8
      %s456 = scalar_lea.vmem %s2, %s455
      %p457 = pneg %p98
      %p458 = pneg %p95
      %p459 = scmp.lt.s32.totalorder %s25, 1
      %s460 = scalar_select %p459, %s25, 1
      %s461 = smul.addr %s460, 11
      %s462 = smul.addr %s461, 8
      %s463 = scalar_lea.vmem %s3, %s462
      %p464 = pneg %p124
      %p465 = pneg %p121
      %p466 = scmp.lt.s32.totalorder %s25, 1
      %s467 = scalar_select %p466, %s25, 1
      %s468 = smul.addr %s467, 11
      %s469 = smul.addr %s468, 8
      %s470 = scalar_lea.vmem %s4, %s469
      %p471 = pneg %p150
      %p472 = pneg %p147
      %p473 = pneg %p171
      %p474 = pneg %p168
      %p475 = pneg %p192
      %p476 = pneg %p189
      %p477 = pneg %p213
      %p478 = pneg %p210
      %p479 = pneg %p234
      %p480 = pneg %p231
      %p481 = pneg %p255
      %p482 = pneg %p252
      %p483 = pneg %p276
      %p484 = pneg %p273
      %p485 = pneg %p302
      %p486 = pneg %p299
      %p487 = scmp.lt.s32.totalorder %s25, 1
      %s488 = scalar_select %p487, %s25, 1
      %s489 = smul.addr %s488, 8
      %s490 = smul.addr %s489, 8
      %s491 = scalar_lea.vmem %s11, %s490
      %p492 = pneg %p328
      %p493 = pneg %p325
      %p494 = scmp.lt.s32.totalorder %s25, 1
      %s495 = scalar_select %p494, %s25, 1
      %s496 = smul.addr %s495, 8
      %s497 = smul.addr %s496, 8
      %s498 = scalar_lea.vmem %s12, %s497
      %p499 = pneg %p354
      %p500 = pneg %p351
      %p501 = scmp.lt.s32.totalorder %s25, 1
      %s502 = scalar_select %p501, %s25, 1
      %s503 = smul.addr %s502, 36
      %s504 = smul.addr %s503, 8
      %s505 = scalar_lea.vmem %s13, %s504
      %p506 = scmp.lt.s32.totalorder %s25, 1
      %s507 = scalar_select %p506, %s25, 1
      %s508 = smul.addr %s507, 32
      %s509 = smul.addr %s508, 8
      %s510 = scalar_lea.vmem %s0, %s509
      %p511 = scmp.lt.s32.totalorder %s25, 1
      %s512 = scalar_select %p511, %s25, 1
      %s513 = smul.addr %s512, 11
      %s514 = smul.addr %s513, 8
      %s515 = scalar_lea.vmem %s1, %s514
      %p516 = scmp.lt.s32.totalorder %s25, 1
      %s517 = scalar_select %p516, %s25, 1
      %s518 = smul.addr %s517, 11
      %s519 = smul.addr %s518, 8
      %s520 = scalar_lea.vmem %s2, %s519
      %p521 = scmp.lt.s32.totalorder %s25, 1
      %s522 = scalar_select %p521, %s25, 1
      %s523 = smul.addr %s522, 11
      %s524 = smul.addr %s523, 8
      %s525 = scalar_lea.vmem %s3, %s524
      %p526 = scmp.lt.s32.totalorder %s25, 1
      %s527 = scalar_select %p526, %s25, 1
      %s528 = smul.addr %s527, 11
      %s529 = smul.addr %s528, 8
      %s530 = scalar_lea.vmem %s4, %s529
      %p531 = scmp.lt.s32.totalorder %s25, 1
      %s532 = scalar_select %p531, %s25, 1
      %s533 = smul.addr %s532, 8
      %s534 = smul.addr %s533, 8
      %s535 = scalar_lea.vmem %s11, %s534
      %p536 = scmp.lt.s32.totalorder %s25, 1
      %s537 = scalar_select %p536, %s25, 1
      %s538 = smul.addr %s537, 8
      %s539 = smul.addr %s538, 8
      %s540 = scalar_lea.vmem %s12, %s539
      %p541 = scmp.lt.s32.totalorder %s25, 1
      %s542 = scalar_select %p541, %s25, 1
      %s543 = smul.addr %s542, 36
      %s544 = smul.addr %s543, 8
      %s545 = scalar_lea.vmem %s13, %s544
      %v546 = vld [vmem:[%s515] sm:$0xff]
      %v547 = vld [vmem:[%s515 + $0x8] sm:$0xff]
      %v548 = vld [vmem:[%s515 + $0x10] sm:$0xff]
      %v549 = vld [vmem:[%s515 + $0x18] sm:$0xff]
      %v550 = vld [vmem:[%s515 + $0x20] sm:$0xff]
      %v551 = vld [vmem:[%s515 + $0x28] sm:$0xff]
      %v552 = vld [vmem:[%s515 + $0x30] sm:$0xff]
      %v553 = vld [vmem:[%s515 + $0x38] sm:$0x7f]
      %v554 = vld [vmem:[%s5] sm:$0xf]
      %v555 = vld [vmem:[%s520] sm:$0xff]
      %v556 = vld [vmem:[%s520 + $0x8] sm:$0xff]
      %v557 = vld [vmem:[%s520 + $0x10] sm:$0xff]
      %v558 = vld [vmem:[%s520 + $0x18] sm:$0xff]
      %v559 = vld [vmem:[%s520 + $0x20] sm:$0xff]
      %v560 = vld [vmem:[%s520 + $0x28] sm:$0xff]
      %v561 = vld [vmem:[%s520 + $0x30] sm:$0xff]
      %v562 = vld [vmem:[%s520 + $0x38] sm:$0x7f]
      %v563 = vmax.f32 %v546, %v555
      %v564 = vmax.f32 %v547, %v556
      %v565 = vmax.f32 %v548, %v557
      %v566 = vmax.f32 %v549, %v558
      %v567 = vmax.f32 %v550, %v559
      %v568 = vmax.f32 %v551, %v560
      %v569 = vmax.f32 %v552, %v561
      %v570 = vmax.f32 %v553, %v562
      %s571 = scalar_lea.vmem %s5, 4
      %v572 = vld [vmem:[%s571] sm:$0xf]
      %vm573 = vcmask 31744
      %v575 = vsel %vm573, %v555, 0
      %v578 = vsel %vm573, %v556, 0
      %v581 = vsel %vm573, %v557, 0
      %v584 = vsel %vm573, %v558, 0
      %v587 = vsel %vm573, %v559, 0
      %v590 = vsel %vm573, %v560, 0
      %v593 = vsel %vm573, %v561, 0
      %v596 = vsel %vm573, %v562, 0
      %vm598 = vcmask 1043456
      %v600 = vsel %vm598, %v572, 0
      %602 = vmatprep.subr.mxu0 0.0
      %603 = vmatpush1.msra.mxu0 %v600
      %604 = vmatprep.subr.mxu0 0.0
      %605 = vmatpush1.msra.mxu0 0.0
      %606 = vmatprep.subr.mxu0 0.0
      %607 = vmatpush1.msra.mxu0 0.0
      %608 = vmatprep.subr.mxu0 0.0
      %609 = vmatpush1.msra.mxu0 0.0
      %610 = vmatprep.subr.mxu0 0.0
      %611 = vmatpush1.msra.mxu0 0.0
      %612 = vmatprep.subr.mxu0 0.0
      %613 = vmatpush1.msra.mxu0 0.0
      %614 = vmatprep.subr.mxu0 0.0
      %615 = vmatpush1.msra.mxu0 0.0
      %616 = vmatprep.subr.mxu0 0.0
      %617 = vmatpush1.msra.mxu0 0.0
      %618 = vmatprep.subr.mxu0 0.0
      %619 = vmatpush1.msra.mxu0 0.0
      %620 = vmatprep.subr.mxu0 0.0
      %621 = vmatpush1.msra.mxu0 0.0
      %622 = vmatprep.subr.mxu0 0.0
      %623 = vmatpush1.msra.mxu0 0.0
      %624 = vmatprep.subr.mxu0 0.0
      %625 = vmatpush1.msra.mxu0 0.0
      %626 = vmatprep.subr.mxu0 0.0
      %627 = vmatpush1.msra.mxu0 0.0
      %628 = vmatprep.subr.mxu0 0.0
      %629 = vmatpush1.msra.mxu0 0.0
      %630 = vmatprep.subr.mxu0 0.0
      %631 = vmatpush1.msra.mxu0 0.0
      %632 = vmatprep.subr.mxu0 0.0
      %633 = vmatpush1.msra.mxu0 0.0
      %634 = vmatprep.subr.mxu0 0.0
      %635 = vmatpush1.msra.mxu0 0.0
      %636 = vmatprep.subr.mxu0 0.0
      %637 = vmatpush1.msra.mxu0 0.0
      %638 = vmatprep.subr.mxu0 0.0
      %639 = vmatpush1.msra.mxu0 0.0
      %640 = vmatprep.subr.mxu0 0.0
      %641 = vmatpush1.msra.mxu0 0.0
      %642 = vmatprep.subr.mxu0 0.0
      %643 = vmatpush1.msra.mxu0 0.0
      %644 = vmatprep.subr.mxu0 0.0
      %645 = vmatpush1.msra.mxu0 0.0
      %646 = vmatprep.subr.mxu0 0.0
      %647 = vmatpush1.msra.mxu0 0.0
      %648 = vmatprep.subr.mxu0 0.0
      %649 = vmatpush1.msra.mxu0 0.0
      %650 = vmatprep.subr.mxu0 0.0
      %651 = vmatpush1.msra.mxu0 0.0
      %652 = vmatprep.subr.mxu0 0.0
      %653 = vmatpush1.msra.mxu0 0.0
      %654 = vmatprep.subr.mxu0 0.0
      %655 = vmatpush1.msra.mxu0 0.0
      %656 = vmatprep.subr.mxu0 0.0
      %657 = vmatpush1.msra.mxu0 0.0
      %658 = vmatprep.subr.mxu0 0.0
      %659 = vmatpush1.msra.mxu0 0.0
      %660 = vmatprep.subr.mxu0 0.0
      %661 = vmatpush1.msra.mxu0 0.0
      %662 = vmatprep.subr.mxu0 0.0
      %663 = vmatpush1.msra.mxu0 0.0
      %664 = vmatprep.subr.mxu0 0.0
      %665 = vmatpush1.msra.mxu0 0.0
      %666 = vmatprep.mubr.f32.mxu0 0.0
      %667 = vmatmul.mubr.f32.gmra.mrb[0].mxu0 %v575
      %v668 = vpop.f32.mrb[0].mxu0
      %v669 = vadd.f32 0.0, %v668
      %v670 = vpop.f32.mrb[0].mxu0
      %671 = vmatprep.mubr.f32.mxu0 0.0
      %672 = vmatmul.mubr.f32.gmra.mrb[0].mxu0 %v578
      %v673 = vpop.f32.mrb[0].mxu0
      %v674 = vadd.f32 0.0, %v673
      %v675 = vpop.f32.mrb[0].mxu0
      %676 = vmatprep.mubr.f32.mxu0 0.0
      %677 = vmatmul.mubr.f32.gmra.mrb[0].mxu0 %v581
      %v678 = vpop.f32.mrb[0].mxu0
      %v679 = vadd.f32 0.0, %v678
      %v680 = vpop.f32.mrb[0].mxu0
      %681 = vmatprep.mubr.f32.mxu0 0.0
      %682 = vmatmul.mubr.f32.gmra.mrb[0].mxu0 %v584
      %v683 = vpop.f32.mrb[0].mxu0
      %v684 = vadd.f32 0.0, %v683
      %v685 = vpop.f32.mrb[0].mxu0
      %686 = vmatprep.mubr.f32.mxu0 0.0
      %687 = vmatmul.mubr.f32.gmra.mrb[0].mxu0 %v587
      %v688 = vpop.f32.mrb[0].mxu0
      %v689 = vadd.f32 0.0, %v688
      %v690 = vpop.f32.mrb[0].mxu0
      %691 = vmatprep.mubr.f32.mxu0 0.0
      %692 = vmatmul.mubr.f32.gmra.mrb[0].mxu0 %v590
      %v693 = vpop.f32.mrb[0].mxu0
      %v694 = vadd.f32 0.0, %v693
      %v695 = vpop.f32.mrb[0].mxu0
      %696 = vmatprep.mubr.f32.mxu0 0.0
      %697 = vmatmul.mubr.f32.gmra.mrb[0].mxu0 %v593
      %v698 = vpop.f32.mrb[0].mxu0
      %v699 = vadd.f32 0.0, %v698
      %v700 = vpop.f32.mrb[0].mxu0
      %701 = vmatprep.mubr.f32.mxu0 0.0
      %702 = vmatmul.mubr.f32.gmra.mrb[0].mxu0 %v596
      %v703 = vpop.f32.mrb[0].mxu0
      %v704 = vadd.f32 0.0, %v703
      %v705 = vpop.f32.mrb[0].mxu0
      %706 = vdwg.mxu0
      %v708 = vsel %vm573, %v546, 0
      %v711 = vsel %vm573, %v547, 0
      %v714 = vsel %vm573, %v548, 0
      %v717 = vsel %vm573, %v549, 0
      %v720 = vsel %vm573, %v550, 0
      %v723 = vsel %vm573, %v551, 0
      %v726 = vsel %vm573, %v552, 0
      %v729 = vsel %vm573, %v553, 0
      %v732 = vsel %vm598, %v554, 0
      %734 = vmatprep.subr.mxu0 0.0
      %735 = vmatpush1.msra.mxu0 %v732
      %736 = vmatprep.subr.mxu0 0.0
      %737 = vmatpush1.msra.mxu0 0.0
      %738 = vmatprep.subr.mxu0 0.0
      %739 = vmatpush1.msra.mxu0 0.0
      %740 = vmatprep.subr.mxu0 0.0
      %741 = vmatpush1.msra.mxu0 0.0
      %742 = vmatprep.subr.mxu0 0.0
      %743 = vmatpush1.msra.mxu0 0.0
      %744 = vmatprep.subr.mxu0 0.0
      %745 = vmatpush1.msra.mxu0 0.0
      %746 = vmatprep.subr.mxu0 0.0
      %747 = vmatpush1.msra.mxu0 0.0
      %748 = vmatprep.subr.mxu0 0.0
      %749 = vmatpush1.msra.mxu0 0.0
      %750 = vmatprep.subr.mxu0 0.0
      %751 = vmatpush1.msra.mxu0 0.0
      %752 = vmatprep.subr.mxu0 0.0
      %753 = vmatpush1.msra.mxu0 0.0
      %754 = vmatprep.subr.mxu0 0.0
      %755 = vmatpush1.msra.mxu0 0.0
      %756 = vmatprep.subr.mxu0 0.0
      %757 = vmatpush1.msra.mxu0 0.0
      %758 = vmatprep.subr.mxu0 0.0
      %759 = vmatpush1.msra.mxu0 0.0
      %760 = vmatprep.subr.mxu0 0.0
      %761 = vmatpush1.msra.mxu0 0.0
      %762 = vmatprep.subr.mxu0 0.0
      %763 = vmatpush1.msra.mxu0 0.0
      %764 = vmatprep.subr.mxu0 0.0
      %765 = vmatpush1.msra.mxu0 0.0
      %766 = vmatprep.subr.mxu0 0.0
      %767 = vmatpush1.msra.mxu0 0.0
      %768 = vmatprep.subr.mxu0 0.0
      %769 = vmatpush1.msra.mxu0 0.0
      %770 = vmatprep.subr.mxu0 0.0
      %771 = vmatpush1.msra.mxu0 0.0
      %772 = vmatprep.subr.mxu0 0.0
      %773 = vmatpush1.msra.mxu0 0.0
      %774 = vmatprep.subr.mxu0 0.0
      %775 = vmatpush1.msra.mxu0 0.0
      %776 = vmatprep.subr.mxu0 0.0
      %777 = vmatpush1.msra.mxu0 0.0
      %778 = vmatprep.subr.mxu0 0.0
      %779 = vmatpush1.msra.mxu0 0.0
      %780 = vmatprep.subr.mxu0 0.0
      %781 = vmatpush1.msra.mxu0 0.0
      %782 = vmatprep.subr.mxu0 0.0
      %783 = vmatpush1.msra.mxu0 0.0
      %784 = vmatprep.subr.mxu0 0.0
      %785 = vmatpush1.msra.mxu0 0.0
      %786 = vmatprep.subr.mxu0 0.0
      %787 = vmatpush1.msra.mxu0 0.0
      %788 = vmatprep.subr.mxu0 0.0
      %789 = vmatpush1.msra.mxu0 0.0
      %790 = vmatprep.subr.mxu0 0.0
      %791 = vmatpush1.msra.mxu0 0.0
      %792 = vmatprep.subr.mxu0 0.0
      %793 = vmatpush1.msra.mxu0 0.0
      %794 = vmatprep.subr.mxu0 0.0
      %795 = vmatpush1.msra.mxu0 0.0
      %796 = vmatprep.subr.mxu0 0.0
      %797 = vmatpush1.msra.mxu0 0.0
      %798 = vmatprep.mubr.f32.mxu0 0.0
      %799 = vmatmul.mubr.f32.gmra.mrb[0].mxu0 %v708
      %v800 = vpop.f32.mrb[0].mxu0
      %v801 = vadd.f32 %v669, %v800
      %v802 = vpop.f32.mrb[0].mxu0
      %803 = vmatprep.mubr.f32.mxu0 0.0
      %804 = vmatmul.mubr.f32.gmra.mrb[0].mxu0 %v711
      %v805 = vpop.f32.mrb[0].mxu0
      %v806 = vadd.f32 %v674, %v805
      %v807 = vpop.f32.mrb[0].mxu0
      %808 = vmatprep.mubr.f32.mxu0 0.0
      %809 = vmatmul.mubr.f32.gmra.mrb[0].mxu0 %v714
      %v810 = vpop.f32.mrb[0].mxu0
      %v811 = vadd.f32 %v679, %v810
      %v812 = vpop.f32.mrb[0].mxu0
      %813 = vmatprep.mubr.f32.mxu0 0.0
      %814 = vmatmul.mubr.f32.gmra.mrb[0].mxu0 %v717
      %v815 = vpop.f32.mrb[0].mxu0
      %v816 = vadd.f32 %v684, %v815
      %v817 = vpop.f32.mrb[0].mxu0
      %818 = vmatprep.mubr.f32.mxu0 0.0
      %819 = vmatmul.mubr.f32.gmra.mrb[0].mxu0 %v720
      %v820 = vpop.f32.mrb[0].mxu0
      %v821 = vadd.f32 %v689, %v820
      %v822 = vpop.f32.mrb[0].mxu0
      %823 = vmatprep.mubr.f32.mxu0 0.0
      %824 = vmatmul.mubr.f32.gmra.mrb[0].mxu0 %v723
      %v825 = vpop.f32.mrb[0].mxu0
      %v826 = vadd.f32 %v694, %v825
      %v827 = vpop.f32.mrb[0].mxu0
      %828 = vmatprep.mubr.f32.mxu0 0.0
      %829 = vmatmul.mubr.f32.gmra.mrb[0].mxu0 %v726
      %v830 = vpop.f32.mrb[0].mxu0
      %v831 = vadd.f32 %v699, %v830
      %v832 = vpop.f32.mrb[0].mxu0
      %833 = vmatprep.mubr.f32.mxu0 0.0
      %834 = vmatmul.mubr.f32.gmra.mrb[0].mxu0 %v729
      %v835 = vpop.f32.mrb[0].mxu0
      %v836 = vadd.f32 %v704, %v835
      %v837 = vpop.f32.mrb[0].mxu0
      %838 = vdwg.mxu0
      %v839 = vld [vmem:[%s515 + $0x1] sm:$0xff]
      %v840 = vld [vmem:[%s515 + $0x9] sm:$0xff]
      %v841 = vld [vmem:[%s515 + $0x11] sm:$0xff]
      %v842 = vld [vmem:[%s515 + $0x19] sm:$0xff]
      %v843 = vld [vmem:[%s515 + $0x21] sm:$0xff]
      %v844 = vld [vmem:[%s515 + $0x29] sm:$0xff]
      %v845 = vld [vmem:[%s515 + $0x31] sm:$0xff]
      %v846 = vld [vmem:[%s515 + $0x39] sm:$0x7f]
      %v847 = vmax.f32 %v563, %v839
      %v848 = vmax.f32 %v564, %v840
      %v849 = vmax.f32 %v565, %v841
      %v850 = vmax.f32 %v566, %v842
      %v851 = vmax.f32 %v567, %v843
      %v852 = vmax.f32 %v568, %v844
      %v853 = vmax.f32 %v569, %v845
      %v854 = vmax.f32 %v570, %v846
      %s855 = scalar_lea.vmem %s5, 8
      %v856 = vld [vmem:[%s855] sm:$0xf]
      %v858 = vsel %vm573, %v839, 0
      %v861 = vsel %vm573, %v840, 0
      %v864 = vsel %vm573, %v841, 0
      %v867 = vsel %vm573, %v842, 0
      %v870 = vsel %vm573, %v843, 0
      %v873 = vsel %vm573, %v844, 0
      %v876 = vsel %vm573, %v845, 0
      %v879 = vsel %vm573, %v846, 0
      %v882 = vsel %vm598, %v856, 0
      %884 = vmatprep.subr.mxu0 0.0
      %885 = vmatpush1.msra.mxu0 %v882
      %886 = vmatprep.subr.mxu0 0.0
      %887 = vmatpush1.msra.mxu0 0.0
      %888 = vmatprep.subr.mxu0 0.0
      %889 = vmatpush1.msra.mxu0 0.0
      %890 = vmatprep.subr.mxu0 0.0
      %891 = vmatpush1.msra.mxu0 0.0
      %892 = vmatprep.subr.mxu0 0.0
      %893 = vmatpush1.msra.mxu0 0.0
      %894 = vmatprep.subr.mxu0 0.0
      %895 = vmatpush1.msra.mxu0 0.0
      %896 = vmatprep.subr.mxu0 0.0
      %897 = vmatpush1.msra.mxu0 0.0
      %898 = vmatprep.subr.mxu0 0.0
      %899 = vmatpush1.msra.mxu0 0.0
      %900 = vmatprep.subr.mxu0 0.0
      %901 = vmatpush1.msra.mxu0 0.0
      %902 = vmatprep.subr.mxu0 0.0
      %903 = vmatpush1.msra.mxu0 0.0
      %904 = vmatprep.subr.mxu0 0.0
      %905 = vmatpush1.msra.mxu0 0.0
      %906 = vmatprep.subr.mxu0 0.0
      %907 = vmatpush1.msra.mxu0 0.0
      %908 = vmatprep.subr.mxu0 0.0
      %909 = vmatpush1.msra.mxu0 0.0
      %910 = vmatprep.subr.mxu0 0.0
      %911 = vmatpush1.msra.mxu0 0.0
      %912 = vmatprep.subr.mxu0 0.0
      %913 = vmatpush1.msra.mxu0 0.0
      %914 = vmatprep.subr.mxu0 0.0
      %915 = vmatpush1.msra.mxu0 0.0
      %916 = vmatprep.subr.mxu0 0.0
      %917 = vmatpush1.msra.mxu0 0.0
      %918 = vmatprep.subr.mxu0 0.0
      %919 = vmatpush1.msra.mxu0 0.0
      %920 = vmatprep.subr.mxu0 0.0
      %921 = vmatpush1.msra.mxu0 0.0
      %922 = vmatprep.subr.mxu0 0.0
      %923 = vmatpush1.msra.mxu0 0.0
      %924 = vmatprep.subr.mxu0 0.0
      %925 = vmatpush1.msra.mxu0 0.0
      %926 = vmatprep.subr.mxu0 0.0
      %927 = vmatpush1.msra.mxu0 0.0
      %928 = vmatprep.subr.mxu0 0.0
      %929 = vmatpush1.msra.mxu0 0.0
      %930 = vmatprep.subr.mxu0 0.0
      %931 = vmatpush1.msra.mxu0 0.0
      %932 = vmatprep.subr.mxu0 0.0
      %933 = vmatpush1.msra.mxu0 0.0
      %934 = vmatprep.subr.mxu0 0.0
      %935 = vmatpush1.msra.mxu0 0.0
      %936 = vmatprep.subr.mxu0 0.0
      %937 = vmatpush1.msra.mxu0 0.0
      %938 = vmatprep.subr.mxu0 0.0
      %939 = vmatpush1.msra.mxu0 0.0
      %940 = vmatprep.subr.mxu0 0.0
      %941 = vmatpush1.msra.mxu0 0.0
      %942 = vmatprep.subr.mxu0 0.0
      %943 = vmatpush1.msra.mxu0 0.0
      %944 = vmatprep.subr.mxu0 0.0
      %945 = vmatpush1.msra.mxu0 0.0
      %946 = vmatprep.subr.mxu0 0.0
      %947 = vmatpush1.msra.mxu0 0.0
      %948 = vmatprep.mubr.f32.mxu0 0.0
      %949 = vmatmul.mubr.f32.gmra.mrb[0].mxu0 %v858
      %v950 = vpop.f32.mrb[0].mxu0
      %v951 = vadd.f32 0.0, %v950
      %v952 = vpop.f32.mrb[0].mxu0
      %953 = vmatprep.mubr.f32.mxu0 0.0
      %954 = vmatmul.mubr.f32.gmra.mrb[0].mxu0 %v861
      %v955 = vpop.f32.mrb[0].mxu0
      %v956 = vadd.f32 0.0, %v955
      %v957 = vpop.f32.mrb[0].mxu0
      %958 = vmatprep.mubr.f32.mxu0 0.0
      %959 = vmatmul.mubr.f32.gmra.mrb[0].mxu0 %v864
      %v960 = vpop.f32.mrb[0].mxu0
      %v961 = vadd.f32 0.0, %v960
      %v962 = vpop.f32.mrb[0].mxu0
      %963 = vmatprep.mubr.f32.mxu0 0.0
      %964 = vmatmul.mubr.f32.gmra.mrb[0].mxu0 %v867
      %v965 = vpop.f32.mrb[0].mxu0
      %v966 = vadd.f32 0.0, %v965
      %v967 = vpop.f32.mrb[0].mxu0
      %968 = vmatprep.mubr.f32.mxu0 0.0
      %969 = vmatmul.mubr.f32.gmra.mrb[0].mxu0 %v870
      %v970 = vpop.f32.mrb[0].mxu0
      %v971 = vadd.f32 0.0, %v970
      %v972 = vpop.f32.mrb[0].mxu0
      %973 = vmatprep.mubr.f32.mxu0 0.0
      %974 = vmatmul.mubr.f32.gmra.mrb[0].mxu0 %v873
      %v975 = vpop.f32.mrb[0].mxu0
      %v976 = vadd.f32 0.0, %v975
      %v977 = vpop.f32.mrb[0].mxu0
      %978 = vmatprep.mubr.f32.mxu0 0.0
      %979 = vmatmul.mubr.f32.gmra.mrb[0].mxu0 %v876
      %v980 = vpop.f32.mrb[0].mxu0
      %v981 = vadd.f32 0.0, %v980
      %v982 = vpop.f32.mrb[0].mxu0
      %983 = vmatprep.mubr.f32.mxu0 0.0
      %984 = vmatmul.mubr.f32.gmra.mrb[0].mxu0 %v879
      %v985 = vpop.f32.mrb[0].mxu0
      %v986 = vadd.f32 0.0, %v985
      %v987 = vpop.f32.mrb[0].mxu0
      %988 = vdwg.mxu0
      %v989 = vadd.f32 %v801, %v951
      %v990 = vadd.f32 %v806, %v956
      %v991 = vadd.f32 %v811, %v961
      %v992 = vadd.f32 %v816, %v966
      %v993 = vadd.f32 %v821, %v971
      %v994 = vadd.f32 %v826, %v976
      %v995 = vadd.f32 %v831, %v981
      %v996 = vadd.f32 %v836, %v986
      %v997 = vld [vmem:[%s525] sm:$0xff]
      %v998 = vld [vmem:[%s525 + $0x8] sm:$0xff]
      %v999 = vld [vmem:[%s525 + $0x10] sm:$0xff]
      %v1000 = vld [vmem:[%s525 + $0x18] sm:$0xff]
      %v1001 = vld [vmem:[%s525 + $0x20] sm:$0xff]
      %v1002 = vld [vmem:[%s525 + $0x28] sm:$0xff]
      %v1003 = vld [vmem:[%s525 + $0x30] sm:$0xff]
      %v1004 = vld [vmem:[%s525 + $0x38] sm:$0x7f]
      %v1005 = vmax.f32 %v847, %v997
      %v1006 = vmax.f32 %v848, %v998
      %v1007 = vmax.f32 %v849, %v999
      %v1008 = vmax.f32 %v850, %v1000
      %v1009 = vmax.f32 %v851, %v1001
      %v1010 = vmax.f32 %v852, %v1002
      %v1011 = vmax.f32 %v853, %v1003
      %v1012 = vmax.f32 %v854, %v1004
      %s1013 = scalar_lea.vmem %s5, 12
      %v1014 = vld [vmem:[%s1013] sm:$0xf]
      %v1016 = vsel %vm573, %v997, 0
      %v1019 = vsel %vm573, %v998, 0
      %v1022 = vsel %vm573, %v999, 0
      %v1025 = vsel %vm573, %v1000, 0
      %v1028 = vsel %vm573, %v1001, 0
      %v1031 = vsel %vm573, %v1002, 0
      %v1034 = vsel %vm573, %v1003, 0
      %v1037 = vsel %vm573, %v1004, 0
      %v1040 = vsel %vm598, %v1014, 0
      %1042 = vmatprep.subr.mxu0 0.0
      %1043 = vmatpush1.msra.mxu0 %v1040
      %1044 = vmatprep.subr.mxu0 0.0
      %1045 = vmatpush1.msra.mxu0 0.0
      %1046 = vmatprep.subr.mxu0 0.0
      %1047 = vmatpush1.msra.mxu0 0.0
      %1048 = vmatprep.subr.mxu0 0.0
      %1049 = vmatpush1.msra.mxu0 0.0
      %1050 = vmatprep.subr.mxu0 0.0
      %1051 = vmatpush1.msra.mxu0 0.0
      %1052 = vmatprep.subr.mxu0 0.0
      %1053 = vmatpush1.msra.mxu0 0.0
      %1054 = vmatprep.subr.mxu0 0.0
      %1055 = vmatpush1.msra.mxu0 0.0
      %1056 = vmatprep.subr.mxu0 0.0
      %1057 = vmatpush1.msra.mxu0 0.0
      %1058 = vmatprep.subr.mxu0 0.0
      %1059 = vmatpush1.msra.mxu0 0.0
      %1060 = vmatprep.subr.mxu0 0.0
      %1061 = vmatpush1.msra.mxu0 0.0
      %1062 = vmatprep.subr.mxu0 0.0
      %1063 = vmatpush1.msra.mxu0 0.0
      %1064 = vmatprep.subr.mxu0 0.0
      %1065 = vmatpush1.msra.mxu0 0.0
      %1066 = vmatprep.subr.mxu0 0.0
      %1067 = vmatpush1.msra.mxu0 0.0
      %1068 = vmatprep.subr.mxu0 0.0
      %1069 = vmatpush1.msra.mxu0 0.0
      %1070 = vmatprep.subr.mxu0 0.0
      %1071 = vmatpush1.msra.mxu0 0.0
      %1072 = vmatprep.subr.mxu0 0.0
      %1073 = vmatpush1.msra.mxu0 0.0
      %1074 = vmatprep.subr.mxu0 0.0
      %1075 = vmatpush1.msra.mxu0 0.0
      %1076 = vmatprep.subr.mxu0 0.0
      %1077 = vmatpush1.msra.mxu0 0.0
      %1078 = vmatprep.subr.mxu0 0.0
      %1079 = vmatpush1.msra.mxu0 0.0
      %1080 = vmatprep.subr.mxu0 0.0
      %1081 = vmatpush1.msra.mxu0 0.0
      %1082 = vmatprep.subr.mxu0 0.0
      %1083 = vmatpush1.msra.mxu0 0.0
      %1084 = vmatprep.subr.mxu0 0.0
      %1085 = vmatpush1.msra.mxu0 0.0
      %1086 = vmatprep.subr.mxu0 0.0
      %1087 = vmatpush1.msra.mxu0 0.0
      %1088 = vmatprep.subr.mxu0 0.0
      %1089 = vmatpush1.msra.mxu0 0.0
      %1090 = vmatprep.subr.mxu0 0.0
      %1091 = vmatpush1.msra.mxu0 0.0
      %1092 = vmatprep.subr.mxu0 0.0
      %1093 = vmatpush1.msra.mxu0 0.0
      %1094 = vmatprep.subr.mxu0 0.0
      %1095 = vmatpush1.msra.mxu0 0.0
      %1096 = vmatprep.subr.mxu0 0.0
      %1097 = vmatpush1.msra.mxu0 0.0
      %1098 = vmatprep.subr.mxu0 0.0
      %1099 = vmatpush1.msra.mxu0 0.0
      %1100 = vmatprep.subr.mxu0 0.0
      %1101 = vmatpush1.msra.mxu0 0.0
      %1102 = vmatprep.subr.mxu0 0.0
      %1103 = vmatpush1.msra.mxu0 0.0
      %1104 = vmatprep.subr.mxu0 0.0
      %1105 = vmatpush1.msra.mxu0 0.0
      %1106 = vmatprep.mubr.f32.mxu0 0.0
      %1107 = vmatmul.mubr.f32.gmra.mrb[0].mxu0 %v1016
      %v1108 = vpop.f32.mrb[0].mxu0
      %v1109 = vadd.f32 0.0, %v1108
      %v1110 = vpop.f32.mrb[0].mxu0
      %1111 = vmatprep.mubr.f32.mxu0 0.0
      %1112 = vmatmul.mubr.f32.gmra.mrb[0].mxu0 %v1019
      %v1113 = vpop.f32.mrb[0].mxu0
      %v1114 = vadd.f32 0.0, %v1113
      %v1115 = vpop.f32.mrb[0].mxu0
      %1116 = vmatprep.mubr.f32.mxu0 0.0
      %1117 = vmatmul.mubr.f32.gmra.mrb[0].mxu0 %v1022
      %v1118 = vpop.f32.mrb[0].mxu0
      %v1119 = vadd.f32 0.0, %v1118
      %v1120 = vpop.f32.mrb[0].mxu0
      %1121 = vmatprep.mubr.f32.mxu0 0.0
      %1122 = vmatmul.mubr.f32.gmra.mrb[0].mxu0 %v1025
      %v1123 = vpop.f32.mrb[0].mxu0
      %v1124 = vadd.f32 0.0, %v1123
      %v1125 = vpop.f32.mrb[0].mxu0
      %1126 = vmatprep.mubr.f32.mxu0 0.0
      %1127 = vmatmul.mubr.f32.gmra.mrb[0].mxu0 %v1028
      %v1128 = vpop.f32.mrb[0].mxu0
      %v1129 = vadd.f32 0.0, %v1128
      %v1130 = vpop.f32.mrb[0].mxu0
      %1131 = vmatprep.mubr.f32.mxu0 0.0
      %1132 = vmatmul.mubr.f32.gmra.mrb[0].mxu0 %v1031
      %v1133 = vpop.f32.mrb[0].mxu0
      %v1134 = vadd.f32 0.0, %v1133
      %v1135 = vpop.f32.mrb[0].mxu0
      %1136 = vmatprep.mubr.f32.mxu0 0.0
      %1137 = vmatmul.mubr.f32.gmra.mrb[0].mxu0 %v1034
      %v1138 = vpop.f32.mrb[0].mxu0
      %v1139 = vadd.f32 0.0, %v1138
      %v1140 = vpop.f32.mrb[0].mxu0
      %1141 = vmatprep.mubr.f32.mxu0 0.0
      %1142 = vmatmul.mubr.f32.gmra.mrb[0].mxu0 %v1037
      %v1143 = vpop.f32.mrb[0].mxu0
      %v1144 = vadd.f32 0.0, %v1143
      %v1145 = vpop.f32.mrb[0].mxu0
      %1146 = vdwg.mxu0
      %v1147 = vadd.f32 %v989, %v1109
      %v1148 = vadd.f32 %v990, %v1114
      %v1149 = vadd.f32 %v991, %v1119
      %v1150 = vadd.f32 %v992, %v1124
      %v1151 = vadd.f32 %v993, %v1129
      %v1152 = vadd.f32 %v994, %v1134
      %v1153 = vadd.f32 %v995, %v1139
      %v1154 = vadd.f32 %v996, %v1144
      %v1155 = vld [vmem:[%s530] sm:$0xff]
      %v1156 = vld [vmem:[%s530 + $0x8] sm:$0xff]
      %v1157 = vld [vmem:[%s530 + $0x10] sm:$0xff]
      %v1158 = vld [vmem:[%s530 + $0x18] sm:$0xff]
      %v1159 = vld [vmem:[%s530 + $0x20] sm:$0xff]
      %v1160 = vld [vmem:[%s530 + $0x28] sm:$0xff]
      %v1161 = vld [vmem:[%s530 + $0x30] sm:$0xff]
      %v1162 = vld [vmem:[%s530 + $0x38] sm:$0x7f]
      %v1163 = vmax.f32 %v1005, %v1155
      %v1164 = vmax.f32 %v1006, %v1156
      %v1165 = vmax.f32 %v1007, %v1157
      %v1166 = vmax.f32 %v1008, %v1158
      %v1167 = vmax.f32 %v1009, %v1159
      %v1168 = vmax.f32 %v1010, %v1160
      %v1169 = vmax.f32 %v1011, %v1161
      %v1170 = vmax.f32 %v1012, %v1162
      %s1171 = scalar_lea.vmem %s5, 16
      %v1172 = vld [vmem:[%s1171] sm:$0xf]
      %v1174 = vsel %vm573, %v1155, 0
      %v1177 = vsel %vm573, %v1156, 0
      %v1180 = vsel %vm573, %v1157, 0
      %v1183 = vsel %vm573, %v1158, 0
      %v1186 = vsel %vm573, %v1159, 0
      %v1189 = vsel %vm573, %v1160, 0
      %v1192 = vsel %vm573, %v1161, 0
      %v1195 = vsel %vm573, %v1162, 0
      %v1198 = vsel %vm598, %v1172, 0
      %1200 = vmatprep.subr.mxu0 0.0
      %1201 = vmatpush1.msra.mxu0 %v1198
      %1202 = vmatprep.subr.mxu0 0.0
      %1203 = vmatpush1.msra.mxu0 0.0
      %1204 = vmatprep.subr.mxu0 0.0
      %1205 = vmatpush1.msra.mxu0 0.0
      %1206 = vmatprep.subr.mxu0 0.0
      %1207 = vmatpush1.msra.mxu0 0.0
      %1208 = vmatprep.subr.mxu0 0.0
      %1209 = vmatpush1.msra.mxu0 0.0
      %1210 = vmatprep.subr.mxu0 0.0
      %1211 = vmatpush1.msra.mxu0 0.0
      %1212 = vmatprep.subr.mxu0 0.0
      %1213 = vmatpush1.msra.mxu0 0.0
      %1214 = vmatprep.subr.mxu0 0.0
      %1215 = vmatpush1.msra.mxu0 0.0
      %1216 = vmatprep.subr.mxu0 0.0
      %1217 = vmatpush1.msra.mxu0 0.0
      %1218 = vmatprep.subr.mxu0 0.0
      %1219 = vmatpush1.msra.mxu0 0.0
      %1220 = vmatprep.subr.mxu0 0.0
      %1221 = vmatpush1.msra.mxu0 0.0
      %1222 = vmatprep.subr.mxu0 0.0
      %1223 = vmatpush1.msra.mxu0 0.0
      %1224 = vmatprep.subr.mxu0 0.0
      %1225 = vmatpush1.msra.mxu0 0.0
      %1226 = vmatprep.subr.mxu0 0.0
      %1227 = vmatpush1.msra.mxu0 0.0
      %1228 = vmatprep.subr.mxu0 0.0
      %1229 = vmatpush1.msra.mxu0 0.0
      %1230 = vmatprep.subr.mxu0 0.0
      %1231 = vmatpush1.msra.mxu0 0.0
      %1232 = vmatprep.subr.mxu0 0.0
      %1233 = vmatpush1.msra.mxu0 0.0
      %1234 = vmatprep.subr.mxu0 0.0
      %1235 = vmatpush1.msra.mxu0 0.0
      %1236 = vmatprep.subr.mxu0 0.0
      %1237 = vmatpush1.msra.mxu0 0.0
      %1238 = vmatprep.subr.mxu0 0.0
      %1239 = vmatpush1.msra.mxu0 0.0
      %1240 = vmatprep.subr.mxu0 0.0
      %1241 = vmatpush1.msra.mxu0 0.0
      %1242 = vmatprep.subr.mxu0 0.0
      %1243 = vmatpush1.msra.mxu0 0.0
      %1244 = vmatprep.subr.mxu0 0.0
      %1245 = vmatpush1.msra.mxu0 0.0
      %1246 = vmatprep.subr.mxu0 0.0
      %1247 = vmatpush1.msra.mxu0 0.0
      %1248 = vmatprep.subr.mxu0 0.0
      %1249 = vmatpush1.msra.mxu0 0.0
      %1250 = vmatprep.subr.mxu0 0.0
      %1251 = vmatpush1.msra.mxu0 0.0
      %1252 = vmatprep.subr.mxu0 0.0
      %1253 = vmatpush1.msra.mxu0 0.0
      %1254 = vmatprep.subr.mxu0 0.0
      %1255 = vmatpush1.msra.mxu0 0.0
      %1256 = vmatprep.subr.mxu0 0.0
      %1257 = vmatpush1.msra.mxu0 0.0
      %1258 = vmatprep.subr.mxu0 0.0
      %1259 = vmatpush1.msra.mxu0 0.0
      %1260 = vmatprep.subr.mxu0 0.0
      %1261 = vmatpush1.msra.mxu0 0.0
      %1262 = vmatprep.subr.mxu0 0.0
      %1263 = vmatpush1.msra.mxu0 0.0
      %1264 = vmatprep.mubr.f32.mxu0 0.0
      %1265 = vmatmul.mubr.f32.gmra.mrb[0].mxu0 %v1174
      %v1266 = vpop.f32.mrb[0].mxu0
      %v1267 = vadd.f32 0.0, %v1266
      %v1268 = vpop.f32.mrb[0].mxu0
      %1269 = vmatprep.mubr.f32.mxu0 0.0
      %1270 = vmatmul.mubr.f32.gmra.mrb[0].mxu0 %v1177
      %v1271 = vpop.f32.mrb[0].mxu0
      %v1272 = vadd.f32 0.0, %v1271
      %v1273 = vpop.f32.mrb[0].mxu0
      %1274 = vmatprep.mubr.f32.mxu0 0.0
      %1275 = vmatmul.mubr.f32.gmra.mrb[0].mxu0 %v1180
      %v1276 = vpop.f32.mrb[0].mxu0
      %v1277 = vadd.f32 0.0, %v1276
      %v1278 = vpop.f32.mrb[0].mxu0
      %1279 = vmatprep.mubr.f32.mxu0 0.0
      %1280 = vmatmul.mubr.f32.gmra.mrb[0].mxu0 %v1183
      %v1281 = vpop.f32.mrb[0].mxu0
      %v1282 = vadd.f32 0.0, %v1281
      %v1283 = vpop.f32.mrb[0].mxu0
      %1284 = vmatprep.mubr.f32.mxu0 0.0
      %1285 = vmatmul.mubr.f32.gmra.mrb[0].mxu0 %v1186
      %v1286 = vpop.f32.mrb[0].mxu0
      %v1287 = vadd.f32 0.0, %v1286
      %v1288 = vpop.f32.mrb[0].mxu0
      %1289 = vmatprep.mubr.f32.mxu0 0.0
      %1290 = vmatmul.mubr.f32.gmra.mrb[0].mxu0 %v1189
      %v1291 = vpop.f32.mrb[0].mxu0
      %v1292 = vadd.f32 0.0, %v1291
      %v1293 = vpop.f32.mrb[0].mxu0
      %1294 = vmatprep.mubr.f32.mxu0 0.0
      %1295 = vmatmul.mubr.f32.gmra.mrb[0].mxu0 %v1192
      %v1296 = vpop.f32.mrb[0].mxu0
      %v1297 = vadd.f32 0.0, %v1296
      %v1298 = vpop.f32.mrb[0].mxu0
      %1299 = vmatprep.mubr.f32.mxu0 0.0
      %1300 = vmatmul.mubr.f32.gmra.mrb[0].mxu0 %v1195
      %v1301 = vpop.f32.mrb[0].mxu0
      %v1302 = vadd.f32 0.0, %v1301
      %v1303 = vpop.f32.mrb[0].mxu0
      %1304 = vdwg.mxu0
      %v1305 = vadd.f32 %v1147, %v1267
      %v1306 = vadd.f32 %v1148, %v1272
      %v1307 = vadd.f32 %v1149, %v1277
      %v1308 = vadd.f32 %v1150, %v1282
      %v1309 = vadd.f32 %v1151, %v1287
      %v1310 = vadd.f32 %v1152, %v1292
      %v1311 = vadd.f32 %v1153, %v1297
      %v1312 = vadd.f32 %v1154, %v1302
      %v1313 = vld [vmem:[%s525 + $0x1] sm:$0xff]
      %v1314 = vld [vmem:[%s525 + $0x9] sm:$0xff]
      %v1315 = vld [vmem:[%s525 + $0x11] sm:$0xff]
      %v1316 = vld [vmem:[%s525 + $0x19] sm:$0xff]
      %v1317 = vld [vmem:[%s525 + $0x21] sm:$0xff]
      %v1318 = vld [vmem:[%s525 + $0x29] sm:$0xff]
      %v1319 = vld [vmem:[%s525 + $0x31] sm:$0xff]
      %v1320 = vld [vmem:[%s525 + $0x39] sm:$0x7f]
      %v1321 = vmax.f32 %v1163, %v1313
      %v1322 = vmax.f32 %v1164, %v1314
      %v1323 = vmax.f32 %v1165, %v1315
      %v1324 = vmax.f32 %v1166, %v1316
      %v1325 = vmax.f32 %v1167, %v1317
      %v1326 = vmax.f32 %v1168, %v1318
      %v1327 = vmax.f32 %v1169, %v1319
      %v1328 = vmax.f32 %v1170, %v1320
      %s1329 = scalar_lea.vmem %s5, 20
      %v1330 = vld [vmem:[%s1329] sm:$0xf]
      %v1332 = vsel %vm573, %v1313, 0
      %v1335 = vsel %vm573, %v1314, 0
      %v1338 = vsel %vm573, %v1315, 0
      %v1341 = vsel %vm573, %v1316, 0
      %v1344 = vsel %vm573, %v1317, 0
      %v1347 = vsel %vm573, %v1318, 0
      %v1350 = vsel %vm573, %v1319, 0
      %v1353 = vsel %vm573, %v1320, 0
      %v1356 = vsel %vm598, %v1330, 0
      %1358 = vmatprep.subr.mxu0 0.0
      %1359 = vmatpush1.msra.mxu0 %v1356
      %1360 = vmatprep.subr.mxu0 0.0
      %1361 = vmatpush1.msra.mxu0 0.0
      %1362 = vmatprep.subr.mxu0 0.0
      %1363 = vmatpush1.msra.mxu0 0.0
      %1364 = vmatprep.subr.mxu0 0.0
      %1365 = vmatpush1.msra.mxu0 0.0
      %1366 = vmatprep.subr.mxu0 0.0
      %1367 = vmatpush1.msra.mxu0 0.0
      %1368 = vmatprep.subr.mxu0 0.0
      %1369 = vmatpush1.msra.mxu0 0.0
      %1370 = vmatprep.subr.mxu0 0.0
      %1371 = vmatpush1.msra.mxu0 0.0
      %1372 = vmatprep.subr.mxu0 0.0
      %1373 = vmatpush1.msra.mxu0 0.0
      %1374 = vmatprep.subr.mxu0 0.0
      %1375 = vmatpush1.msra.mxu0 0.0
      %1376 = vmatprep.subr.mxu0 0.0
      %1377 = vmatpush1.msra.mxu0 0.0
      %1378 = vmatprep.subr.mxu0 0.0
      %1379 = vmatpush1.msra.mxu0 0.0
      %1380 = vmatprep.subr.mxu0 0.0
      %1381 = vmatpush1.msra.mxu0 0.0
      %1382 = vmatprep.subr.mxu0 0.0
      %1383 = vmatpush1.msra.mxu0 0.0
      %1384 = vmatprep.subr.mxu0 0.0
      %1385 = vmatpush1.msra.mxu0 0.0
      %1386 = vmatprep.subr.mxu0 0.0
      %1387 = vmatpush1.msra.mxu0 0.0
      %1388 = vmatprep.subr.mxu0 0.0
      %1389 = vmatpush1.msra.mxu0 0.0
      %1390 = vmatprep.subr.mxu0 0.0
      %1391 = vmatpush1.msra.mxu0 0.0
      %1392 = vmatprep.subr.mxu0 0.0
      %1393 = vmatpush1.msra.mxu0 0.0
      %1394 = vmatprep.subr.mxu0 0.0
      %1395 = vmatpush1.msra.mxu0 0.0
      %1396 = vmatprep.subr.mxu0 0.0
      %1397 = vmatpush1.msra.mxu0 0.0
      %1398 = vmatprep.subr.mxu0 0.0
      %1399 = vmatpush1.msra.mxu0 0.0
      %1400 = vmatprep.subr.mxu0 0.0
      %1401 = vmatpush1.msra.mxu0 0.0
      %1402 = vmatprep.subr.mxu0 0.0
      %1403 = vmatpush1.msra.mxu0 0.0
      %1404 = vmatprep.subr.mxu0 0.0
      %1405 = vmatpush1.msra.mxu0 0.0
      %1406 = vmatprep.subr.mxu0 0.0
      %1407 = vmatpush1.msra.mxu0 0.0
      %1408 = vmatprep.subr.mxu0 0.0
      %1409 = vmatpush1.msra.mxu0 0.0
      %1410 = vmatprep.subr.mxu0 0.0
      %1411 = vmatpush1.msra.mxu0 0.0
      %1412 = vmatprep.subr.mxu0 0.0
      %1413 = vmatpush1.msra.mxu0 0.0
      %1414 = vmatprep.subr.mxu0 0.0
      %1415 = vmatpush1.msra.mxu0 0.0
      %1416 = vmatprep.subr.mxu0 0.0
      %1417 = vmatpush1.msra.mxu0 0.0
      %1418 = vmatprep.subr.mxu0 0.0
      %1419 = vmatpush1.msra.mxu0 0.0
      %1420 = vmatprep.subr.mxu0 0.0
      %1421 = vmatpush1.msra.mxu0 0.0
      %1422 = vmatprep.mubr.f32.mxu0 0.0
      %1423 = vmatmul.mubr.f32.gmra.mrb[0].mxu0 %v1332
      %v1424 = vpop.f32.mrb[0].mxu0
      %v1425 = vadd.f32 0.0, %v1424
      %v1426 = vpop.f32.mrb[0].mxu0
      %1427 = vmatprep.mubr.f32.mxu0 0.0
      %1428 = vmatmul.mubr.f32.gmra.mrb[0].mxu0 %v1335
      %v1429 = vpop.f32.mrb[0].mxu0
      %v1430 = vadd.f32 0.0, %v1429
      %v1431 = vpop.f32.mrb[0].mxu0
      %1432 = vmatprep.mubr.f32.mxu0 0.0
      %1433 = vmatmul.mubr.f32.gmra.mrb[0].mxu0 %v1338
      %v1434 = vpop.f32.mrb[0].mxu0
      %v1435 = vadd.f32 0.0, %v1434
      %v1436 = vpop.f32.mrb[0].mxu0
      %1437 = vmatprep.mubr.f32.mxu0 0.0
      %1438 = vmatmul.mubr.f32.gmra.mrb[0].mxu0 %v1341
      %v1439 = vpop.f32.mrb[0].mxu0
      %v1440 = vadd.f32 0.0, %v1439
      %v1441 = vpop.f32.mrb[0].mxu0
      %1442 = vmatprep.mubr.f32.mxu0 0.0
      %1443 = vmatmul.mubr.f32.gmra.mrb[0].mxu0 %v1344
      %v1444 = vpop.f32.mrb[0].mxu0
      %v1445 = vadd.f32 0.0, %v1444
      %v1446 = vpop.f32.mrb[0].mxu0
      %1447 = vmatprep.mubr.f32.mxu0 0.0
      %1448 = vmatmul.mubr.f32.gmra.mrb[0].mxu0 %v1347
      %v1449 = vpop.f32.mrb[0].mxu0
      %v1450 = vadd.f32 0.0, %v1449
      %v1451 = vpop.f32.mrb[0].mxu0
      %1452 = vmatprep.mubr.f32.mxu0 0.0
      %1453 = vmatmul.mubr.f32.gmra.mrb[0].mxu0 %v1350
      %v1454 = vpop.f32.mrb[0].mxu0
      %v1455 = vadd.f32 0.0, %v1454
      %v1456 = vpop.f32.mrb[0].mxu0
      %1457 = vmatprep.mubr.f32.mxu0 0.0
      %1458 = vmatmul.mubr.f32.gmra.mrb[0].mxu0 %v1353
      %v1459 = vpop.f32.mrb[0].mxu0
      %v1460 = vadd.f32 0.0, %v1459
      %v1461 = vpop.f32.mrb[0].mxu0
      %1462 = vdwg.mxu0
      %v1463 = vadd.f32 %v1305, %v1425
      %v1464 = vadd.f32 %v1306, %v1430
      %v1465 = vadd.f32 %v1307, %v1435
      %v1466 = vadd.f32 %v1308, %v1440
      %v1467 = vadd.f32 %v1309, %v1445
      %v1468 = vadd.f32 %v1310, %v1450
      %v1469 = vadd.f32 %v1311, %v1455
      %v1470 = vadd.f32 %v1312, %v1460
      %v1471 = vld [vmem:[%s515 + $0x9] sm:$0xff]
      %v1472 = vld [vmem:[%s515 + $0x11] sm:$0xff]
      %v1473 = vld [vmem:[%s515 + $0x19] sm:$0xff]
      %v1474 = vld [vmem:[%s515 + $0x21] sm:$0xff]
      %v1475 = vld [vmem:[%s515 + $0x29] sm:$0xff]
      %v1476 = vld [vmem:[%s515 + $0x31] sm:$0xff]
      %v1477 = vld [vmem:[%s515 + $0x39] sm:$0xff]
      %v1478 = vld [vmem:[%s515 + $0x41] sm:$0x7f]
      %v1479 = vmax.f32 %v1321, %v1471
      %v1480 = vmax.f32 %v1322, %v1472
      %v1481 = vmax.f32 %v1323, %v1473
      %v1482 = vmax.f32 %v1324, %v1474
      %v1483 = vmax.f32 %v1325, %v1475
      %v1484 = vmax.f32 %v1326, %v1476
      %v1485 = vmax.f32 %v1327, %v1477
      %v1486 = vmax.f32 %v1328, %v1478
      %s1487 = scalar_lea.vmem %s5, 24
      %v1488 = vld [vmem:[%s1487] sm:$0xf]
      %v1490 = vsel %vm573, %v1471, 0
      %v1493 = vsel %vm573, %v1472, 0
      %v1496 = vsel %vm573, %v1473, 0
      %v1499 = vsel %vm573, %v1474, 0
      %v1502 = vsel %vm573, %v1475, 0
      %v1505 = vsel %vm573, %v1476, 0
      %v1508 = vsel %vm573, %v1477, 0
      %v1511 = vsel %vm573, %v1478, 0
      %v1514 = vsel %vm598, %v1488, 0
      %1516 = vmatprep.subr.mxu0 0.0
      %1517 = vmatpush1.msra.mxu0 %v1514
      %1518 = vmatprep.subr.mxu0 0.0
      %1519 = vmatpush1.msra.mxu0 0.0
      %1520 = vmatprep.subr.mxu0 0.0
      %1521 = vmatpush1.msra.mxu0 0.0
      %1522 = vmatprep.subr.mxu0 0.0
      %1523 = vmatpush1.msra.mxu0 0.0
      %1524 = vmatprep.subr.mxu0 0.0
      %1525 = vmatpush1.msra.mxu0 0.0
      %1526 = vmatprep.subr.mxu0 0.0
      %1527 = vmatpush1.msra.mxu0 0.0
      %1528 = vmatprep.subr.mxu0 0.0
      %1529 = vmatpush1.msra.mxu0 0.0
      %1530 = vmatprep.subr.mxu0 0.0
      %1531 = vmatpush1.msra.mxu0 0.0
      %1532 = vmatprep.subr.mxu0 0.0
      %1533 = vmatpush1.msra.mxu0 0.0
      %1534 = vmatprep.subr.mxu0 0.0
      %1535 = vmatpush1.msra.mxu0 0.0
      %1536 = vmatprep.subr.mxu0 0.0
      %1537 = vmatpush1.msra.mxu0 0.0
      %1538 = vmatprep.subr.mxu0 0.0
      %1539 = vmatpush1.msra.mxu0 0.0
      %1540 = vmatprep.subr.mxu0 0.0
      %1541 = vmatpush1.msra.mxu0 0.0
      %1542 = vmatprep.subr.mxu0 0.0
      %1543 = vmatpush1.msra.mxu0 0.0
      %1544 = vmatprep.subr.mxu0 0.0
      %1545 = vmatpush1.msra.mxu0 0.0
      %1546 = vmatprep.subr.mxu0 0.0
      %1547 = vmatpush1.msra.mxu0 0.0
      %1548 = vmatprep.subr.mxu0 0.0
      %1549 = vmatpush1.msra.mxu0 0.0
      %1550 = vmatprep.subr.mxu0 0.0
      %1551 = vmatpush1.msra.mxu0 0.0
      %1552 = vmatprep.subr.mxu0 0.0
      %1553 = vmatpush1.msra.mxu0 0.0
      %1554 = vmatprep.subr.mxu0 0.0
      %1555 = vmatpush1.msra.mxu0 0.0
      %1556 = vmatprep.subr.mxu0 0.0
      %1557 = vmatpush1.msra.mxu0 0.0
      %1558 = vmatprep.subr.mxu0 0.0
      %1559 = vmatpush1.msra.mxu0 0.0
      %1560 = vmatprep.subr.mxu0 0.0
      %1561 = vmatpush1.msra.mxu0 0.0
      %1562 = vmatprep.subr.mxu0 0.0
      %1563 = vmatpush1.msra.mxu0 0.0
      %1564 = vmatprep.subr.mxu0 0.0
      %1565 = vmatpush1.msra.mxu0 0.0
      %1566 = vmatprep.subr.mxu0 0.0
      %1567 = vmatpush1.msra.mxu0 0.0
      %1568 = vmatprep.subr.mxu0 0.0
      %1569 = vmatpush1.msra.mxu0 0.0
      %1570 = vmatprep.subr.mxu0 0.0
      %1571 = vmatpush1.msra.mxu0 0.0
      %1572 = vmatprep.subr.mxu0 0.0
      %1573 = vmatpush1.msra.mxu0 0.0
      %1574 = vmatprep.subr.mxu0 0.0
      %1575 = vmatpush1.msra.mxu0 0.0
      %1576 = vmatprep.subr.mxu0 0.0
      %1577 = vmatpush1.msra.mxu0 0.0
      %1578 = vmatprep.subr.mxu0 0.0
      %1579 = vmatpush1.msra.mxu0 0.0
      %1580 = vmatprep.mubr.f32.mxu0 0.0
      %1581 = vmatmul.mubr.f32.gmra.mrb[0].mxu0 %v1490
      %v1582 = vpop.f32.mrb[0].mxu0
      %v1583 = vadd.f32 0.0, %v1582
      %v1584 = vpop.f32.mrb[0].mxu0
      %1585 = vmatprep.mubr.f32.mxu0 0.0
      %1586 = vmatmul.mubr.f32.gmra.mrb[0].mxu0 %v1493
      %v1587 = vpop.f32.mrb[0].mxu0
      %v1588 = vadd.f32 0.0, %v1587
      %v1589 = vpop.f32.mrb[0].mxu0
      %1590 = vmatprep.mubr.f32.mxu0 0.0
      %1591 = vmatmul.mubr.f32.gmra.mrb[0].mxu0 %v1496
      %v1592 = vpop.f32.mrb[0].mxu0
      %v1593 = vadd.f32 0.0, %v1592
      %v1594 = vpop.f32.mrb[0].mxu0
      %1595 = vmatprep.mubr.f32.mxu0 0.0
      %1596 = vmatmul.mubr.f32.gmra.mrb[0].mxu0 %v1499
      %v1597 = vpop.f32.mrb[0].mxu0
      %v1598 = vadd.f32 0.0, %v1597
      %v1599 = vpop.f32.mrb[0].mxu0
      %1600 = vmatprep.mubr.f32.mxu0 0.0
      %1601 = vmatmul.mubr.f32.gmra.mrb[0].mxu0 %v1502
      %v1602 = vpop.f32.mrb[0].mxu0
      %v1603 = vadd.f32 0.0, %v1602
      %v1604 = vpop.f32.mrb[0].mxu0
      %1605 = vmatprep.mubr.f32.mxu0 0.0
      %1606 = vmatmul.mubr.f32.gmra.mrb[0].mxu0 %v1505
      %v1607 = vpop.f32.mrb[0].mxu0
      %v1608 = vadd.f32 0.0, %v1607
      %v1609 = vpop.f32.mrb[0].mxu0
      %1610 = vmatprep.mubr.f32.mxu0 0.0
      %1611 = vmatmul.mubr.f32.gmra.mrb[0].mxu0 %v1508
      %v1612 = vpop.f32.mrb[0].mxu0
      %v1613 = vadd.f32 0.0, %v1612
      %v1614 = vpop.f32.mrb[0].mxu0
      %1615 = vmatprep.mubr.f32.mxu0 0.0
      %1616 = vmatmul.mubr.f32.gmra.mrb[0].mxu0 %v1511
      %v1617 = vpop.f32.mrb[0].mxu0
      %v1618 = vadd.f32 0.0, %v1617
      %v1619 = vpop.f32.mrb[0].mxu0
      %1620 = vdwg.mxu0
      %v1621 = vadd.f32 %v1463, %v1583
      %v1622 = vadd.f32 %v1464, %v1588
      %v1623 = vadd.f32 %v1465, %v1593
      %v1624 = vadd.f32 %v1466, %v1598
      %v1625 = vadd.f32 %v1467, %v1603
      %v1626 = vadd.f32 %v1468, %v1608
      %v1627 = vadd.f32 %v1469, %v1613
      %v1628 = vadd.f32 %v1470, %v1618
      %v1629 = vld [vmem:[%s520 + $0x9] sm:$0xff]
      %v1630 = vld [vmem:[%s520 + $0x11] sm:$0xff]
      %v1631 = vld [vmem:[%s520 + $0x19] sm:$0xff]
      %v1632 = vld [vmem:[%s520 + $0x21] sm:$0xff]
      %v1633 = vld [vmem:[%s520 + $0x29] sm:$0xff]
      %v1634 = vld [vmem:[%s520 + $0x31] sm:$0xff]
      %v1635 = vld [vmem:[%s520 + $0x39] sm:$0xff]
      %v1636 = vld [vmem:[%s520 + $0x41] sm:$0x7f]
      %v1637 = vmax.f32 %v1479, %v1629
      %v1638 = vmax.f32 %v1480, %v1630
      %v1639 = vmax.f32 %v1481, %v1631
      %v1640 = vmax.f32 %v1482, %v1632
      %v1641 = vmax.f32 %v1483, %v1633
      %v1642 = vmax.f32 %v1484, %v1634
      %v1643 = vmax.f32 %v1485, %v1635
      %v1644 = vmax.f32 %v1486, %v1636
      %s1645 = scalar_lea.vmem %s5, 28
      %v1646 = vld [vmem:[%s1645] sm:$0xf]
      %v1648 = vsel %vm573, %v1629, 0
      %v1651 = vsel %vm573, %v1630, 0
      %v1654 = vsel %vm573, %v1631, 0
      %v1657 = vsel %vm573, %v1632, 0
      %v1660 = vsel %vm573, %v1633, 0
      %v1663 = vsel %vm573, %v1634, 0
      %v1666 = vsel %vm573, %v1635, 0
      %v1669 = vsel %vm573, %v1636, 0
      %v1672 = vsel %vm598, %v1646, 0
      %1674 = vmatprep.subr.mxu0 0.0
      %1675 = vmatpush1.msra.mxu0 %v1672
      %1676 = vmatprep.subr.mxu0 0.0
      %1677 = vmatpush1.msra.mxu0 0.0
      %1678 = vmatprep.subr.mxu0 0.0
      %1679 = vmatpush1.msra.mxu0 0.0
      %1680 = vmatprep.subr.mxu0 0.0
      %1681 = vmatpush1.msra.mxu0 0.0
      %1682 = vmatprep.subr.mxu0 0.0
      %1683 = vmatpush1.msra.mxu0 0.0
      %1684 = vmatprep.subr.mxu0 0.0
      %1685 = vmatpush1.msra.mxu0 0.0
      %1686 = vmatprep.subr.mxu0 0.0
      %1687 = vmatpush1.msra.mxu0 0.0
      %1688 = vmatprep.subr.mxu0 0.0
      %1689 = vmatpush1.msra.mxu0 0.0
      %1690 = vmatprep.subr.mxu0 0.0
      %1691 = vmatpush1.msra.mxu0 0.0
      %1692 = vmatprep.subr.mxu0 0.0
      %1693 = vmatpush1.msra.mxu0 0.0
      %1694 = vmatprep.subr.mxu0 0.0
      %1695 = vmatpush1.msra.mxu0 0.0
      %1696 = vmatprep.subr.mxu0 0.0
      %1697 = vmatpush1.msra.mxu0 0.0
      %1698 = vmatprep.subr.mxu0 0.0
      %1699 = vmatpush1.msra.mxu0 0.0
      %1700 = vmatprep.subr.mxu0 0.0
      %1701 = vmatpush1.msra.mxu0 0.0
      %1702 = vmatprep.subr.mxu0 0.0
      %1703 = vmatpush1.msra.mxu0 0.0
      %1704 = vmatprep.subr.mxu0 0.0
      %1705 = vmatpush1.msra.mxu0 0.0
      %1706 = vmatprep.subr.mxu0 0.0
      %1707 = vmatpush1.msra.mxu0 0.0
      %1708 = vmatprep.subr.mxu0 0.0
      %1709 = vmatpush1.msra.mxu0 0.0
      %1710 = vmatprep.subr.mxu0 0.0
      %1711 = vmatpush1.msra.mxu0 0.0
      %1712 = vmatprep.subr.mxu0 0.0
      %1713 = vmatpush1.msra.mxu0 0.0
      %1714 = vmatprep.subr.mxu0 0.0
      %1715 = vmatpush1.msra.mxu0 0.0
      %1716 = vmatprep.subr.mxu0 0.0
      %1717 = vmatpush1.msra.mxu0 0.0
      %1718 = vmatprep.subr.mxu0 0.0
      %1719 = vmatpush1.msra.mxu0 0.0
      %1720 = vmatprep.subr.mxu0 0.0
      %1721 = vmatpush1.msra.mxu0 0.0
      %1722 = vmatprep.subr.mxu0 0.0
      %1723 = vmatpush1.msra.mxu0 0.0
      %1724 = vmatprep.subr.mxu0 0.0
      %1725 = vmatpush1.msra.mxu0 0.0
      %1726 = vmatprep.subr.mxu0 0.0
      %1727 = vmatpush1.msra.mxu0 0.0
      %1728 = vmatprep.subr.mxu0 0.0
      %1729 = vmatpush1.msra.mxu0 0.0
      %1730 = vmatprep.subr.mxu0 0.0
      %1731 = vmatpush1.msra.mxu0 0.0
      %1732 = vmatprep.subr.mxu0 0.0
      %1733 = vmatpush1.msra.mxu0 0.0
      %1734 = vmatprep.subr.mxu0 0.0
      %1735 = vmatpush1.msra.mxu0 0.0
      %1736 = vmatprep.subr.mxu0 0.0
      %1737 = vmatpush1.msra.mxu0 0.0
      %1738 = vmatprep.mubr.f32.mxu0 0.0
      %1739 = vmatmul.mubr.f32.gmra.mrb[0].mxu0 %v1648
      %v1740 = vpop.f32.mrb[0].mxu0
      %v1741 = vadd.f32 0.0, %v1740
      %v1742 = vpop.f32.mrb[0].mxu0
      %1743 = vmatprep.mubr.f32.mxu0 0.0
      %1744 = vmatmul.mubr.f32.gmra.mrb[0].mxu0 %v1651
      %v1745 = vpop.f32.mrb[0].mxu0
      %v1746 = vadd.f32 0.0, %v1745
      %v1747 = vpop.f32.mrb[0].mxu0
      %1748 = vmatprep.mubr.f32.mxu0 0.0
      %1749 = vmatmul.mubr.f32.gmra.mrb[0].mxu0 %v1654
      %v1750 = vpop.f32.mrb[0].mxu0
      %v1751 = vadd.f32 0.0, %v1750
      %v1752 = vpop.f32.mrb[0].mxu0
      %1753 = vmatprep.mubr.f32.mxu0 0.0
      %1754 = vmatmul.mubr.f32.gmra.mrb[0].mxu0 %v1657
      %v1755 = vpop.f32.mrb[0].mxu0
      %v1756 = vadd.f32 0.0, %v1755
      %v1757 = vpop.f32.mrb[0].mxu0
      %1758 = vmatprep.mubr.f32.mxu0 0.0
      %1759 = vmatmul.mubr.f32.gmra.mrb[0].mxu0 %v1660
      %v1760 = vpop.f32.mrb[0].mxu0
      %v1761 = vadd.f32 0.0, %v1760
      %v1762 = vpop.f32.mrb[0].mxu0
      %1763 = vmatprep.mubr.f32.mxu0 0.0
      %1764 = vmatmul.mubr.f32.gmra.mrb[0].mxu0 %v1663
      %v1765 = vpop.f32.mrb[0].mxu0
      %v1766 = vadd.f32 0.0, %v1765
      %v1767 = vpop.f32.mrb[0].mxu0
      %1768 = vmatprep.mubr.f32.mxu0 0.0
      %1769 = vmatmul.mubr.f32.gmra.mrb[0].mxu0 %v1666
      %v1770 = vpop.f32.mrb[0].mxu0
      %v1771 = vadd.f32 0.0, %v1770
      %v1772 = vpop.f32.mrb[0].mxu0
      %1773 = vmatprep.mubr.f32.mxu0 0.0
      %1774 = vmatmul.mubr.f32.gmra.mrb[0].mxu0 %v1669
      %v1775 = vpop.f32.mrb[0].mxu0
      %v1776 = vadd.f32 0.0, %v1775
      %v1777 = vpop.f32.mrb[0].mxu0
      %1778 = vdwg.mxu0
      %v1779 = vadd.f32 %v1621, %v1741
      %v1780 = vadd.f32 %v1622, %v1746
      %v1781 = vadd.f32 %v1623, %v1751
      %v1782 = vadd.f32 %v1624, %v1756
      %v1783 = vadd.f32 %v1625, %v1761
      %v1784 = vadd.f32 %v1626, %v1766
      %v1785 = vadd.f32 %v1627, %v1771
      %v1786 = vadd.f32 %v1628, %v1776
      %v1787 = vld [vmem:[%s515 + $0xa] sm:$0xff]
      %v1788 = vld [vmem:[%s515 + $0x12] sm:$0xff]
      %v1789 = vld [vmem:[%s515 + $0x1a] sm:$0xff]
      %v1790 = vld [vmem:[%s515 + $0x22] sm:$0xff]
      %v1791 = vld [vmem:[%s515 + $0x2a] sm:$0xff]
      %v1792 = vld [vmem:[%s515 + $0x32] sm:$0xff]
      %v1793 = vld [vmem:[%s515 + $0x3a] sm:$0xff]
      %v1794 = vld [vmem:[%s515 + $0x42] sm:$0x7f]
      %v1795 = vmax.f32 %v1637, %v1787
      %v1796 = vmax.f32 %v1638, %v1788
      %v1797 = vmax.f32 %v1639, %v1789
      %v1798 = vmax.f32 %v1640, %v1790
      %v1799 = vmax.f32 %v1641, %v1791
      %v1800 = vmax.f32 %v1642, %v1792
      %v1801 = vmax.f32 %v1643, %v1793
      %v1802 = vmax.f32 %v1644, %v1794
      %s1803 = scalar_lea.vmem %s5, 32
      %v1804 = vld [vmem:[%s1803] sm:$0xf]
      %v1806 = vsel %vm573, %v1787, 0
      %v1809 = vsel %vm573, %v1788, 0
      %v1812 = vsel %vm573, %v1789, 0
      %v1815 = vsel %vm573, %v1790, 0
      %v1818 = vsel %vm573, %v1791, 0
      %v1821 = vsel %vm573, %v1792, 0
      %v1824 = vsel %vm573, %v1793, 0
      %v1827 = vsel %vm573, %v1794, 0
      %v1830 = vsel %vm598, %v1804, 0
      %1832 = vmatprep.subr.mxu0 0.0
      %1833 = vmatpush1.msra.mxu0 %v1830
      %1834 = vmatprep.subr.mxu0 0.0
      %1835 = vmatpush1.msra.mxu0 0.0
      %1836 = vmatprep.subr.mxu0 0.0
      %1837 = vmatpush1.msra.mxu0 0.0
      %1838 = vmatprep.subr.mxu0 0.0
      %1839 = vmatpush1.msra.mxu0 0.0
      %1840 = vmatprep.subr.mxu0 0.0
      %1841 = vmatpush1.msra.mxu0 0.0
      %1842 = vmatprep.subr.mxu0 0.0
      %1843 = vmatpush1.msra.mxu0 0.0
      %1844 = vmatprep.subr.mxu0 0.0
      %1845 = vmatpush1.msra.mxu0 0.0
      %1846 = vmatprep.subr.mxu0 0.0
      %1847 = vmatpush1.msra.mxu0 0.0
      %1848 = vmatprep.subr.mxu0 0.0
      %1849 = vmatpush1.msra.mxu0 0.0
      %1850 = vmatprep.subr.mxu0 0.0
      %1851 = vmatpush1.msra.mxu0 0.0
      %1852 = vmatprep.subr.mxu0 0.0
      %1853 = vmatpush1.msra.mxu0 0.0
      %1854 = vmatprep.subr.mxu0 0.0
      %1855 = vmatpush1.msra.mxu0 0.0
      %1856 = vmatprep.subr.mxu0 0.0
      %1857 = vmatpush1.msra.mxu0 0.0
      %1858 = vmatprep.subr.mxu0 0.0
      %1859 = vmatpush1.msra.mxu0 0.0
      %1860 = vmatprep.subr.mxu0 0.0
      %1861 = vmatpush1.msra.mxu0 0.0
      %1862 = vmatprep.subr.mxu0 0.0
      %1863 = vmatpush1.msra.mxu0 0.0
      %1864 = vmatprep.subr.mxu0 0.0
      %1865 = vmatpush1.msra.mxu0 0.0
      %1866 = vmatprep.subr.mxu0 0.0
      %1867 = vmatpush1.msra.mxu0 0.0
      %1868 = vmatprep.subr.mxu0 0.0
      %1869 = vmatpush1.msra.mxu0 0.0
      %1870 = vmatprep.subr.mxu0 0.0
      %1871 = vmatpush1.msra.mxu0 0.0
      %1872 = vmatprep.subr.mxu0 0.0
      %1873 = vmatpush1.msra.mxu0 0.0
      %1874 = vmatprep.subr.mxu0 0.0
      %1875 = vmatpush1.msra.mxu0 0.0
      %1876 = vmatprep.subr.mxu0 0.0
      %1877 = vmatpush1.msra.mxu0 0.0
      %1878 = vmatprep.subr.mxu0 0.0
      %1879 = vmatpush1.msra.mxu0 0.0
      %1880 = vmatprep.subr.mxu0 0.0
      %1881 = vmatpush1.msra.mxu0 0.0
      %1882 = vmatprep.subr.mxu0 0.0
      %1883 = vmatpush1.msra.mxu0 0.0
      %1884 = vmatprep.subr.mxu0 0.0
      %1885 = vmatpush1.msra.mxu0 0.0
      %1886 = vmatprep.subr.mxu0 0.0
      %1887 = vmatpush1.msra.mxu0 0.0
      %1888 = vmatprep.subr.mxu0 0.0
      %1889 = vmatpush1.msra.mxu0 0.0
      %1890 = vmatprep.subr.mxu0 0.0
      %1891 = vmatpush1.msra.mxu0 0.0
      %1892 = vmatprep.subr.mxu0 0.0
      %1893 = vmatpush1.msra.mxu0 0.0
      %1894 = vmatprep.subr.mxu0 0.0
      %1895 = vmatpush1.msra.mxu0 0.0
      %1896 = vmatprep.mubr.f32.mxu0 0.0
      %1897 = vmatmul.mubr.f32.gmra.mrb[0].mxu0 %v1806
      %v1898 = vpop.f32.mrb[0].mxu0
      %v1899 = vadd.f32 0.0, %v1898
      %v1900 = vpop.f32.mrb[0].mxu0
      %1901 = vmatprep.mubr.f32.mxu0 0.0
      %1902 = vmatmul.mubr.f32.gmra.mrb[0].mxu0 %v1809
      %v1903 = vpop.f32.mrb[0].mxu0
      %v1904 = vadd.f32 0.0, %v1903
      %v1905 = vpop.f32.mrb[0].mxu0
      %1906 = vmatprep.mubr.f32.mxu0 0.0
      %1907 = vmatmul.mubr.f32.gmra.mrb[0].mxu0 %v1812
      %v1908 = vpop.f32.mrb[0].mxu0
      %v1909 = vadd.f32 0.0, %v1908
      %v1910 = vpop.f32.mrb[0].mxu0
      %1911 = vmatprep.mubr.f32.mxu0 0.0
      %1912 = vmatmul.mubr.f32.gmra.mrb[0].mxu0 %v1815
      %v1913 = vpop.f32.mrb[0].mxu0
      %v1914 = vadd.f32 0.0, %v1913
      %v1915 = vpop.f32.mrb[0].mxu0
      %1916 = vmatprep.mubr.f32.mxu0 0.0
      %1917 = vmatmul.mubr.f32.gmra.mrb[0].mxu0 %v1818
      %v1918 = vpop.f32.mrb[0].mxu0
      %v1919 = vadd.f32 0.0, %v1918
      %v1920 = vpop.f32.mrb[0].mxu0
      %1921 = vmatprep.mubr.f32.mxu0 0.0
      %1922 = vmatmul.mubr.f32.gmra.mrb[0].mxu0 %v1821
      %v1923 = vpop.f32.mrb[0].mxu0
      %v1924 = vadd.f32 0.0, %v1923
      %v1925 = vpop.f32.mrb[0].mxu0
      %1926 = vmatprep.mubr.f32.mxu0 0.0
      %1927 = vmatmul.mubr.f32.gmra.mrb[0].mxu0 %v1824
      %v1928 = vpop.f32.mrb[0].mxu0
      %v1929 = vadd.f32 0.0, %v1928
      %v1930 = vpop.f32.mrb[0].mxu0
      %1931 = vmatprep.mubr.f32.mxu0 0.0
      %1932 = vmatmul.mubr.f32.gmra.mrb[0].mxu0 %v1827
      %v1933 = vpop.f32.mrb[0].mxu0
      %v1934 = vadd.f32 0.0, %v1933
      %v1935 = vpop.f32.mrb[0].mxu0
      %1936 = vdwg.mxu0
      %v1937 = vadd.f32 %v1779, %v1899
      %v1938 = vadd.f32 %v1780, %v1904
      %v1939 = vadd.f32 %v1781, %v1909
      %v1940 = vadd.f32 %v1782, %v1914
      %v1941 = vadd.f32 %v1783, %v1919
      %v1942 = vadd.f32 %v1784, %v1924
      %v1943 = vadd.f32 %v1785, %v1929
      %v1944 = vadd.f32 %v1786, %v1934
      %1945 = vst.msk [vmem:[%s535] sm:$0xff] %vm573, %v1795
      %1946 = vst.msk [vmem:[%s535 + $0x8] sm:$0xff] %vm573, %v1796
      %1947 = vst.msk [vmem:[%s535 + $0x10] sm:$0xff] %vm573, %v1797
      %1948 = vst.msk [vmem:[%s535 + $0x18] sm:$0xff] %vm573, %v1798
      %1949 = vst.msk [vmem:[%s535 + $0x20] sm:$0xff] %vm573, %v1799
      %1950 = vst.msk [vmem:[%s535 + $0x28] sm:$0xff] %vm573, %v1800
      %1951 = vst.msk [vmem:[%s535 + $0x30] sm:$0xff] %vm573, %v1801
      %vm1952 = vcmask 30720
      %1953 = vst.msk [vmem:[%s535 + $0x38] sm:$0x7f] %vm1952, %v1802
      %v1954 = vld [vmem:[%s6] sm:$0x1]
      %v1956 = vlaneseq
      %v1957 = vshrl.u32 %v1956, 7
      %v1958 = vsub.s32 0, %v1957
      %v1959 = vrot.slane %v1954, %v1958
      %v1961 = vadd.f32 %v1937, %v1959
      %v1962 = vadd.f32 %v1938, %v1959
      %v1963 = vadd.f32 %v1939, %v1959
      %v1964 = vadd.f32 %v1940, %v1959
      %v1965 = vadd.f32 %v1941, %v1959
      %v1966 = vadd.f32 %v1942, %v1959
      %v1967 = vadd.f32 %v1943, %v1959
      %v1968 = vadd.f32 %v1944, %v1959
      %vm1969 = vcmask 195584
      %1970 = vst.msk [vmem:[%s540] sm:$0xff] %vm1969, %v1961
      %1971 = vst.msk [vmem:[%s540 + $0x8] sm:$0xff] %vm1969, %v1962
      %1972 = vst.msk [vmem:[%s540 + $0x10] sm:$0xff] %vm1969, %v1963
      %1973 = vst.msk [vmem:[%s540 + $0x18] sm:$0xff] %vm1969, %v1964
      %1974 = vst.msk [vmem:[%s540 + $0x20] sm:$0xff] %vm1969, %v1965
      %1975 = vst.msk [vmem:[%s540 + $0x28] sm:$0xff] %vm1969, %v1966
      %1976 = vst.msk [vmem:[%s540 + $0x30] sm:$0xff] %vm1969, %v1967
      %vm1977 = vcmask 194560
      %1978 = vst.msk [vmem:[%s540 + $0x38] sm:$0x7f] %vm1977, %v1968
      %v1979 = vld [vmem:[%s510] sm:$0xff]
      %v1980 = vld [vmem:[%s510 + $0x8] sm:$0xff]
      %v1981 = vld [vmem:[%s510 + $0x10] sm:$0xff]
      %v1982 = vld [vmem:[%s510 + $0x18] sm:$0xff]
      %v1983 = vld [vmem:[%s510 + $0x20] sm:$0xff]
      %v1984 = vld [vmem:[%s510 + $0x28] sm:$0xff]
      %v1985 = vld [vmem:[%s510 + $0x30] sm:$0xff]
      %v1986 = vld [vmem:[%s510 + $0x38] sm:$0xff]
      %v1987 = vld [vmem:[%s510 + $0x40] sm:$0xff]
      %v1988 = vld [vmem:[%s510 + $0x48] sm:$0xff]
      %v1989 = vld [vmem:[%s510 + $0x50] sm:$0xff]
      %v1990 = vld [vmem:[%s510 + $0x58] sm:$0xff]
      %v1991 = vld [vmem:[%s510 + $0x60] sm:$0xff]
      %v1992 = vld [vmem:[%s510 + $0x68] sm:$0xff]
      %v1993 = vld [vmem:[%s510 + $0x70] sm:$0xff]
      %v1994 = vld [vmem:[%s510 + $0x78] sm:$0xff]
      %v1995 = vld [vmem:[%s510 + $0x80] sm:$0xff]
      %v1996 = vld [vmem:[%s510 + $0x88] sm:$0xff]
      %v1997 = vld [vmem:[%s510 + $0x90] sm:$0xff]
      %v1998 = vld [vmem:[%s510 + $0x98] sm:$0xff]
      %v1999 = vld [vmem:[%s510 + $0xa0] sm:$0xff]
      %v2000 = vld [vmem:[%s510 + $0xa8] sm:$0xff]
      %v2001 = vld [vmem:[%s510 + $0xb0] sm:$0xff]
      %v2002 = vld [vmem:[%s510 + $0xb8] sm:$0xff]
      %v2003 = vld [vmem:[%s510 + $0xc0] sm:$0xff]
      %v2004 = vld [vmem:[%s510 + $0xc8] sm:$0xff]
      %v2005 = vld [vmem:[%s510 + $0xd0] sm:$0xff]
      %v2006 = vld [vmem:[%s510 + $0xd8] sm:$0xff]
      %v2007 = vld [vmem:[%s510 + $0xe0] sm:$0xff]
      %v2008 = vld [vmem:[%s510 + $0xe8] sm:$0xff]
      %v2009 = vld [vmem:[%s510 + $0xf0] sm:$0xff]
      %v2010 = vld [vmem:[%s510 + $0xf8] sm:$0xff]
      %v2011 = vld [vmem:[%s7] sm:$0xf]
      %v2012 = vld [vmem:[%s8] sm:$0x1]
      %v2014 = vlaneseq
      %v2015 = vshrl.u32 %v2014, 7
      %v2016 = vsub.s32 0, %v2015
      %v2017 = vrot.slane %v2012, %v2016
      %v2020 = vsel %vm573, %v1979, 0
      %v2023 = vsel %vm573, %v1980, 0
      %v2026 = vsel %vm573, %v1981, 0
      %v2029 = vsel %vm573, %v1982, 0
      %v2032 = vsel %vm573, %v1983, 0
      %v2035 = vsel %vm573, %v1984, 0
      %v2038 = vsel %vm573, %v1985, 0
      %v2041 = vsel %vm573, %v1986, 0
      %v2044 = vsel %vm573, %v1987, 0
      %v2047 = vsel %vm573, %v1988, 0
      %v2050 = vsel %vm573, %v1989, 0
      %v2053 = vsel %vm573, %v1990, 0
      %v2056 = vsel %vm573, %v1991, 0
      %v2059 = vsel %vm573, %v1992, 0
      %v2062 = vsel %vm573, %v1993, 0
      %v2065 = vsel %vm573, %v1994, 0
      %v2068 = vsel %vm573, %v1995, 0
      %v2071 = vsel %vm573, %v1996, 0
      %v2074 = vsel %vm573, %v1997, 0
      %v2077 = vsel %vm573, %v1998, 0
      %v2080 = vsel %vm573, %v1999, 0
      %v2083 = vsel %vm573, %v2000, 0
      %v2086 = vsel %vm573, %v2001, 0
      %v2089 = vsel %vm573, %v2002, 0
      %v2092 = vsel %vm573, %v2003, 0
      %v2095 = vsel %vm573, %v2004, 0
      %v2098 = vsel %vm573, %v2005, 0
      %v2101 = vsel %vm573, %v2006, 0
      %v2104 = vsel %vm573, %v2007, 0
      %v2107 = vsel %vm573, %v2008, 0
      %v2110 = vsel %vm573, %v2009, 0
      %v2113 = vsel %vm573, %v2010, 0
      %v2116 = vsel %vm598, %v2011, 0
      %2118 = vmatprep.subr.mxu0 0.0
      %2119 = vmatpush1.msra.mxu0 %v2116
      %2120 = vmatprep.subr.mxu0 0.0
      %2121 = vmatpush1.msra.mxu0 0.0
      %2122 = vmatprep.subr.mxu0 0.0
      %2123 = vmatpush1.msra.mxu0 0.0
      %2124 = vmatprep.subr.mxu0 0.0
      %2125 = vmatpush1.msra.mxu0 0.0
      %2126 = vmatprep.subr.mxu0 0.0
      %2127 = vmatpush1.msra.mxu0 0.0
      %2128 = vmatprep.subr.mxu0 0.0
      %2129 = vmatpush1.msra.mxu0 0.0
      %2130 = vmatprep.subr.mxu0 0.0
      %2131 = vmatpush1.msra.mxu0 0.0
      %2132 = vmatprep.subr.mxu0 0.0
      %2133 = vmatpush1.msra.mxu0 0.0
      %2134 = vmatprep.subr.mxu0 0.0
      %2135 = vmatpush1.msra.mxu0 0.0
      %2136 = vmatprep.subr.mxu0 0.0
      %2137 = vmatpush1.msra.mxu0 0.0
      %2138 = vmatprep.subr.mxu0 0.0
      %2139 = vmatpush1.msra.mxu0 0.0
      %2140 = vmatprep.subr.mxu0 0.0
      %2141 = vmatpush1.msra.mxu0 0.0
      %2142 = vmatprep.subr.mxu0 0.0
      %2143 = vmatpush1.msra.mxu0 0.0
      %2144 = vmatprep.subr.mxu0 0.0
      %2145 = vmatpush1.msra.mxu0 0.0
      %2146 = vmatprep.subr.mxu0 0.0
      %2147 = vmatpush1.msra.mxu0 0.0
      %2148 = vmatprep.subr.mxu0 0.0
      %2149 = vmatpush1.msra.mxu0 0.0
      %2150 = vmatprep.subr.mxu0 0.0
      %2151 = vmatpush1.msra.mxu0 0.0
      %2152 = vmatprep.subr.mxu0 0.0
      %2153 = vmatpush1.msra.mxu0 0.0
      %2154 = vmatprep.subr.mxu0 0.0
      %2155 = vmatpush1.msra.mxu0 0.0
      %2156 = vmatprep.subr.mxu0 0.0
      %2157 = vmatpush1.msra.mxu0 0.0
      %2158 = vmatprep.subr.mxu0 0.0
      %2159 = vmatpush1.msra.mxu0 0.0
      %2160 = vmatprep.subr.mxu0 0.0
      %2161 = vmatpush1.msra.mxu0 0.0
      %2162 = vmatprep.subr.mxu0 0.0
      %2163 = vmatpush1.msra.mxu0 0.0
      %2164 = vmatprep.subr.mxu0 0.0
      %2165 = vmatpush1.msra.mxu0 0.0
      %2166 = vmatprep.subr.mxu0 0.0
      %2167 = vmatpush1.msra.mxu0 0.0
      %2168 = vmatprep.subr.mxu0 0.0
      %2169 = vmatpush1.msra.mxu0 0.0
      %2170 = vmatprep.subr.mxu0 0.0
      %2171 = vmatpush1.msra.mxu0 0.0
      %2172 = vmatprep.subr.mxu0 0.0
      %2173 = vmatpush1.msra.mxu0 0.0
      %2174 = vmatprep.subr.mxu0 0.0
      %2175 = vmatpush1.msra.mxu0 0.0
      %2176 = vmatprep.subr.mxu0 0.0
      %2177 = vmatpush1.msra.mxu0 0.0
      %2178 = vmatprep.subr.mxu0 0.0
      %2179 = vmatpush1.msra.mxu0 0.0
      %2180 = vmatprep.subr.mxu0 0.0
      %2181 = vmatpush1.msra.mxu0 0.0
      %2182 = vmatprep.mubr.f32.mxu0 0.0
      %2183 = vmatmul.mubr.f32.gmra.mrb[0].mxu0 %v2020
      %v2184 = vpop.f32.mrb[0].mxu0
      %v2185 = vadd.f32 %v2017, %v2184
      %v2186 = vpop.f32.mrb[0].mxu0
      %2187 = vmatprep.mubr.f32.mxu0 0.0
      %2188 = vmatmul.mubr.f32.gmra.mrb[0].mxu0 %v2023
      %v2189 = vpop.f32.mrb[0].mxu0
      %v2190 = vadd.f32 %v2017, %v2189
      %v2191 = vpop.f32.mrb[0].mxu0
      %2192 = vmatprep.mubr.f32.mxu0 0.0
      %2193 = vmatmul.mubr.f32.gmra.mrb[0].mxu0 %v2026
      %v2194 = vpop.f32.mrb[0].mxu0
      %v2195 = vadd.f32 %v2017, %v2194
      %v2196 = vpop.f32.mrb[0].mxu0
      %2197 = vmatprep.mubr.f32.mxu0 0.0
      %2198 = vmatmul.mubr.f32.gmra.mrb[0].mxu0 %v2029
      %v2199 = vpop.f32.mrb[0].mxu0
      %v2200 = vadd.f32 %v2017, %v2199
      %v2201 = vpop.f32.mrb[0].mxu0
      %2202 = vmatprep.mubr.f32.mxu0 0.0
      %2203 = vmatmul.mubr.f32.gmra.mrb[0].mxu0 %v2032
      %v2204 = vpop.f32.mrb[0].mxu0
      %v2205 = vadd.f32 %v2017, %v2204
      %v2206 = vpop.f32.mrb[0].mxu0
      %2207 = vmatprep.mubr.f32.mxu0 0.0
      %2208 = vmatmul.mubr.f32.gmra.mrb[0].mxu0 %v2035
      %v2209 = vpop.f32.mrb[0].mxu0
      %v2210 = vadd.f32 %v2017, %v2209
      %v2211 = vpop.f32.mrb[0].mxu0
      %2212 = vmatprep.mubr.f32.mxu0 0.0
      %2213 = vmatmul.mubr.f32.gmra.mrb[0].mxu0 %v2038
      %v2214 = vpop.f32.mrb[0].mxu0
      %v2215 = vadd.f32 %v2017, %v2214
      %v2216 = vpop.f32.mrb[0].mxu0
      %2217 = vmatprep.mubr.f32.mxu0 0.0
      %2218 = vmatmul.mubr.f32.gmra.mrb[0].mxu0 %v2041
      %v2219 = vpop.f32.mrb[0].mxu0
      %v2220 = vadd.f32 %v2017, %v2219
      %v2221 = vpop.f32.mrb[0].mxu0
      %2222 = vmatprep.mubr.f32.mxu0 0.0
      %2223 = vmatmul.mubr.f32.gmra.mrb[0].mxu0 %v2044
      %v2224 = vpop.f32.mrb[0].mxu0
      %v2225 = vadd.f32 %v2017, %v2224
      %v2226 = vpop.f32.mrb[0].mxu0
      %2227 = vmatprep.mubr.f32.mxu0 0.0
      %2228 = vmatmul.mubr.f32.gmra.mrb[0].mxu0 %v2047
      %v2229 = vpop.f32.mrb[0].mxu0
      %v2230 = vadd.f32 %v2017, %v2229
      %v2231 = vpop.f32.mrb[0].mxu0
      %2232 = vmatprep.mubr.f32.mxu0 0.0
      %2233 = vmatmul.mubr.f32.gmra.mrb[0].mxu0 %v2050
      %v2234 = vpop.f32.mrb[0].mxu0
      %v2235 = vadd.f32 %v2017, %v2234
      %v2236 = vpop.f32.mrb[0].mxu0
      %2237 = vmatprep.mubr.f32.mxu0 0.0
      %2238 = vmatmul.mubr.f32.gmra.mrb[0].mxu0 %v2053
      %v2239 = vpop.f32.mrb[0].mxu0
      %v2240 = vadd.f32 %v2017, %v2239
      %v2241 = vpop.f32.mrb[0].mxu0
      %2242 = vmatprep.mubr.f32.mxu0 0.0
      %2243 = vmatmul.mubr.f32.gmra.mrb[0].mxu0 %v2056
      %v2244 = vpop.f32.mrb[0].mxu0
      %v2245 = vadd.f32 %v2017, %v2244
      %v2246 = vpop.f32.mrb[0].mxu0
      %2247 = vmatprep.mubr.f32.mxu0 0.0
      %2248 = vmatmul.mubr.f32.gmra.mrb[0].mxu0 %v2059
      %v2249 = vpop.f32.mrb[0].mxu0
      %v2250 = vadd.f32 %v2017, %v2249
      %v2251 = vpop.f32.mrb[0].mxu0
      %2252 = vmatprep.mubr.f32.mxu0 0.0
      %2253 = vmatmul.mubr.f32.gmra.mrb[0].mxu0 %v2062
      %v2254 = vpop.f32.mrb[0].mxu0
      %v2255 = vadd.f32 %v2017, %v2254
      %v2256 = vpop.f32.mrb[0].mxu0
      %2257 = vmatprep.mubr.f32.mxu0 0.0
      %2258 = vmatmul.mubr.f32.gmra.mrb[0].mxu0 %v2065
      %v2259 = vpop.f32.mrb[0].mxu0
      %v2260 = vadd.f32 %v2017, %v2259
      %v2261 = vpop.f32.mrb[0].mxu0
      %2262 = vmatprep.mubr.f32.mxu0 0.0
      %2263 = vmatmul.mubr.f32.gmra.mrb[0].mxu0 %v2068
      %v2264 = vpop.f32.mrb[0].mxu0
      %v2265 = vadd.f32 %v2017, %v2264
      %v2266 = vpop.f32.mrb[0].mxu0
      %2267 = vmatprep.mubr.f32.mxu0 0.0
      %2268 = vmatmul.mubr.f32.gmra.mrb[0].mxu0 %v2071
      %v2269 = vpop.f32.mrb[0].mxu0
      %v2270 = vadd.f32 %v2017, %v2269
      %v2271 = vpop.f32.mrb[0].mxu0
      %2272 = vmatprep.mubr.f32.mxu0 0.0
      %2273 = vmatmul.mubr.f32.gmra.mrb[0].mxu0 %v2074
      %v2274 = vpop.f32.mrb[0].mxu0
      %v2275 = vadd.f32 %v2017, %v2274
      %v2276 = vpop.f32.mrb[0].mxu0
      %2277 = vmatprep.mubr.f32.mxu0 0.0
      %2278 = vmatmul.mubr.f32.gmra.mrb[0].mxu0 %v2077
      %v2279 = vpop.f32.mrb[0].mxu0
      %v2280 = vadd.f32 %v2017, %v2279
      %v2281 = vpop.f32.mrb[0].mxu0
      %2282 = vmatprep.mubr.f32.mxu0 0.0
      %2283 = vmatmul.mubr.f32.gmra.mrb[0].mxu0 %v2080
      %v2284 = vpop.f32.mrb[0].mxu0
      %v2285 = vadd.f32 %v2017, %v2284
      %v2286 = vpop.f32.mrb[0].mxu0
      %2287 = vmatprep.mubr.f32.mxu0 0.0
      %2288 = vmatmul.mubr.f32.gmra.mrb[0].mxu0 %v2083
      %v2289 = vpop.f32.mrb[0].mxu0
      %v2290 = vadd.f32 %v2017, %v2289
      %v2291 = vpop.f32.mrb[0].mxu0
      %2292 = vmatprep.mubr.f32.mxu0 0.0
      %2293 = vmatmul.mubr.f32.gmra.mrb[0].mxu0 %v2086
      %v2294 = vpop.f32.mrb[0].mxu0
      %v2295 = vadd.f32 %v2017, %v2294
      %v2296 = vpop.f32.mrb[0].mxu0
      %2297 = vmatprep.mubr.f32.mxu0 0.0
      %2298 = vmatmul.mubr.f32.gmra.mrb[0].mxu0 %v2089
      %v2299 = vpop.f32.mrb[0].mxu0
      %v2300 = vadd.f32 %v2017, %v2299
      %v2301 = vpop.f32.mrb[0].mxu0
      %2302 = vmatprep.mubr.f32.mxu0 0.0
      %2303 = vmatmul.mubr.f32.gmra.mrb[0].mxu0 %v2092
      %v2304 = vpop.f32.mrb[0].mxu0
      %v2305 = vadd.f32 %v2017, %v2304
      %v2306 = vpop.f32.mrb[0].mxu0
      %2307 = vmatprep.mubr.f32.mxu0 0.0
      %2308 = vmatmul.mubr.f32.gmra.mrb[0].mxu0 %v2095
      %v2309 = vpop.f32.mrb[0].mxu0
      %v2310 = vadd.f32 %v2017, %v2309
      %v2311 = vpop.f32.mrb[0].mxu0
      %2312 = vmatprep.mubr.f32.mxu0 0.0
      %2313 = vmatmul.mubr.f32.gmra.mrb[0].mxu0 %v2098
      %v2314 = vpop.f32.mrb[0].mxu0
      %v2315 = vadd.f32 %v2017, %v2314
      %v2316 = vpop.f32.mrb[0].mxu0
      %2317 = vmatprep.mubr.f32.mxu0 0.0
      %2318 = vmatmul.mubr.f32.gmra.mrb[0].mxu0 %v2101
      %v2319 = vpop.f32.mrb[0].mxu0
      %v2320 = vadd.f32 %v2017, %v2319
      %v2321 = vpop.f32.mrb[0].mxu0
      %2322 = vmatprep.mubr.f32.mxu0 0.0
      %2323 = vmatmul.mubr.f32.gmra.mrb[0].mxu0 %v2104
      %v2324 = vpop.f32.mrb[0].mxu0
      %v2325 = vadd.f32 %v2017, %v2324
      %v2326 = vpop.f32.mrb[0].mxu0
      %2327 = vmatprep.mubr.f32.mxu0 0.0
      %2328 = vmatmul.mubr.f32.gmra.mrb[0].mxu0 %v2107
      %v2329 = vpop.f32.mrb[0].mxu0
      %v2330 = vadd.f32 %v2017, %v2329
      %v2331 = vpop.f32.mrb[0].mxu0
      %2332 = vmatprep.mubr.f32.mxu0 0.0
      %2333 = vmatmul.mubr.f32.gmra.mrb[0].mxu0 %v2110
      %v2334 = vpop.f32.mrb[0].mxu0
      %v2335 = vadd.f32 %v2017, %v2334
      %v2336 = vpop.f32.mrb[0].mxu0
      %2337 = vmatprep.mubr.f32.mxu0 0.0
      %2338 = vmatmul.mubr.f32.gmra.mrb[0].mxu0 %v2113
      %v2339 = vpop.f32.mrb[0].mxu0
      %v2340 = vadd.f32 %v2017, %v2339
      %v2341 = vpop.f32.mrb[0].mxu0
      %2342 = vdwg.mxu0
      %vm2343 = vcmask 64512
      %2344 = vst.msk [vmem:[#allocation2] sm:$0xff] %vm2343, 0.0
      %2345 = vst.msk [vmem:[#allocation2 + $0x8] sm:$0xff] %vm2343, 0.0
      %2346 = vst.msk [vmem:[#allocation2 + $0x10] sm:$0xff] %vm2343, 0.0
      %2347 = vst.msk [vmem:[#allocation2 + $0x18] sm:$0xff] %vm2343, 0.0
      %2348 = vst.msk [vmem:[#allocation2 + $0x20] sm:$0xff] %vm2343, 0.0
      %2349 = vst.msk [vmem:[#allocation2 + $0x28] sm:$0xff] %vm2343, 0.0
      %2350 = vst.msk [vmem:[#allocation2 + $0x30] sm:$0xff] %vm2343, 0.0
      %2351 = vst.msk [vmem:[#allocation2 + $0x38] sm:$0xff] %vm2343, 0.0
      %2352 = vst.msk [vmem:[#allocation2 + $0x40] sm:$0xff] %vm2343, 0.0
      %2353 = vst.msk [vmem:[#allocation2 + $0x48] sm:$0xff] %vm2343, 0.0
      %2354 = vst.msk [vmem:[#allocation2 + $0x50] sm:$0xff] %vm2343, 0.0
      %2355 = vst.msk [vmem:[#allocation2 + $0x58] sm:$0xff] %vm2343, 0.0
      %2356 = vst.msk [vmem:[#allocation2 + $0x60] sm:$0xff] %vm2343, 0.0
      %2357 = vst.msk [vmem:[#allocation2 + $0x68] sm:$0xff] %vm2343, 0.0
      %2358 = vst.msk [vmem:[#allocation2 + $0x70] sm:$0xff] %vm2343, 0.0
      %2359 = vst.msk [vmem:[#allocation2 + $0x78] sm:$0xff] %vm2343, 0.0
      %2360 = vst.msk [vmem:[#allocation2 + $0x80] sm:$0xff] %vm2343, 0.0
      %2361 = vst.msk [vmem:[#allocation2 + $0x88] sm:$0xff] %vm2343, 0.0
      %2362 = vst.msk [vmem:[#allocation2 + $0x90] sm:$0xff] %vm2343, 0.0
      %2363 = vst.msk [vmem:[#allocation2 + $0x98] sm:$0xff] %vm2343, 0.0
      %2364 = vst.msk [vmem:[#allocation2 + $0xa0] sm:$0xff] %vm2343, 0.0
      %2365 = vst.msk [vmem:[#allocation2 + $0xa8] sm:$0xff] %vm2343, 0.0
      %2366 = vst.msk [vmem:[#allocation2 + $0xb0] sm:$0xff] %vm2343, 0.0
      %2367 = vst.msk [vmem:[#allocation2 + $0xb8] sm:$0xff] %vm2343, 0.0
      %2368 = vst.msk [vmem:[#allocation2 + $0xc0] sm:$0xff] %vm2343, 0.0
      %2369 = vst.msk [vmem:[#allocation2 + $0xc8] sm:$0xff] %vm2343, 0.0
      %2370 = vst.msk [vmem:[#allocation2 + $0xd0] sm:$0xff] %vm2343, 0.0
      %2371 = vst.msk [vmem:[#allocation2 + $0xd8] sm:$0xff] %vm2343, 0.0
      %2372 = vst.msk [vmem:[#allocation2 + $0xe0] sm:$0xff] %vm2343, 0.0
      %2373 = vst.msk [vmem:[#allocation2 + $0xe8] sm:$0xff] %vm2343, 0.0
      %2374 = vst.msk [vmem:[#allocation2 + $0xf0] sm:$0xff] %vm2343, 0.0
      %2375 = vst.msk [vmem:[#allocation2 + $0xf8] sm:$0xff] %vm2343, 0.0
      %2376 = vst.msk [vmem:[#allocation2 + $0x100] sm:$0xff] %vm2343, 0.0
      %2377 = vst.msk [vmem:[#allocation2 + $0x108] sm:$0xff] %vm2343, 0.0
      %2378 = vst.msk [vmem:[#allocation2 + $0x110] sm:$0xff] %vm2343, 0.0
      %2379 = vst.msk [vmem:[#allocation2 + $0x118] sm:$0xff] %vm2343, 0.0
      %2380 = vst.msk [vmem:[#allocation2 + $0x120] sm:$0xff] %vm2343, 0.0
      %2381 = vst.msk [vmem:[#allocation2 + $0x128] sm:$0xff] %vm2343, 0.0
      %2382 = vst.msk [vmem:[#allocation2 + $0x130] sm:$0xff] %vm2343, 0.0
      %2383 = vst.msk [vmem:[#allocation2 + $0x138] sm:$0xff] %vm2343, 0.0
      %2384 = vst.msk [vmem:[#allocation2 + $0x140] sm:$0xff] %vm2343, 0.0
      %2385 = vst.msk [vmem:[#allocation2 + $0x148] sm:$0xff] %vm2343, 0.0
      %vm2386 = vcmask 62464
      %2387 = vst.msk [vmem:[#allocation2 + $0x150] sm:$0x3f] %vm2386, 0.0
      %2388 = vst.msk [vmem:[#allocation2 + $0x13] sm:$0xff] %vm2343, %v2185
      %2389 = vst.msk [vmem:[#allocation2 + $0x1b] sm:$0xff] %vm2343, %v2190
      %2390 = vst.msk [vmem:[#allocation2 + $0x25] sm:$0xff] %vm2343, %v2195
      %2391 = vst.msk [vmem:[#allocation2 + $0x2d] sm:$0xff] %vm2343, %v2200
      %2392 = vst.msk [vmem:[#allocation2 + $0x37] sm:$0xff] %vm2343, %v2205
      %2393 = vst.msk [vmem:[#allocation2 + $0x3f] sm:$0xff] %vm2343, %v2210
      %2394 = vst.msk [vmem:[#allocation2 + $0x49] sm:$0xff] %vm2343, %v2215
      %2395 = vst.msk [vmem:[#allocation2 + $0x51] sm:$0xff] %vm2343, %v2220
      %2396 = vst.msk [vmem:[#allocation2 + $0x5b] sm:$0xff] %vm2343, %v2225
      %2397 = vst.msk [vmem:[#allocation2 + $0x63] sm:$0xff] %vm2343, %v2230
      %2398 = vst.msk [vmem:[#allocation2 + $0x6d] sm:$0xff] %vm2343, %v2235
      %2399 = vst.msk [vmem:[#allocation2 + $0x75] sm:$0xff] %vm2343, %v2240
      %2400 = vst.msk [vmem:[#allocation2 + $0x7f] sm:$0xff] %vm2343, %v2245
      %2401 = vst.msk [vmem:[#allocation2 + $0x87] sm:$0xff] %vm2343, %v2250
      %2402 = vst.msk [vmem:[#allocation2 + $0x91] sm:$0xff] %vm2343, %v2255
      %2403 = vst.msk [vmem:[#allocation2 + $0x99] sm:$0xff] %vm2343, %v2260
      %2404 = vst.msk [vmem:[#allocation2 + $0xa3] sm:$0xff] %vm2343, %v2265
      %2405 = vst.msk [vmem:[#allocation2 + $0xab] sm:$0xff] %vm2343, %v2270
      %2406 = vst.msk [vmem:[#allocation2 + $0xb5] sm:$0xff] %vm2343, %v2275
      %2407 = vst.msk [vmem:[#allocation2 + $0xbd] sm:$0xff] %vm2343, %v2280
      %2408 = vst.msk [vmem:[#allocation2 + $0xc7] sm:$0xff] %vm2343, %v2285
      %2409 = vst.msk [vmem:[#allocation2 + $0xcf] sm:$0xff] %vm2343, %v2290
      %2410 = vst.msk [vmem:[#allocation2 + $0xd9] sm:$0xff] %vm2343, %v2295
      %2411 = vst.msk [vmem:[#allocation2 + $0xe1] sm:$0xff] %vm2343, %v2300
      %2412 = vst.msk [vmem:[#allocation2 + $0xeb] sm:$0xff] %vm2343, %v2305
      %2413 = vst.msk [vmem:[#allocation2 + $0xf3] sm:$0xff] %vm2343, %v2310
      %2414 = vst.msk [vmem:[#allocation2 + $0xfd] sm:$0xff] %vm2343, %v2315
      %2415 = vst.msk [vmem:[#allocation2 + $0x105] sm:$0xff] %vm2343, %v2320
      %2416 = vst.msk [vmem:[#allocation2 + $0x10f] sm:$0xff] %vm2343, %v2325
      %2417 = vst.msk [vmem:[#allocation2 + $0x117] sm:$0xff] %vm2343, %v2330
      %2418 = vst.msk [vmem:[#allocation2 + $0x121] sm:$0xff] %vm2343, %v2335
      %2419 = vst.msk [vmem:[#allocation2 + $0x129] sm:$0xff] %vm2343, %v2340
      %v2420 = vld [vmem:[#allocation2] sm:$0xff]
      %v2421 = vld [vmem:[#allocation2 + $0x8] sm:$0xff]
      %v2422 = vld [vmem:[#allocation2 + $0x10] sm:$0xff]
      %v2423 = vld [vmem:[#allocation2 + $0x18] sm:$0xff]
      %v2424 = vld [vmem:[#allocation2 + $0x20] sm:$0xff]
      %v2425 = vld [vmem:[#allocation2 + $0x28] sm:$0xff]
      %v2426 = vld [vmem:[#allocation2 + $0x30] sm:$0xff]
      %v2427 = vld [vmem:[#allocation2 + $0x38] sm:$0xff]
      %v2428 = vld [vmem:[#allocation2 + $0x40] sm:$0xff]
      %v2429 = vld [vmem:[#allocation2 + $0x48] sm:$0xff]
      %v2430 = vld [vmem:[#allocation2 + $0x50] sm:$0xff]
      %v2431 = vld [vmem:[#allocation2 + $0x58] sm:$0xff]
      %v2432 = vld [vmem:[#allocation2 + $0x60] sm:$0xff]
      %v2433 = vld [vmem:[#allocation2 + $0x68] sm:$0xff]
      %v2434 = vld [vmem:[#allocation2 + $0x70] sm:$0xff]
      %v2435 = vld [vmem:[#allocation2 + $0x78] sm:$0xff]
      %v2436 = vld [vmem:[#allocation2 + $0x80] sm:$0xff]
      %v2437 = vld [vmem:[#allocation2 + $0x88] sm:$0xff]
      %v2438 = vld [vmem:[#allocation2 + $0x90] sm:$0xff]
      %v2439 = vld [vmem:[#allocation2 + $0x98] sm:$0xff]
      %v2440 = vld [vmem:[#allocation2 + $0xa0] sm:$0xff]
      %v2441 = vld [vmem:[#allocation2 + $0xa8] sm:$0xff]
      %v2442 = vld [vmem:[#allocation2 + $0xb0] sm:$0xff]
      %v2443 = vld [vmem:[#allocation2 + $0xb8] sm:$0xff]
      %v2444 = vld [vmem:[#allocation2 + $0xc0] sm:$0xff]
      %v2445 = vld [vmem:[#allocation2 + $0xc8] sm:$0xff]
      %v2446 = vld [vmem:[#allocation2 + $0xd0] sm:$0xff]
      %v2447 = vld [vmem:[#allocation2 + $0xd8] sm:$0xff]
      %v2448 = vld [vmem:[#allocation2 + $0xe0] sm:$0xff]
      %v2449 = vld [vmem:[#allocation2 + $0xe8] sm:$0xff]
      %v2450 = vld [vmem:[#allocation2 + $0xf0] sm:$0xff]
      %v2451 = vld [vmem:[#allocation2 + $0xf8] sm:$0xff]
      %v2452 = vld [vmem:[#allocation2 + $0x100] sm:$0xff]
      %v2453 = vld [vmem:[#allocation2 + $0x108] sm:$0xff]
      %v2454 = vld [vmem:[#allocation2 + $0x110] sm:$0xff]
      %v2455 = vld [vmem:[#allocation2 + $0x118] sm:$0xff]
      %v2456 = vld [vmem:[%s9] sm:$0xff]
      %v2457 = vld [vmem:[#allocation2 + $0x1] sm:$0xff]
      %v2458 = vld [vmem:[#allocation2 + $0x9] sm:$0xff]
      %v2459 = vld [vmem:[#allocation2 + $0x11] sm:$0xff]
      %v2460 = vld [vmem:[#allocation2 + $0x19] sm:$0xff]
      %v2461 = vld [vmem:[#allocation2 + $0x21] sm:$0xff]
      %v2462 = vld [vmem:[#allocation2 + $0x29] sm:$0xff]
      %v2463 = vld [vmem:[#allocation2 + $0x31] sm:$0xff]
      %v2464 = vld [vmem:[#allocation2 + $0x39] sm:$0xff]
      %v2465 = vld [vmem:[#allocation2 + $0x41] sm:$0xff]
      %v2466 = vld [vmem:[#allocation2 + $0x49] sm:$0xff]
      %v2467 = vld [vmem:[#allocation2 + $0x51] sm:$0xff]
      %v2468 = vld [vmem:[#allocation2 + $0x59] sm:$0xff]
      %v2469 = vld [vmem:[#allocation2 + $0x61] sm:$0xff]
      %v2470 = vld [vmem:[#allocation2 + $0x69] sm:$0xff]
      %v2471 = vld [vmem:[#allocation2 + $0x71] sm:$0xff]
      %v2472 = vld [vmem:[#allocation2 + $0x79] sm:$0xff]
      %v2473 = vld [vmem:[#allocation2 + $0x81] sm:$0xff]
      %v2474 = vld [vmem:[#allocation2 + $0x89] sm:$0xff]
      %v2475 = vld [vmem:[#allocation2 + $0x91] sm:$0xff]
      %v2476 = vld [vmem:[#allocation2 + $0x99] sm:$0xff]
      %v2477 = vld [vmem:[#allocation2 + $0xa1] sm:$0xff]
      %v2478 = vld [vmem:[#allocation2 + $0xa9] sm:$0xff]
      %v2479 = vld [vmem:[#allocation2 + $0xb1] sm:$0xff]
      %v2480 = vld [vmem:[#allocation2 + $0xb9] sm:$0xff]
      %v2481 = vld [vmem:[#allocation2 + $0xc1] sm:$0xff]
      %v2482 = vld [vmem:[#allocation2 + $0xc9] sm:$0xff]
      %v2483 = vld [vmem:[#allocation2 + $0xd1] sm:$0xff]
      %v2484 = vld [vmem:[#allocation2 + $0xd9] sm:$0xff]
      %v2485 = vld [vmem:[#allocation2 + $0xe1] sm:$0xff]
      %v2486 = vld [vmem:[#allocation2 + $0xe9] sm:$0xff]
      %v2487 = vld [vmem:[#allocation2 + $0xf1] sm:$0xff]
      %v2488 = vld [vmem:[#allocation2 + $0xf9] sm:$0xff]
      %v2489 = vld [vmem:[#allocation2 + $0x101] sm:$0xff]
      %v2490 = vld [vmem:[#allocation2 + $0x109] sm:$0xff]
      %v2491 = vld [vmem:[#allocation2 + $0x111] sm:$0xff]
      %v2492 = vld [vmem:[#allocation2 + $0x119] sm:$0xff]
      %s2493 = scalar_lea.vmem %s9, 8
      %v2494 = vld [vmem:[%s2493] sm:$0xff]
      %v2496 = vsel %vm2343, %v2457, 0
      %v2499 = vsel %vm2343, %v2458, 0
      %v2502 = vsel %vm2343, %v2459, 0
      %v2505 = vsel %vm2343, %v2460, 0
      %v2508 = vsel %vm2343, %v2461, 0
      %v2511 = vsel %vm2343, %v2462, 0
      %v2514 = vsel %vm2343, %v2463, 0
      %v2517 = vsel %vm2343, %v2464, 0
      %v2520 = vsel %vm2343, %v2465, 0
      %v2523 = vsel %vm2343, %v2466, 0
      %v2526 = vsel %vm2343, %v2467, 0
      %v2529 = vsel %vm2343, %v2468, 0
      %v2532 = vsel %vm2343, %v2469, 0
      %v2535 = vsel %vm2343, %v2470, 0
      %v2538 = vsel %vm2343, %v2471, 0
      %v2541 = vsel %vm2343, %v2472, 0
      %v2544 = vsel %vm2343, %v2473, 0
      %v2547 = vsel %vm2343, %v2474, 0
      %v2550 = vsel %vm2343, %v2475, 0
      %v2553 = vsel %vm2343, %v2476, 0
      %v2556 = vsel %vm2343, %v2477, 0
      %v2559 = vsel %vm2343, %v2478, 0
      %v2562 = vsel %vm2343, %v2479, 0
      %v2565 = vsel %vm2343, %v2480, 0
      %v2568 = vsel %vm2343, %v2481, 0
      %v2571 = vsel %vm2343, %v2482, 0
      %v2574 = vsel %vm2343, %v2483, 0
      %v2577 = vsel %vm2343, %v2484, 0
      %v2580 = vsel %vm2343, %v2485, 0
      %v2583 = vsel %vm2343, %v2486, 0
      %v2586 = vsel %vm2343, %v2487, 0
      %v2589 = vsel %vm2343, %v2488, 0
      %v2592 = vsel %vm2343, %v2489, 0
      %v2595 = vsel %vm2343, %v2490, 0
      %v2598 = vsel %vm2343, %v2491, 0
      %v2601 = vsel %vm2343, %v2492, 0
      %2603 = vmatprep.subr.mxu0 0.0
      %2604 = vmatpush1.msra.mxu0 %v2494
      %2605 = vmatprep.subr.mxu0 0.0
      %2606 = vmatpush1.msra.mxu0 0.0
      %2607 = vmatprep.subr.mxu0 0.0
      %2608 = vmatpush1.msra.mxu0 0.0
      %2609 = vmatprep.subr.mxu0 0.0
      %2610 = vmatpush1.msra.mxu0 0.0
      %2611 = vmatprep.subr.mxu0 0.0
      %2612 = vmatpush1.msra.mxu0 0.0
      %2613 = vmatprep.subr.mxu0 0.0
      %2614 = vmatpush1.msra.mxu0 0.0
      %2615 = vmatprep.subr.mxu0 0.0
      %2616 = vmatpush1.msra.mxu0 0.0
      %2617 = vmatprep.subr.mxu0 0.0
      %2618 = vmatpush1.msra.mxu0 0.0
      %2619 = vmatprep.subr.mxu0 0.0
      %2620 = vmatpush1.msra.mxu0 0.0
      %2621 = vmatprep.subr.mxu0 0.0
      %2622 = vmatpush1.msra.mxu0 0.0
      %2623 = vmatprep.subr.mxu0 0.0
      %2624 = vmatpush1.msra.mxu0 0.0
      %2625 = vmatprep.subr.mxu0 0.0
      %2626 = vmatpush1.msra.mxu0 0.0
      %2627 = vmatprep.subr.mxu0 0.0
      %2628 = vmatpush1.msra.mxu0 0.0
      %2629 = vmatprep.subr.mxu0 0.0
      %2630 = vmatpush1.msra.mxu0 0.0
      %2631 = vmatprep.subr.mxu0 0.0
      %2632 = vmatpush1.msra.mxu0 0.0
      %2633 = vmatprep.subr.mxu0 0.0
      %2634 = vmatpush1.msra.mxu0 0.0
      %2635 = vmatprep.subr.mxu0 0.0
      %2636 = vmatpush1.msra.mxu0 0.0
      %2637 = vmatprep.subr.mxu0 0.0
      %2638 = vmatpush1.msra.mxu0 0.0
      %2639 = vmatprep.subr.mxu0 0.0
      %2640 = vmatpush1.msra.mxu0 0.0
      %2641 = vmatprep.subr.mxu0 0.0
      %2642 = vmatpush1.msra.mxu0 0.0
      %2643 = vmatprep.subr.mxu0 0.0
      %2644 = vmatpush1.msra.mxu0 0.0
      %2645 = vmatprep.subr.mxu0 0.0
      %2646 = vmatpush1.msra.mxu0 0.0
      %2647 = vmatprep.subr.mxu0 0.0
      %2648 = vmatpush1.msra.mxu0 0.0
      %2649 = vmatprep.subr.mxu0 0.0
      %2650 = vmatpush1.msra.mxu0 0.0
      %2651 = vmatprep.subr.mxu0 0.0
      %2652 = vmatpush1.msra.mxu0 0.0
      %2653 = vmatprep.subr.mxu0 0.0
      %2654 = vmatpush1.msra.mxu0 0.0
      %2655 = vmatprep.subr.mxu0 0.0
      %2656 = vmatpush1.msra.mxu0 0.0
      %2657 = vmatprep.subr.mxu0 0.0
      %2658 = vmatpush1.msra.mxu0 0.0
      %2659 = vmatprep.subr.mxu0 0.0
      %2660 = vmatpush1.msra.mxu0 0.0
      %2661 = vmatprep.subr.mxu0 0.0
      %2662 = vmatpush1.msra.mxu0 0.0
      %2663 = vmatprep.subr.mxu0 0.0
      %2664 = vmatpush1.msra.mxu0 0.0
      %2665 = vmatprep.subr.mxu0 0.0
      %2666 = vmatpush1.msra.mxu0 0.0
      %2667 = vmatprep.mubr.f32.mxu0 0.0
      %2668 = vmatmul.mubr.f32.gmra.mrb[0].mxu0 %v2496
      %v2669 = vpop.f32.mrb[0].mxu0
      %v2670 = vadd.f32 0.0, %v2669
      %v2671 = vpop.f32.mrb[0].mxu0
      %2672 = vmatprep.mubr.f32.mxu0 0.0
      %2673 = vmatmul.mubr.f32.gmra.mrb[0].mxu0 %v2499
      %v2674 = vpop.f32.mrb[0].mxu0
      %v2675 = vadd.f32 0.0, %v2674
      %v2676 = vpop.f32.mrb[0].mxu0
      %2677 = vmatprep.mubr.f32.mxu0 0.0
      %2678 = vmatmul.mubr.f32.gmra.mrb[0].mxu0 %v2502
      %v2679 = vpop.f32.mrb[0].mxu0
      %v2680 = vadd.f32 0.0, %v2679
      %v2681 = vpop.f32.mrb[0].mxu0
      %2682 = vmatprep.mubr.f32.mxu0 0.0
      %2683 = vmatmul.mubr.f32.gmra.mrb[0].mxu0 %v2505
      %v2684 = vpop.f32.mrb[0].mxu0
      %v2685 = vadd.f32 0.0, %v2684
      %v2686 = vpop.f32.mrb[0].mxu0
      %2687 = vmatprep.mubr.f32.mxu0 0.0
      %2688 = vmatmul.mubr.f32.gmra.mrb[0].mxu0 %v2508
      %v2689 = vpop.f32.mrb[0].mxu0
      %v2690 = vadd.f32 0.0, %v2689
      %v2691 = vpop.f32.mrb[0].mxu0
      %2692 = vmatprep.mubr.f32.mxu0 0.0
      %2693 = vmatmul.mubr.f32.gmra.mrb[0].mxu0 %v2511
      %v2694 = vpop.f32.mrb[0].mxu0
      %v2695 = vadd.f32 0.0, %v2694
      %v2696 = vpop.f32.mrb[0].mxu0
      %2697 = vmatprep.mubr.f32.mxu0 0.0
      %2698 = vmatmul.mubr.f32.gmra.mrb[0].mxu0 %v2514
      %v2699 = vpop.f32.mrb[0].mxu0
      %v2700 = vadd.f32 0.0, %v2699
      %v2701 = vpop.f32.mrb[0].mxu0
      %2702 = vmatprep.mubr.f32.mxu0 0.0
      %2703 = vmatmul.mubr.f32.gmra.mrb[0].mxu0 %v2517
      %v2704 = vpop.f32.mrb[0].mxu0
      %v2705 = vadd.f32 0.0, %v2704
      %v2706 = vpop.f32.mrb[0].mxu0
      %2707 = vmatprep.mubr.f32.mxu0 0.0
      %2708 = vmatmul.mubr.f32.gmra.mrb[0].mxu0 %v2520
      %v2709 = vpop.f32.mrb[0].mxu0
      %v2710 = vadd.f32 0.0, %v2709
      %v2711 = vpop.f32.mrb[0].mxu0
      %2712 = vmatprep.mubr.f32.mxu0 0.0
      %2713 = vmatmul.mubr.f32.gmra.mrb[0].mxu0 %v2523
      %v2714 = vpop.f32.mrb[0].mxu0
      %v2715 = vadd.f32 0.0, %v2714
      %v2716 = vpop.f32.mrb[0].mxu0
      %2717 = vmatprep.mubr.f32.mxu0 0.0
      %2718 = vmatmul.mubr.f32.gmra.mrb[0].mxu0 %v2526
      %v2719 = vpop.f32.mrb[0].mxu0
      %v2720 = vadd.f32 0.0, %v2719
      %v2721 = vpop.f32.mrb[0].mxu0
      %2722 = vmatprep.mubr.f32.mxu0 0.0
      %2723 = vmatmul.mubr.f32.gmra.mrb[0].mxu0 %v2529
      %v2724 = vpop.f32.mrb[0].mxu0
      %v2725 = vadd.f32 0.0, %v2724
      %v2726 = vpop.f32.mrb[0].mxu0
      %2727 = vmatprep.mubr.f32.mxu0 0.0
      %2728 = vmatmul.mubr.f32.gmra.mrb[0].mxu0 %v2532
      %v2729 = vpop.f32.mrb[0].mxu0
      %v2730 = vadd.f32 0.0, %v2729
      %v2731 = vpop.f32.mrb[0].mxu0
      %2732 = vmatprep.mubr.f32.mxu0 0.0
      %2733 = vmatmul.mubr.f32.gmra.mrb[0].mxu0 %v2535
      %v2734 = vpop.f32.mrb[0].mxu0
      %v2735 = vadd.f32 0.0, %v2734
      %v2736 = vpop.f32.mrb[0].mxu0
      %2737 = vmatprep.mubr.f32.mxu0 0.0
      %2738 = vmatmul.mubr.f32.gmra.mrb[0].mxu0 %v2538
      %v2739 = vpop.f32.mrb[0].mxu0
      %v2740 = vadd.f32 0.0, %v2739
      %v2741 = vpop.f32.mrb[0].mxu0
      %2742 = vmatprep.mubr.f32.mxu0 0.0
      %2743 = vmatmul.mubr.f32.gmra.mrb[0].mxu0 %v2541
      %v2744 = vpop.f32.mrb[0].mxu0
      %v2745 = vadd.f32 0.0, %v2744
      %v2746 = vpop.f32.mrb[0].mxu0
      %2747 = vmatprep.mubr.f32.mxu0 0.0
      %2748 = vmatmul.mubr.f32.gmra.mrb[0].mxu0 %v2544
      %v2749 = vpop.f32.mrb[0].mxu0
      %v2750 = vadd.f32 0.0, %v2749
      %v2751 = vpop.f32.mrb[0].mxu0
      %2752 = vmatprep.mubr.f32.mxu0 0.0
      %2753 = vmatmul.mubr.f32.gmra.mrb[0].mxu0 %v2547
      %v2754 = vpop.f32.mrb[0].mxu0
      %v2755 = vadd.f32 0.0, %v2754
      %v2756 = vpop.f32.mrb[0].mxu0
      %2757 = vmatprep.mubr.f32.mxu0 0.0
      %2758 = vmatmul.mubr.f32.gmra.mrb[0].mxu0 %v2550
      %v2759 = vpop.f32.mrb[0].mxu0
      %v2760 = vadd.f32 0.0, %v2759
      %v2761 = vpop.f32.mrb[0].mxu0
      %2762 = vmatprep.mubr.f32.mxu0 0.0
      %2763 = vmatmul.mubr.f32.gmra.mrb[0].mxu0 %v2553
      %v2764 = vpop.f32.mrb[0].mxu0
      %v2765 = vadd.f32 0.0, %v2764
      %v2766 = vpop.f32.mrb[0].mxu0
      %2767 = vmatprep.mubr.f32.mxu0 0.0
      %2768 = vmatmul.mubr.f32.gmra.mrb[0].mxu0 %v2556
      %v2769 = vpop.f32.mrb[0].mxu0
      %v2770 = vadd.f32 0.0, %v2769
      %v2771 = vpop.f32.mrb[0].mxu0
      %2772 = vmatprep.mubr.f32.mxu0 0.0
      %2773 = vmatmul.mubr.f32.gmra.mrb[0].mxu0 %v2559
      %v2774 = vpop.f32.mrb[0].mxu0
      %v2775 = vadd.f32 0.0, %v2774
      %v2776 = vpop.f32.mrb[0].mxu0
      %2777 = vmatprep.mubr.f32.mxu0 0.0
      %2778 = vmatmul.mubr.f32.gmra.mrb[0].mxu0 %v2562
      %v2779 = vpop.f32.mrb[0].mxu0
      %v2780 = vadd.f32 0.0, %v2779
      %v2781 = vpop.f32.mrb[0].mxu0
      %2782 = vmatprep.mubr.f32.mxu0 0.0
      %2783 = vmatmul.mubr.f32.gmra.mrb[0].mxu0 %v2565
      %v2784 = vpop.f32.mrb[0].mxu0
      %v2785 = vadd.f32 0.0, %v2784
      %v2786 = vpop.f32.mrb[0].mxu0
      %2787 = vmatprep.mubr.f32.mxu0 0.0
      %2788 = vmatmul.mubr.f32.gmra.mrb[0].mxu0 %v2568
      %v2789 = vpop.f32.mrb[0].mxu0
      %v2790 = vadd.f32 0.0, %v2789
      %v2791 = vpop.f32.mrb[0].mxu0
      %2792 = vmatprep.mubr.f32.mxu0 0.0
      %2793 = vmatmul.mubr.f32.gmra.mrb[0].mxu0 %v2571
      %v2794 = vpop.f32.mrb[0].mxu0
      %v2795 = vadd.f32 0.0, %v2794
      %v2796 = vpop.f32.mrb[0].mxu0
      %2797 = vmatprep.mubr.f32.mxu0 0.0
      %2798 = vmatmul.mubr.f32.gmra.mrb[0].mxu0 %v2574
      %v2799 = vpop.f32.mrb[0].mxu0
      %v2800 = vadd.f32 0.0, %v2799
      %v2801 = vpop.f32.mrb[0].mxu0
      %2802 = vmatprep.mubr.f32.mxu0 0.0
      %2803 = vmatmul.mubr.f32.gmra.mrb[0].mxu0 %v2577
      %v2804 = vpop.f32.mrb[0].mxu0
      %v2805 = vadd.f32 0.0, %v2804
      %v2806 = vpop.f32.mrb[0].mxu0
      %2807 = vmatprep.mubr.f32.mxu0 0.0
      %2808 = vmatmul.mubr.f32.gmra.mrb[0].mxu0 %v2580
      %v2809 = vpop.f32.mrb[0].mxu0
      %v2810 = vadd.f32 0.0, %v2809
      %v2811 = vpop.f32.mrb[0].mxu0
      %2812 = vmatprep.mubr.f32.mxu0 0.0
      %2813 = vmatmul.mubr.f32.gmra.mrb[0].mxu0 %v2583
      %v2814 = vpop.f32.mrb[0].mxu0
      %v2815 = vadd.f32 0.0, %v2814
      %v2816 = vpop.f32.mrb[0].mxu0
      %2817 = vmatprep.mubr.f32.mxu0 0.0
      %2818 = vmatmul.mubr.f32.gmra.mrb[0].mxu0 %v2586
      %v2819 = vpop.f32.mrb[0].mxu0
      %v2820 = vadd.f32 0.0, %v2819
      %v2821 = vpop.f32.mrb[0].mxu0
      %2822 = vmatprep.mubr.f32.mxu0 0.0
      %2823 = vmatmul.mubr.f32.gmra.mrb[0].mxu0 %v2589
      %v2824 = vpop.f32.mrb[0].mxu0
      %v2825 = vadd.f32 0.0, %v2824
      %v2826 = vpop.f32.mrb[0].mxu0
      %2827 = vmatprep.mubr.f32.mxu0 0.0
      %2828 = vmatmul.mubr.f32.gmra.mrb[0].mxu0 %v2592
      %v2829 = vpop.f32.mrb[0].mxu0
      %v2830 = vadd.f32 0.0, %v2829
      %v2831 = vpop.f32.mrb[0].mxu0
      %2832 = vmatprep.mubr.f32.mxu0 0.0
      %2833 = vmatmul.mubr.f32.gmra.mrb[0].mxu0 %v2595
      %v2834 = vpop.f32.mrb[0].mxu0
      %v2835 = vadd.f32 0.0, %v2834
      %v2836 = vpop.f32.mrb[0].mxu0
      %2837 = vmatprep.mubr.f32.mxu0 0.0
      %2838 = vmatmul.mubr.f32.gmra.mrb[0].mxu0 %v2598
      %v2839 = vpop.f32.mrb[0].mxu0
      %v2840 = vadd.f32 0.0, %v2839
      %v2841 = vpop.f32.mrb[0].mxu0
      %2842 = vmatprep.mubr.f32.mxu0 0.0
      %2843 = vmatmul.mubr.f32.gmra.mrb[0].mxu0 %v2601
      %v2844 = vpop.f32.mrb[0].mxu0
      %v2845 = vadd.f32 0.0, %v2844
      %v2846 = vpop.f32.mrb[0].mxu0
      %2847 = vdwg.mxu0
      %v2849 = vsel %vm2343, %v2420, 0
      %v2852 = vsel %vm2343, %v2421, 0
      %v2855 = vsel %vm2343, %v2422, 0
      %v2858 = vsel %vm2343, %v2423, 0
      %v2861 = vsel %vm2343, %v2424, 0
      %v2864 = vsel %vm2343, %v2425, 0
      %v2867 = vsel %vm2343, %v2426, 0
      %v2870 = vsel %vm2343, %v2427, 0
      %v2873 = vsel %vm2343, %v2428, 0
      %v2876 = vsel %vm2343, %v2429, 0
      %v2879 = vsel %vm2343, %v2430, 0
      %v2882 = vsel %vm2343, %v2431, 0
      %v2885 = vsel %vm2343, %v2432, 0
      %v2888 = vsel %vm2343, %v2433, 0
      %v2891 = vsel %vm2343, %v2434, 0
      %v2894 = vsel %vm2343, %v2435, 0
      %v2897 = vsel %vm2343, %v2436, 0
      %v2900 = vsel %vm2343, %v2437, 0
      %v2903 = vsel %vm2343, %v2438, 0
      %v2906 = vsel %vm2343, %v2439, 0
      %v2909 = vsel %vm2343, %v2440, 0
      %v2912 = vsel %vm2343, %v2441, 0
      %v2915 = vsel %vm2343, %v2442, 0
      %v2918 = vsel %vm2343, %v2443, 0
      %v2921 = vsel %vm2343, %v2444, 0
      %v2924 = vsel %vm2343, %v2445, 0
      %v2927 = vsel %vm2343, %v2446, 0
      %v2930 = vsel %vm2343, %v2447, 0
      %v2933 = vsel %vm2343, %v2448, 0
      %v2936 = vsel %vm2343, %v2449, 0
      %v2939 = vsel %vm2343, %v2450, 0
      %v2942 = vsel %vm2343, %v2451, 0
      %v2945 = vsel %vm2343, %v2452, 0
      %v2948 = vsel %vm2343, %v2453, 0
      %v2951 = vsel %vm2343, %v2454, 0
      %v2954 = vsel %vm2343, %v2455, 0
      %2956 = vmatprep.subr.mxu0 0.0
      %2957 = vmatpush1.msra.mxu0 %v2456
      %2958 = vmatprep.subr.mxu0 0.0
      %2959 = vmatpush1.msra.mxu0 0.0
      %2960 = vmatprep.subr.mxu0 0.0
      %2961 = vmatpush1.msra.mxu0 0.0
      %2962 = vmatprep.subr.mxu0 0.0
      %2963 = vmatpush1.msra.mxu0 0.0
      %2964 = vmatprep.subr.mxu0 0.0
      %2965 = vmatpush1.msra.mxu0 0.0
      %2966 = vmatprep.subr.mxu0 0.0
      %2967 = vmatpush1.msra.mxu0 0.0
      %2968 = vmatprep.subr.mxu0 0.0
      %2969 = vmatpush1.msra.mxu0 0.0
      %2970 = vmatprep.subr.mxu0 0.0
      %2971 = vmatpush1.msra.mxu0 0.0
      %2972 = vmatprep.subr.mxu0 0.0
      %2973 = vmatpush1.msra.mxu0 0.0
      %2974 = vmatprep.subr.mxu0 0.0
      %2975 = vmatpush1.msra.mxu0 0.0
      %2976 = vmatprep.subr.mxu0 0.0
      %2977 = vmatpush1.msra.mxu0 0.0
      %2978 = vmatprep.subr.mxu0 0.0
      %2979 = vmatpush1.msra.mxu0 0.0
      %2980 = vmatprep.subr.mxu0 0.0
      %2981 = vmatpush1.msra.mxu0 0.0
      %2982 = vmatprep.subr.mxu0 0.0
      %2983 = vmatpush1.msra.mxu0 0.0
      %2984 = vmatprep.subr.mxu0 0.0
      %2985 = vmatpush1.msra.mxu0 0.0
      %2986 = vmatprep.subr.mxu0 0.0
      %2987 = vmatpush1.msra.mxu0 0.0
      %2988 = vmatprep.subr.mxu0 0.0
      %2989 = vmatpush1.msra.mxu0 0.0
      %2990 = vmatprep.subr.mxu0 0.0
      %2991 = vmatpush1.msra.mxu0 0.0
      %2992 = vmatprep.subr.mxu0 0.0
      %2993 = vmatpush1.msra.mxu0 0.0
      %2994 = vmatprep.subr.mxu0 0.0
      %2995 = vmatpush1.msra.mxu0 0.0
      %2996 = vmatprep.subr.mxu0 0.0
      %2997 = vmatpush1.msra.mxu0 0.0
      %2998 = vmatprep.subr.mxu0 0.0
      %2999 = vmatpush1.msra.mxu0 0.0
      %3000 = vmatprep.subr.mxu0 0.0
      %3001 = vmatpush1.msra.mxu0 0.0
      %3002 = vmatprep.subr.mxu0 0.0
      %3003 = vmatpush1.msra.mxu0 0.0
      %3004 = vmatprep.subr.mxu0 0.0
      %3005 = vmatpush1.msra.mxu0 0.0
      %3006 = vmatprep.subr.mxu0 0.0
      %3007 = vmatpush1.msra.mxu0 0.0
      %3008 = vmatprep.subr.mxu0 0.0
      %3009 = vmatpush1.msra.mxu0 0.0
      %3010 = vmatprep.subr.mxu0 0.0
      %3011 = vmatpush1.msra.mxu0 0.0
      %3012 = vmatprep.subr.mxu0 0.0
      %3013 = vmatpush1.msra.mxu0 0.0
      %3014 = vmatprep.subr.mxu0 0.0
      %3015 = vmatpush1.msra.mxu0 0.0
      %3016 = vmatprep.subr.mxu0 0.0
      %3017 = vmatpush1.msra.mxu0 0.0
      %3018 = vmatprep.subr.mxu0 0.0
      %3019 = vmatpush1.msra.mxu0 0.0
      %3020 = vmatprep.mubr.f32.mxu0 0.0
      %3021 = vmatmul.mubr.f32.gmra.mrb[0].mxu0 %v2849
      %v3022 = vpop.f32.mrb[0].mxu0
      %v3023 = vadd.f32 %v2670, %v3022
      %v3024 = vpop.f32.mrb[0].mxu0
      %3025 = vmatprep.mubr.f32.mxu0 0.0
      %3026 = vmatmul.mubr.f32.gmra.mrb[0].mxu0 %v2852
      %v3027 = vpop.f32.mrb[0].mxu0
      %v3028 = vadd.f32 %v2675, %v3027
      %v3029 = vpop.f32.mrb[0].mxu0
      %3030 = vmatprep.mubr.f32.mxu0 0.0
      %3031 = vmatmul.mubr.f32.gmra.mrb[0].mxu0 %v2855
      %v3032 = vpop.f32.mrb[0].mxu0
      %v3033 = vadd.f32 %v2680, %v3032
      %v3034 = vpop.f32.mrb[0].mxu0
      %3035 = vmatprep.mubr.f32.mxu0 0.0
      %3036 = vmatmul.mubr.f32.gmra.mrb[0].mxu0 %v2858
      %v3037 = vpop.f32.mrb[0].mxu0
      %v3038 = vadd.f32 %v2685, %v3037
      %v3039 = vpop.f32.mrb[0].mxu0
      %3040 = vmatprep.mubr.f32.mxu0 0.0
      %3041 = vmatmul.mubr.f32.gmra.mrb[0].mxu0 %v2861
      %v3042 = vpop.f32.mrb[0].mxu0
      %v3043 = vadd.f32 %v2690, %v3042
      %v3044 = vpop.f32.mrb[0].mxu0
      %3045 = vmatprep.mubr.f32.mxu0 0.0
      %3046 = vmatmul.mubr.f32.gmra.mrb[0].mxu0 %v2864
      %v3047 = vpop.f32.mrb[0].mxu0
      %v3048 = vadd.f32 %v2695, %v3047
      %v3049 = vpop.f32.mrb[0].mxu0
      %3050 = vmatprep.mubr.f32.mxu0 0.0
      %3051 = vmatmul.mubr.f32.gmra.mrb[0].mxu0 %v2867
      %v3052 = vpop.f32.mrb[0].mxu0
      %v3053 = vadd.f32 %v2700, %v3052
      %v3054 = vpop.f32.mrb[0].mxu0
      %3055 = vmatprep.mubr.f32.mxu0 0.0
      %3056 = vmatmul.mubr.f32.gmra.mrb[0].mxu0 %v2870
      %v3057 = vpop.f32.mrb[0].mxu0
      %v3058 = vadd.f32 %v2705, %v3057
      %v3059 = vpop.f32.mrb[0].mxu0
      %3060 = vmatprep.mubr.f32.mxu0 0.0
      %3061 = vmatmul.mubr.f32.gmra.mrb[0].mxu0 %v2873
      %v3062 = vpop.f32.mrb[0].mxu0
      %v3063 = vadd.f32 %v2710, %v3062
      %v3064 = vpop.f32.mrb[0].mxu0
      %3065 = vmatprep.mubr.f32.mxu0 0.0
      %3066 = vmatmul.mubr.f32.gmra.mrb[0].mxu0 %v2876
      %v3067 = vpop.f32.mrb[0].mxu0
      %v3068 = vadd.f32 %v2715, %v3067
      %v3069 = vpop.f32.mrb[0].mxu0
      %3070 = vmatprep.mubr.f32.mxu0 0.0
      %3071 = vmatmul.mubr.f32.gmra.mrb[0].mxu0 %v2879
      %v3072 = vpop.f32.mrb[0].mxu0
      %v3073 = vadd.f32 %v2720, %v3072
      %v3074 = vpop.f32.mrb[0].mxu0
      %3075 = vmatprep.mubr.f32.mxu0 0.0
      %3076 = vmatmul.mubr.f32.gmra.mrb[0].mxu0 %v2882
      %v3077 = vpop.f32.mrb[0].mxu0
      %v3078 = vadd.f32 %v2725, %v3077
      %v3079 = vpop.f32.mrb[0].mxu0
      %3080 = vmatprep.mubr.f32.mxu0 0.0
      %3081 = vmatmul.mubr.f32.gmra.mrb[0].mxu0 %v2885
      %v3082 = vpop.f32.mrb[0].mxu0
      %v3083 = vadd.f32 %v2730, %v3082
      %v3084 = vpop.f32.mrb[0].mxu0
      %3085 = vmatprep.mubr.f32.mxu0 0.0
      %3086 = vmatmul.mubr.f32.gmra.mrb[0].mxu0 %v2888
      %v3087 = vpop.f32.mrb[0].mxu0
      %v3088 = vadd.f32 %v2735, %v3087
      %v3089 = vpop.f32.mrb[0].mxu0
      %3090 = vmatprep.mubr.f32.mxu0 0.0
      %3091 = vmatmul.mubr.f32.gmra.mrb[0].mxu0 %v2891
      %v3092 = vpop.f32.mrb[0].mxu0
      %v3093 = vadd.f32 %v2740, %v3092
      %v3094 = vpop.f32.mrb[0].mxu0
      %3095 = vmatprep.mubr.f32.mxu0 0.0
      %3096 = vmatmul.mubr.f32.gmra.mrb[0].mxu0 %v2894
      %v3097 = vpop.f32.mrb[0].mxu0
      %v3098 = vadd.f32 %v2745, %v3097
      %v3099 = vpop.f32.mrb[0].mxu0
      %3100 = vmatprep.mubr.f32.mxu0 0.0
      %3101 = vmatmul.mubr.f32.gmra.mrb[0].mxu0 %v2897
      %v3102 = vpop.f32.mrb[0].mxu0
      %v3103 = vadd.f32 %v2750, %v3102
      %v3104 = vpop.f32.mrb[0].mxu0
      %3105 = vmatprep.mubr.f32.mxu0 0.0
      %3106 = vmatmul.mubr.f32.gmra.mrb[0].mxu0 %v2900
      %v3107 = vpop.f32.mrb[0].mxu0
      %v3108 = vadd.f32 %v2755, %v3107
      %v3109 = vpop.f32.mrb[0].mxu0
      %3110 = vmatprep.mubr.f32.mxu0 0.0
      %3111 = vmatmul.mubr.f32.gmra.mrb[0].mxu0 %v2903
      %v3112 = vpop.f32.mrb[0].mxu0
      %v3113 = vadd.f32 %v2760, %v3112
      %v3114 = vpop.f32.mrb[0].mxu0
      %3115 = vmatprep.mubr.f32.mxu0 0.0
      %3116 = vmatmul.mubr.f32.gmra.mrb[0].mxu0 %v2906
      %v3117 = vpop.f32.mrb[0].mxu0
      %v3118 = vadd.f32 %v2765, %v3117
      %v3119 = vpop.f32.mrb[0].mxu0
      %3120 = vmatprep.mubr.f32.mxu0 0.0
      %3121 = vmatmul.mubr.f32.gmra.mrb[0].mxu0 %v2909
      %v3122 = vpop.f32.mrb[0].mxu0
      %v3123 = vadd.f32 %v2770, %v3122
      %v3124 = vpop.f32.mrb[0].mxu0
      %3125 = vmatprep.mubr.f32.mxu0 0.0
      %3126 = vmatmul.mubr.f32.gmra.mrb[0].mxu0 %v2912
      %v3127 = vpop.f32.mrb[0].mxu0
      %v3128 = vadd.f32 %v2775, %v3127
      %v3129 = vpop.f32.mrb[0].mxu0
      %3130 = vmatprep.mubr.f32.mxu0 0.0
      %3131 = vmatmul.mubr.f32.gmra.mrb[0].mxu0 %v2915
      %v3132 = vpop.f32.mrb[0].mxu0
      %v3133 = vadd.f32 %v2780, %v3132
      %v3134 = vpop.f32.mrb[0].mxu0
      %3135 = vmatprep.mubr.f32.mxu0 0.0
      %3136 = vmatmul.mubr.f32.gmra.mrb[0].mxu0 %v2918
      %v3137 = vpop.f32.mrb[0].mxu0
      %v3138 = vadd.f32 %v2785, %v3137
      %v3139 = vpop.f32.mrb[0].mxu0
      %3140 = vmatprep.mubr.f32.mxu0 0.0
      %3141 = vmatmul.mubr.f32.gmra.mrb[0].mxu0 %v2921
      %v3142 = vpop.f32.mrb[0].mxu0
      %v3143 = vadd.f32 %v2790, %v3142
      %v3144 = vpop.f32.mrb[0].mxu0
      %3145 = vmatprep.mubr.f32.mxu0 0.0
      %3146 = vmatmul.mubr.f32.gmra.mrb[0].mxu0 %v2924
      %v3147 = vpop.f32.mrb[0].mxu0
      %v3148 = vadd.f32 %v2795, %v3147
      %v3149 = vpop.f32.mrb[0].mxu0
      %3150 = vmatprep.mubr.f32.mxu0 0.0
      %3151 = vmatmul.mubr.f32.gmra.mrb[0].mxu0 %v2927
      %v3152 = vpop.f32.mrb[0].mxu0
      %v3153 = vadd.f32 %v2800, %v3152
      %v3154 = vpop.f32.mrb[0].mxu0
      %3155 = vmatprep.mubr.f32.mxu0 0.0
      %3156 = vmatmul.mubr.f32.gmra.mrb[0].mxu0 %v2930
      %v3157 = vpop.f32.mrb[0].mxu0
      %v3158 = vadd.f32 %v2805, %v3157
      %v3159 = vpop.f32.mrb[0].mxu0
      %3160 = vmatprep.mubr.f32.mxu0 0.0
      %3161 = vmatmul.mubr.f32.gmra.mrb[0].mxu0 %v2933
      %v3162 = vpop.f32.mrb[0].mxu0
      %v3163 = vadd.f32 %v2810, %v3162
      %v3164 = vpop.f32.mrb[0].mxu0
      %3165 = vmatprep.mubr.f32.mxu0 0.0
      %3166 = vmatmul.mubr.f32.gmra.mrb[0].mxu0 %v2936
      %v3167 = vpop.f32.mrb[0].mxu0
      %v3168 = vadd.f32 %v2815, %v3167
      %v3169 = vpop.f32.mrb[0].mxu0
      %3170 = vmatprep.mubr.f32.mxu0 0.0
      %3171 = vmatmul.mubr.f32.gmra.mrb[0].mxu0 %v2939
      %v3172 = vpop.f32.mrb[0].mxu0
      %v3173 = vadd.f32 %v2820, %v3172
      %v3174 = vpop.f32.mrb[0].mxu0
      %3175 = vmatprep.mubr.f32.mxu0 0.0
      %3176 = vmatmul.mubr.f32.gmra.mrb[0].mxu0 %v2942
      %v3177 = vpop.f32.mrb[0].mxu0
      %v3178 = vadd.f32 %v2825, %v3177
      %v3179 = vpop.f32.mrb[0].mxu0
      %3180 = vmatprep.mubr.f32.mxu0 0.0
      %3181 = vmatmul.mubr.f32.gmra.mrb[0].mxu0 %v2945
      %v3182 = vpop.f32.mrb[0].mxu0
      %v3183 = vadd.f32 %v2830, %v3182
      %v3184 = vpop.f32.mrb[0].mxu0
      %3185 = vmatprep.mubr.f32.mxu0 0.0
      %3186 = vmatmul.mubr.f32.gmra.mrb[0].mxu0 %v2948
      %v3187 = vpop.f32.mrb[0].mxu0
      %v3188 = vadd.f32 %v2835, %v3187
      %v3189 = vpop.f32.mrb[0].mxu0
      %3190 = vmatprep.mubr.f32.mxu0 0.0
      %3191 = vmatmul.mubr.f32.gmra.mrb[0].mxu0 %v2951
      %v3192 = vpop.f32.mrb[0].mxu0
      %v3193 = vadd.f32 %v2840, %v3192
      %v3194 = vpop.f32.mrb[0].mxu0
      %3195 = vmatprep.mubr.f32.mxu0 0.0
      %3196 = vmatmul.mubr.f32.gmra.mrb[0].mxu0 %v2954
      %v3197 = vpop.f32.mrb[0].mxu0
      %v3198 = vadd.f32 %v2845, %v3197
      %v3199 = vpop.f32.mrb[0].mxu0
      %3200 = vdwg.mxu0
      %v3201 = vld [vmem:[#allocation2 + $0x2] sm:$0xff]
      %v3202 = vld [vmem:[#allocation2 + $0xa] sm:$0xff]
      %v3203 = vld [vmem:[#allocation2 + $0x12] sm:$0xff]
      %v3204 = vld [vmem:[#allocation2 + $0x1a] sm:$0xff]
      %v3205 = vld [vmem:[#allocation2 + $0x22] sm:$0xff]
      %v3206 = vld [vmem:[#allocation2 + $0x2a] sm:$0xff]
      %v3207 = vld [vmem:[#allocation2 + $0x32] sm:$0xff]
      %v3208 = vld [vmem:[#allocation2 + $0x3a] sm:$0xff]
      %v3209 = vld [vmem:[#allocation2 + $0x42] sm:$0xff]
      %v3210 = vld [vmem:[#allocation2 + $0x4a] sm:$0xff]
      %v3211 = vld [vmem:[#allocation2 + $0x52] sm:$0xff]
      %v3212 = vld [vmem:[#allocation2 + $0x5a] sm:$0xff]
      %v3213 = vld [vmem:[#allocation2 + $0x62] sm:$0xff]
      %v3214 = vld [vmem:[#allocation2 + $0x6a] sm:$0xff]
      %v3215 = vld [vmem:[#allocation2 + $0x72] sm:$0xff]
      %v3216 = vld [vmem:[#allocation2 + $0x7a] sm:$0xff]
      %v3217 = vld [vmem:[#allocation2 + $0x82] sm:$0xff]
      %v3218 = vld [vmem:[#allocation2 + $0x8a] sm:$0xff]
      %v3219 = vld [vmem:[#allocation2 + $0x92] sm:$0xff]
      %v3220 = vld [vmem:[#allocation2 + $0x9a] sm:$0xff]
      %v3221 = vld [vmem:[#allocation2 + $0xa2] sm:$0xff]
      %v3222 = vld [vmem:[#allocation2 + $0xaa] sm:$0xff]
      %v3223 = vld [vmem:[#allocation2 + $0xb2] sm:$0xff]
      %v3224 = vld [vmem:[#allocation2 + $0xba] sm:$0xff]
      %v3225 = vld [vmem:[#allocation2 + $0xc2] sm:$0xff]
      %v3226 = vld [vmem:[#allocation2 + $0xca] sm:$0xff]
      %v3227 = vld [vmem:[#allocation2 + $0xd2] sm:$0xff]
      %v3228 = vld [vmem:[#allocation2 + $0xda] sm:$0xff]
      %v3229 = vld [vmem:[#allocation2 + $0xe2] sm:$0xff]
      %v3230 = vld [vmem:[#allocation2 + $0xea] sm:$0xff]
      %v3231 = vld [vmem:[#allocation2 + $0xf2] sm:$0xff]
      %v3232 = vld [vmem:[#allocation2 + $0xfa] sm:$0xff]
      %v3233 = vld [vmem:[#allocation2 + $0x102] sm:$0xff]
      %v3234 = vld [vmem:[#allocation2 + $0x10a] sm:$0xff]
      %v3235 = vld [vmem:[#allocation2 + $0x112] sm:$0xff]
      %v3236 = vld [vmem:[#allocation2 + $0x11a] sm:$0xff]
      %s3237 = scalar_lea.vmem %s9, 16
      %v3238 = vld [vmem:[%s3237] sm:$0xff]
      %v3240 = vsel %vm2343, %v3201, 0
      %v3243 = vsel %vm2343, %v3202, 0
      %v3246 = vsel %vm2343, %v3203, 0
      %v3249 = vsel %vm2343, %v3204, 0
      %v3252 = vsel %vm2343, %v3205, 0
      %v3255 = vsel %vm2343, %v3206, 0
      %v3258 = vsel %vm2343, %v3207, 0
      %v3261 = vsel %vm2343, %v3208, 0
      %v3264 = vsel %vm2343, %v3209, 0
      %v3267 = vsel %vm2343, %v3210, 0
      %v3270 = vsel %vm2343, %v3211, 0
      %v3273 = vsel %vm2343, %v3212, 0
      %v3276 = vsel %vm2343, %v3213, 0
      %v3279 = vsel %vm2343, %v3214, 0
      %v3282 = vsel %vm2343, %v3215, 0
      %v3285 = vsel %vm2343, %v3216, 0
      %v3288 = vsel %vm2343, %v3217, 0
      %v3291 = vsel %vm2343, %v3218, 0
      %v3294 = vsel %vm2343, %v3219, 0
      %v3297 = vsel %vm2343, %v3220, 0
      %v3300 = vsel %vm2343, %v3221, 0
      %v3303 = vsel %vm2343, %v3222, 0
      %v3306 = vsel %vm2343, %v3223, 0
      %v3309 = vsel %vm2343, %v3224, 0
      %v3312 = vsel %vm2343, %v3225, 0
      %v3315 = vsel %vm2343, %v3226, 0
      %v3318 = vsel %vm2343, %v3227, 0
      %v3321 = vsel %vm2343, %v3228, 0
      %v3324 = vsel %vm2343, %v3229, 0
      %v3327 = vsel %vm2343, %v3230, 0
      %v3330 = vsel %vm2343, %v3231, 0
      %v3333 = vsel %vm2343, %v3232, 0
      %v3336 = vsel %vm2343, %v3233, 0
      %v3339 = vsel %vm2343, %v3234, 0
      %v3342 = vsel %vm2343, %v3235, 0
      %v3345 = vsel %vm2343, %v3236, 0
      %3347 = vmatprep.subr.mxu0 0.0
      %3348 = vmatpush1.msra.mxu0 %v3238
      %3349 = vmatprep.subr.mxu0 0.0
      %3350 = vmatpush1.msra.mxu0 0.0
      %3351 = vmatprep.subr.mxu0 0.0
      %3352 = vmatpush1.msra.mxu0 0.0
      %3353 = vmatprep.subr.mxu0 0.0
      %3354 = vmatpush1.msra.mxu0 0.0
      %3355 = vmatprep.subr.mxu0 0.0
      %3356 = vmatpush1.msra.mxu0 0.0
      %3357 = vmatprep.subr.mxu0 0.0
      %3358 = vmatpush1.msra.mxu0 0.0
      %3359 = vmatprep.subr.mxu0 0.0
      %3360 = vmatpush1.msra.mxu0 0.0
      %3361 = vmatprep.subr.mxu0 0.0
      %3362 = vmatpush1.msra.mxu0 0.0
      %3363 = vmatprep.subr.mxu0 0.0
      %3364 = vmatpush1.msra.mxu0 0.0
      %3365 = vmatprep.subr.mxu0 0.0
      %3366 = vmatpush1.msra.mxu0 0.0
      %3367 = vmatprep.subr.mxu0 0.0
      %3368 = vmatpush1.msra.mxu0 0.0
      %3369 = vmatprep.subr.mxu0 0.0
      %3370 = vmatpush1.msra.mxu0 0.0
      %3371 = vmatprep.subr.mxu0 0.0
      %3372 = vmatpush1.msra.mxu0 0.0
      %3373 = vmatprep.subr.mxu0 0.0
      %3374 = vmatpush1.msra.mxu0 0.0
      %3375 = vmatprep.subr.mxu0 0.0
      %3376 = vmatpush1.msra.mxu0 0.0
      %3377 = vmatprep.subr.mxu0 0.0
      %3378 = vmatpush1.msra.mxu0 0.0
      %3379 = vmatprep.subr.mxu0 0.0
      %3380 = vmatpush1.msra.mxu0 0.0
      %3381 = vmatprep.subr.mxu0 0.0
      %3382 = vmatpush1.msra.mxu0 0.0
      %3383 = vmatprep.subr.mxu0 0.0
      %3384 = vmatpush1.msra.mxu0 0.0
      %3385 = vmatprep.subr.mxu0 0.0
      %3386 = vmatpush1.msra.mxu0 0.0
      %3387 = vmatprep.subr.mxu0 0.0
      %3388 = vmatpush1.msra.mxu0 0.0
      %3389 = vmatprep.subr.mxu0 0.0
      %3390 = vmatpush1.msra.mxu0 0.0
      %3391 = vmatprep.subr.mxu0 0.0
      %3392 = vmatpush1.msra.mxu0 0.0
      %3393 = vmatprep.subr.mxu0 0.0
      %3394 = vmatpush1.msra.mxu0 0.0
      %3395 = vmatprep.subr.mxu0 0.0
      %3396 = vmatpush1.msra.mxu0 0.0
      %3397 = vmatprep.subr.mxu0 0.0
      %3398 = vmatpush1.msra.mxu0 0.0
      %3399 = vmatprep.subr.mxu0 0.0
      %3400 = vmatpush1.msra.mxu0 0.0
      %3401 = vmatprep.subr.mxu0 0.0
      %3402 = vmatpush1.msra.mxu0 0.0
      %3403 = vmatprep.subr.mxu0 0.0
      %3404 = vmatpush1.msra.mxu0 0.0
      %3405 = vmatprep.subr.mxu0 0.0
      %3406 = vmatpush1.msra.mxu0 0.0
      %3407 = vmatprep.subr.mxu0 0.0
      %3408 = vmatpush1.msra.mxu0 0.0
      %3409 = vmatprep.subr.mxu0 0.0
      %3410 = vmatpush1.msra.mxu0 0.0
      %3411 = vmatprep.mubr.f32.mxu0 0.0
      %3412 = vmatmul.mubr.f32.gmra.mrb[0].mxu0 %v3240
      %v3413 = vpop.f32.mrb[0].mxu0
      %v3414 = vadd.f32 0.0, %v3413
      %v3415 = vpop.f32.mrb[0].mxu0
      %3416 = vmatprep.mubr.f32.mxu0 0.0
      %3417 = vmatmul.mubr.f32.gmra.mrb[0].mxu0 %v3243
      %v3418 = vpop.f32.mrb[0].mxu0
      %v3419 = vadd.f32 0.0, %v3418
      %v3420 = vpop.f32.mrb[0].mxu0
      %3421 = vmatprep.mubr.f32.mxu0 0.0
      %3422 = vmatmul.mubr.f32.gmra.mrb[0].mxu0 %v3246
      %v3423 = vpop.f32.mrb[0].mxu0
      %v3424 = vadd.f32 0.0, %v3423
      %v3425 = vpop.f32.mrb[0].mxu0
      %3426 = vmatprep.mubr.f32.mxu0 0.0
      %3427 = vmatmul.mubr.f32.gmra.mrb[0].mxu0 %v3249
      %v3428 = vpop.f32.mrb[0].mxu0
      %v3429 = vadd.f32 0.0, %v3428
      %v3430 = vpop.f32.mrb[0].mxu0
      %3431 = vmatprep.mubr.f32.mxu0 0.0
      %3432 = vmatmul.mubr.f32.gmra.mrb[0].mxu0 %v3252
      %v3433 = vpop.f32.mrb[0].mxu0
      %v3434 = vadd.f32 0.0, %v3433
      %v3435 = vpop.f32.mrb[0].mxu0
      %3436 = vmatprep.mubr.f32.mxu0 0.0
      %3437 = vmatmul.mubr.f32.gmra.mrb[0].mxu0 %v3255
      %v3438 = vpop.f32.mrb[0].mxu0
      %v3439 = vadd.f32 0.0, %v3438
      %v3440 = vpop.f32.mrb[0].mxu0
      %3441 = vmatprep.mubr.f32.mxu0 0.0
      %3442 = vmatmul.mubr.f32.gmra.mrb[0].mxu0 %v3258
      %v3443 = vpop.f32.mrb[0].mxu0
      %v3444 = vadd.f32 0.0, %v3443
      %v3445 = vpop.f32.mrb[0].mxu0
      %3446 = vmatprep.mubr.f32.mxu0 0.0
      %3447 = vmatmul.mubr.f32.gmra.mrb[0].mxu0 %v3261
      %v3448 = vpop.f32.mrb[0].mxu0
      %v3449 = vadd.f32 0.0, %v3448
      %v3450 = vpop.f32.mrb[0].mxu0
      %3451 = vmatprep.mubr.f32.mxu0 0.0
      %3452 = vmatmul.mubr.f32.gmra.mrb[0].mxu0 %v3264
      %v3453 = vpop.f32.mrb[0].mxu0
      %v3454 = vadd.f32 0.0, %v3453
      %v3455 = vpop.f32.mrb[0].mxu0
      %3456 = vmatprep.mubr.f32.mxu0 0.0
      %3457 = vmatmul.mubr.f32.gmra.mrb[0].mxu0 %v3267
      %v3458 = vpop.f32.mrb[0].mxu0
      %v3459 = vadd.f32 0.0, %v3458
      %v3460 = vpop.f32.mrb[0].mxu0
      %3461 = vmatprep.mubr.f32.mxu0 0.0
      %3462 = vmatmul.mubr.f32.gmra.mrb[0].mxu0 %v3270
      %v3463 = vpop.f32.mrb[0].mxu0
      %v3464 = vadd.f32 0.0, %v3463
      %v3465 = vpop.f32.mrb[0].mxu0
      %3466 = vmatprep.mubr.f32.mxu0 0.0
      %3467 = vmatmul.mubr.f32.gmra.mrb[0].mxu0 %v3273
      %v3468 = vpop.f32.mrb[0].mxu0
      %v3469 = vadd.f32 0.0, %v3468
      %v3470 = vpop.f32.mrb[0].mxu0
      %3471 = vmatprep.mubr.f32.mxu0 0.0
      %3472 = vmatmul.mubr.f32.gmra.mrb[0].mxu0 %v3276
      %v3473 = vpop.f32.mrb[0].mxu0
      %v3474 = vadd.f32 0.0, %v3473
      %v3475 = vpop.f32.mrb[0].mxu0
      %3476 = vmatprep.mubr.f32.mxu0 0.0
      %3477 = vmatmul.mubr.f32.gmra.mrb[0].mxu0 %v3279
      %v3478 = vpop.f32.mrb[0].mxu0
      %v3479 = vadd.f32 0.0, %v3478
      %v3480 = vpop.f32.mrb[0].mxu0
      %3481 = vmatprep.mubr.f32.mxu0 0.0
      %3482 = vmatmul.mubr.f32.gmra.mrb[0].mxu0 %v3282
      %v3483 = vpop.f32.mrb[0].mxu0
      %v3484 = vadd.f32 0.0, %v3483
      %v3485 = vpop.f32.mrb[0].mxu0
      %3486 = vmatprep.mubr.f32.mxu0 0.0
      %3487 = vmatmul.mubr.f32.gmra.mrb[0].mxu0 %v3285
      %v3488 = vpop.f32.mrb[0].mxu0
      %v3489 = vadd.f32 0.0, %v3488
      %v3490 = vpop.f32.mrb[0].mxu0
      %3491 = vmatprep.mubr.f32.mxu0 0.0
      %3492 = vmatmul.mubr.f32.gmra.mrb[0].mxu0 %v3288
      %v3493 = vpop.f32.mrb[0].mxu0
      %v3494 = vadd.f32 0.0, %v3493
      %v3495 = vpop.f32.mrb[0].mxu0
      %3496 = vmatprep.mubr.f32.mxu0 0.0
      %3497 = vmatmul.mubr.f32.gmra.mrb[0].mxu0 %v3291
      %v3498 = vpop.f32.mrb[0].mxu0
      %v3499 = vadd.f32 0.0, %v3498
      %v3500 = vpop.f32.mrb[0].mxu0
      %3501 = vmatprep.mubr.f32.mxu0 0.0
      %3502 = vmatmul.mubr.f32.gmra.mrb[0].mxu0 %v3294
      %v3503 = vpop.f32.mrb[0].mxu0
      %v3504 = vadd.f32 0.0, %v3503
      %v3505 = vpop.f32.mrb[0].mxu0
      %3506 = vmatprep.mubr.f32.mxu0 0.0
      %3507 = vmatmul.mubr.f32.gmra.mrb[0].mxu0 %v3297
      %v3508 = vpop.f32.mrb[0].mxu0
      %v3509 = vadd.f32 0.0, %v3508
      %v3510 = vpop.f32.mrb[0].mxu0
      %3511 = vmatprep.mubr.f32.mxu0 0.0
      %3512 = vmatmul.mubr.f32.gmra.mrb[0].mxu0 %v3300
      %v3513 = vpop.f32.mrb[0].mxu0
      %v3514 = vadd.f32 0.0, %v3513
      %v3515 = vpop.f32.mrb[0].mxu0
      %3516 = vmatprep.mubr.f32.mxu0 0.0
      %3517 = vmatmul.mubr.f32.gmra.mrb[0].mxu0 %v3303
      %v3518 = vpop.f32.mrb[0].mxu0
      %v3519 = vadd.f32 0.0, %v3518
      %v3520 = vpop.f32.mrb[0].mxu0
      %3521 = vmatprep.mubr.f32.mxu0 0.0
      %3522 = vmatmul.mubr.f32.gmra.mrb[0].mxu0 %v3306
      %v3523 = vpop.f32.mrb[0].mxu0
      %v3524 = vadd.f32 0.0, %v3523
      %v3525 = vpop.f32.mrb[0].mxu0
      %3526 = vmatprep.mubr.f32.mxu0 0.0
      %3527 = vmatmul.mubr.f32.gmra.mrb[0].mxu0 %v3309
      %v3528 = vpop.f32.mrb[0].mxu0
      %v3529 = vadd.f32 0.0, %v3528
      %v3530 = vpop.f32.mrb[0].mxu0
      %3531 = vmatprep.mubr.f32.mxu0 0.0
      %3532 = vmatmul.mubr.f32.gmra.mrb[0].mxu0 %v3312
      %v3533 = vpop.f32.mrb[0].mxu0
      %v3534 = vadd.f32 0.0, %v3533
      %v3535 = vpop.f32.mrb[0].mxu0
      %3536 = vmatprep.mubr.f32.mxu0 0.0
      %3537 = vmatmul.mubr.f32.gmra.mrb[0].mxu0 %v3315
      %v3538 = vpop.f32.mrb[0].mxu0
      %v3539 = vadd.f32 0.0, %v3538
      %v3540 = vpop.f32.mrb[0].mxu0
      %3541 = vmatprep.mubr.f32.mxu0 0.0
      %3542 = vmatmul.mubr.f32.gmra.mrb[0].mxu0 %v3318
      %v3543 = vpop.f32.mrb[0].mxu0
      %v3544 = vadd.f32 0.0, %v3543
      %v3545 = vpop.f32.mrb[0].mxu0
      %3546 = vmatprep.mubr.f32.mxu0 0.0
      %3547 = vmatmul.mubr.f32.gmra.mrb[0].mxu0 %v3321
      %v3548 = vpop.f32.mrb[0].mxu0
      %v3549 = vadd.f32 0.0, %v3548
      %v3550 = vpop.f32.mrb[0].mxu0
      %3551 = vmatprep.mubr.f32.mxu0 0.0
      %3552 = vmatmul.mubr.f32.gmra.mrb[0].mxu0 %v3324
      %v3553 = vpop.f32.mrb[0].mxu0
      %v3554 = vadd.f32 0.0, %v3553
      %v3555 = vpop.f32.mrb[0].mxu0
      %3556 = vmatprep.mubr.f32.mxu0 0.0
      %3557 = vmatmul.mubr.f32.gmra.mrb[0].mxu0 %v3327
      %v3558 = vpop.f32.mrb[0].mxu0
      %v3559 = vadd.f32 0.0, %v3558
      %v3560 = vpop.f32.mrb[0].mxu0
      %3561 = vmatprep.mubr.f32.mxu0 0.0
      %3562 = vmatmul.mubr.f32.gmra.mrb[0].mxu0 %v3330
      %v3563 = vpop.f32.mrb[0].mxu0
      %v3564 = vadd.f32 0.0, %v3563
      %v3565 = vpop.f32.mrb[0].mxu0
      %3566 = vmatprep.mubr.f32.mxu0 0.0
      %3567 = vmatmul.mubr.f32.gmra.mrb[0].mxu0 %v3333
      %v3568 = vpop.f32.mrb[0].mxu0
      %v3569 = vadd.f32 0.0, %v3568
      %v3570 = vpop.f32.mrb[0].mxu0
      %3571 = vmatprep.mubr.f32.mxu0 0.0
      %3572 = vmatmul.mubr.f32.gmra.mrb[0].mxu0 %v3336
      %v3573 = vpop.f32.mrb[0].mxu0
      %v3574 = vadd.f32 0.0, %v3573
      %v3575 = vpop.f32.mrb[0].mxu0
      %3576 = vmatprep.mubr.f32.mxu0 0.0
      %3577 = vmatmul.mubr.f32.gmra.mrb[0].mxu0 %v3339
      %v3578 = vpop.f32.mrb[0].mxu0
      %v3579 = vadd.f32 0.0, %v3578
      %v3580 = vpop.f32.mrb[0].mxu0
      %3581 = vmatprep.mubr.f32.mxu0 0.0
      %3582 = vmatmul.mubr.f32.gmra.mrb[0].mxu0 %v3342
      %v3583 = vpop.f32.mrb[0].mxu0
      %v3584 = vadd.f32 0.0, %v3583
      %v3585 = vpop.f32.mrb[0].mxu0
      %3586 = vmatprep.mubr.f32.mxu0 0.0
      %3587 = vmatmul.mubr.f32.gmra.mrb[0].mxu0 %v3345
      %v3588 = vpop.f32.mrb[0].mxu0
      %v3589 = vadd.f32 0.0, %v3588
      %v3590 = vpop.f32.mrb[0].mxu0
      %3591 = vdwg.mxu0
      %v3592 = vadd.f32 %v3023, %v3414
      %v3593 = vadd.f32 %v3028, %v3419
      %v3594 = vadd.f32 %v3033, %v3424
      %v3595 = vadd.f32 %v3038, %v3429
      %v3596 = vadd.f32 %v3043, %v3434
      %v3597 = vadd.f32 %v3048, %v3439
      %v3598 = vadd.f32 %v3053, %v3444
      %v3599 = vadd.f32 %v3058, %v3449
      %v3600 = vadd.f32 %v3063, %v3454
      %v3601 = vadd.f32 %v3068, %v3459
      %v3602 = vadd.f32 %v3073, %v3464
      %v3603 = vadd.f32 %v3078, %v3469
      %v3604 = vadd.f32 %v3083, %v3474
      %v3605 = vadd.f32 %v3088, %v3479
      %v3606 = vadd.f32 %v3093, %v3484
      %v3607 = vadd.f32 %v3098, %v3489
      %v3608 = vadd.f32 %v3103, %v3494
      %v3609 = vadd.f32 %v3108, %v3499
      %v3610 = vadd.f32 %v3113, %v3504
      %v3611 = vadd.f32 %v3118, %v3509
      %v3612 = vadd.f32 %v3123, %v3514
      %v3613 = vadd.f32 %v3128, %v3519
      %v3614 = vadd.f32 %v3133, %v3524
      %v3615 = vadd.f32 %v3138, %v3529
      %v3616 = vadd.f32 %v3143, %v3534
      %v3617 = vadd.f32 %v3148, %v3539
      %v3618 = vadd.f32 %v3153, %v3544
      %v3619 = vadd.f32 %v3158, %v3549
      %v3620 = vadd.f32 %v3163, %v3554
      %v3621 = vadd.f32 %v3168, %v3559
      %v3622 = vadd.f32 %v3173, %v3564
      %v3623 = vadd.f32 %v3178, %v3569
      %v3624 = vadd.f32 %v3183, %v3574
      %v3625 = vadd.f32 %v3188, %v3579
      %v3626 = vadd.f32 %v3193, %v3584
      %v3627 = vadd.f32 %v3198, %v3589
      %v3628 = vld [vmem:[#allocation2 + $0x12] sm:$0xff]
      %v3629 = vld [vmem:[#allocation2 + $0x1a] sm:$0xff]
      %v3630 = vld [vmem:[#allocation2 + $0x22] sm:$0xff]
      %v3631 = vld [vmem:[#allocation2 + $0x2a] sm:$0xff]
      %v3632 = vld [vmem:[#allocation2 + $0x32] sm:$0xff]
      %v3633 = vld [vmem:[#allocation2 + $0x3a] sm:$0xff]
      %v3634 = vld [vmem:[#allocation2 + $0x42] sm:$0xff]
      %v3635 = vld [vmem:[#allocation2 + $0x4a] sm:$0xff]
      %v3636 = vld [vmem:[#allocation2 + $0x52] sm:$0xff]
      %v3637 = vld [vmem:[#allocation2 + $0x5a] sm:$0xff]
      %v3638 = vld [vmem:[#allocation2 + $0x62] sm:$0xff]
      %v3639 = vld [vmem:[#allocation2 + $0x6a] sm:$0xff]
      %v3640 = vld [vmem:[#allocation2 + $0x72] sm:$0xff]
      %v3641 = vld [vmem:[#allocation2 + $0x7a] sm:$0xff]
      %v3642 = vld [vmem:[#allocation2 + $0x82] sm:$0xff]
      %v3643 = vld [vmem:[#allocation2 + $0x8a] sm:$0xff]
      %v3644 = vld [vmem:[#allocation2 + $0x92] sm:$0xff]
      %v3645 = vld [vmem:[#allocation2 + $0x9a] sm:$0xff]
      %v3646 = vld [vmem:[#allocation2 + $0xa2] sm:$0xff]
      %v3647 = vld [vmem:[#allocation2 + $0xaa] sm:$0xff]
      %v3648 = vld [vmem:[#allocation2 + $0xb2] sm:$0xff]
      %v3649 = vld [vmem:[#allocation2 + $0xba] sm:$0xff]
      %v3650 = vld [vmem:[#allocation2 + $0xc2] sm:$0xff]
      %v3651 = vld [vmem:[#allocation2 + $0xca] sm:$0xff]
      %v3652 = vld [vmem:[#allocation2 + $0xd2] sm:$0xff]
      %v3653 = vld [vmem:[#allocation2 + $0xda] sm:$0xff]
      %v3654 = vld [vmem:[#allocation2 + $0xe2] sm:$0xff]
      %v3655 = vld [vmem:[#allocation2 + $0xea] sm:$0xff]
      %v3656 = vld [vmem:[#allocation2 + $0xf2] sm:$0xff]
      %v3657 = vld [vmem:[#allocation2 + $0xfa] sm:$0xff]
      %v3658 = vld [vmem:[#allocation2 + $0x102] sm:$0xff]
      %v3659 = vld [vmem:[#allocation2 + $0x10a] sm:$0xff]
      %v3660 = vld [vmem:[#allocation2 + $0x112] sm:$0xff]
      %v3661 = vld [vmem:[#allocation2 + $0x11a] sm:$0xff]
      %v3662 = vld [vmem:[#allocation2 + $0x122] sm:$0xff]
      %v3663 = vld [vmem:[#allocation2 + $0x12a] sm:$0xff]
      %s3664 = scalar_lea.vmem %s9, 24
      %v3665 = vld [vmem:[%s3664] sm:$0xff]
      %v3667 = vsel %vm2343, %v3628, 0
      %v3670 = vsel %vm2343, %v3629, 0
      %v3673 = vsel %vm2343, %v3630, 0
      %v3676 = vsel %vm2343, %v3631, 0
      %v3679 = vsel %vm2343, %v3632, 0
      %v3682 = vsel %vm2343, %v3633, 0
      %v3685 = vsel %vm2343, %v3634, 0
      %v3688 = vsel %vm2343, %v3635, 0
      %v3691 = vsel %vm2343, %v3636, 0
      %v3694 = vsel %vm2343, %v3637, 0
      %v3697 = vsel %vm2343, %v3638, 0
      %v3700 = vsel %vm2343, %v3639, 0
      %v3703 = vsel %vm2343, %v3640, 0
      %v3706 = vsel %vm2343, %v3641, 0
      %v3709 = vsel %vm2343, %v3642, 0
      %v3712 = vsel %vm2343, %v3643, 0
      %v3715 = vsel %vm2343, %v3644, 0
      %v3718 = vsel %vm2343, %v3645, 0
      %v3721 = vsel %vm2343, %v3646, 0
      %v3724 = vsel %vm2343, %v3647, 0
      %v3727 = vsel %vm2343, %v3648, 0
      %v3730 = vsel %vm2343, %v3649, 0
      %v3733 = vsel %vm2343, %v3650, 0
      %v3736 = vsel %vm2343, %v3651, 0
      %v3739 = vsel %vm2343, %v3652, 0
      %v3742 = vsel %vm2343, %v3653, 0
      %v3745 = vsel %vm2343, %v3654, 0
      %v3748 = vsel %vm2343, %v3655, 0
      %v3751 = vsel %vm2343, %v3656, 0
      %v3754 = vsel %vm2343, %v3657, 0
      %v3757 = vsel %vm2343, %v3658, 0
      %v3760 = vsel %vm2343, %v3659, 0
      %v3763 = vsel %vm2343, %v3660, 0
      %v3766 = vsel %vm2343, %v3661, 0
      %v3769 = vsel %vm2343, %v3662, 0
      %v3772 = vsel %vm2343, %v3663, 0
      %3774 = vmatprep.subr.mxu0 0.0
      %3775 = vmatpush1.msra.mxu0 %v3665
      %3776 = vmatprep.subr.mxu0 0.0
      %3777 = vmatpush1.msra.mxu0 0.0
      %3778 = vmatprep.subr.mxu0 0.0
      %3779 = vmatpush1.msra.mxu0 0.0
      %3780 = vmatprep.subr.mxu0 0.0
      %3781 = vmatpush1.msra.mxu0 0.0
      %3782 = vmatprep.subr.mxu0 0.0
      %3783 = vmatpush1.msra.mxu0 0.0
      %3784 = vmatprep.subr.mxu0 0.0
      %3785 = vmatpush1.msra.mxu0 0.0
      %3786 = vmatprep.subr.mxu0 0.0
      %3787 = vmatpush1.msra.mxu0 0.0
      %3788 = vmatprep.subr.mxu0 0.0
      %3789 = vmatpush1.msra.mxu0 0.0
      %3790 = vmatprep.subr.mxu0 0.0
      %3791 = vmatpush1.msra.mxu0 0.0
      %3792 = vmatprep.subr.mxu0 0.0
      %3793 = vmatpush1.msra.mxu0 0.0
      %3794 = vmatprep.subr.mxu0 0.0
      %3795 = vmatpush1.msra.mxu0 0.0
      %3796 = vmatprep.subr.mxu0 0.0
      %3797 = vmatpush1.msra.mxu0 0.0
      %3798 = vmatprep.subr.mxu0 0.0
      %3799 = vmatpush1.msra.mxu0 0.0
      %3800 = vmatprep.subr.mxu0 0.0
      %3801 = vmatpush1.msra.mxu0 0.0
      %3802 = vmatprep.subr.mxu0 0.0
      %3803 = vmatpush1.msra.mxu0 0.0
      %3804 = vmatprep.subr.mxu0 0.0
      %3805 = vmatpush1.msra.mxu0 0.0
      %3806 = vmatprep.subr.mxu0 0.0
      %3807 = vmatpush1.msra.mxu0 0.0
      %3808 = vmatprep.subr.mxu0 0.0
      %3809 = vmatpush1.msra.mxu0 0.0
      %3810 = vmatprep.subr.mxu0 0.0
      %3811 = vmatpush1.msra.mxu0 0.0
      %3812 = vmatprep.subr.mxu0 0.0
      %3813 = vmatpush1.msra.mxu0 0.0
      %3814 = vmatprep.subr.mxu0 0.0
      %3815 = vmatpush1.msra.mxu0 0.0
      %3816 = vmatprep.subr.mxu0 0.0
      %3817 = vmatpush1.msra.mxu0 0.0
      %3818 = vmatprep.subr.mxu0 0.0
      %3819 = vmatpush1.msra.mxu0 0.0
      %3820 = vmatprep.subr.mxu0 0.0
      %3821 = vmatpush1.msra.mxu0 0.0
      %3822 = vmatprep.subr.mxu0 0.0
      %3823 = vmatpush1.msra.mxu0 0.0
      %3824 = vmatprep.subr.mxu0 0.0
      %3825 = vmatpush1.msra.mxu0 0.0
      %3826 = vmatprep.subr.mxu0 0.0
      %3827 = vmatpush1.msra.mxu0 0.0
      %3828 = vmatprep.subr.mxu0 0.0
      %3829 = vmatpush1.msra.mxu0 0.0
      %3830 = vmatprep.subr.mxu0 0.0
      %3831 = vmatpush1.msra.mxu0 0.0
      %3832 = vmatprep.subr.mxu0 0.0
      %3833 = vmatpush1.msra.mxu0 0.0
      %3834 = vmatprep.subr.mxu0 0.0
      %3835 = vmatpush1.msra.mxu0 0.0
      %3836 = vmatprep.subr.mxu0 0.0
      %3837 = vmatpush1.msra.mxu0 0.0
      %3838 = vmatprep.mubr.f32.mxu0 0.0
      %3839 = vmatmul.mubr.f32.gmra.mrb[0].mxu0 %v3667
      %v3840 = vpop.f32.mrb[0].mxu0
      %v3841 = vadd.f32 0.0, %v3840
      %v3842 = vpop.f32.mrb[0].mxu0
      %3843 = vmatprep.mubr.f32.mxu0 0.0
      %3844 = vmatmul.mubr.f32.gmra.mrb[0].mxu0 %v3670
      %v3845 = vpop.f32.mrb[0].mxu0
      %v3846 = vadd.f32 0.0, %v3845
      %v3847 = vpop.f32.mrb[0].mxu0
      %3848 = vmatprep.mubr.f32.mxu0 0.0
      %3849 = vmatmul.mubr.f32.gmra.mrb[0].mxu0 %v3673
      %v3850 = vpop.f32.mrb[0].mxu0
      %v3851 = vadd.f32 0.0, %v3850
      %v3852 = vpop.f32.mrb[0].mxu0
      %3853 = vmatprep.mubr.f32.mxu0 0.0
      %3854 = vmatmul.mubr.f32.gmra.mrb[0].mxu0 %v3676
      %v3855 = vpop.f32.mrb[0].mxu0
      %v3856 = vadd.f32 0.0, %v3855
      %v3857 = vpop.f32.mrb[0].mxu0
      %3858 = vmatprep.mubr.f32.mxu0 0.0
      %3859 = vmatmul.mubr.f32.gmra.mrb[0].mxu0 %v3679
      %v3860 = vpop.f32.mrb[0].mxu0
      %v3861 = vadd.f32 0.0, %v3860
      %v3862 = vpop.f32.mrb[0].mxu0
      %3863 = vmatprep.mubr.f32.mxu0 0.0
      %3864 = vmatmul.mubr.f32.gmra.mrb[0].mxu0 %v3682
      %v3865 = vpop.f32.mrb[0].mxu0
      %v3866 = vadd.f32 0.0, %v3865
      %v3867 = vpop.f32.mrb[0].mxu0
      %3868 = vmatprep.mubr.f32.mxu0 0.0
      %3869 = vmatmul.mubr.f32.gmra.mrb[0].mxu0 %v3685
      %v3870 = vpop.f32.mrb[0].mxu0
      %v3871 = vadd.f32 0.0, %v3870
      %v3872 = vpop.f32.mrb[0].mxu0
      %3873 = vmatprep.mubr.f32.mxu0 0.0
      %3874 = vmatmul.mubr.f32.gmra.mrb[0].mxu0 %v3688
      %v3875 = vpop.f32.mrb[0].mxu0
      %v3876 = vadd.f32 0.0, %v3875
      %v3877 = vpop.f32.mrb[0].mxu0
      %3878 = vmatprep.mubr.f32.mxu0 0.0
      %3879 = vmatmul.mubr.f32.gmra.mrb[0].mxu0 %v3691
      %v3880 = vpop.f32.mrb[0].mxu0
      %v3881 = vadd.f32 0.0, %v3880
      %v3882 = vpop.f32.mrb[0].mxu0
      %3883 = vmatprep.mubr.f32.mxu0 0.0
      %3884 = vmatmul.mubr.f32.gmra.mrb[0].mxu0 %v3694
      %v3885 = vpop.f32.mrb[0].mxu0
      %v3886 = vadd.f32 0.0, %v3885
      %v3887 = vpop.f32.mrb[0].mxu0
      %3888 = vmatprep.mubr.f32.mxu0 0.0
      %3889 = vmatmul.mubr.f32.gmra.mrb[0].mxu0 %v3697
      %v3890 = vpop.f32.mrb[0].mxu0
      %v3891 = vadd.f32 0.0, %v3890
      %v3892 = vpop.f32.mrb[0].mxu0
      %3893 = vmatprep.mubr.f32.mxu0 0.0
      %3894 = vmatmul.mubr.f32.gmra.mrb[0].mxu0 %v3700
      %v3895 = vpop.f32.mrb[0].mxu0
      %v3896 = vadd.f32 0.0, %v3895
      %v3897 = vpop.f32.mrb[0].mxu0
      %3898 = vmatprep.mubr.f32.mxu0 0.0
      %3899 = vmatmul.mubr.f32.gmra.mrb[0].mxu0 %v3703
      %v3900 = vpop.f32.mrb[0].mxu0
      %v3901 = vadd.f32 0.0, %v3900
      %v3902 = vpop.f32.mrb[0].mxu0
      %3903 = vmatprep.mubr.f32.mxu0 0.0
      %3904 = vmatmul.mubr.f32.gmra.mrb[0].mxu0 %v3706
      %v3905 = vpop.f32.mrb[0].mxu0
      %v3906 = vadd.f32 0.0, %v3905
      %v3907 = vpop.f32.mrb[0].mxu0
      %3908 = vmatprep.mubr.f32.mxu0 0.0
      %3909 = vmatmul.mubr.f32.gmra.mrb[0].mxu0 %v3709
      %v3910 = vpop.f32.mrb[0].mxu0
      %v3911 = vadd.f32 0.0, %v3910
      %v3912 = vpop.f32.mrb[0].mxu0
      %3913 = vmatprep.mubr.f32.mxu0 0.0
      %3914 = vmatmul.mubr.f32.gmra.mrb[0].mxu0 %v3712
      %v3915 = vpop.f32.mrb[0].mxu0
      %v3916 = vadd.f32 0.0, %v3915
      %v3917 = vpop.f32.mrb[0].mxu0
      %3918 = vmatprep.mubr.f32.mxu0 0.0
      %3919 = vmatmul.mubr.f32.gmra.mrb[0].mxu0 %v3715
      %v3920 = vpop.f32.mrb[0].mxu0
      %v3921 = vadd.f32 0.0, %v3920
      %v3922 = vpop.f32.mrb[0].mxu0
      %3923 = vmatprep.mubr.f32.mxu0 0.0
      %3924 = vmatmul.mubr.f32.gmra.mrb[0].mxu0 %v3718
      %v3925 = vpop.f32.mrb[0].mxu0
      %v3926 = vadd.f32 0.0, %v3925
      %v3927 = vpop.f32.mrb[0].mxu0
      %3928 = vmatprep.mubr.f32.mxu0 0.0
      %3929 = vmatmul.mubr.f32.gmra.mrb[0].mxu0 %v3721
      %v3930 = vpop.f32.mrb[0].mxu0
      %v3931 = vadd.f32 0.0, %v3930
      %v3932 = vpop.f32.mrb[0].mxu0
      %3933 = vmatprep.mubr.f32.mxu0 0.0
      %3934 = vmatmul.mubr.f32.gmra.mrb[0].mxu0 %v3724
      %v3935 = vpop.f32.mrb[0].mxu0
      %v3936 = vadd.f32 0.0, %v3935
      %v3937 = vpop.f32.mrb[0].mxu0
      %3938 = vmatprep.mubr.f32.mxu0 0.0
      %3939 = vmatmul.mubr.f32.gmra.mrb[0].mxu0 %v3727
      %v3940 = vpop.f32.mrb[0].mxu0
      %v3941 = vadd.f32 0.0, %v3940
      %v3942 = vpop.f32.mrb[0].mxu0
      %3943 = vmatprep.mubr.f32.mxu0 0.0
      %3944 = vmatmul.mubr.f32.gmra.mrb[0].mxu0 %v3730
      %v3945 = vpop.f32.mrb[0].mxu0
      %v3946 = vadd.f32 0.0, %v3945
      %v3947 = vpop.f32.mrb[0].mxu0
      %3948 = vmatprep.mubr.f32.mxu0 0.0
      %3949 = vmatmul.mubr.f32.gmra.mrb[0].mxu0 %v3733
      %v3950 = vpop.f32.mrb[0].mxu0
      %v3951 = vadd.f32 0.0, %v3950
      %v3952 = vpop.f32.mrb[0].mxu0
      %3953 = vmatprep.mubr.f32.mxu0 0.0
      %3954 = vmatmul.mubr.f32.gmra.mrb[0].mxu0 %v3736
      %v3955 = vpop.f32.mrb[0].mxu0
      %v3956 = vadd.f32 0.0, %v3955
      %v3957 = vpop.f32.mrb[0].mxu0
      %3958 = vmatprep.mubr.f32.mxu0 0.0
      %3959 = vmatmul.mubr.f32.gmra.mrb[0].mxu0 %v3739
      %v3960 = vpop.f32.mrb[0].mxu0
      %v3961 = vadd.f32 0.0, %v3960
      %v3962 = vpop.f32.mrb[0].mxu0
      %3963 = vmatprep.mubr.f32.mxu0 0.0
      %3964 = vmatmul.mubr.f32.gmra.mrb[0].mxu0 %v3742
      %v3965 = vpop.f32.mrb[0].mxu0
      %v3966 = vadd.f32 0.0, %v3965
      %v3967 = vpop.f32.mrb[0].mxu0
      %3968 = vmatprep.mubr.f32.mxu0 0.0
      %3969 = vmatmul.mubr.f32.gmra.mrb[0].mxu0 %v3745
      %v3970 = vpop.f32.mrb[0].mxu0
      %v3971 = vadd.f32 0.0, %v3970
      %v3972 = vpop.f32.mrb[0].mxu0
      %3973 = vmatprep.mubr.f32.mxu0 0.0
      %3974 = vmatmul.mubr.f32.gmra.mrb[0].mxu0 %v3748
      %v3975 = vpop.f32.mrb[0].mxu0
      %v3976 = vadd.f32 0.0, %v3975
      %v3977 = vpop.f32.mrb[0].mxu0
      %3978 = vmatprep.mubr.f32.mxu0 0.0
      %3979 = vmatmul.mubr.f32.gmra.mrb[0].mxu0 %v3751
      %v3980 = vpop.f32.mrb[0].mxu0
      %v3981 = vadd.f32 0.0, %v3980
      %v3982 = vpop.f32.mrb[0].mxu0
      %3983 = vmatprep.mubr.f32.mxu0 0.0
      %3984 = vmatmul.mubr.f32.gmra.mrb[0].mxu0 %v3754
      %v3985 = vpop.f32.mrb[0].mxu0
      %v3986 = vadd.f32 0.0, %v3985
      %v3987 = vpop.f32.mrb[0].mxu0
      %3988 = vmatprep.mubr.f32.mxu0 0.0
      %3989 = vmatmul.mubr.f32.gmra.mrb[0].mxu0 %v3757
      %v3990 = vpop.f32.mrb[0].mxu0
      %v3991 = vadd.f32 0.0, %v3990
      %v3992 = vpop.f32.mrb[0].mxu0
      %3993 = vmatprep.mubr.f32.mxu0 0.0
      %3994 = vmatmul.mubr.f32.gmra.mrb[0].mxu0 %v3760
      %v3995 = vpop.f32.mrb[0].mxu0
      %v3996 = vadd.f32 0.0, %v3995
      %v3997 = vpop.f32.mrb[0].mxu0
      %3998 = vmatprep.mubr.f32.mxu0 0.0
      %3999 = vmatmul.mubr.f32.gmra.mrb[0].mxu0 %v3763
      %v4000 = vpop.f32.mrb[0].mxu0
      %v4001 = vadd.f32 0.0, %v4000
      %v4002 = vpop.f32.mrb[0].mxu0
      %4003 = vmatprep.mubr.f32.mxu0 0.0
      %4004 = vmatmul.mubr.f32.gmra.mrb[0].mxu0 %v3766
      %v4005 = vpop.f32.mrb[0].mxu0
      %v4006 = vadd.f32 0.0, %v4005
      %v4007 = vpop.f32.mrb[0].mxu0
      %4008 = vmatprep.mubr.f32.mxu0 0.0
      %4009 = vmatmul.mubr.f32.gmra.mrb[0].mxu0 %v3769
      %v4010 = vpop.f32.mrb[0].mxu0
      %v4011 = vadd.f32 0.0, %v4010
      %v4012 = vpop.f32.mrb[0].mxu0
      %4013 = vmatprep.mubr.f32.mxu0 0.0
      %4014 = vmatmul.mubr.f32.gmra.mrb[0].mxu0 %v3772
      %v4015 = vpop.f32.mrb[0].mxu0
      %v4016 = vadd.f32 0.0, %v4015
      %v4017 = vpop.f32.mrb[0].mxu0
      %4018 = vdwg.mxu0
      %v4019 = vadd.f32 %v3592, %v3841
      %v4020 = vadd.f32 %v3593, %v3846
      %v4021 = vadd.f32 %v3594, %v3851
      %v4022 = vadd.f32 %v3595, %v3856
      %v4023 = vadd.f32 %v3596, %v3861
      %v4024 = vadd.f32 %v3597, %v3866
      %v4025 = vadd.f32 %v3598, %v3871
      %v4026 = vadd.f32 %v3599, %v3876
      %v4027 = vadd.f32 %v3600, %v3881
      %v4028 = vadd.f32 %v3601, %v3886
      %v4029 = vadd.f32 %v3602, %v3891
      %v4030 = vadd.f32 %v3603, %v3896
      %v4031 = vadd.f32 %v3604, %v3901
      %v4032 = vadd.f32 %v3605, %v3906
      %v4033 = vadd.f32 %v3606, %v3911
      %v4034 = vadd.f32 %v3607, %v3916
      %v4035 = vadd.f32 %v3608, %v3921
      %v4036 = vadd.f32 %v3609, %v3926
      %v4037 = vadd.f32 %v3610, %v3931
      %v4038 = vadd.f32 %v3611, %v3936
      %v4039 = vadd.f32 %v3612, %v3941
      %v4040 = vadd.f32 %v3613, %v3946
      %v4041 = vadd.f32 %v3614, %v3951
      %v4042 = vadd.f32 %v3615, %v3956
      %v4043 = vadd.f32 %v3616, %v3961
      %v4044 = vadd.f32 %v3617, %v3966
      %v4045 = vadd.f32 %v3618, %v3971
      %v4046 = vadd.f32 %v3619, %v3976
      %v4047 = vadd.f32 %v3620, %v3981
      %v4048 = vadd.f32 %v3621, %v3986
      %v4049 = vadd.f32 %v3622, %v3991
      %v4050 = vadd.f32 %v3623, %v3996
      %v4051 = vadd.f32 %v3624, %v4001
      %v4052 = vadd.f32 %v3625, %v4006
      %v4053 = vadd.f32 %v3626, %v4011
      %v4054 = vadd.f32 %v3627, %v4016
      %v4055 = vld [vmem:[#allocation2 + $0x13] sm:$0xff]
      %v4056 = vld [vmem:[#allocation2 + $0x1b] sm:$0xff]
      %v4057 = vld [vmem:[#allocation2 + $0x23] sm:$0xff]
      %v4058 = vld [vmem:[#allocation2 + $0x2b] sm:$0xff]
      %v4059 = vld [vmem:[#allocation2 + $0x33] sm:$0xff]
      %v4060 = vld [vmem:[#allocation2 + $0x3b] sm:$0xff]
      %v4061 = vld [vmem:[#allocation2 + $0x43] sm:$0xff]
      %v4062 = vld [vmem:[#allocation2 + $0x4b] sm:$0xff]
      %v4063 = vld [vmem:[#allocation2 + $0x53] sm:$0xff]
      %v4064 = vld [vmem:[#allocation2 + $0x5b] sm:$0xff]
      %v4065 = vld [vmem:[#allocation2 + $0x63] sm:$0xff]
      %v4066 = vld [vmem:[#allocation2 + $0x6b] sm:$0xff]
      %v4067 = vld [vmem:[#allocation2 + $0x73] sm:$0xff]
      %v4068 = vld [vmem:[#allocation2 + $0x7b] sm:$0xff]
      %v4069 = vld [vmem:[#allocation2 + $0x83] sm:$0xff]
      %v4070 = vld [vmem:[#allocation2 + $0x8b] sm:$0xff]
      %v4071 = vld [vmem:[#allocation2 + $0x93] sm:$0xff]
      %v4072 = vld [vmem:[#allocation2 + $0x9b] sm:$0xff]
      %v4073 = vld [vmem:[#allocation2 + $0xa3] sm:$0xff]
      %v4074 = vld [vmem:[#allocation2 + $0xab] sm:$0xff]
      %v4075 = vld [vmem:[#allocation2 + $0xb3] sm:$0xff]
      %v4076 = vld [vmem:[#allocation2 + $0xbb] sm:$0xff]
      %v4077 = vld [vmem:[#allocation2 + $0xc3] sm:$0xff]
      %v4078 = vld [vmem:[#allocation2 + $0xcb] sm:$0xff]
      %v4079 = vld [vmem:[#allocation2 + $0xd3] sm:$0xff]
      %v4080 = vld [vmem:[#allocation2 + $0xdb] sm:$0xff]
      %v4081 = vld [vmem:[#allocation2 + $0xe3] sm:$0xff]
      %v4082 = vld [vmem:[#allocation2 + $0xeb] sm:$0xff]
      %v4083 = vld [vmem:[#allocation2 + $0xf3] sm:$0xff]
      %v4084 = vld [vmem:[#allocation2 + $0xfb] sm:$0xff]
      %v4085 = vld [vmem:[#allocation2 + $0x103] sm:$0xff]
      %v4086 = vld [vmem:[#allocation2 + $0x10b] sm:$0xff]
      %v4087 = vld [vmem:[#allocation2 + $0x113] sm:$0xff]
      %v4088 = vld [vmem:[#allocation2 + $0x11b] sm:$0xff]
      %v4089 = vld [vmem:[#allocation2 + $0x123] sm:$0xff]
      %v4090 = vld [vmem:[#allocation2 + $0x12b] sm:$0xff]
      %s4091 = scalar_lea.vmem %s9, 32
      %v4092 = vld [vmem:[%s4091] sm:$0xff]
      %v4094 = vsel %vm2343, %v4055, 0
      %v4097 = vsel %vm2343, %v4056, 0
      %v4100 = vsel %vm2343, %v4057, 0
      %v4103 = vsel %vm2343, %v4058, 0
      %v4106 = vsel %vm2343, %v4059, 0
      %v4109 = vsel %vm2343, %v4060, 0
      %v4112 = vsel %vm2343, %v4061, 0
      %v4115 = vsel %vm2343, %v4062, 0
      %v4118 = vsel %vm2343, %v4063, 0
      %v4121 = vsel %vm2343, %v4064, 0
      %v4124 = vsel %vm2343, %v4065, 0
      %v4127 = vsel %vm2343, %v4066, 0
      %v4130 = vsel %vm2343, %v4067, 0
      %v4133 = vsel %vm2343, %v4068, 0
      %v4136 = vsel %vm2343, %v4069, 0
      %v4139 = vsel %vm2343, %v4070, 0
      %v4142 = vsel %vm2343, %v4071, 0
      %v4145 = vsel %vm2343, %v4072, 0
      %v4148 = vsel %vm2343, %v4073, 0
      %v4151 = vsel %vm2343, %v4074, 0
      %v4154 = vsel %vm2343, %v4075, 0
      %v4157 = vsel %vm2343, %v4076, 0
      %v4160 = vsel %vm2343, %v4077, 0
      %v4163 = vsel %vm2343, %v4078, 0
      %v4166 = vsel %vm2343, %v4079, 0
      %v4169 = vsel %vm2343, %v4080, 0
      %v4172 = vsel %vm2343, %v4081, 0
      %v4175 = vsel %vm2343, %v4082, 0
      %v4178 = vsel %vm2343, %v4083, 0
      %v4181 = vsel %vm2343, %v4084, 0
      %v4184 = vsel %vm2343, %v4085, 0
      %v4187 = vsel %vm2343, %v4086, 0
      %v4190 = vsel %vm2343, %v4087, 0
      %v4193 = vsel %vm2343, %v4088, 0
      %v4196 = vsel %vm2343, %v4089, 0
      %v4199 = vsel %vm2343, %v4090, 0
      %4201 = vmatprep.subr.mxu0 0.0
      %4202 = vmatpush1.msra.mxu0 %v4092
      %4203 = vmatprep.subr.mxu0 0.0
      %4204 = vmatpush1.msra.mxu0 0.0
      %4205 = vmatprep.subr.mxu0 0.0
      %4206 = vmatpush1.msra.mxu0 0.0
      %4207 = vmatprep.subr.mxu0 0.0
      %4208 = vmatpush1.msra.mxu0 0.0
      %4209 = vmatprep.subr.mxu0 0.0
      %4210 = vmatpush1.msra.mxu0 0.0
      %4211 = vmatprep.subr.mxu0 0.0
      %4212 = vmatpush1.msra.mxu0 0.0
      %4213 = vmatprep.subr.mxu0 0.0
      %4214 = vmatpush1.msra.mxu0 0.0
      %4215 = vmatprep.subr.mxu0 0.0
      %4216 = vmatpush1.msra.mxu0 0.0
      %4217 = vmatprep.subr.mxu0 0.0
      %4218 = vmatpush1.msra.mxu0 0.0
      %4219 = vmatprep.subr.mxu0 0.0
      %4220 = vmatpush1.msra.mxu0 0.0
      %4221 = vmatprep.subr.mxu0 0.0
      %4222 = vmatpush1.msra.mxu0 0.0
      %4223 = vmatprep.subr.mxu0 0.0
      %4224 = vmatpush1.msra.mxu0 0.0
      %4225 = vmatprep.subr.mxu0 0.0
      %4226 = vmatpush1.msra.mxu0 0.0
      %4227 = vmatprep.subr.mxu0 0.0
      %4228 = vmatpush1.msra.mxu0 0.0
      %4229 = vmatprep.subr.mxu0 0.0
      %4230 = vmatpush1.msra.mxu0 0.0
      %4231 = vmatprep.subr.mxu0 0.0
      %4232 = vmatpush1.msra.mxu0 0.0
      %4233 = vmatprep.subr.mxu0 0.0
      %4234 = vmatpush1.msra.mxu0 0.0
      %4235 = vmatprep.subr.mxu0 0.0
      %4236 = vmatpush1.msra.mxu0 0.0
      %4237 = vmatprep.subr.mxu0 0.0
      %4238 = vmatpush1.msra.mxu0 0.0
      %4239 = vmatprep.subr.mxu0 0.0
      %4240 = vmatpush1.msra.mxu0 0.0
      %4241 = vmatprep.subr.mxu0 0.0
      %4242 = vmatpush1.msra.mxu0 0.0
      %4243 = vmatprep.subr.mxu0 0.0
      %4244 = vmatpush1.msra.mxu0 0.0
      %4245 = vmatprep.subr.mxu0 0.0
      %4246 = vmatpush1.msra.mxu0 0.0
      %4247 = vmatprep.subr.mxu0 0.0
      %4248 = vmatpush1.msra.mxu0 0.0
      %4249 = vmatprep.subr.mxu0 0.0
      %4250 = vmatpush1.msra.mxu0 0.0
      %4251 = vmatprep.subr.mxu0 0.0
      %4252 = vmatpush1.msra.mxu0 0.0
      %4253 = vmatprep.subr.mxu0 0.0
      %4254 = vmatpush1.msra.mxu0 0.0
      %4255 = vmatprep.subr.mxu0 0.0
      %4256 = vmatpush1.msra.mxu0 0.0
      %4257 = vmatprep.subr.mxu0 0.0
      %4258 = vmatpush1.msra.mxu0 0.0
      %4259 = vmatprep.subr.mxu0 0.0
      %4260 = vmatpush1.msra.mxu0 0.0
      %4261 = vmatprep.subr.mxu0 0.0
      %4262 = vmatpush1.msra.mxu0 0.0
      %4263 = vmatprep.subr.mxu0 0.0
      %4264 = vmatpush1.msra.mxu0 0.0
      %4265 = vmatprep.mubr.f32.mxu0 0.0
      %4266 = vmatmul.mubr.f32.gmra.mrb[0].mxu0 %v4094
      %v4267 = vpop.f32.mrb[0].mxu0
      %v4268 = vadd.f32 0.0, %v4267
      %v4269 = vpop.f32.mrb[0].mxu0
      %4270 = vmatprep.mubr.f32.mxu0 0.0
      %4271 = vmatmul.mubr.f32.gmra.mrb[0].mxu0 %v4097
      %v4272 = vpop.f32.mrb[0].mxu0
      %v4273 = vadd.f32 0.0, %v4272
      %v4274 = vpop.f32.mrb[0].mxu0
      %4275 = vmatprep.mubr.f32.mxu0 0.0
      %4276 = vmatmul.mubr.f32.gmra.mrb[0].mxu0 %v4100
      %v4277 = vpop.f32.mrb[0].mxu0
      %v4278 = vadd.f32 0.0, %v4277
      %v4279 = vpop.f32.mrb[0].mxu0
      %4280 = vmatprep.mubr.f32.mxu0 0.0
      %4281 = vmatmul.mubr.f32.gmra.mrb[0].mxu0 %v4103
      %v4282 = vpop.f32.mrb[0].mxu0
      %v4283 = vadd.f32 0.0, %v4282
      %v4284 = vpop.f32.mrb[0].mxu0
      %4285 = vmatprep.mubr.f32.mxu0 0.0
      %4286 = vmatmul.mubr.f32.gmra.mrb[0].mxu0 %v4106
      %v4287 = vpop.f32.mrb[0].mxu0
      %v4288 = vadd.f32 0.0, %v4287
      %v4289 = vpop.f32.mrb[0].mxu0
      %4290 = vmatprep.mubr.f32.mxu0 0.0
      %4291 = vmatmul.mubr.f32.gmra.mrb[0].mxu0 %v4109
      %v4292 = vpop.f32.mrb[0].mxu0
      %v4293 = vadd.f32 0.0, %v4292
      %v4294 = vpop.f32.mrb[0].mxu0
      %4295 = vmatprep.mubr.f32.mxu0 0.0
      %4296 = vmatmul.mubr.f32.gmra.mrb[0].mxu0 %v4112
      %v4297 = vpop.f32.mrb[0].mxu0
      %v4298 = vadd.f32 0.0, %v4297
      %v4299 = vpop.f32.mrb[0].mxu0
      %4300 = vmatprep.mubr.f32.mxu0 0.0
      %4301 = vmatmul.mubr.f32.gmra.mrb[0].mxu0 %v4115
      %v4302 = vpop.f32.mrb[0].mxu0
      %v4303 = vadd.f32 0.0, %v4302
      %v4304 = vpop.f32.mrb[0].mxu0
      %4305 = vmatprep.mubr.f32.mxu0 0.0
      %4306 = vmatmul.mubr.f32.gmra.mrb[0].mxu0 %v4118
      %v4307 = vpop.f32.mrb[0].mxu0
      %v4308 = vadd.f32 0.0, %v4307
      %v4309 = vpop.f32.mrb[0].mxu0
      %4310 = vmatprep.mubr.f32.mxu0 0.0
      %4311 = vmatmul.mubr.f32.gmra.mrb[0].mxu0 %v4121
      %v4312 = vpop.f32.mrb[0].mxu0
      %v4313 = vadd.f32 0.0, %v4312
      %v4314 = vpop.f32.mrb[0].mxu0
      %4315 = vmatprep.mubr.f32.mxu0 0.0
      %4316 = vmatmul.mubr.f32.gmra.mrb[0].mxu0 %v4124
      %v4317 = vpop.f32.mrb[0].mxu0
      %v4318 = vadd.f32 0.0, %v4317
      %v4319 = vpop.f32.mrb[0].mxu0
      %4320 = vmatprep.mubr.f32.mxu0 0.0
      %4321 = vmatmul.mubr.f32.gmra.mrb[0].mxu0 %v4127
      %v4322 = vpop.f32.mrb[0].mxu0
      %v4323 = vadd.f32 0.0, %v4322
      %v4324 = vpop.f32.mrb[0].mxu0
      %4325 = vmatprep.mubr.f32.mxu0 0.0
      %4326 = vmatmul.mubr.f32.gmra.mrb[0].mxu0 %v4130
      %v4327 = vpop.f32.mrb[0].mxu0
      %v4328 = vadd.f32 0.0, %v4327
      %v4329 = vpop.f32.mrb[0].mxu0
      %4330 = vmatprep.mubr.f32.mxu0 0.0
      %4331 = vmatmul.mubr.f32.gmra.mrb[0].mxu0 %v4133
      %v4332 = vpop.f32.mrb[0].mxu0
      %v4333 = vadd.f32 0.0, %v4332
      %v4334 = vpop.f32.mrb[0].mxu0
      %4335 = vmatprep.mubr.f32.mxu0 0.0
      %4336 = vmatmul.mubr.f32.gmra.mrb[0].mxu0 %v4136
      %v4337 = vpop.f32.mrb[0].mxu0
      %v4338 = vadd.f32 0.0, %v4337
      %v4339 = vpop.f32.mrb[0].mxu0
      %4340 = vmatprep.mubr.f32.mxu0 0.0
      %4341 = vmatmul.mubr.f32.gmra.mrb[0].mxu0 %v4139
      %v4342 = vpop.f32.mrb[0].mxu0
      %v4343 = vadd.f32 0.0, %v4342
      %v4344 = vpop.f32.mrb[0].mxu0
      %4345 = vmatprep.mubr.f32.mxu0 0.0
      %4346 = vmatmul.mubr.f32.gmra.mrb[0].mxu0 %v4142
      %v4347 = vpop.f32.mrb[0].mxu0
      %v4348 = vadd.f32 0.0, %v4347
      %v4349 = vpop.f32.mrb[0].mxu0
      %4350 = vmatprep.mubr.f32.mxu0 0.0
      %4351 = vmatmul.mubr.f32.gmra.mrb[0].mxu0 %v4145
      %v4352 = vpop.f32.mrb[0].mxu0
      %v4353 = vadd.f32 0.0, %v4352
      %v4354 = vpop.f32.mrb[0].mxu0
      %4355 = vmatprep.mubr.f32.mxu0 0.0
      %4356 = vmatmul.mubr.f32.gmra.mrb[0].mxu0 %v4148
      %v4357 = vpop.f32.mrb[0].mxu0
      %v4358 = vadd.f32 0.0, %v4357
      %v4359 = vpop.f32.mrb[0].mxu0
      %4360 = vmatprep.mubr.f32.mxu0 0.0
      %4361 = vmatmul.mubr.f32.gmra.mrb[0].mxu0 %v4151
      %v4362 = vpop.f32.mrb[0].mxu0
      %v4363 = vadd.f32 0.0, %v4362
      %v4364 = vpop.f32.mrb[0].mxu0
      %4365 = vmatprep.mubr.f32.mxu0 0.0
      %4366 = vmatmul.mubr.f32.gmra.mrb[0].mxu0 %v4154
      %v4367 = vpop.f32.mrb[0].mxu0
      %v4368 = vadd.f32 0.0, %v4367
      %v4369 = vpop.f32.mrb[0].mxu0
      %4370 = vmatprep.mubr.f32.mxu0 0.0
      %4371 = vmatmul.mubr.f32.gmra.mrb[0].mxu0 %v4157
      %v4372 = vpop.f32.mrb[0].mxu0
      %v4373 = vadd.f32 0.0, %v4372
      %v4374 = vpop.f32.mrb[0].mxu0
      %4375 = vmatprep.mubr.f32.mxu0 0.0
      %4376 = vmatmul.mubr.f32.gmra.mrb[0].mxu0 %v4160
      %v4377 = vpop.f32.mrb[0].mxu0
      %v4378 = vadd.f32 0.0, %v4377
      %v4379 = vpop.f32.mrb[0].mxu0
      %4380 = vmatprep.mubr.f32.mxu0 0.0
      %4381 = vmatmul.mubr.f32.gmra.mrb[0].mxu0 %v4163
      %v4382 = vpop.f32.mrb[0].mxu0
      %v4383 = vadd.f32 0.0, %v4382
      %v4384 = vpop.f32.mrb[0].mxu0
      %4385 = vmatprep.mubr.f32.mxu0 0.0
      %4386 = vmatmul.mubr.f32.gmra.mrb[0].mxu0 %v4166
      %v4387 = vpop.f32.mrb[0].mxu0
      %v4388 = vadd.f32 0.0, %v4387
      %v4389 = vpop.f32.mrb[0].mxu0
      %4390 = vmatprep.mubr.f32.mxu0 0.0
      %4391 = vmatmul.mubr.f32.gmra.mrb[0].mxu0 %v4169
      %v4392 = vpop.f32.mrb[0].mxu0
      %v4393 = vadd.f32 0.0, %v4392
      %v4394 = vpop.f32.mrb[0].mxu0
      %4395 = vmatprep.mubr.f32.mxu0 0.0
      %4396 = vmatmul.mubr.f32.gmra.mrb[0].mxu0 %v4172
      %v4397 = vpop.f32.mrb[0].mxu0
      %v4398 = vadd.f32 0.0, %v4397
      %v4399 = vpop.f32.mrb[0].mxu0
      %4400 = vmatprep.mubr.f32.mxu0 0.0
      %4401 = vmatmul.mubr.f32.gmra.mrb[0].mxu0 %v4175
      %v4402 = vpop.f32.mrb[0].mxu0
      %v4403 = vadd.f32 0.0, %v4402
      %v4404 = vpop.f32.mrb[0].mxu0
      %4405 = vmatprep.mubr.f32.mxu0 0.0
      %4406 = vmatmul.mubr.f32.gmra.mrb[0].mxu0 %v4178
      %v4407 = vpop.f32.mrb[0].mxu0
      %v4408 = vadd.f32 0.0, %v4407
      %v4409 = vpop.f32.mrb[0].mxu0
      %4410 = vmatprep.mubr.f32.mxu0 0.0
      %4411 = vmatmul.mubr.f32.gmra.mrb[0].mxu0 %v4181
      %v4412 = vpop.f32.mrb[0].mxu0
      %v4413 = vadd.f32 0.0, %v4412
      %v4414 = vpop.f32.mrb[0].mxu0
      %4415 = vmatprep.mubr.f32.mxu0 0.0
      %4416 = vmatmul.mubr.f32.gmra.mrb[0].mxu0 %v4184
      %v4417 = vpop.f32.mrb[0].mxu0
      %v4418 = vadd.f32 0.0, %v4417
      %v4419 = vpop.f32.mrb[0].mxu0
      %4420 = vmatprep.mubr.f32.mxu0 0.0
      %4421 = vmatmul.mubr.f32.gmra.mrb[0].mxu0 %v4187
      %v4422 = vpop.f32.mrb[0].mxu0
      %v4423 = vadd.f32 0.0, %v4422
      %v4424 = vpop.f32.mrb[0].mxu0
      %4425 = vmatprep.mubr.f32.mxu0 0.0
      %4426 = vmatmul.mubr.f32.gmra.mrb[0].mxu0 %v4190
      %v4427 = vpop.f32.mrb[0].mxu0
      %v4428 = vadd.f32 0.0, %v4427
      %v4429 = vpop.f32.mrb[0].mxu0
      %4430 = vmatprep.mubr.f32.mxu0 0.0
      %4431 = vmatmul.mubr.f32.gmra.mrb[0].mxu0 %v4193
      %v4432 = vpop.f32.mrb[0].mxu0
      %v4433 = vadd.f32 0.0, %v4432
      %v4434 = vpop.f32.mrb[0].mxu0
      %4435 = vmatprep.mubr.f32.mxu0 0.0
      %4436 = vmatmul.mubr.f32.gmra.mrb[0].mxu0 %v4196
      %v4437 = vpop.f32.mrb[0].mxu0
      %v4438 = vadd.f32 0.0, %v4437
      %v4439 = vpop.f32.mrb[0].mxu0
      %4440 = vmatprep.mubr.f32.mxu0 0.0
      %4441 = vmatmul.mubr.f32.gmra.mrb[0].mxu0 %v4199
      %v4442 = vpop.f32.mrb[0].mxu0
      %v4443 = vadd.f32 0.0, %v4442
      %v4444 = vpop.f32.mrb[0].mxu0
      %4445 = vdwg.mxu0
      %v4446 = vadd.f32 %v4019, %v4268
      %v4447 = vadd.f32 %v4020, %v4273
      %v4448 = vadd.f32 %v4021, %v4278
      %v4449 = vadd.f32 %v4022, %v4283
      %v4450 = vadd.f32 %v4023, %v4288
      %v4451 = vadd.f32 %v4024, %v4293
      %v4452 = vadd.f32 %v4025, %v4298
      %v4453 = vadd.f32 %v4026, %v4303
      %v4454 = vadd.f32 %v4027, %v4308
      %v4455 = vadd.f32 %v4028, %v4313
      %v4456 = vadd.f32 %v4029, %v4318
      %v4457 = vadd.f32 %v4030, %v4323
      %v4458 = vadd.f32 %v4031, %v4328
      %v4459 = vadd.f32 %v4032, %v4333
      %v4460 = vadd.f32 %v4033, %v4338
      %v4461 = vadd.f32 %v4034, %v4343
      %v4462 = vadd.f32 %v4035, %v4348
      %v4463 = vadd.f32 %v4036, %v4353
      %v4464 = vadd.f32 %v4037, %v4358
      %v4465 = vadd.f32 %v4038, %v4363
      %v4466 = vadd.f32 %v4039, %v4368
      %v4467 = vadd.f32 %v4040, %v4373
      %v4468 = vadd.f32 %v4041, %v4378
      %v4469 = vadd.f32 %v4042, %v4383
      %v4470 = vadd.f32 %v4043, %v4388
      %v4471 = vadd.f32 %v4044, %v4393
      %v4472 = vadd.f32 %v4045, %v4398
      %v4473 = vadd.f32 %v4046, %v4403
      %v4474 = vadd.f32 %v4047, %v4408
      %v4475 = vadd.f32 %v4048, %v4413
      %v4476 = vadd.f32 %v4049, %v4418
      %v4477 = vadd.f32 %v4050, %v4423
      %v4478 = vadd.f32 %v4051, %v4428
      %v4479 = vadd.f32 %v4052, %v4433
      %v4480 = vadd.f32 %v4053, %v4438
      %v4481 = vadd.f32 %v4054, %v4443
      %v4482 = vld [vmem:[#allocation2 + $0x14] sm:$0xff]
      %v4483 = vld [vmem:[#allocation2 + $0x1c] sm:$0xff]
      %v4484 = vld [vmem:[#allocation2 + $0x24] sm:$0xff]
      %v4485 = vld [vmem:[#allocation2 + $0x2c] sm:$0xff]
      %v4486 = vld [vmem:[#allocation2 + $0x34] sm:$0xff]
      %v4487 = vld [vmem:[#allocation2 + $0x3c] sm:$0xff]
      %v4488 = vld [vmem:[#allocation2 + $0x44] sm:$0xff]
      %v4489 = vld [vmem:[#allocation2 + $0x4c] sm:$0xff]
      %v4490 = vld [vmem:[#allocation2 + $0x54] sm:$0xff]
      %v4491 = vld [vmem:[#allocation2 + $0x5c] sm:$0xff]
      %v4492 = vld [vmem:[#allocation2 + $0x64] sm:$0xff]
      %v4493 = vld [vmem:[#allocation2 + $0x6c] sm:$0xff]
      %v4494 = vld [vmem:[#allocation2 + $0x74] sm:$0xff]
      %v4495 = vld [vmem:[#allocation2 + $0x7c] sm:$0xff]
      %v4496 = vld [vmem:[#allocation2 + $0x84] sm:$0xff]
      %v4497 = vld [vmem:[#allocation2 + $0x8c] sm:$0xff]
      %v4498 = vld [vmem:[#allocation2 + $0x94] sm:$0xff]
      %v4499 = vld [vmem:[#allocation2 + $0x9c] sm:$0xff]
      %v4500 = vld [vmem:[#allocation2 + $0xa4] sm:$0xff]
      %v4501 = vld [vmem:[#allocation2 + $0xac] sm:$0xff]
      %v4502 = vld [vmem:[#allocation2 + $0xb4] sm:$0xff]
      %v4503 = vld [vmem:[#allocation2 + $0xbc] sm:$0xff]
      %v4504 = vld [vmem:[#allocation2 + $0xc4] sm:$0xff]
      %v4505 = vld [vmem:[#allocation2 + $0xcc] sm:$0xff]
      %v4506 = vld [vmem:[#allocation2 + $0xd4] sm:$0xff]
      %v4507 = vld [vmem:[#allocation2 + $0xdc] sm:$0xff]
      %v4508 = vld [vmem:[#allocation2 + $0xe4] sm:$0xff]
      %v4509 = vld [vmem:[#allocation2 + $0xec] sm:$0xff]
      %v4510 = vld [vmem:[#allocation2 + $0xf4] sm:$0xff]
      %v4511 = vld [vmem:[#allocation2 + $0xfc] sm:$0xff]
      %v4512 = vld [vmem:[#allocation2 + $0x104] sm:$0xff]
      %v4513 = vld [vmem:[#allocation2 + $0x10c] sm:$0xff]
      %v4514 = vld [vmem:[#allocation2 + $0x114] sm:$0xff]
      %v4515 = vld [vmem:[#allocation2 + $0x11c] sm:$0xff]
      %v4516 = vld [vmem:[#allocation2 + $0x124] sm:$0xff]
      %v4517 = vld [vmem:[#allocation2 + $0x12c] sm:$0xff]
      %s4518 = scalar_lea.vmem %s9, 40
      %v4519 = vld [vmem:[%s4518] sm:$0xff]
      %v4521 = vsel %vm2343, %v4482, 0
      %v4524 = vsel %vm2343, %v4483, 0
      %v4527 = vsel %vm2343, %v4484, 0
      %v4530 = vsel %vm2343, %v4485, 0
      %v4533 = vsel %vm2343, %v4486, 0
      %v4536 = vsel %vm2343, %v4487, 0
      %v4539 = vsel %vm2343, %v4488, 0
      %v4542 = vsel %vm2343, %v4489, 0
      %v4545 = vsel %vm2343, %v4490, 0
      %v4548 = vsel %vm2343, %v4491, 0
      %v4551 = vsel %vm2343, %v4492, 0
      %v4554 = vsel %vm2343, %v4493, 0
      %v4557 = vsel %vm2343, %v4494, 0
      %v4560 = vsel %vm2343, %v4495, 0
      %v4563 = vsel %vm2343, %v4496, 0
      %v4566 = vsel %vm2343, %v4497, 0
      %v4569 = vsel %vm2343, %v4498, 0
      %v4572 = vsel %vm2343, %v4499, 0
      %v4575 = vsel %vm2343, %v4500, 0
      %v4578 = vsel %vm2343, %v4501, 0
      %v4581 = vsel %vm2343, %v4502, 0
      %v4584 = vsel %vm2343, %v4503, 0
      %v4587 = vsel %vm2343, %v4504, 0
      %v4590 = vsel %vm2343, %v4505, 0
      %v4593 = vsel %vm2343, %v4506, 0
      %v4596 = vsel %vm2343, %v4507, 0
      %v4599 = vsel %vm2343, %v4508, 0
      %v4602 = vsel %vm2343, %v4509, 0
      %v4605 = vsel %vm2343, %v4510, 0
      %v4608 = vsel %vm2343, %v4511, 0
      %v4611 = vsel %vm2343, %v4512, 0
      %v4614 = vsel %vm2343, %v4513, 0
      %v4617 = vsel %vm2343, %v4514, 0
      %v4620 = vsel %vm2343, %v4515, 0
      %v4623 = vsel %vm2343, %v4516, 0
      %v4626 = vsel %vm2343, %v4517, 0
      %4628 = vmatprep.subr.mxu0 0.0
      %4629 = vmatpush1.msra.mxu0 %v4519
      %4630 = vmatprep.subr.mxu0 0.0
      %4631 = vmatpush1.msra.mxu0 0.0
      %4632 = vmatprep.subr.mxu0 0.0
      %4633 = vmatpush1.msra.mxu0 0.0
      %4634 = vmatprep.subr.mxu0 0.0
      %4635 = vmatpush1.msra.mxu0 0.0
      %4636 = vmatprep.subr.mxu0 0.0
      %4637 = vmatpush1.msra.mxu0 0.0
      %4638 = vmatprep.subr.mxu0 0.0
      %4639 = vmatpush1.msra.mxu0 0.0
      %4640 = vmatprep.subr.mxu0 0.0
      %4641 = vmatpush1.msra.mxu0 0.0
      %4642 = vmatprep.subr.mxu0 0.0
      %4643 = vmatpush1.msra.mxu0 0.0
      %4644 = vmatprep.subr.mxu0 0.0
      %4645 = vmatpush1.msra.mxu0 0.0
      %4646 = vmatprep.subr.mxu0 0.0
      %4647 = vmatpush1.msra.mxu0 0.0
      %4648 = vmatprep.subr.mxu0 0.0
      %4649 = vmatpush1.msra.mxu0 0.0
      %4650 = vmatprep.subr.mxu0 0.0
      %4651 = vmatpush1.msra.mxu0 0.0
      %4652 = vmatprep.subr.mxu0 0.0
      %4653 = vmatpush1.msra.mxu0 0.0
      %4654 = vmatprep.subr.mxu0 0.0
      %4655 = vmatpush1.msra.mxu0 0.0
      %4656 = vmatprep.subr.mxu0 0.0
      %4657 = vmatpush1.msra.mxu0 0.0
      %4658 = vmatprep.subr.mxu0 0.0
      %4659 = vmatpush1.msra.mxu0 0.0
      %4660 = vmatprep.subr.mxu0 0.0
      %4661 = vmatpush1.msra.mxu0 0.0
      %4662 = vmatprep.subr.mxu0 0.0
      %4663 = vmatpush1.msra.mxu0 0.0
      %4664 = vmatprep.subr.mxu0 0.0
      %4665 = vmatpush1.msra.mxu0 0.0
      %4666 = vmatprep.subr.mxu0 0.0
      %4667 = vmatpush1.msra.mxu0 0.0
      %4668 = vmatprep.subr.mxu0 0.0
      %4669 = vmatpush1.msra.mxu0 0.0
      %4670 = vmatprep.subr.mxu0 0.0
      %4671 = vmatpush1.msra.mxu0 0.0
      %4672 = vmatprep.subr.mxu0 0.0
      %4673 = vmatpush1.msra.mxu0 0.0
      %4674 = vmatprep.subr.mxu0 0.0
      %4675 = vmatpush1.msra.mxu0 0.0
      %4676 = vmatprep.subr.mxu0 0.0
      %4677 = vmatpush1.msra.mxu0 0.0
      %4678 = vmatprep.subr.mxu0 0.0
      %4679 = vmatpush1.msra.mxu0 0.0
      %4680 = vmatprep.subr.mxu0 0.0
      %4681 = vmatpush1.msra.mxu0 0.0
      %4682 = vmatprep.subr.mxu0 0.0
      %4683 = vmatpush1.msra.mxu0 0.0
      %4684 = vmatprep.subr.mxu0 0.0
      %4685 = vmatpush1.msra.mxu0 0.0
      %4686 = vmatprep.subr.mxu0 0.0
      %4687 = vmatpush1.msra.mxu0 0.0
      %4688 = vmatprep.subr.mxu0 0.0
      %4689 = vmatpush1.msra.mxu0 0.0
      %4690 = vmatprep.subr.mxu0 0.0
      %4691 = vmatpush1.msra.mxu0 0.0
      %4692 = vmatprep.mubr.f32.mxu0 0.0
      %4693 = vmatmul.mubr.f32.gmra.mrb[0].mxu0 %v4521
      %v4694 = vpop.f32.mrb[0].mxu0
      %v4695 = vadd.f32 0.0, %v4694
      %v4696 = vpop.f32.mrb[0].mxu0
      %4697 = vmatprep.mubr.f32.mxu0 0.0
      %4698 = vmatmul.mubr.f32.gmra.mrb[0].mxu0 %v4524
      %v4699 = vpop.f32.mrb[0].mxu0
      %v4700 = vadd.f32 0.0, %v4699
      %v4701 = vpop.f32.mrb[0].mxu0
      %4702 = vmatprep.mubr.f32.mxu0 0.0
      %4703 = vmatmul.mubr.f32.gmra.mrb[0].mxu0 %v4527
      %v4704 = vpop.f32.mrb[0].mxu0
      %v4705 = vadd.f32 0.0, %v4704
      %v4706 = vpop.f32.mrb[0].mxu0
      %4707 = vmatprep.mubr.f32.mxu0 0.0
      %4708 = vmatmul.mubr.f32.gmra.mrb[0].mxu0 %v4530
      %v4709 = vpop.f32.mrb[0].mxu0
      %v4710 = vadd.f32 0.0, %v4709
      %v4711 = vpop.f32.mrb[0].mxu0
      %4712 = vmatprep.mubr.f32.mxu0 0.0
      %4713 = vmatmul.mubr.f32.gmra.mrb[0].mxu0 %v4533
      %v4714 = vpop.f32.mrb[0].mxu0
      %v4715 = vadd.f32 0.0, %v4714
      %v4716 = vpop.f32.mrb[0].mxu0
      %4717 = vmatprep.mubr.f32.mxu0 0.0
      %4718 = vmatmul.mubr.f32.gmra.mrb[0].mxu0 %v4536
      %v4719 = vpop.f32.mrb[0].mxu0
      %v4720 = vadd.f32 0.0, %v4719
      %v4721 = vpop.f32.mrb[0].mxu0
      %4722 = vmatprep.mubr.f32.mxu0 0.0
      %4723 = vmatmul.mubr.f32.gmra.mrb[0].mxu0 %v4539
      %v4724 = vpop.f32.mrb[0].mxu0
      %v4725 = vadd.f32 0.0, %v4724
      %v4726 = vpop.f32.mrb[0].mxu0
      %4727 = vmatprep.mubr.f32.mxu0 0.0
      %4728 = vmatmul.mubr.f32.gmra.mrb[0].mxu0 %v4542
      %v4729 = vpop.f32.mrb[0].mxu0
      %v4730 = vadd.f32 0.0, %v4729
      %v4731 = vpop.f32.mrb[0].mxu0
      %4732 = vmatprep.mubr.f32.mxu0 0.0
      %4733 = vmatmul.mubr.f32.gmra.mrb[0].mxu0 %v4545
      %v4734 = vpop.f32.mrb[0].mxu0
      %v4735 = vadd.f32 0.0, %v4734
      %v4736 = vpop.f32.mrb[0].mxu0
      %4737 = vmatprep.mubr.f32.mxu0 0.0
      %4738 = vmatmul.mubr.f32.gmra.mrb[0].mxu0 %v4548
      %v4739 = vpop.f32.mrb[0].mxu0
      %v4740 = vadd.f32 0.0, %v4739
      %v4741 = vpop.f32.mrb[0].mxu0
      %4742 = vmatprep.mubr.f32.mxu0 0.0
      %4743 = vmatmul.mubr.f32.gmra.mrb[0].mxu0 %v4551
      %v4744 = vpop.f32.mrb[0].mxu0
      %v4745 = vadd.f32 0.0, %v4744
      %v4746 = vpop.f32.mrb[0].mxu0
      %4747 = vmatprep.mubr.f32.mxu0 0.0
      %4748 = vmatmul.mubr.f32.gmra.mrb[0].mxu0 %v4554
      %v4749 = vpop.f32.mrb[0].mxu0
      %v4750 = vadd.f32 0.0, %v4749
      %v4751 = vpop.f32.mrb[0].mxu0
      %4752 = vmatprep.mubr.f32.mxu0 0.0
      %4753 = vmatmul.mubr.f32.gmra.mrb[0].mxu0 %v4557
      %v4754 = vpop.f32.mrb[0].mxu0
      %v4755 = vadd.f32 0.0, %v4754
      %v4756 = vpop.f32.mrb[0].mxu0
      %4757 = vmatprep.mubr.f32.mxu0 0.0
      %4758 = vmatmul.mubr.f32.gmra.mrb[0].mxu0 %v4560
      %v4759 = vpop.f32.mrb[0].mxu0
      %v4760 = vadd.f32 0.0, %v4759
      %v4761 = vpop.f32.mrb[0].mxu0
      %4762 = vmatprep.mubr.f32.mxu0 0.0
      %4763 = vmatmul.mubr.f32.gmra.mrb[0].mxu0 %v4563
      %v4764 = vpop.f32.mrb[0].mxu0
      %v4765 = vadd.f32 0.0, %v4764
      %v4766 = vpop.f32.mrb[0].mxu0
      %4767 = vmatprep.mubr.f32.mxu0 0.0
      %4768 = vmatmul.mubr.f32.gmra.mrb[0].mxu0 %v4566
      %v4769 = vpop.f32.mrb[0].mxu0
      %v4770 = vadd.f32 0.0, %v4769
      %v4771 = vpop.f32.mrb[0].mxu0
      %4772 = vmatprep.mubr.f32.mxu0 0.0
      %4773 = vmatmul.mubr.f32.gmra.mrb[0].mxu0 %v4569
      %v4774 = vpop.f32.mrb[0].mxu0
      %v4775 = vadd.f32 0.0, %v4774
      %v4776 = vpop.f32.mrb[0].mxu0
      %4777 = vmatprep.mubr.f32.mxu0 0.0
      %4778 = vmatmul.mubr.f32.gmra.mrb[0].mxu0 %v4572
      %v4779 = vpop.f32.mrb[0].mxu0
      %v4780 = vadd.f32 0.0, %v4779
      %v4781 = vpop.f32.mrb[0].mxu0
      %4782 = vmatprep.mubr.f32.mxu0 0.0
      %4783 = vmatmul.mubr.f32.gmra.mrb[0].mxu0 %v4575
      %v4784 = vpop.f32.mrb[0].mxu0
      %v4785 = vadd.f32 0.0, %v4784
      %v4786 = vpop.f32.mrb[0].mxu0
      %4787 = vmatprep.mubr.f32.mxu0 0.0
      %4788 = vmatmul.mubr.f32.gmra.mrb[0].mxu0 %v4578
      %v4789 = vpop.f32.mrb[0].mxu0
      %v4790 = vadd.f32 0.0, %v4789
      %v4791 = vpop.f32.mrb[0].mxu0
      %4792 = vmatprep.mubr.f32.mxu0 0.0
      %4793 = vmatmul.mubr.f32.gmra.mrb[0].mxu0 %v4581
      %v4794 = vpop.f32.mrb[0].mxu0
      %v4795 = vadd.f32 0.0, %v4794
      %v4796 = vpop.f32.mrb[0].mxu0
      %4797 = vmatprep.mubr.f32.mxu0 0.0
      %4798 = vmatmul.mubr.f32.gmra.mrb[0].mxu0 %v4584
      %v4799 = vpop.f32.mrb[0].mxu0
      %v4800 = vadd.f32 0.0, %v4799
      %v4801 = vpop.f32.mrb[0].mxu0
      %4802 = vmatprep.mubr.f32.mxu0 0.0
      %4803 = vmatmul.mubr.f32.gmra.mrb[0].mxu0 %v4587
      %v4804 = vpop.f32.mrb[0].mxu0
      %v4805 = vadd.f32 0.0, %v4804
      %v4806 = vpop.f32.mrb[0].mxu0
      %4807 = vmatprep.mubr.f32.mxu0 0.0
      %4808 = vmatmul.mubr.f32.gmra.mrb[0].mxu0 %v4590
      %v4809 = vpop.f32.mrb[0].mxu0
      %v4810 = vadd.f32 0.0, %v4809
      %v4811 = vpop.f32.mrb[0].mxu0
      %4812 = vmatprep.mubr.f32.mxu0 0.0
      %4813 = vmatmul.mubr.f32.gmra.mrb[0].mxu0 %v4593
      %v4814 = vpop.f32.mrb[0].mxu0
      %v4815 = vadd.f32 0.0, %v4814
      %v4816 = vpop.f32.mrb[0].mxu0
      %4817 = vmatprep.mubr.f32.mxu0 0.0
      %4818 = vmatmul.mubr.f32.gmra.mrb[0].mxu0 %v4596
      %v4819 = vpop.f32.mrb[0].mxu0
      %v4820 = vadd.f32 0.0, %v4819
      %v4821 = vpop.f32.mrb[0].mxu0
      %4822 = vmatprep.mubr.f32.mxu0 0.0
      %4823 = vmatmul.mubr.f32.gmra.mrb[0].mxu0 %v4599
      %v4824 = vpop.f32.mrb[0].mxu0
      %v4825 = vadd.f32 0.0, %v4824
      %v4826 = vpop.f32.mrb[0].mxu0
      %4827 = vmatprep.mubr.f32.mxu0 0.0
      %4828 = vmatmul.mubr.f32.gmra.mrb[0].mxu0 %v4602
      %v4829 = vpop.f32.mrb[0].mxu0
      %v4830 = vadd.f32 0.0, %v4829
      %v4831 = vpop.f32.mrb[0].mxu0
      %4832 = vmatprep.mubr.f32.mxu0 0.0
      %4833 = vmatmul.mubr.f32.gmra.mrb[0].mxu0 %v4605
      %v4834 = vpop.f32.mrb[0].mxu0
      %v4835 = vadd.f32 0.0, %v4834
      %v4836 = vpop.f32.mrb[0].mxu0
      %4837 = vmatprep.mubr.f32.mxu0 0.0
      %4838 = vmatmul.mubr.f32.gmra.mrb[0].mxu0 %v4608
      %v4839 = vpop.f32.mrb[0].mxu0
      %v4840 = vadd.f32 0.0, %v4839
      %v4841 = vpop.f32.mrb[0].mxu0
      %4842 = vmatprep.mubr.f32.mxu0 0.0
      %4843 = vmatmul.mubr.f32.gmra.mrb[0].mxu0 %v4611
      %v4844 = vpop.f32.mrb[0].mxu0
      %v4845 = vadd.f32 0.0, %v4844
      %v4846 = vpop.f32.mrb[0].mxu0
      %4847 = vmatprep.mubr.f32.mxu0 0.0
      %4848 = vmatmul.mubr.f32.gmra.mrb[0].mxu0 %v4614
      %v4849 = vpop.f32.mrb[0].mxu0
      %v4850 = vadd.f32 0.0, %v4849
      %v4851 = vpop.f32.mrb[0].mxu0
      %4852 = vmatprep.mubr.f32.mxu0 0.0
      %4853 = vmatmul.mubr.f32.gmra.mrb[0].mxu0 %v4617
      %v4854 = vpop.f32.mrb[0].mxu0
      %v4855 = vadd.f32 0.0, %v4854
      %v4856 = vpop.f32.mrb[0].mxu0
      %4857 = vmatprep.mubr.f32.mxu0 0.0
      %4858 = vmatmul.mubr.f32.gmra.mrb[0].mxu0 %v4620
      %v4859 = vpop.f32.mrb[0].mxu0
      %v4860 = vadd.f32 0.0, %v4859
      %v4861 = vpop.f32.mrb[0].mxu0
      %4862 = vmatprep.mubr.f32.mxu0 0.0
      %4863 = vmatmul.mubr.f32.gmra.mrb[0].mxu0 %v4623
      %v4864 = vpop.f32.mrb[0].mxu0
      %v4865 = vadd.f32 0.0, %v4864
      %v4866 = vpop.f32.mrb[0].mxu0
      %4867 = vmatprep.mubr.f32.mxu0 0.0
      %4868 = vmatmul.mubr.f32.gmra.mrb[0].mxu0 %v4626
      %v4869 = vpop.f32.mrb[0].mxu0
      %v4870 = vadd.f32 0.0, %v4869
      %v4871 = vpop.f32.mrb[0].mxu0
      %4872 = vdwg.mxu0
      %v4873 = vadd.f32 %v4446, %v4695
      %v4874 = vadd.f32 %v4447, %v4700
      %v4875 = vadd.f32 %v4448, %v4705
      %v4876 = vadd.f32 %v4449, %v4710
      %v4877 = vadd.f32 %v4450, %v4715
      %v4878 = vadd.f32 %v4451, %v4720
      %v4879 = vadd.f32 %v4452, %v4725
      %v4880 = vadd.f32 %v4453, %v4730
      %v4881 = vadd.f32 %v4454, %v4735
      %v4882 = vadd.f32 %v4455, %v4740
      %v4883 = vadd.f32 %v4456, %v4745
      %v4884 = vadd.f32 %v4457, %v4750
      %v4885 = vadd.f32 %v4458, %v4755
      %v4886 = vadd.f32 %v4459, %v4760
      %v4887 = vadd.f32 %v4460, %v4765
      %v4888 = vadd.f32 %v4461, %v4770
      %v4889 = vadd.f32 %v4462, %v4775
      %v4890 = vadd.f32 %v4463, %v4780
      %v4891 = vadd.f32 %v4464, %v4785
      %v4892 = vadd.f32 %v4465, %v4790
      %v4893 = vadd.f32 %v4466, %v4795
      %v4894 = vadd.f32 %v4467, %v4800
      %v4895 = vadd.f32 %v4468, %v4805
      %v4896 = vadd.f32 %v4469, %v4810
      %v4897 = vadd.f32 %v4470, %v4815
      %v4898 = vadd.f32 %v4471, %v4820
      %v4899 = vadd.f32 %v4472, %v4825
      %v4900 = vadd.f32 %v4473, %v4830
      %v4901 = vadd.f32 %v4474, %v4835
      %v4902 = vadd.f32 %v4475, %v4840
      %v4903 = vadd.f32 %v4476, %v4845
      %v4904 = vadd.f32 %v4477, %v4850
      %v4905 = vadd.f32 %v4478, %v4855
      %v4906 = vadd.f32 %v4479, %v4860
      %v4907 = vadd.f32 %v4480, %v4865
      %v4908 = vadd.f32 %v4481, %v4870
      %v4909 = vld [vmem:[#allocation2 + $0x24] sm:$0xff]
      %v4910 = vld [vmem:[#allocation2 + $0x2c] sm:$0xff]
      %v4911 = vld [vmem:[#allocation2 + $0x34] sm:$0xff]
      %v4912 = vld [vmem:[#allocation2 + $0x3c] sm:$0xff]
      %v4913 = vld [vmem:[#allocation2 + $0x44] sm:$0xff]
      %v4914 = vld [vmem:[#allocation2 + $0x4c] sm:$0xff]
      %v4915 = vld [vmem:[#allocation2 + $0x54] sm:$0xff]
      %v4916 = vld [vmem:[#allocation2 + $0x5c] sm:$0xff]
      %v4917 = vld [vmem:[#allocation2 + $0x64] sm:$0xff]
      %v4918 = vld [vmem:[#allocation2 + $0x6c] sm:$0xff]
      %v4919 = vld [vmem:[#allocation2 + $0x74] sm:$0xff]
      %v4920 = vld [vmem:[#allocation2 + $0x7c] sm:$0xff]
      %v4921 = vld [vmem:[#allocation2 + $0x84] sm:$0xff]
      %v4922 = vld [vmem:[#allocation2 + $0x8c] sm:$0xff]
      %v4923 = vld [vmem:[#allocation2 + $0x94] sm:$0xff]
      %v4924 = vld [vmem:[#allocation2 + $0x9c] sm:$0xff]
      %v4925 = vld [vmem:[#allocation2 + $0xa4] sm:$0xff]
      %v4926 = vld [vmem:[#allocation2 + $0xac] sm:$0xff]
      %v4927 = vld [vmem:[#allocation2 + $0xb4] sm:$0xff]
      %v4928 = vld [vmem:[#allocation2 + $0xbc] sm:$0xff]
      %v4929 = vld [vmem:[#allocation2 + $0xc4] sm:$0xff]
      %v4930 = vld [vmem:[#allocation2 + $0xcc] sm:$0xff]
      %v4931 = vld [vmem:[#allocation2 + $0xd4] sm:$0xff]
      %v4932 = vld [vmem:[#allocation2 + $0xdc] sm:$0xff]
      %v4933 = vld [vmem:[#allocation2 + $0xe4] sm:$0xff]
      %v4934 = vld [vmem:[#allocation2 + $0xec] sm:$0xff]
      %v4935 = vld [vmem:[#allocation2 + $0xf4] sm:$0xff]
      %v4936 = vld [vmem:[#allocation2 + $0xfc] sm:$0xff]
      %v4937 = vld [vmem:[#allocation2 + $0x104] sm:$0xff]
      %v4938 = vld [vmem:[#allocation2 + $0x10c] sm:$0xff]
      %v4939 = vld [vmem:[#allocation2 + $0x114] sm:$0xff]
      %v4940 = vld [vmem:[#allocation2 + $0x11c] sm:$0xff]
      %v4941 = vld [vmem:[#allocation2 + $0x124] sm:$0xff]
      %v4942 = vld [vmem:[#allocation2 + $0x12c] sm:$0xff]
      %v4943 = vld [vmem:[#allocation2 + $0x134] sm:$0xff]
      %v4944 = vld [vmem:[#allocation2 + $0x13c] sm:$0xff]
      %s4945 = scalar_lea.vmem %s9, 48
      %v4946 = vld [vmem:[%s4945] sm:$0xff]
      %v4948 = vsel %vm2343, %v4909, 0
      %v4951 = vsel %vm2343, %v4910, 0
      %v4954 = vsel %vm2343, %v4911, 0
      %v4957 = vsel %vm2343, %v4912, 0
      %v4960 = vsel %vm2343, %v4913, 0
      %v4963 = vsel %vm2343, %v4914, 0
      %v4966 = vsel %vm2343, %v4915, 0
      %v4969 = vsel %vm2343, %v4916, 0
      %v4972 = vsel %vm2343, %v4917, 0
      %v4975 = vsel %vm2343, %v4918, 0
      %v4978 = vsel %vm2343, %v4919, 0
      %v4981 = vsel %vm2343, %v4920, 0
      %v4984 = vsel %vm2343, %v4921, 0
      %v4987 = vsel %vm2343, %v4922, 0
      %v4990 = vsel %vm2343, %v4923, 0
      %v4993 = vsel %vm2343, %v4924, 0
      %v4996 = vsel %vm2343, %v4925, 0
      %v4999 = vsel %vm2343, %v4926, 0
      %v5002 = vsel %vm2343, %v4927, 0
      %v5005 = vsel %vm2343, %v4928, 0
      %v5008 = vsel %vm2343, %v4929, 0
      %v5011 = vsel %vm2343, %v4930, 0
      %v5014 = vsel %vm2343, %v4931, 0
      %v5017 = vsel %vm2343, %v4932, 0
      %v5020 = vsel %vm2343, %v4933, 0
      %v5023 = vsel %vm2343, %v4934, 0
      %v5026 = vsel %vm2343, %v4935, 0
      %v5029 = vsel %vm2343, %v4936, 0
      %v5032 = vsel %vm2343, %v4937, 0
      %v5035 = vsel %vm2343, %v4938, 0
      %v5038 = vsel %vm2343, %v4939, 0
      %v5041 = vsel %vm2343, %v4940, 0
      %v5044 = vsel %vm2343, %v4941, 0
      %v5047 = vsel %vm2343, %v4942, 0
      %v5050 = vsel %vm2343, %v4943, 0
      %v5053 = vsel %vm2343, %v4944, 0
      %5055 = vmatprep.subr.mxu0 0.0
      %5056 = vmatpush1.msra.mxu0 %v4946
      %5057 = vmatprep.subr.mxu0 0.0
      %5058 = vmatpush1.msra.mxu0 0.0
      %5059 = vmatprep.subr.mxu0 0.0
      %5060 = vmatpush1.msra.mxu0 0.0
      %5061 = vmatprep.subr.mxu0 0.0
      %5062 = vmatpush1.msra.mxu0 0.0
      %5063 = vmatprep.subr.mxu0 0.0
      %5064 = vmatpush1.msra.mxu0 0.0
      %5065 = vmatprep.subr.mxu0 0.0
      %5066 = vmatpush1.msra.mxu0 0.0
      %5067 = vmatprep.subr.mxu0 0.0
      %5068 = vmatpush1.msra.mxu0 0.0
      %5069 = vmatprep.subr.mxu0 0.0
      %5070 = vmatpush1.msra.mxu0 0.0
      %5071 = vmatprep.subr.mxu0 0.0
      %5072 = vmatpush1.msra.mxu0 0.0
      %5073 = vmatprep.subr.mxu0 0.0
      %5074 = vmatpush1.msra.mxu0 0.0
      %5075 = vmatprep.subr.mxu0 0.0
      %5076 = vmatpush1.msra.mxu0 0.0
      %5077 = vmatprep.subr.mxu0 0.0
      %5078 = vmatpush1.msra.mxu0 0.0
      %5079 = vmatprep.subr.mxu0 0.0
      %5080 = vmatpush1.msra.mxu0 0.0
      %5081 = vmatprep.subr.mxu0 0.0
      %5082 = vmatpush1.msra.mxu0 0.0
      %5083 = vmatprep.subr.mxu0 0.0
      %5084 = vmatpush1.msra.mxu0 0.0
      %5085 = vmatprep.subr.mxu0 0.0
      %5086 = vmatpush1.msra.mxu0 0.0
      %5087 = vmatprep.subr.mxu0 0.0
      %5088 = vmatpush1.msra.mxu0 0.0
      %5089 = vmatprep.subr.mxu0 0.0
      %5090 = vmatpush1.msra.mxu0 0.0
      %5091 = vmatprep.subr.mxu0 0.0
      %5092 = vmatpush1.msra.mxu0 0.0
      %5093 = vmatprep.subr.mxu0 0.0
      %5094 = vmatpush1.msra.mxu0 0.0
      %5095 = vmatprep.subr.mxu0 0.0
      %5096 = vmatpush1.msra.mxu0 0.0
      %5097 = vmatprep.subr.mxu0 0.0
      %5098 = vmatpush1.msra.mxu0 0.0
      %5099 = vmatprep.subr.mxu0 0.0
      %5100 = vmatpush1.msra.mxu0 0.0
      %5101 = vmatprep.subr.mxu0 0.0
      %5102 = vmatpush1.msra.mxu0 0.0
      %5103 = vmatprep.subr.mxu0 0.0
      %5104 = vmatpush1.msra.mxu0 0.0
      %5105 = vmatprep.subr.mxu0 0.0
      %5106 = vmatpush1.msra.mxu0 0.0
      %5107 = vmatprep.subr.mxu0 0.0
      %5108 = vmatpush1.msra.mxu0 0.0
      %5109 = vmatprep.subr.mxu0 0.0
      %5110 = vmatpush1.msra.mxu0 0.0
      %5111 = vmatprep.subr.mxu0 0.0
      %5112 = vmatpush1.msra.mxu0 0.0
      %5113 = vmatprep.subr.mxu0 0.0
      %5114 = vmatpush1.msra.mxu0 0.0
      %5115 = vmatprep.subr.mxu0 0.0
      %5116 = vmatpush1.msra.mxu0 0.0
      %5117 = vmatprep.subr.mxu0 0.0
      %5118 = vmatpush1.msra.mxu0 0.0
      %5119 = vmatprep.mubr.f32.mxu0 0.0
      %5120 = vmatmul.mubr.f32.gmra.mrb[0].mxu0 %v4948
      %v5121 = vpop.f32.mrb[0].mxu0
      %v5122 = vadd.f32 0.0, %v5121
      %v5123 = vpop.f32.mrb[0].mxu0
      %5124 = vmatprep.mubr.f32.mxu0 0.0
      %5125 = vmatmul.mubr.f32.gmra.mrb[0].mxu0 %v4951
      %v5126 = vpop.f32.mrb[0].mxu0
      %v5127 = vadd.f32 0.0, %v5126
      %v5128 = vpop.f32.mrb[0].mxu0
      %5129 = vmatprep.mubr.f32.mxu0 0.0
      %5130 = vmatmul.mubr.f32.gmra.mrb[0].mxu0 %v4954
      %v5131 = vpop.f32.mrb[0].mxu0
      %v5132 = vadd.f32 0.0, %v5131
      %v5133 = vpop.f32.mrb[0].mxu0
      %5134 = vmatprep.mubr.f32.mxu0 0.0
      %5135 = vmatmul.mubr.f32.gmra.mrb[0].mxu0 %v4957
      %v5136 = vpop.f32.mrb[0].mxu0
      %v5137 = vadd.f32 0.0, %v5136
      %v5138 = vpop.f32.mrb[0].mxu0
      %5139 = vmatprep.mubr.f32.mxu0 0.0
      %5140 = vmatmul.mubr.f32.gmra.mrb[0].mxu0 %v4960
      %v5141 = vpop.f32.mrb[0].mxu0
      %v5142 = vadd.f32 0.0, %v5141
      %v5143 = vpop.f32.mrb[0].mxu0
      %5144 = vmatprep.mubr.f32.mxu0 0.0
      %5145 = vmatmul.mubr.f32.gmra.mrb[0].mxu0 %v4963
      %v5146 = vpop.f32.mrb[0].mxu0
      %v5147 = vadd.f32 0.0, %v5146
      %v5148 = vpop.f32.mrb[0].mxu0
      %5149 = vmatprep.mubr.f32.mxu0 0.0
      %5150 = vmatmul.mubr.f32.gmra.mrb[0].mxu0 %v4966
      %v5151 = vpop.f32.mrb[0].mxu0
      %v5152 = vadd.f32 0.0, %v5151
      %v5153 = vpop.f32.mrb[0].mxu0
      %5154 = vmatprep.mubr.f32.mxu0 0.0
      %5155 = vmatmul.mubr.f32.gmra.mrb[0].mxu0 %v4969
      %v5156 = vpop.f32.mrb[0].mxu0
      %v5157 = vadd.f32 0.0, %v5156
      %v5158 = vpop.f32.mrb[0].mxu0
      %5159 = vmatprep.mubr.f32.mxu0 0.0
      %5160 = vmatmul.mubr.f32.gmra.mrb[0].mxu0 %v4972
      %v5161 = vpop.f32.mrb[0].mxu0
      %v5162 = vadd.f32 0.0, %v5161
      %v5163 = vpop.f32.mrb[0].mxu0
      %5164 = vmatprep.mubr.f32.mxu0 0.0
      %5165 = vmatmul.mubr.f32.gmra.mrb[0].mxu0 %v4975
      %v5166 = vpop.f32.mrb[0].mxu0
      %v5167 = vadd.f32 0.0, %v5166
      %v5168 = vpop.f32.mrb[0].mxu0
      %5169 = vmatprep.mubr.f32.mxu0 0.0
      %5170 = vmatmul.mubr.f32.gmra.mrb[0].mxu0 %v4978
      %v5171 = vpop.f32.mrb[0].mxu0
      %v5172 = vadd.f32 0.0, %v5171
      %v5173 = vpop.f32.mrb[0].mxu0
      %5174 = vmatprep.mubr.f32.mxu0 0.0
      %5175 = vmatmul.mubr.f32.gmra.mrb[0].mxu0 %v4981
      %v5176 = vpop.f32.mrb[0].mxu0
      %v5177 = vadd.f32 0.0, %v5176
      %v5178 = vpop.f32.mrb[0].mxu0
      %5179 = vmatprep.mubr.f32.mxu0 0.0
      %5180 = vmatmul.mubr.f32.gmra.mrb[0].mxu0 %v4984
      %v5181 = vpop.f32.mrb[0].mxu0
      %v5182 = vadd.f32 0.0, %v5181
      %v5183 = vpop.f32.mrb[0].mxu0
      %5184 = vmatprep.mubr.f32.mxu0 0.0
      %5185 = vmatmul.mubr.f32.gmra.mrb[0].mxu0 %v4987
      %v5186 = vpop.f32.mrb[0].mxu0
      %v5187 = vadd.f32 0.0, %v5186
      %v5188 = vpop.f32.mrb[0].mxu0
      %5189 = vmatprep.mubr.f32.mxu0 0.0
      %5190 = vmatmul.mubr.f32.gmra.mrb[0].mxu0 %v4990
      %v5191 = vpop.f32.mrb[0].mxu0
      %v5192 = vadd.f32 0.0, %v5191
      %v5193 = vpop.f32.mrb[0].mxu0
      %5194 = vmatprep.mubr.f32.mxu0 0.0
      %5195 = vmatmul.mubr.f32.gmra.mrb[0].mxu0 %v4993
      %v5196 = vpop.f32.mrb[0].mxu0
      %v5197 = vadd.f32 0.0, %v5196
      %v5198 = vpop.f32.mrb[0].mxu0
      %5199 = vmatprep.mubr.f32.mxu0 0.0
      %5200 = vmatmul.mubr.f32.gmra.mrb[0].mxu0 %v4996
      %v5201 = vpop.f32.mrb[0].mxu0
      %v5202 = vadd.f32 0.0, %v5201
      %v5203 = vpop.f32.mrb[0].mxu0
      %5204 = vmatprep.mubr.f32.mxu0 0.0
      %5205 = vmatmul.mubr.f32.gmra.mrb[0].mxu0 %v4999
      %v5206 = vpop.f32.mrb[0].mxu0
      %v5207 = vadd.f32 0.0, %v5206
      %v5208 = vpop.f32.mrb[0].mxu0
      %5209 = vmatprep.mubr.f32.mxu0 0.0
      %5210 = vmatmul.mubr.f32.gmra.mrb[0].mxu0 %v5002
      %v5211 = vpop.f32.mrb[0].mxu0
      %v5212 = vadd.f32 0.0, %v5211
      %v5213 = vpop.f32.mrb[0].mxu0
      %5214 = vmatprep.mubr.f32.mxu0 0.0
      %5215 = vmatmul.mubr.f32.gmra.mrb[0].mxu0 %v5005
      %v5216 = vpop.f32.mrb[0].mxu0
      %v5217 = vadd.f32 0.0, %v5216
      %v5218 = vpop.f32.mrb[0].mxu0
      %5219 = vmatprep.mubr.f32.mxu0 0.0
      %5220 = vmatmul.mubr.f32.gmra.mrb[0].mxu0 %v5008
      %v5221 = vpop.f32.mrb[0].mxu0
      %v5222 = vadd.f32 0.0, %v5221
      %v5223 = vpop.f32.mrb[0].mxu0
      %5224 = vmatprep.mubr.f32.mxu0 0.0
      %5225 = vmatmul.mubr.f32.gmra.mrb[0].mxu0 %v5011
      %v5226 = vpop.f32.mrb[0].mxu0
      %v5227 = vadd.f32 0.0, %v5226
      %v5228 = vpop.f32.mrb[0].mxu0
      %5229 = vmatprep.mubr.f32.mxu0 0.0
      %5230 = vmatmul.mubr.f32.gmra.mrb[0].mxu0 %v5014
      %v5231 = vpop.f32.mrb[0].mxu0
      %v5232 = vadd.f32 0.0, %v5231
      %v5233 = vpop.f32.mrb[0].mxu0
      %5234 = vmatprep.mubr.f32.mxu0 0.0
      %5235 = vmatmul.mubr.f32.gmra.mrb[0].mxu0 %v5017
      %v5236 = vpop.f32.mrb[0].mxu0
      %v5237 = vadd.f32 0.0, %v5236
      %v5238 = vpop.f32.mrb[0].mxu0
      %5239 = vmatprep.mubr.f32.mxu0 0.0
      %5240 = vmatmul.mubr.f32.gmra.mrb[0].mxu0 %v5020
      %v5241 = vpop.f32.mrb[0].mxu0
      %v5242 = vadd.f32 0.0, %v5241
      %v5243 = vpop.f32.mrb[0].mxu0
      %5244 = vmatprep.mubr.f32.mxu0 0.0
      %5245 = vmatmul.mubr.f32.gmra.mrb[0].mxu0 %v5023
      %v5246 = vpop.f32.mrb[0].mxu0
      %v5247 = vadd.f32 0.0, %v5246
      %v5248 = vpop.f32.mrb[0].mxu0
      %5249 = vmatprep.mubr.f32.mxu0 0.0
      %5250 = vmatmul.mubr.f32.gmra.mrb[0].mxu0 %v5026
      %v5251 = vpop.f32.mrb[0].mxu0
      %v5252 = vadd.f32 0.0, %v5251
      %v5253 = vpop.f32.mrb[0].mxu0
      %5254 = vmatprep.mubr.f32.mxu0 0.0
      %5255 = vmatmul.mubr.f32.gmra.mrb[0].mxu0 %v5029
      %v5256 = vpop.f32.mrb[0].mxu0
      %v5257 = vadd.f32 0.0, %v5256
      %v5258 = vpop.f32.mrb[0].mxu0
      %5259 = vmatprep.mubr.f32.mxu0 0.0
      %5260 = vmatmul.mubr.f32.gmra.mrb[0].mxu0 %v5032
      %v5261 = vpop.f32.mrb[0].mxu0
      %v5262 = vadd.f32 0.0, %v5261
      %v5263 = vpop.f32.mrb[0].mxu0
      %5264 = vmatprep.mubr.f32.mxu0 0.0
      %5265 = vmatmul.mubr.f32.gmra.mrb[0].mxu0 %v5035
      %v5266 = vpop.f32.mrb[0].mxu0
      %v5267 = vadd.f32 0.0, %v5266
      %v5268 = vpop.f32.mrb[0].mxu0
      %5269 = vmatprep.mubr.f32.mxu0 0.0
      %5270 = vmatmul.mubr.f32.gmra.mrb[0].mxu0 %v5038
      %v5271 = vpop.f32.mrb[0].mxu0
      %v5272 = vadd.f32 0.0, %v5271
      %v5273 = vpop.f32.mrb[0].mxu0
      %5274 = vmatprep.mubr.f32.mxu0 0.0
      %5275 = vmatmul.mubr.f32.gmra.mrb[0].mxu0 %v5041
      %v5276 = vpop.f32.mrb[0].mxu0
      %v5277 = vadd.f32 0.0, %v5276
      %v5278 = vpop.f32.mrb[0].mxu0
      %5279 = vmatprep.mubr.f32.mxu0 0.0
      %5280 = vmatmul.mubr.f32.gmra.mrb[0].mxu0 %v5044
      %v5281 = vpop.f32.mrb[0].mxu0
      %v5282 = vadd.f32 0.0, %v5281
      %v5283 = vpop.f32.mrb[0].mxu0
      %5284 = vmatprep.mubr.f32.mxu0 0.0
      %5285 = vmatmul.mubr.f32.gmra.mrb[0].mxu0 %v5047
      %v5286 = vpop.f32.mrb[0].mxu0
      %v5287 = vadd.f32 0.0, %v5286
      %v5288 = vpop.f32.mrb[0].mxu0
      %5289 = vmatprep.mubr.f32.mxu0 0.0
      %5290 = vmatmul.mubr.f32.gmra.mrb[0].mxu0 %v5050
      %v5291 = vpop.f32.mrb[0].mxu0
      %v5292 = vadd.f32 0.0, %v5291
      %v5293 = vpop.f32.mrb[0].mxu0
      %5294 = vmatprep.mubr.f32.mxu0 0.0
      %5295 = vmatmul.mubr.f32.gmra.mrb[0].mxu0 %v5053
      %v5296 = vpop.f32.mrb[0].mxu0
      %v5297 = vadd.f32 0.0, %v5296
      %v5298 = vpop.f32.mrb[0].mxu0
      %5299 = vdwg.mxu0
      %v5300 = vadd.f32 %v4873, %v5122
      %v5301 = vadd.f32 %v4874, %v5127
      %v5302 = vadd.f32 %v4875, %v5132
      %v5303 = vadd.f32 %v4876, %v5137
      %v5304 = vadd.f32 %v4877, %v5142
      %v5305 = vadd.f32 %v4878, %v5147
      %v5306 = vadd.f32 %v4879, %v5152
      %v5307 = vadd.f32 %v4880, %v5157
      %v5308 = vadd.f32 %v4881, %v5162
      %v5309 = vadd.f32 %v4882, %v5167
      %v5310 = vadd.f32 %v4883, %v5172
      %v5311 = vadd.f32 %v4884, %v5177
      %v5312 = vadd.f32 %v4885, %v5182
      %v5313 = vadd.f32 %v4886, %v5187
      %v5314 = vadd.f32 %v4887, %v5192
      %v5315 = vadd.f32 %v4888, %v5197
      %v5316 = vadd.f32 %v4889, %v5202
      %v5317 = vadd.f32 %v4890, %v5207
      %v5318 = vadd.f32 %v4891, %v5212
      %v5319 = vadd.f32 %v4892, %v5217
      %v5320 = vadd.f32 %v4893, %v5222
      %v5321 = vadd.f32 %v4894, %v5227
      %v5322 = vadd.f32 %v4895, %v5232
      %v5323 = vadd.f32 %v4896, %v5237
      %v5324 = vadd.f32 %v4897, %v5242
      %v5325 = vadd.f32 %v4898, %v5247
      %v5326 = vadd.f32 %v4899, %v5252
      %v5327 = vadd.f32 %v4900, %v5257
      %v5328 = vadd.f32 %v4901, %v5262
      %v5329 = vadd.f32 %v4902, %v5267
      %v5330 = vadd.f32 %v4903, %v5272
      %v5331 = vadd.f32 %v4904, %v5277
      %v5332 = vadd.f32 %v4905, %v5282
      %v5333 = vadd.f32 %v4906, %v5287
      %v5334 = vadd.f32 %v4907, %v5292
      %v5335 = vadd.f32 %v4908, %v5297
      %v5336 = vld [vmem:[#allocation2 + $0x25] sm:$0xff]
      %v5337 = vld [vmem:[#allocation2 + $0x2d] sm:$0xff]
      %v5338 = vld [vmem:[#allocation2 + $0x35] sm:$0xff]
      %v5339 = vld [vmem:[#allocation2 + $0x3d] sm:$0xff]
      %v5340 = vld [vmem:[#allocation2 + $0x45] sm:$0xff]
      %v5341 = vld [vmem:[#allocation2 + $0x4d] sm:$0xff]
      %v5342 = vld [vmem:[#allocation2 + $0x55] sm:$0xff]
      %v5343 = vld [vmem:[#allocation2 + $0x5d] sm:$0xff]
      %v5344 = vld [vmem:[#allocation2 + $0x65] sm:$0xff]
      %v5345 = vld [vmem:[#allocation2 + $0x6d] sm:$0xff]
      %v5346 = vld [vmem:[#allocation2 + $0x75] sm:$0xff]
      %v5347 = vld [vmem:[#allocation2 + $0x7d] sm:$0xff]
      %v5348 = vld [vmem:[#allocation2 + $0x85] sm:$0xff]
      %v5349 = vld [vmem:[#allocation2 + $0x8d] sm:$0xff]
      %v5350 = vld [vmem:[#allocation2 + $0x95] sm:$0xff]
      %v5351 = vld [vmem:[#allocation2 + $0x9d] sm:$0xff]
      %v5352 = vld [vmem:[#allocation2 + $0xa5] sm:$0xff]
      %v5353 = vld [vmem:[#allocation2 + $0xad] sm:$0xff]
      %v5354 = vld [vmem:[#allocation2 + $0xb5] sm:$0xff]
      %v5355 = vld [vmem:[#allocation2 + $0xbd] sm:$0xff]
      %v5356 = vld [vmem:[#allocation2 + $0xc5] sm:$0xff]
      %v5357 = vld [vmem:[#allocation2 + $0xcd] sm:$0xff]
      %v5358 = vld [vmem:[#allocation2 + $0xd5] sm:$0xff]
      %v5359 = vld [vmem:[#allocation2 + $0xdd] sm:$0xff]
      %v5360 = vld [vmem:[#allocation2 + $0xe5] sm:$0xff]
      %v5361 = vld [vmem:[#allocation2 + $0xed] sm:$0xff]
      %v5362 = vld [vmem:[#allocation2 + $0xf5] sm:$0xff]
      %v5363 = vld [vmem:[#allocation2 + $0xfd] sm:$0xff]
      %v5364 = vld [vmem:[#allocation2 + $0x105] sm:$0xff]
      %v5365 = vld [vmem:[#allocation2 + $0x10d] sm:$0xff]
      %v5366 = vld [vmem:[#allocation2 + $0x115] sm:$0xff]
      %v5367 = vld [vmem:[#allocation2 + $0x11d] sm:$0xff]
      %v5368 = vld [vmem:[#allocation2 + $0x125] sm:$0xff]
      %v5369 = vld [vmem:[#allocation2 + $0x12d] sm:$0xff]
      %v5370 = vld [vmem:[#allocation2 + $0x135] sm:$0xff]
      %v5371 = vld [vmem:[#allocation2 + $0x13d] sm:$0xff]
      %s5372 = scalar_lea.vmem %s9, 56
      %v5373 = vld [vmem:[%s5372] sm:$0xff]
      %v5375 = vsel %vm2343, %v5336, 0
      %v5378 = vsel %vm2343, %v5337, 0
      %v5381 = vsel %vm2343, %v5338, 0
      %v5384 = vsel %vm2343, %v5339, 0
      %v5387 = vsel %vm2343, %v5340, 0
      %v5390 = vsel %vm2343, %v5341, 0
      %v5393 = vsel %vm2343, %v5342, 0
      %v5396 = vsel %vm2343, %v5343, 0
      %v5399 = vsel %vm2343, %v5344, 0
      %v5402 = vsel %vm2343, %v5345, 0
      %v5405 = vsel %vm2343, %v5346, 0
      %v5408 = vsel %vm2343, %v5347, 0
      %v5411 = vsel %vm2343, %v5348, 0
      %v5414 = vsel %vm2343, %v5349, 0
      %v5417 = vsel %vm2343, %v5350, 0
      %v5420 = vsel %vm2343, %v5351, 0
      %v5423 = vsel %vm2343, %v5352, 0
      %v5426 = vsel %vm2343, %v5353, 0
      %v5429 = vsel %vm2343, %v5354, 0
      %v5432 = vsel %vm2343, %v5355, 0
      %v5435 = vsel %vm2343, %v5356, 0
      %v5438 = vsel %vm2343, %v5357, 0
      %v5441 = vsel %vm2343, %v5358, 0
      %v5444 = vsel %vm2343, %v5359, 0
      %v5447 = vsel %vm2343, %v5360, 0
      %v5450 = vsel %vm2343, %v5361, 0
      %v5453 = vsel %vm2343, %v5362, 0
      %v5456 = vsel %vm2343, %v5363, 0
      %v5459 = vsel %vm2343, %v5364, 0
      %v5462 = vsel %vm2343, %v5365, 0
      %v5465 = vsel %vm2343, %v5366, 0
      %v5468 = vsel %vm2343, %v5367, 0
      %v5471 = vsel %vm2343, %v5368, 0
      %v5474 = vsel %vm2343, %v5369, 0
      %v5477 = vsel %vm2343, %v5370, 0
      %v5480 = vsel %vm2343, %v5371, 0
      %5482 = vmatprep.subr.mxu0 0.0
      %5483 = vmatpush1.msra.mxu0 %v5373
      %5484 = vmatprep.subr.mxu0 0.0
      %5485 = vmatpush1.msra.mxu0 0.0
      %5486 = vmatprep.subr.mxu0 0.0
      %5487 = vmatpush1.msra.mxu0 0.0
      %5488 = vmatprep.subr.mxu0 0.0
      %5489 = vmatpush1.msra.mxu0 0.0
      %5490 = vmatprep.subr.mxu0 0.0
      %5491 = vmatpush1.msra.mxu0 0.0
      %5492 = vmatprep.subr.mxu0 0.0
      %5493 = vmatpush1.msra.mxu0 0.0
      %5494 = vmatprep.subr.mxu0 0.0
      %5495 = vmatpush1.msra.mxu0 0.0
      %5496 = vmatprep.subr.mxu0 0.0
      %5497 = vmatpush1.msra.mxu0 0.0
      %5498 = vmatprep.subr.mxu0 0.0
      %5499 = vmatpush1.msra.mxu0 0.0
      %5500 = vmatprep.subr.mxu0 0.0
      %5501 = vmatpush1.msra.mxu0 0.0
      %5502 = vmatprep.subr.mxu0 0.0
      %5503 = vmatpush1.msra.mxu0 0.0
      %5504 = vmatprep.subr.mxu0 0.0
      %5505 = vmatpush1.msra.mxu0 0.0
      %5506 = vmatprep.subr.mxu0 0.0
      %5507 = vmatpush1.msra.mxu0 0.0
      %5508 = vmatprep.subr.mxu0 0.0
      %5509 = vmatpush1.msra.mxu0 0.0
      %5510 = vmatprep.subr.mxu0 0.0
      %5511 = vmatpush1.msra.mxu0 0.0
      %5512 = vmatprep.subr.mxu0 0.0
      %5513 = vmatpush1.msra.mxu0 0.0
      %5514 = vmatprep.subr.mxu0 0.0
      %5515 = vmatpush1.msra.mxu0 0.0
      %5516 = vmatprep.subr.mxu0 0.0
      %5517 = vmatpush1.msra.mxu0 0.0
      %5518 = vmatprep.subr.mxu0 0.0
      %5519 = vmatpush1.msra.mxu0 0.0
      %5520 = vmatprep.subr.mxu0 0.0
      %5521 = vmatpush1.msra.mxu0 0.0
      %5522 = vmatprep.subr.mxu0 0.0
      %5523 = vmatpush1.msra.mxu0 0.0
      %5524 = vmatprep.subr.mxu0 0.0
      %5525 = vmatpush1.msra.mxu0 0.0
      %5526 = vmatprep.subr.mxu0 0.0
      %5527 = vmatpush1.msra.mxu0 0.0
      %5528 = vmatprep.subr.mxu0 0.0
      %5529 = vmatpush1.msra.mxu0 0.0
      %5530 = vmatprep.subr.mxu0 0.0
      %5531 = vmatpush1.msra.mxu0 0.0
      %5532 = vmatprep.subr.mxu0 0.0
      %5533 = vmatpush1.msra.mxu0 0.0
      %5534 = vmatprep.subr.mxu0 0.0
      %5535 = vmatpush1.msra.mxu0 0.0
      %5536 = vmatprep.subr.mxu0 0.0
      %5537 = vmatpush1.msra.mxu0 0.0
      %5538 = vmatprep.subr.mxu0 0.0
      %5539 = vmatpush1.msra.mxu0 0.0
      %5540 = vmatprep.subr.mxu0 0.0
      %5541 = vmatpush1.msra.mxu0 0.0
      %5542 = vmatprep.subr.mxu0 0.0
      %5543 = vmatpush1.msra.mxu0 0.0
      %5544 = vmatprep.subr.mxu0 0.0
      %5545 = vmatpush1.msra.mxu0 0.0
      %5546 = vmatprep.mubr.f32.mxu0 0.0
      %5547 = vmatmul.mubr.f32.gmra.mrb[0].mxu0 %v5375
      %v5548 = vpop.f32.mrb[0].mxu0
      %v5549 = vadd.f32 0.0, %v5548
      %v5550 = vpop.f32.mrb[0].mxu0
      %5551 = vmatprep.mubr.f32.mxu0 0.0
      %5552 = vmatmul.mubr.f32.gmra.mrb[0].mxu0 %v5378
      %v5553 = vpop.f32.mrb[0].mxu0
      %v5554 = vadd.f32 0.0, %v5553
      %v5555 = vpop.f32.mrb[0].mxu0
      %5556 = vmatprep.mubr.f32.mxu0 0.0
      %5557 = vmatmul.mubr.f32.gmra.mrb[0].mxu0 %v5381
      %v5558 = vpop.f32.mrb[0].mxu0
      %v5559 = vadd.f32 0.0, %v5558
      %v5560 = vpop.f32.mrb[0].mxu0
      %5561 = vmatprep.mubr.f32.mxu0 0.0
      %5562 = vmatmul.mubr.f32.gmra.mrb[0].mxu0 %v5384
      %v5563 = vpop.f32.mrb[0].mxu0
      %v5564 = vadd.f32 0.0, %v5563
      %v5565 = vpop.f32.mrb[0].mxu0
      %5566 = vmatprep.mubr.f32.mxu0 0.0
      %5567 = vmatmul.mubr.f32.gmra.mrb[0].mxu0 %v5387
      %v5568 = vpop.f32.mrb[0].mxu0
      %v5569 = vadd.f32 0.0, %v5568
      %v5570 = vpop.f32.mrb[0].mxu0
      %5571 = vmatprep.mubr.f32.mxu0 0.0
      %5572 = vmatmul.mubr.f32.gmra.mrb[0].mxu0 %v5390
      %v5573 = vpop.f32.mrb[0].mxu0
      %v5574 = vadd.f32 0.0, %v5573
      %v5575 = vpop.f32.mrb[0].mxu0
      %5576 = vmatprep.mubr.f32.mxu0 0.0
      %5577 = vmatmul.mubr.f32.gmra.mrb[0].mxu0 %v5393
      %v5578 = vpop.f32.mrb[0].mxu0
      %v5579 = vadd.f32 0.0, %v5578
      %v5580 = vpop.f32.mrb[0].mxu0
      %5581 = vmatprep.mubr.f32.mxu0 0.0
      %5582 = vmatmul.mubr.f32.gmra.mrb[0].mxu0 %v5396
      %v5583 = vpop.f32.mrb[0].mxu0
      %v5584 = vadd.f32 0.0, %v5583
      %v5585 = vpop.f32.mrb[0].mxu0
      %5586 = vmatprep.mubr.f32.mxu0 0.0
      %5587 = vmatmul.mubr.f32.gmra.mrb[0].mxu0 %v5399
      %v5588 = vpop.f32.mrb[0].mxu0
      %v5589 = vadd.f32 0.0, %v5588
      %v5590 = vpop.f32.mrb[0].mxu0
      %5591 = vmatprep.mubr.f32.mxu0 0.0
      %5592 = vmatmul.mubr.f32.gmra.mrb[0].mxu0 %v5402
      %v5593 = vpop.f32.mrb[0].mxu0
      %v5594 = vadd.f32 0.0, %v5593
      %v5595 = vpop.f32.mrb[0].mxu0
      %5596 = vmatprep.mubr.f32.mxu0 0.0
      %5597 = vmatmul.mubr.f32.gmra.mrb[0].mxu0 %v5405
      %v5598 = vpop.f32.mrb[0].mxu0
      %v5599 = vadd.f32 0.0, %v5598
      %v5600 = vpop.f32.mrb[0].mxu0
      %5601 = vmatprep.mubr.f32.mxu0 0.0
      %5602 = vmatmul.mubr.f32.gmra.mrb[0].mxu0 %v5408
      %v5603 = vpop.f32.mrb[0].mxu0
      %v5604 = vadd.f32 0.0, %v5603
      %v5605 = vpop.f32.mrb[0].mxu0
      %5606 = vmatprep.mubr.f32.mxu0 0.0
      %5607 = vmatmul.mubr.f32.gmra.mrb[0].mxu0 %v5411
      %v5608 = vpop.f32.mrb[0].mxu0
      %v5609 = vadd.f32 0.0, %v5608
      %v5610 = vpop.f32.mrb[0].mxu0
      %5611 = vmatprep.mubr.f32.mxu0 0.0
      %5612 = vmatmul.mubr.f32.gmra.mrb[0].mxu0 %v5414
      %v5613 = vpop.f32.mrb[0].mxu0
      %v5614 = vadd.f32 0.0, %v5613
      %v5615 = vpop.f32.mrb[0].mxu0
      %5616 = vmatprep.mubr.f32.mxu0 0.0
      %5617 = vmatmul.mubr.f32.gmra.mrb[0].mxu0 %v5417
      %v5618 = vpop.f32.mrb[0].mxu0
      %v5619 = vadd.f32 0.0, %v5618
      %v5620 = vpop.f32.mrb[0].mxu0
      %5621 = vmatprep.mubr.f32.mxu0 0.0
      %5622 = vmatmul.mubr.f32.gmra.mrb[0].mxu0 %v5420
      %v5623 = vpop.f32.mrb[0].mxu0
      %v5624 = vadd.f32 0.0, %v5623
      %v5625 = vpop.f32.mrb[0].mxu0
      %5626 = vmatprep.mubr.f32.mxu0 0.0
      %5627 = vmatmul.mubr.f32.gmra.mrb[0].mxu0 %v5423
      %v5628 = vpop.f32.mrb[0].mxu0
      %v5629 = vadd.f32 0.0, %v5628
      %v5630 = vpop.f32.mrb[0].mxu0
      %5631 = vmatprep.mubr.f32.mxu0 0.0
      %5632 = vmatmul.mubr.f32.gmra.mrb[0].mxu0 %v5426
      %v5633 = vpop.f32.mrb[0].mxu0
      %v5634 = vadd.f32 0.0, %v5633
      %v5635 = vpop.f32.mrb[0].mxu0
      %5636 = vmatprep.mubr.f32.mxu0 0.0
      %5637 = vmatmul.mubr.f32.gmra.mrb[0].mxu0 %v5429
      %v5638 = vpop.f32.mrb[0].mxu0
      %v5639 = vadd.f32 0.0, %v5638
      %v5640 = vpop.f32.mrb[0].mxu0
      %5641 = vmatprep.mubr.f32.mxu0 0.0
      %5642 = vmatmul.mubr.f32.gmra.mrb[0].mxu0 %v5432
      %v5643 = vpop.f32.mrb[0].mxu0
      %v5644 = vadd.f32 0.0, %v5643
      %v5645 = vpop.f32.mrb[0].mxu0
      %5646 = vmatprep.mubr.f32.mxu0 0.0
      %5647 = vmatmul.mubr.f32.gmra.mrb[0].mxu0 %v5435
      %v5648 = vpop.f32.mrb[0].mxu0
      %v5649 = vadd.f32 0.0, %v5648
      %v5650 = vpop.f32.mrb[0].mxu0
      %5651 = vmatprep.mubr.f32.mxu0 0.0
      %5652 = vmatmul.mubr.f32.gmra.mrb[0].mxu0 %v5438
      %v5653 = vpop.f32.mrb[0].mxu0
      %v5654 = vadd.f32 0.0, %v5653
      %v5655 = vpop.f32.mrb[0].mxu0
      %5656 = vmatprep.mubr.f32.mxu0 0.0
      %5657 = vmatmul.mubr.f32.gmra.mrb[0].mxu0 %v5441
      %v5658 = vpop.f32.mrb[0].mxu0
      %v5659 = vadd.f32 0.0, %v5658
      %v5660 = vpop.f32.mrb[0].mxu0
      %5661 = vmatprep.mubr.f32.mxu0 0.0
      %5662 = vmatmul.mubr.f32.gmra.mrb[0].mxu0 %v5444
      %v5663 = vpop.f32.mrb[0].mxu0
      %v5664 = vadd.f32 0.0, %v5663
      %v5665 = vpop.f32.mrb[0].mxu0
      %5666 = vmatprep.mubr.f32.mxu0 0.0
      %5667 = vmatmul.mubr.f32.gmra.mrb[0].mxu0 %v5447
      %v5668 = vpop.f32.mrb[0].mxu0
      %v5669 = vadd.f32 0.0, %v5668
      %v5670 = vpop.f32.mrb[0].mxu0
      %5671 = vmatprep.mubr.f32.mxu0 0.0
      %5672 = vmatmul.mubr.f32.gmra.mrb[0].mxu0 %v5450
      %v5673 = vpop.f32.mrb[0].mxu0
      %v5674 = vadd.f32 0.0, %v5673
      %v5675 = vpop.f32.mrb[0].mxu0
      %5676 = vmatprep.mubr.f32.mxu0 0.0
      %5677 = vmatmul.mubr.f32.gmra.mrb[0].mxu0 %v5453
      %v5678 = vpop.f32.mrb[0].mxu0
      %v5679 = vadd.f32 0.0, %v5678
      %v5680 = vpop.f32.mrb[0].mxu0
      %5681 = vmatprep.mubr.f32.mxu0 0.0
      %5682 = vmatmul.mubr.f32.gmra.mrb[0].mxu0 %v5456
      %v5683 = vpop.f32.mrb[0].mxu0
      %v5684 = vadd.f32 0.0, %v5683
      %v5685 = vpop.f32.mrb[0].mxu0
      %5686 = vmatprep.mubr.f32.mxu0 0.0
      %5687 = vmatmul.mubr.f32.gmra.mrb[0].mxu0 %v5459
      %v5688 = vpop.f32.mrb[0].mxu0
      %v5689 = vadd.f32 0.0, %v5688
      %v5690 = vpop.f32.mrb[0].mxu0
      %5691 = vmatprep.mubr.f32.mxu0 0.0
      %5692 = vmatmul.mubr.f32.gmra.mrb[0].mxu0 %v5462
      %v5693 = vpop.f32.mrb[0].mxu0
      %v5694 = vadd.f32 0.0, %v5693
      %v5695 = vpop.f32.mrb[0].mxu0
      %5696 = vmatprep.mubr.f32.mxu0 0.0
      %5697 = vmatmul.mubr.f32.gmra.mrb[0].mxu0 %v5465
      %v5698 = vpop.f32.mrb[0].mxu0
      %v5699 = vadd.f32 0.0, %v5698
      %v5700 = vpop.f32.mrb[0].mxu0
      %5701 = vmatprep.mubr.f32.mxu0 0.0
      %5702 = vmatmul.mubr.f32.gmra.mrb[0].mxu0 %v5468
      %v5703 = vpop.f32.mrb[0].mxu0
      %v5704 = vadd.f32 0.0, %v5703
      %v5705 = vpop.f32.mrb[0].mxu0
      %5706 = vmatprep.mubr.f32.mxu0 0.0
      %5707 = vmatmul.mubr.f32.gmra.mrb[0].mxu0 %v5471
      %v5708 = vpop.f32.mrb[0].mxu0
      %v5709 = vadd.f32 0.0, %v5708
      %v5710 = vpop.f32.mrb[0].mxu0
      %5711 = vmatprep.mubr.f32.mxu0 0.0
      %5712 = vmatmul.mubr.f32.gmra.mrb[0].mxu0 %v5474
      %v5713 = vpop.f32.mrb[0].mxu0
      %v5714 = vadd.f32 0.0, %v5713
      %v5715 = vpop.f32.mrb[0].mxu0
      %5716 = vmatprep.mubr.f32.mxu0 0.0
      %5717 = vmatmul.mubr.f32.gmra.mrb[0].mxu0 %v5477
      %v5718 = vpop.f32.mrb[0].mxu0
      %v5719 = vadd.f32 0.0, %v5718
      %v5720 = vpop.f32.mrb[0].mxu0
      %5721 = vmatprep.mubr.f32.mxu0 0.0
      %5722 = vmatmul.mubr.f32.gmra.mrb[0].mxu0 %v5480
      %v5723 = vpop.f32.mrb[0].mxu0
      %v5724 = vadd.f32 0.0, %v5723
      %v5725 = vpop.f32.mrb[0].mxu0
      %5726 = vdwg.mxu0
      %v5727 = vadd.f32 %v5300, %v5549
      %v5728 = vadd.f32 %v5301, %v5554
      %v5729 = vadd.f32 %v5302, %v5559
      %v5730 = vadd.f32 %v5303, %v5564
      %v5731 = vadd.f32 %v5304, %v5569
      %v5732 = vadd.f32 %v5305, %v5574
      %v5733 = vadd.f32 %v5306, %v5579
      %v5734 = vadd.f32 %v5307, %v5584
      %v5735 = vadd.f32 %v5308, %v5589
      %v5736 = vadd.f32 %v5309, %v5594
      %v5737 = vadd.f32 %v5310, %v5599
      %v5738 = vadd.f32 %v5311, %v5604
      %v5739 = vadd.f32 %v5312, %v5609
      %v5740 = vadd.f32 %v5313, %v5614
      %v5741 = vadd.f32 %v5314, %v5619
      %v5742 = vadd.f32 %v5315, %v5624
      %v5743 = vadd.f32 %v5316, %v5629
      %v5744 = vadd.f32 %v5317, %v5634
      %v5745 = vadd.f32 %v5318, %v5639
      %v5746 = vadd.f32 %v5319, %v5644
      %v5747 = vadd.f32 %v5320, %v5649
      %v5748 = vadd.f32 %v5321, %v5654
      %v5749 = vadd.f32 %v5322, %v5659
      %v5750 = vadd.f32 %v5323, %v5664
      %v5751 = vadd.f32 %v5324, %v5669
      %v5752 = vadd.f32 %v5325, %v5674
      %v5753 = vadd.f32 %v5326, %v5679
      %v5754 = vadd.f32 %v5327, %v5684
      %v5755 = vadd.f32 %v5328, %v5689
      %v5756 = vadd.f32 %v5329, %v5694
      %v5757 = vadd.f32 %v5330, %v5699
      %v5758 = vadd.f32 %v5331, %v5704
      %v5759 = vadd.f32 %v5332, %v5709
      %v5760 = vadd.f32 %v5333, %v5714
      %v5761 = vadd.f32 %v5334, %v5719
      %v5762 = vadd.f32 %v5335, %v5724
      %v5763 = vld [vmem:[#allocation2 + $0x26] sm:$0xff]
      %v5764 = vld [vmem:[#allocation2 + $0x2e] sm:$0xff]
      %v5765 = vld [vmem:[#allocation2 + $0x36] sm:$0xff]
      %v5766 = vld [vmem:[#allocation2 + $0x3e] sm:$0xff]
      %v5767 = vld [vmem:[#allocation2 + $0x46] sm:$0xff]
      %v5768 = vld [vmem:[#allocation2 + $0x4e] sm:$0xff]
      %v5769 = vld [vmem:[#allocation2 + $0x56] sm:$0xff]
      %v5770 = vld [vmem:[#allocation2 + $0x5e] sm:$0xff]
      %v5771 = vld [vmem:[#allocation2 + $0x66] sm:$0xff]
      %v5772 = vld [vmem:[#allocation2 + $0x6e] sm:$0xff]
      %v5773 = vld [vmem:[#allocation2 + $0x76] sm:$0xff]
      %v5774 = vld [vmem:[#allocation2 + $0x7e] sm:$0xff]
      %v5775 = vld [vmem:[#allocation2 + $0x86] sm:$0xff]
      %v5776 = vld [vmem:[#allocation2 + $0x8e] sm:$0xff]
      %v5777 = vld [vmem:[#allocation2 + $0x96] sm:$0xff]
      %v5778 = vld [vmem:[#allocation2 + $0x9e] sm:$0xff]
      %v5779 = vld [vmem:[#allocation2 + $0xa6] sm:$0xff]
      %v5780 = vld [vmem:[#allocation2 + $0xae] sm:$0xff]
      %v5781 = vld [vmem:[#allocation2 + $0xb6] sm:$0xff]
      %v5782 = vld [vmem:[#allocation2 + $0xbe] sm:$0xff]
      %v5783 = vld [vmem:[#allocation2 + $0xc6] sm:$0xff]
      %v5784 = vld [vmem:[#allocation2 + $0xce] sm:$0xff]
      %v5785 = vld [vmem:[#allocation2 + $0xd6] sm:$0xff]
      %v5786 = vld [vmem:[#allocation2 + $0xde] sm:$0xff]
      %v5787 = vld [vmem:[#allocation2 + $0xe6] sm:$0xff]
      %v5788 = vld [vmem:[#allocation2 + $0xee] sm:$0xff]
      %v5789 = vld [vmem:[#allocation2 + $0xf6] sm:$0xff]
      %v5790 = vld [vmem:[#allocation2 + $0xfe] sm:$0xff]
      %v5791 = vld [vmem:[#allocation2 + $0x106] sm:$0xff]
      %v5792 = vld [vmem:[#allocation2 + $0x10e] sm:$0xff]
      %v5793 = vld [vmem:[#allocation2 + $0x116] sm:$0xff]
      %v5794 = vld [vmem:[#allocation2 + $0x11e] sm:$0xff]
      %v5795 = vld [vmem:[#allocation2 + $0x126] sm:$0xff]
      %v5796 = vld [vmem:[#allocation2 + $0x12e] sm:$0xff]
      %v5797 = vld [vmem:[#allocation2 + $0x136] sm:$0xff]
      %v5798 = vld [vmem:[#allocation2 + $0x13e] sm:$0xff]
      %s5799 = scalar_lea.vmem %s9, 64
      %v5800 = vld [vmem:[%s5799] sm:$0xff]
      %v5802 = vsel %vm2343, %v5763, 0
      %v5805 = vsel %vm2343, %v5764, 0
      %v5808 = vsel %vm2343, %v5765, 0
      %v5811 = vsel %vm2343, %v5766, 0
      %v5814 = vsel %vm2343, %v5767, 0
      %v5817 = vsel %vm2343, %v5768, 0
      %v5820 = vsel %vm2343, %v5769, 0
      %v5823 = vsel %vm2343, %v5770, 0
      %v5826 = vsel %vm2343, %v5771, 0
      %v5829 = vsel %vm2343, %v5772, 0
      %v5832 = vsel %vm2343, %v5773, 0
      %v5835 = vsel %vm2343, %v5774, 0
      %v5838 = vsel %vm2343, %v5775, 0
      %v5841 = vsel %vm2343, %v5776, 0
      %v5844 = vsel %vm2343, %v5777, 0
      %v5847 = vsel %vm2343, %v5778, 0
      %v5850 = vsel %vm2343, %v5779, 0
      %v5853 = vsel %vm2343, %v5780, 0
      %v5856 = vsel %vm2343, %v5781, 0
      %v5859 = vsel %vm2343, %v5782, 0
      %v5862 = vsel %vm2343, %v5783, 0
      %v5865 = vsel %vm2343, %v5784, 0
      %v5868 = vsel %vm2343, %v5785, 0
      %v5871 = vsel %vm2343, %v5786, 0
      %v5874 = vsel %vm2343, %v5787, 0
      %v5877 = vsel %vm2343, %v5788, 0
      %v5880 = vsel %vm2343, %v5789, 0
      %v5883 = vsel %vm2343, %v5790, 0
      %v5886 = vsel %vm2343, %v5791, 0
      %v5889 = vsel %vm2343, %v5792, 0
      %v5892 = vsel %vm2343, %v5793, 0
      %v5895 = vsel %vm2343, %v5794, 0
      %v5898 = vsel %vm2343, %v5795, 0
      %v5901 = vsel %vm2343, %v5796, 0
      %v5904 = vsel %vm2343, %v5797, 0
      %v5907 = vsel %vm2343, %v5798, 0
      %5909 = vmatprep.subr.mxu0 0.0
      %5910 = vmatpush1.msra.mxu0 %v5800
      %5911 = vmatprep.subr.mxu0 0.0
      %5912 = vmatpush1.msra.mxu0 0.0
      %5913 = vmatprep.subr.mxu0 0.0
      %5914 = vmatpush1.msra.mxu0 0.0
      %5915 = vmatprep.subr.mxu0 0.0
      %5916 = vmatpush1.msra.mxu0 0.0
      %5917 = vmatprep.subr.mxu0 0.0
      %5918 = vmatpush1.msra.mxu0 0.0
      %5919 = vmatprep.subr.mxu0 0.0
      %5920 = vmatpush1.msra.mxu0 0.0
      %5921 = vmatprep.subr.mxu0 0.0
      %5922 = vmatpush1.msra.mxu0 0.0
      %5923 = vmatprep.subr.mxu0 0.0
      %5924 = vmatpush1.msra.mxu0 0.0
      %5925 = vmatprep.subr.mxu0 0.0
      %5926 = vmatpush1.msra.mxu0 0.0
      %5927 = vmatprep.subr.mxu0 0.0
      %5928 = vmatpush1.msra.mxu0 0.0
      %5929 = vmatprep.subr.mxu0 0.0
      %5930 = vmatpush1.msra.mxu0 0.0
      %5931 = vmatprep.subr.mxu0 0.0
      %5932 = vmatpush1.msra.mxu0 0.0
      %5933 = vmatprep.subr.mxu0 0.0
      %5934 = vmatpush1.msra.mxu0 0.0
      %5935 = vmatprep.subr.mxu0 0.0
      %5936 = vmatpush1.msra.mxu0 0.0
      %5937 = vmatprep.subr.mxu0 0.0
      %5938 = vmatpush1.msra.mxu0 0.0
      %5939 = vmatprep.subr.mxu0 0.0
      %5940 = vmatpush1.msra.mxu0 0.0
      %5941 = vmatprep.subr.mxu0 0.0
      %5942 = vmatpush1.msra.mxu0 0.0
      %5943 = vmatprep.subr.mxu0 0.0
      %5944 = vmatpush1.msra.mxu0 0.0
      %5945 = vmatprep.subr.mxu0 0.0
      %5946 = vmatpush1.msra.mxu0 0.0
      %5947 = vmatprep.subr.mxu0 0.0
      %5948 = vmatpush1.msra.mxu0 0.0
      %5949 = vmatprep.subr.mxu0 0.0
      %5950 = vmatpush1.msra.mxu0 0.0
      %5951 = vmatprep.subr.mxu0 0.0
      %5952 = vmatpush1.msra.mxu0 0.0
      %5953 = vmatprep.subr.mxu0 0.0
      %5954 = vmatpush1.msra.mxu0 0.0
      %5955 = vmatprep.subr.mxu0 0.0
      %5956 = vmatpush1.msra.mxu0 0.0
      %5957 = vmatprep.subr.mxu0 0.0
      %5958 = vmatpush1.msra.mxu0 0.0
      %5959 = vmatprep.subr.mxu0 0.0
      %5960 = vmatpush1.msra.mxu0 0.0
      %5961 = vmatprep.subr.mxu0 0.0
      %5962 = vmatpush1.msra.mxu0 0.0
      %5963 = vmatprep.subr.mxu0 0.0
      %5964 = vmatpush1.msra.mxu0 0.0
      %5965 = vmatprep.subr.mxu0 0.0
      %5966 = vmatpush1.msra.mxu0 0.0
      %5967 = vmatprep.subr.mxu0 0.0
      %5968 = vmatpush1.msra.mxu0 0.0
      %5969 = vmatprep.subr.mxu0 0.0
      %5970 = vmatpush1.msra.mxu0 0.0
      %5971 = vmatprep.subr.mxu0 0.0
      %5972 = vmatpush1.msra.mxu0 0.0
      %5973 = vmatprep.mubr.f32.mxu0 0.0
      %5974 = vmatmul.mubr.f32.gmra.mrb[0].mxu0 %v5802
      %v5975 = vpop.f32.mrb[0].mxu0
      %v5976 = vadd.f32 0.0, %v5975
      %v5977 = vpop.f32.mrb[0].mxu0
      %5978 = vmatprep.mubr.f32.mxu0 0.0
      %5979 = vmatmul.mubr.f32.gmra.mrb[0].mxu0 %v5805
      %v5980 = vpop.f32.mrb[0].mxu0
      %v5981 = vadd.f32 0.0, %v5980
      %v5982 = vpop.f32.mrb[0].mxu0
      %5983 = vmatprep.mubr.f32.mxu0 0.0
      %5984 = vmatmul.mubr.f32.gmra.mrb[0].mxu0 %v5808
      %v5985 = vpop.f32.mrb[0].mxu0
      %v5986 = vadd.f32 0.0, %v5985
      %v5987 = vpop.f32.mrb[0].mxu0
      %5988 = vmatprep.mubr.f32.mxu0 0.0
      %5989 = vmatmul.mubr.f32.gmra.mrb[0].mxu0 %v5811
      %v5990 = vpop.f32.mrb[0].mxu0
      %v5991 = vadd.f32 0.0, %v5990
      %v5992 = vpop.f32.mrb[0].mxu0
      %5993 = vmatprep.mubr.f32.mxu0 0.0
      %5994 = vmatmul.mubr.f32.gmra.mrb[0].mxu0 %v5814
      %v5995 = vpop.f32.mrb[0].mxu0
      %v5996 = vadd.f32 0.0, %v5995
      %v5997 = vpop.f32.mrb[0].mxu0
      %5998 = vmatprep.mubr.f32.mxu0 0.0
      %5999 = vmatmul.mubr.f32.gmra.mrb[0].mxu0 %v5817
      %v6000 = vpop.f32.mrb[0].mxu0
      %v6001 = vadd.f32 0.0, %v6000
      %v6002 = vpop.f32.mrb[0].mxu0
      %6003 = vmatprep.mubr.f32.mxu0 0.0
      %6004 = vmatmul.mubr.f32.gmra.mrb[0].mxu0 %v5820
      %v6005 = vpop.f32.mrb[0].mxu0
      %v6006 = vadd.f32 0.0, %v6005
      %v6007 = vpop.f32.mrb[0].mxu0
      %6008 = vmatprep.mubr.f32.mxu0 0.0
      %6009 = vmatmul.mubr.f32.gmra.mrb[0].mxu0 %v5823
      %v6010 = vpop.f32.mrb[0].mxu0
      %v6011 = vadd.f32 0.0, %v6010
      %v6012 = vpop.f32.mrb[0].mxu0
      %6013 = vmatprep.mubr.f32.mxu0 0.0
      %6014 = vmatmul.mubr.f32.gmra.mrb[0].mxu0 %v5826
      %v6015 = vpop.f32.mrb[0].mxu0
      %v6016 = vadd.f32 0.0, %v6015
      %v6017 = vpop.f32.mrb[0].mxu0
      %6018 = vmatprep.mubr.f32.mxu0 0.0
      %6019 = vmatmul.mubr.f32.gmra.mrb[0].mxu0 %v5829
      %v6020 = vpop.f32.mrb[0].mxu0
      %v6021 = vadd.f32 0.0, %v6020
      %v6022 = vpop.f32.mrb[0].mxu0
      %6023 = vmatprep.mubr.f32.mxu0 0.0
      %6024 = vmatmul.mubr.f32.gmra.mrb[0].mxu0 %v5832
      %v6025 = vpop.f32.mrb[0].mxu0
      %v6026 = vadd.f32 0.0, %v6025
      %v6027 = vpop.f32.mrb[0].mxu0
      %6028 = vmatprep.mubr.f32.mxu0 0.0
      %6029 = vmatmul.mubr.f32.gmra.mrb[0].mxu0 %v5835
      %v6030 = vpop.f32.mrb[0].mxu0
      %v6031 = vadd.f32 0.0, %v6030
      %v6032 = vpop.f32.mrb[0].mxu0
      %6033 = vmatprep.mubr.f32.mxu0 0.0
      %6034 = vmatmul.mubr.f32.gmra.mrb[0].mxu0 %v5838
      %v6035 = vpop.f32.mrb[0].mxu0
      %v6036 = vadd.f32 0.0, %v6035
      %v6037 = vpop.f32.mrb[0].mxu0
      %6038 = vmatprep.mubr.f32.mxu0 0.0
      %6039 = vmatmul.mubr.f32.gmra.mrb[0].mxu0 %v5841
      %v6040 = vpop.f32.mrb[0].mxu0
      %v6041 = vadd.f32 0.0, %v6040
      %v6042 = vpop.f32.mrb[0].mxu0
      %6043 = vmatprep.mubr.f32.mxu0 0.0
      %6044 = vmatmul.mubr.f32.gmra.mrb[0].mxu0 %v5844
      %v6045 = vpop.f32.mrb[0].mxu0
      %v6046 = vadd.f32 0.0, %v6045
      %v6047 = vpop.f32.mrb[0].mxu0
      %6048 = vmatprep.mubr.f32.mxu0 0.0
      %6049 = vmatmul.mubr.f32.gmra.mrb[0].mxu0 %v5847
      %v6050 = vpop.f32.mrb[0].mxu0
      %v6051 = vadd.f32 0.0, %v6050
      %v6052 = vpop.f32.mrb[0].mxu0
      %6053 = vmatprep.mubr.f32.mxu0 0.0
      %6054 = vmatmul.mubr.f32.gmra.mrb[0].mxu0 %v5850
      %v6055 = vpop.f32.mrb[0].mxu0
      %v6056 = vadd.f32 0.0, %v6055
      %v6057 = vpop.f32.mrb[0].mxu0
      %6058 = vmatprep.mubr.f32.mxu0 0.0
      %6059 = vmatmul.mubr.f32.gmra.mrb[0].mxu0 %v5853
      %v6060 = vpop.f32.mrb[0].mxu0
      %v6061 = vadd.f32 0.0, %v6060
      %v6062 = vpop.f32.mrb[0].mxu0
      %6063 = vmatprep.mubr.f32.mxu0 0.0
      %6064 = vmatmul.mubr.f32.gmra.mrb[0].mxu0 %v5856
      %v6065 = vpop.f32.mrb[0].mxu0
      %v6066 = vadd.f32 0.0, %v6065
      %v6067 = vpop.f32.mrb[0].mxu0
      %6068 = vmatprep.mubr.f32.mxu0 0.0
      %6069 = vmatmul.mubr.f32.gmra.mrb[0].mxu0 %v5859
      %v6070 = vpop.f32.mrb[0].mxu0
      %v6071 = vadd.f32 0.0, %v6070
      %v6072 = vpop.f32.mrb[0].mxu0
      %6073 = vmatprep.mubr.f32.mxu0 0.0
      %6074 = vmatmul.mubr.f32.gmra.mrb[0].mxu0 %v5862
      %v6075 = vpop.f32.mrb[0].mxu0
      %v6076 = vadd.f32 0.0, %v6075
      %v6077 = vpop.f32.mrb[0].mxu0
      %6078 = vmatprep.mubr.f32.mxu0 0.0
      %6079 = vmatmul.mubr.f32.gmra.mrb[0].mxu0 %v5865
      %v6080 = vpop.f32.mrb[0].mxu0
      %v6081 = vadd.f32 0.0, %v6080
      %v6082 = vpop.f32.mrb[0].mxu0
      %6083 = vmatprep.mubr.f32.mxu0 0.0
      %6084 = vmatmul.mubr.f32.gmra.mrb[0].mxu0 %v5868
      %v6085 = vpop.f32.mrb[0].mxu0
      %v6086 = vadd.f32 0.0, %v6085
      %v6087 = vpop.f32.mrb[0].mxu0
      %6088 = vmatprep.mubr.f32.mxu0 0.0
      %6089 = vmatmul.mubr.f32.gmra.mrb[0].mxu0 %v5871
      %v6090 = vpop.f32.mrb[0].mxu0
      %v6091 = vadd.f32 0.0, %v6090
      %v6092 = vpop.f32.mrb[0].mxu0
      %6093 = vmatprep.mubr.f32.mxu0 0.0
      %6094 = vmatmul.mubr.f32.gmra.mrb[0].mxu0 %v5874
      %v6095 = vpop.f32.mrb[0].mxu0
      %v6096 = vadd.f32 0.0, %v6095
      %v6097 = vpop.f32.mrb[0].mxu0
      %6098 = vmatprep.mubr.f32.mxu0 0.0
      %6099 = vmatmul.mubr.f32.gmra.mrb[0].mxu0 %v5877
      %v6100 = vpop.f32.mrb[0].mxu0
      %v6101 = vadd.f32 0.0, %v6100
      %v6102 = vpop.f32.mrb[0].mxu0
      %6103 = vmatprep.mubr.f32.mxu0 0.0
      %6104 = vmatmul.mubr.f32.gmra.mrb[0].mxu0 %v5880
      %v6105 = vpop.f32.mrb[0].mxu0
      %v6106 = vadd.f32 0.0, %v6105
      %v6107 = vpop.f32.mrb[0].mxu0
      %6108 = vmatprep.mubr.f32.mxu0 0.0
      %6109 = vmatmul.mubr.f32.gmra.mrb[0].mxu0 %v5883
      %v6110 = vpop.f32.mrb[0].mxu0
      %v6111 = vadd.f32 0.0, %v6110
      %v6112 = vpop.f32.mrb[0].mxu0
      %6113 = vmatprep.mubr.f32.mxu0 0.0
      %6114 = vmatmul.mubr.f32.gmra.mrb[0].mxu0 %v5886
      %v6115 = vpop.f32.mrb[0].mxu0
      %v6116 = vadd.f32 0.0, %v6115
      %v6117 = vpop.f32.mrb[0].mxu0
      %6118 = vmatprep.mubr.f32.mxu0 0.0
      %6119 = vmatmul.mubr.f32.gmra.mrb[0].mxu0 %v5889
      %v6120 = vpop.f32.mrb[0].mxu0
      %v6121 = vadd.f32 0.0, %v6120
      %v6122 = vpop.f32.mrb[0].mxu0
      %6123 = vmatprep.mubr.f32.mxu0 0.0
      %6124 = vmatmul.mubr.f32.gmra.mrb[0].mxu0 %v5892
      %v6125 = vpop.f32.mrb[0].mxu0
      %v6126 = vadd.f32 0.0, %v6125
      %v6127 = vpop.f32.mrb[0].mxu0
      %6128 = vmatprep.mubr.f32.mxu0 0.0
      %6129 = vmatmul.mubr.f32.gmra.mrb[0].mxu0 %v5895
      %v6130 = vpop.f32.mrb[0].mxu0
      %v6131 = vadd.f32 0.0, %v6130
      %v6132 = vpop.f32.mrb[0].mxu0
      %6133 = vmatprep.mubr.f32.mxu0 0.0
      %6134 = vmatmul.mubr.f32.gmra.mrb[0].mxu0 %v5898
      %v6135 = vpop.f32.mrb[0].mxu0
      %v6136 = vadd.f32 0.0, %v6135
      %v6137 = vpop.f32.mrb[0].mxu0
      %6138 = vmatprep.mubr.f32.mxu0 0.0
      %6139 = vmatmul.mubr.f32.gmra.mrb[0].mxu0 %v5901
      %v6140 = vpop.f32.mrb[0].mxu0
      %v6141 = vadd.f32 0.0, %v6140
      %v6142 = vpop.f32.mrb[0].mxu0
      %6143 = vmatprep.mubr.f32.mxu0 0.0
      %6144 = vmatmul.mubr.f32.gmra.mrb[0].mxu0 %v5904
      %v6145 = vpop.f32.mrb[0].mxu0
      %v6146 = vadd.f32 0.0, %v6145
      %v6147 = vpop.f32.mrb[0].mxu0
      %6148 = vmatprep.mubr.f32.mxu0 0.0
      %6149 = vmatmul.mubr.f32.gmra.mrb[0].mxu0 %v5907
      %v6150 = vpop.f32.mrb[0].mxu0
      %v6151 = vadd.f32 0.0, %v6150
      %v6152 = vpop.f32.mrb[0].mxu0
      %6153 = vdwg.mxu0
      %v6154 = vadd.f32 %v5727, %v5976
      %v6155 = vadd.f32 %v5728, %v5981
      %v6156 = vadd.f32 %v5729, %v5986
      %v6157 = vadd.f32 %v5730, %v5991
      %v6158 = vadd.f32 %v5731, %v5996
      %v6159 = vadd.f32 %v5732, %v6001
      %v6160 = vadd.f32 %v5733, %v6006
      %v6161 = vadd.f32 %v5734, %v6011
      %v6162 = vadd.f32 %v5735, %v6016
      %v6163 = vadd.f32 %v5736, %v6021
      %v6164 = vadd.f32 %v5737, %v6026
      %v6165 = vadd.f32 %v5738, %v6031
      %v6166 = vadd.f32 %v5739, %v6036
      %v6167 = vadd.f32 %v5740, %v6041
      %v6168 = vadd.f32 %v5741, %v6046
      %v6169 = vadd.f32 %v5742, %v6051
      %v6170 = vadd.f32 %v5743, %v6056
      %v6171 = vadd.f32 %v5744, %v6061
      %v6172 = vadd.f32 %v5745, %v6066
      %v6173 = vadd.f32 %v5746, %v6071
      %v6174 = vadd.f32 %v5747, %v6076
      %v6175 = vadd.f32 %v5748, %v6081
      %v6176 = vadd.f32 %v5749, %v6086
      %v6177 = vadd.f32 %v5750, %v6091
      %v6178 = vadd.f32 %v5751, %v6096
      %v6179 = vadd.f32 %v5752, %v6101
      %v6180 = vadd.f32 %v5753, %v6106
      %v6181 = vadd.f32 %v5754, %v6111
      %v6182 = vadd.f32 %v5755, %v6116
      %v6183 = vadd.f32 %v5756, %v6121
      %v6184 = vadd.f32 %v5757, %v6126
      %v6185 = vadd.f32 %v5758, %v6131
      %v6186 = vadd.f32 %v5759, %v6136
      %v6187 = vadd.f32 %v5760, %v6141
      %v6188 = vadd.f32 %v5761, %v6146
      %v6189 = vadd.f32 %v5762, %v6151
      %v6190 = vld [vmem:[%s10] sm:$0x1]
      %v6192 = vlaneseq
      %v6193 = vshrl.u32 %v6192, 7
      %v6194 = vsub.s32 0, %v6193
      %v6195 = vrot.slane %v6190, %v6194
      %v6197 = vadd.f32 %v6154, %v6195
      %v6198 = vadd.f32 %v6155, %v6195
      %v6199 = vadd.f32 %v6156, %v6195
      %v6200 = vadd.f32 %v6157, %v6195
      %v6201 = vadd.f32 %v6158, %v6195
      %v6202 = vadd.f32 %v6159, %v6195
      %v6203 = vadd.f32 %v6160, %v6195
      %v6204 = vadd.f32 %v6161, %v6195
      %v6205 = vadd.f32 %v6162, %v6195
      %v6206 = vadd.f32 %v6163, %v6195
      %v6207 = vadd.f32 %v6164, %v6195
      %v6208 = vadd.f32 %v6165, %v6195
      %v6209 = vadd.f32 %v6166, %v6195
      %v6210 = vadd.f32 %v6167, %v6195
      %v6211 = vadd.f32 %v6168, %v6195
      %v6212 = vadd.f32 %v6169, %v6195
      %v6213 = vadd.f32 %v6170, %v6195
      %v6214 = vadd.f32 %v6171, %v6195
      %v6215 = vadd.f32 %v6172, %v6195
      %v6216 = vadd.f32 %v6173, %v6195
      %v6217 = vadd.f32 %v6174, %v6195
      %v6218 = vadd.f32 %v6175, %v6195
      %v6219 = vadd.f32 %v6176, %v6195
      %v6220 = vadd.f32 %v6177, %v6195
      %v6221 = vadd.f32 %v6178, %v6195
      %v6222 = vadd.f32 %v6179, %v6195
      %v6223 = vadd.f32 %v6180, %v6195
      %v6224 = vadd.f32 %v6181, %v6195
      %v6225 = vadd.f32 %v6182, %v6195
      %v6226 = vadd.f32 %v6183, %v6195
      %v6227 = vadd.f32 %v6184, %v6195
      %v6228 = vadd.f32 %v6185, %v6195
      %v6229 = vadd.f32 %v6186, %v6195
      %v6230 = vadd.f32 %v6187, %v6195
      %v6231 = vadd.f32 %v6188, %v6195
      %v6232 = vadd.f32 %v6189, %v6195
      %vm6233 = vcmask 97280
      %6234 = vst.msk [vmem:[%s545] sm:$0xff] %vm6233, %v6197
      %6235 = vst.msk [vmem:[%s545 + $0x8] sm:$0xff] %vm6233, %v6198
      %6236 = vst.msk [vmem:[%s545 + $0x10] sm:$0xff] %vm6233, %v6199
      %6237 = vst.msk [vmem:[%s545 + $0x18] sm:$0xff] %vm6233, %v6200
      %6238 = vst.msk [vmem:[%s545 + $0x20] sm:$0xff] %vm6233, %v6201
      %6239 = vst.msk [vmem:[%s545 + $0x28] sm:$0xff] %vm6233, %v6202
      %6240 = vst.msk [vmem:[%s545 + $0x30] sm:$0xff] %vm6233, %v6203
      %6241 = vst.msk [vmem:[%s545 + $0x38] sm:$0xff] %vm6233, %v6204
      %6242 = vst.msk [vmem:[%s545 + $0x40] sm:$0xff] %vm6233, %v6205
      %6243 = vst.msk [vmem:[%s545 + $0x48] sm:$0xff] %vm6233, %v6206
      %6244 = vst.msk [vmem:[%s545 + $0x50] sm:$0xff] %vm6233, %v6207
      %6245 = vst.msk [vmem:[%s545 + $0x58] sm:$0xff] %vm6233, %v6208
      %6246 = vst.msk [vmem:[%s545 + $0x60] sm:$0xff] %vm6233, %v6209
      %6247 = vst.msk [vmem:[%s545 + $0x68] sm:$0xff] %vm6233, %v6210
      %6248 = vst.msk [vmem:[%s545 + $0x70] sm:$0xff] %vm6233, %v6211
      %6249 = vst.msk [vmem:[%s545 + $0x78] sm:$0xff] %vm6233, %v6212
      %6250 = vst.msk [vmem:[%s545 + $0x80] sm:$0xff] %vm6233, %v6213
      %6251 = vst.msk [vmem:[%s545 + $0x88] sm:$0xff] %vm6233, %v6214
      %6252 = vst.msk [vmem:[%s545 + $0x90] sm:$0xff] %vm6233, %v6215
      %6253 = vst.msk [vmem:[%s545 + $0x98] sm:$0xff] %vm6233, %v6216
      %6254 = vst.msk [vmem:[%s545 + $0xa0] sm:$0xff] %vm6233, %v6217
      %6255 = vst.msk [vmem:[%s545 + $0xa8] sm:$0xff] %vm6233, %v6218
      %6256 = vst.msk [vmem:[%s545 + $0xb0] sm:$0xff] %vm6233, %v6219
      %6257 = vst.msk [vmem:[%s545 + $0xb8] sm:$0xff] %vm6233, %v6220
      %6258 = vst.msk [vmem:[%s545 + $0xc0] sm:$0xff] %vm6233, %v6221
      %6259 = vst.msk [vmem:[%s545 + $0xc8] sm:$0xff] %vm6233, %v6222
      %6260 = vst.msk [vmem:[%s545 + $0xd0] sm:$0xff] %vm6233, %v6223
      %6261 = vst.msk [vmem:[%s545 + $0xd8] sm:$0xff] %vm6233, %v6224
      %6262 = vst.msk [vmem:[%s545 + $0xe0] sm:$0xff] %vm6233, %v6225
      %6263 = vst.msk [vmem:[%s545 + $0xe8] sm:$0xff] %vm6233, %v6226
      %6264 = vst.msk [vmem:[%s545 + $0xf0] sm:$0xff] %vm6233, %v6227
      %6265 = vst.msk [vmem:[%s545 + $0xf8] sm:$0xff] %vm6233, %v6228
      %6266 = vst.msk [vmem:[%s545 + $0x100] sm:$0xff] %vm6233, %v6229
      %6267 = vst.msk [vmem:[%s545 + $0x108] sm:$0xff] %vm6233, %v6230
      %6268 = vst.msk [vmem:[%s545 + $0x110] sm:$0xff] %vm6233, %v6231
      %6269 = vst.msk [vmem:[%s545 + $0x118] sm:$0xff] %vm6233, %v6232
      %p6270 = scmp.lt.s32.totalorder %s25, 1
      %s6271 = scalar_select %p6270, %s25, 1
      %s6272 = smul.addr %s6271, 8
      %s6273 = smul.addr %s6272, 8
      %s6274 = scalar_lea.vmem %s11, %s6273
      %p6275 = scmp.lt.s32.totalorder %s25, 1
      %s6276 = scalar_select %p6275, %s25, 1
      %s6277 = smul.addr %s6276, 8
      %s6278 = smul.addr %s6277, 8
      %s6279 = scalar_lea.vmem %s12, %s6278
      %p6280 = scmp.lt.s32.totalorder %s25, 1
      %s6281 = scalar_select %p6280, %s25, 1
      %s6282 = smul.addr %s6281, 36
      %s6283 = smul.addr %s6282, 8
      %s6284 = scalar_lea.vmem %s13, %s6283
      // Predicated region
      $region65: #{reduction_a_forward.2} parent=63 // pred_check
        %p6285 = pneg %p299
      $region66: #{reduction_a_forward.2} parent=63 // pred_check_branch
        %6287 = sbr.rel (%p6285) target = $region68
      $region67: #{reduction_a_forward.2} parent=63 // pred_region
        _
      $region68: #{reduction_a_forward.2} parent=63 // pred_fallthru
        _
      // Predicated region
      $region69: #{reduction_a_forward.2} parent=63 // pred_check
        %p6288 = pneg %p325
      $region70: #{reduction_a_forward.2} parent=63 // pred_check_branch
        %6290 = sbr.rel (%p6288) target = $region72
      $region71: #{reduction_a_forward.2} parent=63 // pred_region
        _
      $region72: #{reduction_a_forward.2} parent=63 // pred_fallthru
        _
      // Predicated region
      $region73: #{reduction_a_forward.2} parent=63 // pred_check
        %p6291 = pneg %p351
      $region74: #{reduction_a_forward.2} parent=63 // pred_check_branch
        %6293 = sbr.rel (%p6291) target = $region76
      $region75: #{reduction_a_forward.2} parent=63 // pred_region
        _
      $region76: #{reduction_a_forward.2} parent=63 // pred_fallthru
        _
    $region64: #{reduction_a_forward.2} parent=5 // pred_fallthru
      _
    %p6294 = scmp.le.s32.totalorder 2, %s20
    // Predicated region
    $region77: #{reduction_a_forward.2} parent=5 // pred_check
      %p6295 = pneg %p6294
    $region78: #{reduction_a_forward.2} parent=5 // pred_check_branch
      %6297 = sbr.rel (%p6295) target = $region80
    $region79: #{reduction_a_forward.2} parent=5 // pred_region
      %s6298 = ssub.s32 %s20, 2
      // Predicated region
      $region81: #{reduction_a_forward.2} parent=79 // pred_check
        %p6299 = pneg %p305
      $region82: #{reduction_a_forward.2} parent=79 // pred_check_branch
        %6301 = sbr.rel (%p6299) target = $region84
      $region83: #{reduction_a_forward.2} parent=79 // pred_region
        %p6302 = scmp.lt.s32.totalorder %s26, 1
        %s6303 = scalar_select %p6302, %s26, 1
        %s6304 = smul.addr %s6303, 8
        %s6305 = smul.addr %s6304, 8
        %s6306 = scalar_lea.vmem %s11, %s6305
      $region84: #{reduction_a_forward.2} parent=79 // pred_fallthru
        _
      // Predicated region
      $region85: #{reduction_a_forward.2} parent=79 // pred_check
        %p6307 = pneg %p331
      $region86: #{reduction_a_forward.2} parent=79 // pred_check_branch
        %6309 = sbr.rel (%p6307) target = $region88
      $region87: #{reduction_a_forward.2} parent=79 // pred_region
        %p6310 = scmp.lt.s32.totalorder %s26, 1
        %s6311 = scalar_select %p6310, %s26, 1
        %s6312 = smul.addr %s6311, 8
        %s6313 = smul.addr %s6312, 8
        %s6314 = scalar_lea.vmem %s12, %s6313
      $region88: #{reduction_a_forward.2} parent=79 // pred_fallthru
        _
      // Predicated region
      $region89: #{reduction_a_forward.2} parent=79 // pred_check
        %p6315 = pneg %p357
      $region90: #{reduction_a_forward.2} parent=79 // pred_check_branch
        %6317 = sbr.rel (%p6315) target = $region92
      $region91: #{reduction_a_forward.2} parent=79 // pred_region
        %p6318 = scmp.lt.s32.totalorder %s26, 1
        %s6319 = scalar_select %p6318, %s26, 1
        %s6320 = smul.addr %s6319, 36
        %s6321 = smul.addr %s6320, 8
        %s6322 = scalar_lea.vmem %s13, %s6321
      $region92: #{reduction_a_forward.2} parent=79 // pred_fallthru
        _
    $region80: #{reduction_a_forward.2} parent=5 // pred_fallthru
      _
  $region6: #{reduction_a_forward.2} parent=0 // loop_footer
    %s24 = sadd.s32 1, %s20
  $region7: #{reduction_a_forward.2} parent=0 // loop_footer_branch
    %19 = sbr.rel target = $region3
  $region8: #{reduction_a_forward.2} parent=0 // loop_exit
    _

</llo_original>
